<compile_context>
chip_gen: v7x
topology: tpu7x:2x2x1
jax: 0.10.0
libtpu: 0.0.40
codegen_flags: <defaults>
</compile_context>

<pallas_src>
import math

import jax
import jax.numpy as jnp
from jax.experimental import pallas as pl
from jax.experimental.pallas import tpu as pltpu

# ----------------------------- configuration --------------------------------
B = 2          # batch
T_DEC = 8      # decoder sequence length
T_ENC = 8      # encoder sequence length
F_IN = 4       # model_settings['f_in'][1]
H = 32         # num_hiddens
N_HEADS = 4
D_K = H // N_HEADS
N_LAYERS = 2   # model_settings['num_layers'][1]
EPS = 1e-6
NEG_INF = -1e9

M = B * T_DEC        # folded query rows
MK_ENC = B * T_ENC   # folded encoder rows
X0_PAD = 8           # x0 lane-padded width (matches the 8-row bw band)

# ------------------------- packed parameter-slab layout ----------------------
H3 = 3 * H                                   # slab width (96)
# top-level section (absolute row offsets)
R_BW, R_FW1, R_FW2 = 0, 8, 40                # bw (4 used / 8 rows), fw1, fw2
R_BB, R_FB1, R_FB2 = 72, 73, 74
R_N1A, R_N1B, R_N2A, R_N2B = 75, 76, 77, 78
TOP_ROWS = 80
# per-layer weight row offsets (relative to layer base; all 8-aligned)
LW_A1_QKV, LW_A2_KV = 0, 32                  # (32,96), (32,64)
LW_A1_O, LW_A2_Q, LW_A2_O = 64, 96, 128      # (32,32) each
LW_FF1, LW_FF2 = 160, 192                    # (32,32) each
LV = 224                                     # vector rows start
# vector row indices (relative to LV); each is one row of the slab
V_A1_BQKV, V_A2_BKV = 0, 1
V_A1_BO, V_A2_BQ, V_A2_BO = 2, 3, 4
V_FB1, V_FB2 = 5, 6
V_LN1A, V_LN1B, V_LN2A, V_LN2B, V_LN3A, V_LN3B = 7, 8, 9, 10, 11, 12
LAYER_ROWS = 240
PSLAB_ROWS = TOP_ROWS + N_LAYERS * LAYER_ROWS


# --------------------------- in-kernel helpers -------------------------------
def _layernorm(x, alpha, bias):
    """alpha * (x - mean) / (std_unbiased + eps) + bias  (torch .std default)."""
    n = x.shape[-1]
    mean = jnp.mean(x, axis=-1, keepdims=True)
    d = x - mean
    std = jnp.sqrt(jnp.sum(d * d, axis=-1, keepdims=True) * (1.0 / (n - 1)))
    inv = pl.reciprocal(std + EPS, approx=False)   # exact: keeps LN precision
    return alpha * (d * inv) + bias


def _mha(q, k, v, bias, wo, bo):
    """q:(Mq,H) (already scaled by 1/sqrt(d_k)); k,v:(Mk,H); bias:(Mq,Mk)."""
    kt = k.T                                             # ONE transpose per MHA
    av = []
    for h in range(N_HEADS):
        lo, hi = h * D_K, (h + 1) * D_K
        s = jnp.dot(q[:, lo:hi], kt[lo:hi, :],
                    preferred_element_type=jnp.float32) + bias      # (Mq, Mk)
        m = jnp.max(s, axis=-1, keepdims=True)
        p = jnp.exp(s - m)
        p = p * pl.reciprocal(jnp.sum(p, axis=-1, keepdims=True), approx=True)
        av.append(jnp.dot(p, v[:, lo:hi], preferred_element_type=jnp.float32))
    av = jnp.concatenate(av, axis=-1)                    # (Mq, H)
    return jnp.dot(av, wo, preferred_element_type=jnp.float32) + bo


def _fold_bias(mask_ref, tq, tk):
    """Build a (B*tq, B*tk) additive bias (0 / -1e9) from a (B,{1|tq},tk) mask.
    Also blocks cross-batch attention so batch can be folded into matmul rows."""
    blocked = jnp.full((tq, tk), NEG_INF, jnp.float32)
    rows = []
    for b in range(B):
        mb = jnp.broadcast_to(mask_ref[b], (tq, tk))
        keep = jnp.where(mb > 0.0, 0.0, NEG_INF).astype(jnp.float32)
        rows.append(jnp.concatenate(
            [keep if b2 == b else blocked for b2 in range(B)], axis=1))
    return jnp.concatenate(rows, axis=0)


# -------------------------------- the kernel ---------------------------------
def _decoder_kernel(x0_ref, enc_ref, dmask_ref, emask_ref, p_ref, out_ref):
    x0 = x0_ref[...]                    # (M, X0_PAD)   zero-padded features
    enc = enc_ref[...]                  # (MK_ENC, H)
    d_bias = _fold_bias(dmask_ref, T_DEC, T_DEC)     # (M, M)
    e_bias = _fold_bias(emask_ref, T_DEC, T_ENC)     # (M, MK_ENC)

    def w(r, rows, cols):               # weight band
        return p_ref[r:r + rows, 0:cols]

    def vec(r, cols):                   # one bias / norm row -> (1, cols)
        return p_ref[r:r + 1, 0:cols]

    # ---- top level: broadcast Linear -> norm1 -> FeedForward ----
    y = jnp.dot(x0, w(R_BW, X0_PAD, H),
                preferred_element_type=jnp.float32) + vec(R_BB, H)
    y = _layernorm(y, vec(R_N1A, H), vec(R_N1B, H))
    hdn = jnp.maximum(jnp.dot(y, w(R_FW1, H, H),
                              preferred_element_type=jnp.float32)
                      + vec(R_FB1, H), 0.0)
    y = jnp.dot(hdn, w(R_FW2, H, H),
                preferred_element_type=jnp.float32) + vec(R_FB2, H)

    # ---- decoder blocks (unrolled; everything resident in VMEM) ----
    for l in range(N_LAYERS):
        base = TOP_ROWS + l * LAYER_ROWS
        vb = base + LV

        # masked self-attention + residual + norm1 (fused QKV projection)
        qkv = jnp.dot(y, w(base + LW_A1_QKV, H, 3 * H),
                      preferred_element_type=jnp.float32) + vec(vb + V_A1_BQKV, 3 * H)
        y = y + _mha(qkv[:, 0:H], qkv[:, H:2 * H], qkv[:, 2 * H:3 * H], d_bias,
                     w(base + LW_A1_O, H, H), vec(vb + V_A1_BO, H))
        y = _layernorm(y, vec(vb + V_LN1A, H), vec(vb + V_LN1B, H))

        # cross-attention over encoder output + residual + norm2 (fused KV)
        q = jnp.dot(y, w(base + LW_A2_Q, H, H),
                    preferred_element_type=jnp.float32) + vec(vb + V_A2_BQ, H)
        kv = jnp.dot(enc, w(base + LW_A2_KV, H, 2 * H),
                     preferred_element_type=jnp.float32) + vec(vb + V_A2_BKV, 2 * H)
        y = y + _mha(q, kv[:, 0:H], kv[:, H:2 * H], e_bias,
                     w(base + LW_A2_O, H, H), vec(vb + V_A2_BO, H))
        y = _layernorm(y, vec(vb + V_LN2A, H), vec(vb + V_LN2B, H))

        # feed-forward + residual + norm3
        hdn = jnp.maximum(jnp.dot(y, w(base + LW_FF1, H, H),
                                  preferred_element_type=jnp.float32)
                          + vec(vb + V_FB1, H), 0.0)
        y = y + jnp.dot(hdn, w(base + LW_FF2, H, H),
                        preferred_element_type=jnp.float32) + vec(vb + V_FB2, H)
        y = _layernorm(y, vec(vb + V_LN3A, H), vec(vb + V_LN3B, H))

    # final norm2 of the TransformerDecoder
    out_ref[...] = _layernorm(y, vec(R_N2A, H), vec(R_N2B, H))


# ------------------------------ wrapper / glue --------------------------------
@jax.jit
def transformer_decoder_forward(pslab, y_t, e_output, e_mask, d_mask):
    # y_t: (B, F_IN, T_DEC) -> (B, T_DEC, F_IN) -> (M, F_IN) -> lane-pad to 8
    x0 = jnp.swapaxes(y_t, -1, -2).reshape(M, F_IN)
    x0 = jnp.pad(x0, ((0, 0), (0, X0_PAD - F_IN)))
    enc = e_output.reshape(MK_ENC, H)
    dm = d_mask.astype(jnp.float32)
    em = e_mask.astype(jnp.float32)

    out = pl.pallas_call(
        _decoder_kernel,
        out_shape=jax.ShapeDtypeStruct((M, H), jnp.float32),
        in_specs=[pl.BlockSpec(memory_space=pltpu.MemorySpace.VMEM)] * 5,
        out_specs=pl.BlockSpec(memory_space=pltpu.MemorySpace.VMEM),
    )(x0, enc, dm, em, pslab)
    return out.reshape(B, T_DEC, H)


# ------------------------------- parameters ----------------------------------
def _dense(key, din, dout):
    kw, kb = jax.random.split(key)
    return (jax.random.normal(kw, (din, dout), jnp.float32) * 0.1,
            jax.random.normal(kb, (dout,), jnp.float32) * 0.1)


def init_params(key):
    """Build the single packed parameter slab (runs once, off the hot path)."""
    scale = 1.0 / math.sqrt(D_K)     # folded into Q projections
    p = jnp.zeros((PSLAB_ROWS, H3), jnp.float32)

    def put(slab, r, arr):
        arr = jnp.asarray(arr, jnp.float32)
        if arr.ndim == 1:
            arr = arr[None, :]
        return slab.at[r:r + arr.shape[0], :arr.shape[1]].set(arr)

    keys = jax.random.split(key, 2 + N_LAYERS)
    bw, bb = _dense(keys[0], F_IN, H)
    p = put(p, R_BW, bw)             # rows 4..7 of the bw band stay zero
    p = put(p, R_BB, bb)
    kf1, kf2 = jax.random.split(keys[1])
    fw1, fb1 = _dense(kf1, H, H)
    fw2, fb2 = _dense(kf2, H, H)
    p = put(p, R_FW1, fw1); p = put(p, R_FB1, fb1)
    p = put(p, R_FW2, fw2); p = put(p, R_FB2, fb2)
    p = put(p, R_N1A, jnp.ones(H)); p = put(p, R_N1B, jnp.zeros(H))
    p = put(p, R_N2A, jnp.ones(H)); p = put(p, R_N2B, jnp.zeros(H))

    for l in range(N_LAYERS):
        base = TOP_ROWS + l * LAYER_ROWS
        vb = base + LV
        lk = jax.random.split(keys[2 + l], 10)
        # self-attention (fused QKV; score scale folded into Q weight/bias)
        wq, bq = _dense(lk[0], H, H); wk, bk = _dense(lk[1], H, H)
        wv, bv = _dense(lk[2], H, H); wo, bo = _dense(lk[3], H, H)
        p = put(p, base + LW_A1_QKV, jnp.concatenate([wq * scale, wk, wv], 1))
        p = put(p, vb + V_A1_BQKV, jnp.concatenate([bq * scale, bk, bv], 0))
        p = put(p, base + LW_A1_O, wo); p = put(p, vb + V_A1_BO, bo)
        # cross-attention (separate Q, fused KV)
        wq, bq = _dense(lk[4], H, H); wk, bk = _dense(lk[5], H, H)
        wv, bv = _dense(lk[6], H, H); wo, bo = _dense(lk[7], H, H)
        p = put(p, base + LW_A2_Q, wq * scale); p = put(p, vb + V_A2_BQ, bq * scale)
        p = put(p, base + LW_A2_KV, jnp.concatenate([wk, wv], 1))
        p = put(p, vb + V_A2_BKV, jnp.concatenate([bk, bv], 0))
        p = put(p, base + LW_A2_O, wo); p = put(p, vb + V_A2_BO, bo)
        # feed-forward
        w1, b1 = _dense(lk[8], H, H); w2, b2 = _dense(lk[9], H, H)
        p = put(p, base + LW_FF1, w1); p = put(p, vb + V_FB1, b1)
        p = put(p, base + LW_FF2, w2); p = put(p, vb + V_FB2, b2)
        # norms
        for r in (V_LN1A, V_LN2A, V_LN3A):
            p = put(p, vb + r, jnp.ones(H))
        for r in (V_LN1B, V_LN2B, V_LN3B):
            p = put(p, vb + r, jnp.zeros(H))
    return p


# ---------------------------------- main --------------------------------------
if __name__ == "__main__":
    key = jax.random.PRNGKey(0)
    kp, ky, ke = jax.random.split(key, 3)
    pslab = init_params(kp)

    y_t = jax.random.normal(ky, (B, F_IN, T_DEC), jnp.float32)
    e_output = jax.random.normal(ke, (B, T_ENC, H), jnp.float32)
    e_mask = jnp.ones((B, 1, T_ENC), jnp.float32)                      # pad mask
    d_mask = jnp.broadcast_to(jnp.tril(jnp.ones((T_DEC, T_DEC), jnp.float32)),
                              (B, T_DEC, T_DEC))                       # causal

    out = transformer_decoder_forward(pslab, y_t, e_output, e_mask, d_mask)
    jax.block_until_ready(out)
    assert out.shape == (B, T_DEC, H) and out.dtype == jnp.float32
    assert bool(jnp.all(jnp.isfinite(out)))
    print("KERNEL_OK")
</pallas_src>

<mosaic_0001>
module attributes {stable_mosaic.version = 11 : i64} {
  func.func @_decoder_kernel(%arg0: memref<16x8xf32, #tpu.memory_space<vmem>>, %arg1: memref<16x32xf32, #tpu.memory_space<vmem>>, %arg2: memref<2x8x8xf32, #tpu.memory_space<vmem>>, %arg3: memref<2x1x8xf32, #tpu.memory_space<vmem>>, %arg4: memref<560x96xf32, #tpu.memory_space<vmem>>, %arg5: memref<16x32xf32, #tpu.memory_space<vmem>>) attributes {dimension_semantics = [], scalar_prefetch = 0 : i64, scratch_operands = 0 : i64, tpu.core_type = #tpu.core_type<tc>} {
    %c0 = arith.constant 0 : index
    %c0_0 = arith.constant 0 : index
    %0 = vector.load %arg0[%c0, %c0_0] : memref<16x8xf32, #tpu.memory_space<vmem>>, vector<16x8xf32>
    %c0_1 = arith.constant 0 : index
    %c0_2 = arith.constant 0 : index
    %1 = vector.load %arg1[%c0_1, %c0_2] : memref<16x32xf32, #tpu.memory_space<vmem>>, vector<16x32xf32>
    %cst = arith.constant -1.000000e+09 : f32
    %2 = vector.broadcast %cst : f32 to vector<8x8xf32>
    %c0_3 = arith.constant 0 : index
    %c0_4 = arith.constant 0 : index
    %c0_5 = arith.constant 0 : index
    %3 = vector.load %arg2[%c0_3, %c0_4, %c0_5] : memref<2x8x8xf32, #tpu.memory_space<vmem>>, vector<1x8x8xf32>
    %4 = vector.shape_cast %3 : vector<1x8x8xf32> to vector<8x8xf32>
    %cst_6 = arith.constant 0.000000e+00 : f32
    %5 = vector.broadcast %cst_6 : f32 to vector<8x8xf32>
    %6 = arith.cmpf ogt, %4, %5 : vector<8x8xf32>
    %cst_7 = arith.constant 0.000000e+00 : f32
    %cst_8 = arith.constant -1.000000e+09 : f32
    %7 = vector.broadcast %cst_7 : f32 to vector<8x8xf32>
    %8 = vector.broadcast %cst_8 : f32 to vector<8x8xf32>
    %9 = arith.select %6, %7, %8 : vector<8x8xi1>, vector<8x8xf32>
    %10 = tpu.concatenate %9, %2 in 1 : vector<8x8xf32>, vector<8x8xf32> -> vector<8x16xf32>
    %c1 = arith.constant 1 : index
    %c0_9 = arith.constant 0 : index
    %c0_10 = arith.constant 0 : index
    %11 = vector.load %arg2[%c1, %c0_9, %c0_10] : memref<2x8x8xf32, #tpu.memory_space<vmem>>, vector<1x8x8xf32>
    %12 = vector.shape_cast %11 : vector<1x8x8xf32> to vector<8x8xf32>
    %cst_11 = arith.constant 0.000000e+00 : f32
    %13 = vector.broadcast %cst_11 : f32 to vector<8x8xf32>
    %14 = arith.cmpf ogt, %12, %13 : vector<8x8xf32>
    %cst_12 = arith.constant 0.000000e+00 : f32
    %cst_13 = arith.constant -1.000000e+09 : f32
    %15 = vector.broadcast %cst_12 : f32 to vector<8x8xf32>
    %16 = vector.broadcast %cst_13 : f32 to vector<8x8xf32>
    %17 = arith.select %14, %15, %16 : vector<8x8xi1>, vector<8x8xf32>
    %18 = tpu.concatenate %2, %17 in 1 : vector<8x8xf32>, vector<8x8xf32> -> vector<8x16xf32>
    %19 = tpu.concatenate %10, %18 in 0 : vector<8x16xf32>, vector<8x16xf32> -> vector<16x16xf32>
    %cst_14 = arith.constant -1.000000e+09 : f32
    %20 = vector.broadcast %cst_14 : f32 to vector<8x8xf32>
    %c0_15 = arith.constant 0 : index
    %c0_16 = arith.constant 0 : index
    %c0_17 = arith.constant 0 : index
    %21 = vector.load %arg3[%c0_15, %c0_16, %c0_17] : memref<2x1x8xf32, #tpu.memory_space<vmem>>, vector<1x1x8xf32>
    %22 = vector.shape_cast %21 : vector<1x1x8xf32> to vector<1x8xf32>
    %23 = vector.shape_cast %22 : vector<1x8xf32> to vector<1x8xf32>
    %24 = vector.broadcast %23 : vector<1x8xf32> to vector<8x8xf32>
    %cst_18 = arith.constant 0.000000e+00 : f32
    %25 = vector.broadcast %cst_18 : f32 to vector<8x8xf32>
    %26 = arith.cmpf ogt, %24, %25 : vector<8x8xf32>
    %cst_19 = arith.constant 0.000000e+00 : f32
    %cst_20 = arith.constant -1.000000e+09 : f32
    %27 = vector.broadcast %cst_19 : f32 to vector<8x8xf32>
    %28 = vector.broadcast %cst_20 : f32 to vector<8x8xf32>
    %29 = arith.select %26, %27, %28 : vector<8x8xi1>, vector<8x8xf32>
    %30 = tpu.concatenate %29, %20 in 1 : vector<8x8xf32>, vector<8x8xf32> -> vector<8x16xf32>
    %c1_21 = arith.constant 1 : index
    %c0_22 = arith.constant 0 : index
    %c0_23 = arith.constant 0 : index
    %31 = vector.load %arg3[%c1_21, %c0_22, %c0_23] : memref<2x1x8xf32, #tpu.memory_space<vmem>>, vector<1x1x8xf32>
    %32 = vector.shape_cast %31 : vector<1x1x8xf32> to vector<1x8xf32>
    %33 = vector.shape_cast %32 : vector<1x8xf32> to vector<1x8xf32>
    %34 = vector.broadcast %33 : vector<1x8xf32> to vector<8x8xf32>
    %cst_24 = arith.constant 0.000000e+00 : f32
    %35 = vector.broadcast %cst_24 : f32 to vector<8x8xf32>
    %36 = arith.cmpf ogt, %34, %35 : vector<8x8xf32>
    %cst_25 = arith.constant 0.000000e+00 : f32
    %cst_26 = arith.constant -1.000000e+09 : f32
    %37 = vector.broadcast %cst_25 : f32 to vector<8x8xf32>
    %38 = vector.broadcast %cst_26 : f32 to vector<8x8xf32>
    %39 = arith.select %36, %37, %38 : vector<8x8xi1>, vector<8x8xf32>
    %40 = tpu.concatenate %20, %39 in 1 : vector<8x8xf32>, vector<8x8xf32> -> vector<8x16xf32>
    %41 = tpu.concatenate %30, %40 in 0 : vector<8x16xf32>, vector<8x16xf32> -> vector<16x16xf32>
    %c0_27 = arith.constant 0 : index
    %c0_28 = arith.constant 0 : index
    %42 = vector.load %arg4[%c0_27, %c0_28] : memref<560x96xf32, #tpu.memory_space<vmem>>, vector<8x32xf32>
    %cst_29 = arith.constant dense<0.000000e+00> : vector<16x32xf32>
    %43 = tpu.matmul %0, %42, %cst_29 {dimension_numbers = #tpu.dot_dimension_numbers<[1], [0], [0], [1], [0, 0, 1, 1], [], []>} : vector<16x8xf32>, vector<8x32xf32>, vector<16x32xf32> -> vector<16x32xf32>
    %c72 = arith.constant 72 : index
    %c0_30 = arith.constant 0 : index
    %44 = vector.load %arg4[%c72, %c0_30] : memref<560x96xf32, #tpu.memory_space<vmem>>, vector<1x32xf32>
    %45 = vector.broadcast %44 : vector<1x32xf32> to vector<16x32xf32>
    %46 = arith.addf %43, %45 : vector<16x32xf32>
    %c75 = arith.constant 75 : index
    %c0_31 = arith.constant 0 : index
    %47 = vector.load %arg4[%c75, %c0_31] : memref<560x96xf32, #tpu.memory_space<vmem>>, vector<1x32xf32>
    %c76 = arith.constant 76 : index
    %c0_32 = arith.constant 0 : index
    %48 = vector.load %arg4[%c76, %c0_32] : memref<560x96xf32, #tpu.memory_space<vmem>>, vector<1x32xf32>
    %cst_33 = arith.constant dense<0.000000e+00> : vector<16xf32>
    %49 = vector.multi_reduction <add>, %46, %cst_33 [1] : vector<16x32xf32> to vector<16xf32>
    %50 = vector.shape_cast %49 : vector<16xf32> to vector<16x1xf32>
    %cst_34 = arith.constant 3.200000e+01 : f32
    %51 = vector.broadcast %cst_34 : f32 to vector<16x1xf32>
    %52 = arith.divf %50, %51 : vector<16x1xf32>
    %53 = vector.broadcast %52 : vector<16x1xf32> to vector<16x32xf32>
    %54 = arith.subf %46, %53 : vector<16x32xf32>
    %55 = arith.mulf %54, %54 : vector<16x32xf32>
    %cst_35 = arith.constant dense<0.000000e+00> : vector<16xf32>
    %56 = vector.multi_reduction <add>, %55, %cst_35 [1] : vector<16x32xf32> to vector<16xf32>
    %57 = vector.shape_cast %56 : vector<16xf32> to vector<16x1xf32>
    %cst_36 = arith.constant 0.0322580636 : f32
    %58 = vector.broadcast %cst_36 : f32 to vector<16x1xf32>
    %59 = arith.mulf %57, %58 : vector<16x1xf32>
    %60 = math.sqrt %59 : vector<16x1xf32>
    %cst_37 = arith.constant 9.99999997E-7 : f32
    %61 = vector.broadcast %cst_37 : f32 to vector<16x1xf32>
    %62 = arith.addf %60, %61 : vector<16x1xf32>
    %63 = tpu.reciprocal %62 : vector<16x1xf32> -> vector<16x1xf32>
    %64 = vector.broadcast %63 : vector<16x1xf32> to vector<16x32xf32>
    %65 = arith.mulf %54, %64 : vector<16x32xf32>
    %66 = vector.broadcast %47 : vector<1x32xf32> to vector<16x32xf32>
    %67 = arith.mulf %66, %65 : vector<16x32xf32>
    %68 = vector.broadcast %48 : vector<1x32xf32> to vector<16x32xf32>
    %69 = arith.addf %67, %68 : vector<16x32xf32>
    %c8 = arith.constant 8 : index
    %c0_38 = arith.constant 0 : index
    %70 = vector.load %arg4[%c8, %c0_38] : memref<560x96xf32, #tpu.memory_space<vmem>>, vector<32x32xf32>
    %cst_39 = arith.constant dense<0.000000e+00> : vector<16x32xf32>
    %71 = tpu.matmul %69, %70, %cst_39 {dimension_numbers = #tpu.dot_dimension_numbers<[1], [0], [0], [1], [0, 0, 1, 1], [], []>} : vector<16x32xf32>, vector<32x32xf32>, vector<16x32xf32> -> vector<16x32xf32>
    %c73 = arith.constant 73 : index
    %c0_40 = arith.constant 0 : index
    %72 = vector.load %arg4[%c73, %c0_40] : memref<560x96xf32, #tpu.memory_space<vmem>>, vector<1x32xf32>
    %73 = vector.broadcast %72 : vector<1x32xf32> to vector<16x32xf32>
    %74 = arith.addf %71, %73 : vector<16x32xf32>
    %cst_41 = arith.constant 0.000000e+00 : f32
    %75 = vector.broadcast %cst_41 : f32 to vector<16x32xf32>
    %76 = arith.maximumf %74, %75 : vector<16x32xf32>
    %c40 = arith.constant 40 : index
    %c0_42 = arith.constant 0 : index
    %77 = vector.load %arg4[%c40, %c0_42] : memref<560x96xf32, #tpu.memory_space<vmem>>, vector<32x32xf32>
    %cst_43 = arith.constant dense<0.000000e+00> : vector<16x32xf32>
    %78 = tpu.matmul %76, %77, %cst_43 {dimension_numbers = #tpu.dot_dimension_numbers<[1], [0], [0], [1], [0, 0, 1, 1], [], []>} : vector<16x32xf32>, vector<32x32xf32>, vector<16x32xf32> -> vector<16x32xf32>
    %c74 = arith.constant 74 : index
    %c0_44 = arith.constant 0 : index
    %79 = vector.load %arg4[%c74, %c0_44] : memref<560x96xf32, #tpu.memory_space<vmem>>, vector<1x32xf32>
    %80 = vector.broadcast %79 : vector<1x32xf32> to vector<16x32xf32>
    %81 = arith.addf %78, %80 : vector<16x32xf32>
    %c80 = arith.constant 80 : index
    %c0_45 = arith.constant 0 : index
    %82 = vector.load %arg4[%c80, %c0_45] : memref<560x96xf32, #tpu.memory_space<vmem>>, vector<32x96xf32>
    %cst_46 = arith.constant dense<0.000000e+00> : vector<16x96xf32>
    %83 = tpu.matmul %81, %82, %cst_46 {dimension_numbers = #tpu.dot_dimension_numbers<[1], [0], [0], [1], [0, 0, 1, 1], [], []>} : vector<16x32xf32>, vector<32x96xf32>, vector<16x96xf32> -> vector<16x96xf32>
    %c304 = arith.constant 304 : index
    %c0_47 = arith.constant 0 : index
    %84 = vector.load %arg4[%c304, %c0_47] : memref<560x96xf32, #tpu.memory_space<vmem>>, vector<1x96xf32>
    %85 = vector.broadcast %84 : vector<1x96xf32> to vector<16x96xf32>
    %86 = arith.addf %83, %85 : vector<16x96xf32>
    %87 = vector.extract_strided_slice %86 {offsets = [0, 0], sizes = [16, 32], strides = [1, 1]} : vector<16x96xf32> to vector<16x32xf32>
    %88 = vector.extract_strided_slice %86 {offsets = [0, 32], sizes = [16, 32], strides = [1, 1]} : vector<16x96xf32> to vector<16x32xf32>
    %89 = vector.extract_strided_slice %86 {offsets = [0, 64], sizes = [16, 32], strides = [1, 1]} : vector<16x96xf32> to vector<16x32xf32>
    %c144 = arith.constant 144 : index
    %c0_48 = arith.constant 0 : index
    %90 = vector.load %arg4[%c144, %c0_48] : memref<560x96xf32, #tpu.memory_space<vmem>>, vector<32x32xf32>
    %c306 = arith.constant 306 : index
    %c0_49 = arith.constant 0 : index
    %91 = vector.load %arg4[%c306, %c0_49] : memref<560x96xf32, #tpu.memory_space<vmem>>, vector<1x32xf32>
    %92 = tpu.transpose %88, [1, 0] : vector<16x32xf32> -> vector<32x16xf32>
    %93 = vector.extract_strided_slice %87 {offsets = [0, 0], sizes = [16, 8], strides = [1, 1]} : vector<16x32xf32> to vector<16x8xf32>
    %94 = vector.extract_strided_slice %92 {offsets = [0, 0], sizes = [8, 16], strides = [1, 1]} : vector<32x16xf32> to vector<8x16xf32>
    %cst_50 = arith.constant dense<0.000000e+00> : vector<16x16xf32>
    %95 = tpu.matmul %93, %94, %cst_50 {dimension_numbers = #tpu.dot_dimension_numbers<[1], [0], [0], [1], [0, 0, 1, 1], [], []>} : vector<16x8xf32>, vector<8x16xf32>, vector<16x16xf32> -> vector<16x16xf32>
    %96 = arith.addf %95, %19 : vector<16x16xf32>
    %cst_51 = arith.constant dense<0xFF800000> : vector<16xf32>
    %97 = vector.multi_reduction <maximumf>, %96, %cst_51 [1] : vector<16x16xf32> to vector<16xf32>
    %98 = vector.shape_cast %97 : vector<16xf32> to vector<16x1xf32>
    %99 = vector.broadcast %98 : vector<16x1xf32> to vector<16x16xf32>
    %100 = arith.subf %96, %99 : vector<16x16xf32>
    %101 = math.exp %100 : vector<16x16xf32>
    %cst_52 = arith.constant dense<0.000000e+00> : vector<16xf32>
    %102 = vector.multi_reduction <add>, %101, %cst_52 [1] : vector<16x16xf32> to vector<16xf32>
    %103 = vector.shape_cast %102 : vector<16xf32> to vector<16x1xf32>
    %104 = tpu.reciprocal %103 {approx = true} : vector<16x1xf32> -> vector<16x1xf32>
    %105 = vector.broadcast %104 : vector<16x1xf32> to vector<16x16xf32>
    %106 = arith.mulf %101, %105 : vector<16x16xf32>
    %107 = vector.extract_strided_slice %89 {offsets = [0, 0], sizes = [16, 8], strides = [1, 1]} : vector<16x32xf32> to vector<16x8xf32>
    %cst_53 = arith.constant dense<0.000000e+00> : vector<16x8xf32>
    %108 = tpu.matmul %106, %107, %cst_53 {dimension_numbers = #tpu.dot_dimension_numbers<[1], [0], [0], [1], [0, 0, 1, 1], [], []>} : vector<16x16xf32>, vector<16x8xf32>, vector<16x8xf32> -> vector<16x8xf32>
    %109 = vector.extract_strided_slice %87 {offsets = [0, 8], sizes = [16, 8], strides = [1, 1]} : vector<16x32xf32> to vector<16x8xf32>
    %110 = vector.extract_strided_slice %92 {offsets = [8, 0], sizes = [8, 16], strides = [1, 1]} : vector<32x16xf32> to vector<8x16xf32>
    %cst_54 = arith.constant dense<0.000000e+00> : vector<16x16xf32>
    %111 = tpu.matmul %109, %110, %cst_54 {dimension_numbers = #tpu.dot_dimension_numbers<[1], [0], [0], [1], [0, 0, 1, 1], [], []>} : vector<16x8xf32>, vector<8x16xf32>, vector<16x16xf32> -> vector<16x16xf32>
    %112 = arith.addf %111, %19 : vector<16x16xf32>
    %cst_55 = arith.constant dense<0xFF800000> : vector<16xf32>
    %113 = vector.multi_reduction <maximumf>, %112, %cst_55 [1] : vector<16x16xf32> to vector<16xf32>
    %114 = vector.shape_cast %113 : vector<16xf32> to vector<16x1xf32>
    %115 = vector.broadcast %114 : vector<16x1xf32> to vector<16x16xf32>
    %116 = arith.subf %112, %115 : vector<16x16xf32>
    %117 = math.exp %116 : vector<16x16xf32>
    %cst_56 = arith.constant dense<0.000000e+00> : vector<16xf32>
    %118 = vector.multi_reduction <add>, %117, %cst_56 [1] : vector<16x16xf32> to vector<16xf32>
    %119 = vector.shape_cast %118 : vector<16xf32> to vector<16x1xf32>
    %120 = tpu.reciprocal %119 {approx = true} : vector<16x1xf32> -> vector<16x1xf32>
    %121 = vector.broadcast %120 : vector<16x1xf32> to vector<16x16xf32>
    %122 = arith.mulf %117, %121 : vector<16x16xf32>
    %123 = vector.extract_strided_slice %89 {offsets = [0, 8], sizes = [16, 8], strides = [1, 1]} : vector<16x32xf32> to vector<16x8xf32>
    %cst_57 = arith.constant dense<0.000000e+00> : vector<16x8xf32>
    %124 = tpu.matmul %122, %123, %cst_57 {dimension_numbers = #tpu.dot_dimension_numbers<[1], [0], [0], [1], [0, 0, 1, 1], [], []>} : vector<16x16xf32>, vector<16x8xf32>, vector<16x8xf32> -> vector<16x8xf32>
    %125 = vector.extract_strided_slice %87 {offsets = [0, 16], sizes = [16, 8], strides = [1, 1]} : vector<16x32xf32> to vector<16x8xf32>
    %126 = vector.extract_strided_slice %92 {offsets = [16, 0], sizes = [8, 16], strides = [1, 1]} : vector<32x16xf32> to vector<8x16xf32>
    %cst_58 = arith.constant dense<0.000000e+00> : vector<16x16xf32>
    %127 = tpu.matmul %125, %126, %cst_58 {dimension_numbers = #tpu.dot_dimension_numbers<[1], [0], [0], [1], [0, 0, 1, 1], [], []>} : vector<16x8xf32>, vector<8x16xf32>, vector<16x16xf32> -> vector<16x16xf32>
    %128 = arith.addf %127, %19 : vector<16x16xf32>
    %cst_59 = arith.constant dense<0xFF800000> : vector<16xf32>
    %129 = vector.multi_reduction <maximumf>, %128, %cst_59 [1] : vector<16x16xf32> to vector<16xf32>
    %130 = vector.shape_cast %129 : vector<16xf32> to vector<16x1xf32>
    %131 = vector.broadcast %130 : vector<16x1xf32> to vector<16x16xf32>
    %132 = arith.subf %128, %131 : vector<16x16xf32>
    %133 = math.exp %132 : vector<16x16xf32>
    %cst_60 = arith.constant dense<0.000000e+00> : vector<16xf32>
    %134 = vector.multi_reduction <add>, %133, %cst_60 [1] : vector<16x16xf32> to vector<16xf32>
    %135 = vector.shape_cast %134 : vector<16xf32> to vector<16x1xf32>
    %136 = tpu.reciprocal %135 {approx = true} : vector<16x1xf32> -> vector<16x1xf32>
    %137 = vector.broadcast %136 : vector<16x1xf32> to vector<16x16xf32>
    %138 = arith.mulf %133, %137 : vector<16x16xf32>
    %139 = vector.extract_strided_slice %89 {offsets = [0, 16], sizes = [16, 8], strides = [1, 1]} : vector<16x32xf32> to vector<16x8xf32>
    %cst_61 = arith.constant dense<0.000000e+00> : vector<16x8xf32>
    %140 = tpu.matmul %138, %139, %cst_61 {dimension_numbers = #tpu.dot_dimension_numbers<[1], [0], [0], [1], [0, 0, 1, 1], [], []>} : vector<16x16xf32>, vector<16x8xf32>, vector<16x8xf32> -> vector<16x8xf32>
    %141 = vector.extract_strided_slice %87 {offsets = [0, 24], sizes = [16, 8], strides = [1, 1]} : vector<16x32xf32> to vector<16x8xf32>
    %142 = vector.extract_strided_slice %92 {offsets = [24, 0], sizes = [8, 16], strides = [1, 1]} : vector<32x16xf32> to vector<8x16xf32>
    %cst_62 = arith.constant dense<0.000000e+00> : vector<16x16xf32>
    %143 = tpu.matmul %141, %142, %cst_62 {dimension_numbers = #tpu.dot_dimension_numbers<[1], [0], [0], [1], [0, 0, 1, 1], [], []>} : vector<16x8xf32>, vector<8x16xf32>, vector<16x16xf32> -> vector<16x16xf32>
    %144 = arith.addf %143, %19 : vector<16x16xf32>
    %cst_63 = arith.constant dense<0xFF800000> : vector<16xf32>
    %145 = vector.multi_reduction <maximumf>, %144, %cst_63 [1] : vector<16x16xf32> to vector<16xf32>
    %146 = vector.shape_cast %145 : vector<16xf32> to vector<16x1xf32>
    %147 = vector.broadcast %146 : vector<16x1xf32> to vector<16x16xf32>
    %148 = arith.subf %144, %147 : vector<16x16xf32>
    %149 = math.exp %148 : vector<16x16xf32>
    %cst_64 = arith.constant dense<0.000000e+00> : vector<16xf32>
    %150 = vector.multi_reduction <add>, %149, %cst_64 [1] : vector<16x16xf32> to vector<16xf32>
    %151 = vector.shape_cast %150 : vector<16xf32> to vector<16x1xf32>
    %152 = tpu.reciprocal %151 {approx = true} : vector<16x1xf32> -> vector<16x1xf32>
    %153 = vector.broadcast %152 : vector<16x1xf32> to vector<16x16xf32>
    %154 = arith.mulf %149, %153 : vector<16x16xf32>
    %155 = vector.extract_strided_slice %89 {offsets = [0, 24], sizes = [16, 8], strides = [1, 1]} : vector<16x32xf32> to vector<16x8xf32>
    %cst_65 = arith.constant dense<0.000000e+00> : vector<16x8xf32>
    %156 = tpu.matmul %154, %155, %cst_65 {dimension_numbers = #tpu.dot_dimension_numbers<[1], [0], [0], [1], [0, 0, 1, 1], [], []>} : vector<16x16xf32>, vector<16x8xf32>, vector<16x8xf32> -> vector<16x8xf32>
    %157 = tpu.concatenate %108, %124, %140, %156 in 1 : vector<16x8xf32>, vector<16x8xf32>, vector<16x8xf32>, vector<16x8xf32> -> vector<16x32xf32>
    %cst_66 = arith.constant dense<0.000000e+00> : vector<16x32xf32>
    %158 = tpu.matmul %157, %90, %cst_66 {dimension_numbers = #tpu.dot_dimension_numbers<[1], [0], [0], [1], [0, 0, 1, 1], [], []>} : vector<16x32xf32>, vector<32x32xf32>, vector<16x32xf32> -> vector<16x32xf32>
    %159 = vector.broadcast %91 : vector<1x32xf32> to vector<16x32xf32>
    %160 = arith.addf %158, %159 : vector<16x32xf32>
    %161 = arith.addf %81, %160 : vector<16x32xf32>
    %c311 = arith.constant 311 : index
    %c0_67 = arith.constant 0 : index
    %162 = vector.load %arg4[%c311, %c0_67] : memref<560x96xf32, #tpu.memory_space<vmem>>, vector<1x32xf32>
    %c312 = arith.constant 312 : index
    %c0_68 = arith.constant 0 : index
    %163 = vector.load %arg4[%c312, %c0_68] : memref<560x96xf32, #tpu.memory_space<vmem>>, vector<1x32xf32>
    %cst_69 = arith.constant dense<0.000000e+00> : vector<16xf32>
    %164 = vector.multi_reduction <add>, %161, %cst_69 [1] : vector<16x32xf32> to vector<16xf32>
    %165 = vector.shape_cast %164 : vector<16xf32> to vector<16x1xf32>
    %cst_70 = arith.constant 3.200000e+01 : f32
    %166 = vector.broadcast %cst_70 : f32 to vector<16x1xf32>
    %167 = arith.divf %165, %166 : vector<16x1xf32>
    %168 = vector.broadcast %167 : vector<16x1xf32> to vector<16x32xf32>
    %169 = arith.subf %161, %168 : vector<16x32xf32>
    %170 = arith.mulf %169, %169 : vector<16x32xf32>
    %cst_71 = arith.constant dense<0.000000e+00> : vector<16xf32>
    %171 = vector.multi_reduction <add>, %170, %cst_71 [1] : vector<16x32xf32> to vector<16xf32>
    %172 = vector.shape_cast %171 : vector<16xf32> to vector<16x1xf32>
    %cst_72 = arith.constant 0.0322580636 : f32
    %173 = vector.broadcast %cst_72 : f32 to vector<16x1xf32>
    %174 = arith.mulf %172, %173 : vector<16x1xf32>
    %175 = math.sqrt %174 : vector<16x1xf32>
    %cst_73 = arith.constant 9.99999997E-7 : f32
    %176 = vector.broadcast %cst_73 : f32 to vector<16x1xf32>
    %177 = arith.addf %175, %176 : vector<16x1xf32>
    %178 = tpu.reciprocal %177 : vector<16x1xf32> -> vector<16x1xf32>
    %179 = vector.broadcast %178 : vector<16x1xf32> to vector<16x32xf32>
    %180 = arith.mulf %169, %179 : vector<16x32xf32>
    %181 = vector.broadcast %162 : vector<1x32xf32> to vector<16x32xf32>
    %182 = arith.mulf %181, %180 : vector<16x32xf32>
    %183 = vector.broadcast %163 : vector<1x32xf32> to vector<16x32xf32>
    %184 = arith.addf %182, %183 : vector<16x32xf32>
    %c176 = arith.constant 176 : index
    %c0_74 = arith.constant 0 : index
    %185 = vector.load %arg4[%c176, %c0_74] : memref<560x96xf32, #tpu.memory_space<vmem>>, vector<32x32xf32>
    %cst_75 = arith.constant dense<0.000000e+00> : vector<16x32xf32>
    %186 = tpu.matmul %184, %185, %cst_75 {dimension_numbers = #tpu.dot_dimension_numbers<[1], [0], [0], [1], [0, 0, 1, 1], [], []>} : vector<16x32xf32>, vector<32x32xf32>, vector<16x32xf32> -> vector<16x32xf32>
    %c307 = arith.constant 307 : index
    %c0_76 = arith.constant 0 : index
    %187 = vector.load %arg4[%c307, %c0_76] : memref<560x96xf32, #tpu.memory_space<vmem>>, vector<1x32xf32>
    %188 = vector.broadcast %187 : vector<1x32xf32> to vector<16x32xf32>
    %189 = arith.addf %186, %188 : vector<16x32xf32>
    %c112 = arith.constant 112 : index
    %c0_77 = arith.constant 0 : index
    %190 = vector.load %arg4[%c112, %c0_77] : memref<560x96xf32, #tpu.memory_space<vmem>>, vector<32x64xf32>
    %cst_78 = arith.constant dense<0.000000e+00> : vector<16x64xf32>
    %191 = tpu.matmul %1, %190, %cst_78 {dimension_numbers = #tpu.dot_dimension_numbers<[1], [0], [0], [1], [0, 0, 1, 1], [], []>} : vector<16x32xf32>, vector<32x64xf32>, vector<16x64xf32> -> vector<16x64xf32>
    %c305 = arith.constant 305 : index
    %c0_79 = arith.constant 0 : index
    %192 = vector.load %arg4[%c305, %c0_79] : memref<560x96xf32, #tpu.memory_space<vmem>>, vector<1x64xf32>
    %193 = vector.broadcast %192 : vector<1x64xf32> to vector<16x64xf32>
    %194 = arith.addf %191, %193 : vector<16x64xf32>
    %195 = vector.extract_strided_slice %194 {offsets = [0, 0], sizes = [16, 32], strides = [1, 1]} : vector<16x64xf32> to vector<16x32xf32>
    %196 = vector.extract_strided_slice %194 {offsets = [0, 32], sizes = [16, 32], strides = [1, 1]} : vector<16x64xf32> to vector<16x32xf32>
    %c208 = arith.constant 208 : index
    %c0_80 = arith.constant 0 : index
    %197 = vector.load %arg4[%c208, %c0_80] : memref<560x96xf32, #tpu.memory_space<vmem>>, vector<32x32xf32>
    %c308 = arith.constant 308 : index
    %c0_81 = arith.constant 0 : index
    %198 = vector.load %arg4[%c308, %c0_81] : memref<560x96xf32, #tpu.memory_space<vmem>>, vector<1x32xf32>
    %199 = tpu.transpose %195, [1, 0] : vector<16x32xf32> -> vector<32x16xf32>
    %200 = vector.extract_strided_slice %189 {offsets = [0, 0], sizes = [16, 8], strides = [1, 1]} : vector<16x32xf32> to vector<16x8xf32>
    %201 = vector.extract_strided_slice %199 {offsets = [0, 0], sizes = [8, 16], strides = [1, 1]} : vector<32x16xf32> to vector<8x16xf32>
    %cst_82 = arith.constant dense<0.000000e+00> : vector<16x16xf32>
    %202 = tpu.matmul %200, %201, %cst_82 {dimension_numbers = #tpu.dot_dimension_numbers<[1], [0], [0], [1], [0, 0, 1, 1], [], []>} : vector<16x8xf32>, vector<8x16xf32>, vector<16x16xf32> -> vector<16x16xf32>
    %203 = arith.addf %202, %41 : vector<16x16xf32>
    %cst_83 = arith.constant dense<0xFF800000> : vector<16xf32>
    %204 = vector.multi_reduction <maximumf>, %203, %cst_83 [1] : vector<16x16xf32> to vector<16xf32>
    %205 = vector.shape_cast %204 : vector<16xf32> to vector<16x1xf32>
    %206 = vector.broadcast %205 : vector<16x1xf32> to vector<16x16xf32>
    %207 = arith.subf %203, %206 : vector<16x16xf32>
    %208 = math.exp %207 : vector<16x16xf32>
    %cst_84 = arith.constant dense<0.000000e+00> : vector<16xf32>
    %209 = vector.multi_reduction <add>, %208, %cst_84 [1] : vector<16x16xf32> to vector<16xf32>
    %210 = vector.shape_cast %209 : vector<16xf32> to vector<16x1xf32>
    %211 = tpu.reciprocal %210 {approx = true} : vector<16x1xf32> -> vector<16x1xf32>
    %212 = vector.broadcast %211 : vector<16x1xf32> to vector<16x16xf32>
    %213 = arith.mulf %208, %212 : vector<16x16xf32>
    %214 = vector.extract_strided_slice %196 {offsets = [0, 0], sizes = [16, 8], strides = [1, 1]} : vector<16x32xf32> to vector<16x8xf32>
    %cst_85 = arith.constant dense<0.000000e+00> : vector<16x8xf32>
    %215 = tpu.matmul %213, %214, %cst_85 {dimension_numbers = #tpu.dot_dimension_numbers<[1], [0], [0], [1], [0, 0, 1, 1], [], []>} : vector<16x16xf32>, vector<16x8xf32>, vector<16x8xf32> -> vector<16x8xf32>
    %216 = vector.extract_strided_slice %189 {offsets = [0, 8], sizes = [16, 8], strides = [1, 1]} : vector<16x32xf32> to vector<16x8xf32>
    %217 = vector.extract_strided_slice %199 {offsets = [8, 0], sizes = [8, 16], strides = [1, 1]} : vector<32x16xf32> to vector<8x16xf32>
    %cst_86 = arith.constant dense<0.000000e+00> : vector<16x16xf32>
    %218 = tpu.matmul %216, %217, %cst_86 {dimension_numbers = #tpu.dot_dimension_numbers<[1], [0], [0], [1], [0, 0, 1, 1], [], []>} : vector<16x8xf32>, vector<8x16xf32>, vector<16x16xf32> -> vector<16x16xf32>
    %219 = arith.addf %218, %41 : vector<16x16xf32>
    %cst_87 = arith.constant dense<0xFF800000> : vector<16xf32>
    %220 = vector.multi_reduction <maximumf>, %219, %cst_87 [1] : vector<16x16xf32> to vector<16xf32>
    %221 = vector.shape_cast %220 : vector<16xf32> to vector<16x1xf32>
    %222 = vector.broadcast %221 : vector<16x1xf32> to vector<16x16xf32>
    %223 = arith.subf %219, %222 : vector<16x16xf32>
    %224 = math.exp %223 : vector<16x16xf32>
    %cst_88 = arith.constant dense<0.000000e+00> : vector<16xf32>
    %225 = vector.multi_reduction <add>, %224, %cst_88 [1] : vector<16x16xf32> to vector<16xf32>
    %226 = vector.shape_cast %225 : vector<16xf32> to vector<16x1xf32>
    %227 = tpu.reciprocal %226 {approx = true} : vector<16x1xf32> -> vector<16x1xf32>
    %228 = vector.broadcast %227 : vector<16x1xf32> to vector<16x16xf32>
    %229 = arith.mulf %224, %228 : vector<16x16xf32>
    %230 = vector.extract_strided_slice %196 {offsets = [0, 8], sizes = [16, 8], strides = [1, 1]} : vector<16x32xf32> to vector<16x8xf32>
    %cst_89 = arith.constant dense<0.000000e+00> : vector<16x8xf32>
    %231 = tpu.matmul %229, %230, %cst_89 {dimension_numbers = #tpu.dot_dimension_numbers<[1], [0], [0], [1], [0, 0, 1, 1], [], []>} : vector<16x16xf32>, vector<16x8xf32>, vector<16x8xf32> -> vector<16x8xf32>
    %232 = vector.extract_strided_slice %189 {offsets = [0, 16], sizes = [16, 8], strides = [1, 1]} : vector<16x32xf32> to vector<16x8xf32>
    %233 = vector.extract_strided_slice %199 {offsets = [16, 0], sizes = [8, 16], strides = [1, 1]} : vector<32x16xf32> to vector<8x16xf32>
    %cst_90 = arith.constant dense<0.000000e+00> : vector<16x16xf32>
    %234 = tpu.matmul %232, %233, %cst_90 {dimension_numbers = #tpu.dot_dimension_numbers<[1], [0], [0], [1], [0, 0, 1, 1], [], []>} : vector<16x8xf32>, vector<8x16xf32>, vector<16x16xf32> -> vector<16x16xf32>
    %235 = arith.addf %234, %41 : vector<16x16xf32>
    %cst_91 = arith.constant dense<0xFF800000> : vector<16xf32>
    %236 = vector.multi_reduction <maximumf>, %235, %cst_91 [1] : vector<16x16xf32> to vector<16xf32>
    %237 = vector.shape_cast %236 : vector<16xf32> to vector<16x1xf32>
    %238 = vector.broadcast %237 : vector<16x1xf32> to vector<16x16xf32>
    %239 = arith.subf %235, %238 : vector<16x16xf32>
    %240 = math.exp %239 : vector<16x16xf32>
    %cst_92 = arith.constant dense<0.000000e+00> : vector<16xf32>
    %241 = vector.multi_reduction <add>, %240, %cst_92 [1] : vector<16x16xf32> to vector<16xf32>
    %242 = vector.shape_cast %241 : vector<16xf32> to vector<16x1xf32>
    %243 = tpu.reciprocal %242 {approx = true} : vector<16x1xf32> -> vector<16x1xf32>
    %244 = vector.broadcast %243 : vector<16x1xf32> to vector<16x16xf32>
    %245 = arith.mulf %240, %244 : vector<16x16xf32>
    %246 = vector.extract_strided_slice %196 {offsets = [0, 16], sizes = [16, 8], strides = [1, 1]} : vector<16x32xf32> to vector<16x8xf32>
    %cst_93 = arith.constant dense<0.000000e+00> : vector<16x8xf32>
    %247 = tpu.matmul %245, %246, %cst_93 {dimension_numbers = #tpu.dot_dimension_numbers<[1], [0], [0], [1], [0, 0, 1, 1], [], []>} : vector<16x16xf32>, vector<16x8xf32>, vector<16x8xf32> -> vector<16x8xf32>
    %248 = vector.extract_strided_slice %189 {offsets = [0, 24], sizes = [16, 8], strides = [1, 1]} : vector<16x32xf32> to vector<16x8xf32>
    %249 = vector.extract_strided_slice %199 {offsets = [24, 0], sizes = [8, 16], strides = [1, 1]} : vector<32x16xf32> to vector<8x16xf32>
    %cst_94 = arith.constant dense<0.000000e+00> : vector<16x16xf32>
    %250 = tpu.matmul %248, %249, %cst_94 {dimension_numbers = #tpu.dot_dimension_numbers<[1], [0], [0], [1], [0, 0, 1, 1], [], []>} : vector<16x8xf32>, vector<8x16xf32>, vector<16x16xf32> -> vector<16x16xf32>
    %251 = arith.addf %250, %41 : vector<16x16xf32>
    %cst_95 = arith.constant dense<0xFF800000> : vector<16xf32>
    %252 = vector.multi_reduction <maximumf>, %251, %cst_95 [1] : vector<16x16xf32> to vector<16xf32>
    %253 = vector.shape_cast %252 : vector<16xf32> to vector<16x1xf32>
    %254 = vector.broadcast %253 : vector<16x1xf32> to vector<16x16xf32>
    %255 = arith.subf %251, %254 : vector<16x16xf32>
    %256 = math.exp %255 : vector<16x16xf32>
    %cst_96 = arith.constant dense<0.000000e+00> : vector<16xf32>
    %257 = vector.multi_reduction <add>, %256, %cst_96 [1] : vector<16x16xf32> to vector<16xf32>
    %258 = vector.shape_cast %257 : vector<16xf32> to vector<16x1xf32>
    %259 = tpu.reciprocal %258 {approx = true} : vector<16x1xf32> -> vector<16x1xf32>
    %260 = vector.broadcast %259 : vector<16x1xf32> to vector<16x16xf32>
    %261 = arith.mulf %256, %260 : vector<16x16xf32>
    %262 = vector.extract_strided_slice %196 {offsets = [0, 24], sizes = [16, 8], strides = [1, 1]} : vector<16x32xf32> to vector<16x8xf32>
    %cst_97 = arith.constant dense<0.000000e+00> : vector<16x8xf32>
    %263 = tpu.matmul %261, %262, %cst_97 {dimension_numbers = #tpu.dot_dimension_numbers<[1], [0], [0], [1], [0, 0, 1, 1], [], []>} : vector<16x16xf32>, vector<16x8xf32>, vector<16x8xf32> -> vector<16x8xf32>
    %264 = tpu.concatenate %215, %231, %247, %263 in 1 : vector<16x8xf32>, vector<16x8xf32>, vector<16x8xf32>, vector<16x8xf32> -> vector<16x32xf32>
    %cst_98 = arith.constant dense<0.000000e+00> : vector<16x32xf32>
    %265 = tpu.matmul %264, %197, %cst_98 {dimension_numbers = #tpu.dot_dimension_numbers<[1], [0], [0], [1], [0, 0, 1, 1], [], []>} : vector<16x32xf32>, vector<32x32xf32>, vector<16x32xf32> -> vector<16x32xf32>
    %266 = vector.broadcast %198 : vector<1x32xf32> to vector<16x32xf32>
    %267 = arith.addf %265, %266 : vector<16x32xf32>
    %268 = arith.addf %184, %267 : vector<16x32xf32>
    %c313 = arith.constant 313 : index
    %c0_99 = arith.constant 0 : index
    %269 = vector.load %arg4[%c313, %c0_99] : memref<560x96xf32, #tpu.memory_space<vmem>>, vector<1x32xf32>
    %c314 = arith.constant 314 : index
    %c0_100 = arith.constant 0 : index
    %270 = vector.load %arg4[%c314, %c0_100] : memref<560x96xf32, #tpu.memory_space<vmem>>, vector<1x32xf32>
    %cst_101 = arith.constant dense<0.000000e+00> : vector<16xf32>
    %271 = vector.multi_reduction <add>, %268, %cst_101 [1] : vector<16x32xf32> to vector<16xf32>
    %272 = vector.shape_cast %271 : vector<16xf32> to vector<16x1xf32>
    %cst_102 = arith.constant 3.200000e+01 : f32
    %273 = vector.broadcast %cst_102 : f32 to vector<16x1xf32>
    %274 = arith.divf %272, %273 : vector<16x1xf32>
    %275 = vector.broadcast %274 : vector<16x1xf32> to vector<16x32xf32>
    %276 = arith.subf %268, %275 : vector<16x32xf32>
    %277 = arith.mulf %276, %276 : vector<16x32xf32>
    %cst_103 = arith.constant dense<0.000000e+00> : vector<16xf32>
    %278 = vector.multi_reduction <add>, %277, %cst_103 [1] : vector<16x32xf32> to vector<16xf32>
    %279 = vector.shape_cast %278 : vector<16xf32> to vector<16x1xf32>
    %cst_104 = arith.constant 0.0322580636 : f32
    %280 = vector.broadcast %cst_104 : f32 to vector<16x1xf32>
    %281 = arith.mulf %279, %280 : vector<16x1xf32>
    %282 = math.sqrt %281 : vector<16x1xf32>
    %cst_105 = arith.constant 9.99999997E-7 : f32
    %283 = vector.broadcast %cst_105 : f32 to vector<16x1xf32>
    %284 = arith.addf %282, %283 : vector<16x1xf32>
    %285 = tpu.reciprocal %284 : vector<16x1xf32> -> vector<16x1xf32>
    %286 = vector.broadcast %285 : vector<16x1xf32> to vector<16x32xf32>
    %287 = arith.mulf %276, %286 : vector<16x32xf32>
    %288 = vector.broadcast %269 : vector<1x32xf32> to vector<16x32xf32>
    %289 = arith.mulf %288, %287 : vector<16x32xf32>
    %290 = vector.broadcast %270 : vector<1x32xf32> to vector<16x32xf32>
    %291 = arith.addf %289, %290 : vector<16x32xf32>
    %c240 = arith.constant 240 : index
    %c0_106 = arith.constant 0 : index
    %292 = vector.load %arg4[%c240, %c0_106] : memref<560x96xf32, #tpu.memory_space<vmem>>, vector<32x32xf32>
    %cst_107 = arith.constant dense<0.000000e+00> : vector<16x32xf32>
    %293 = tpu.matmul %291, %292, %cst_107 {dimension_numbers = #tpu.dot_dimension_numbers<[1], [0], [0], [1], [0, 0, 1, 1], [], []>} : vector<16x32xf32>, vector<32x32xf32>, vector<16x32xf32> -> vector<16x32xf32>
    %c309 = arith.constant 309 : index
    %c0_108 = arith.constant 0 : index
    %294 = vector.load %arg4[%c309, %c0_108] : memref<560x96xf32, #tpu.memory_space<vmem>>, vector<1x32xf32>
    %295 = vector.broadcast %294 : vector<1x32xf32> to vector<16x32xf32>
    %296 = arith.addf %293, %295 : vector<16x32xf32>
    %cst_109 = arith.constant 0.000000e+00 : f32
    %297 = vector.broadcast %cst_109 : f32 to vector<16x32xf32>
    %298 = arith.maximumf %296, %297 : vector<16x32xf32>
    %c272 = arith.constant 272 : index
    %c0_110 = arith.constant 0 : index
    %299 = vector.load %arg4[%c272, %c0_110] : memref<560x96xf32, #tpu.memory_space<vmem>>, vector<32x32xf32>
    %cst_111 = arith.constant dense<0.000000e+00> : vector<16x32xf32>
    %300 = tpu.matmul %298, %299, %cst_111 {dimension_numbers = #tpu.dot_dimension_numbers<[1], [0], [0], [1], [0, 0, 1, 1], [], []>} : vector<16x32xf32>, vector<32x32xf32>, vector<16x32xf32> -> vector<16x32xf32>
    %301 = arith.addf %291, %300 : vector<16x32xf32>
    %c310 = arith.constant 310 : index
    %c0_112 = arith.constant 0 : index
    %302 = vector.load %arg4[%c310, %c0_112] : memref<560x96xf32, #tpu.memory_space<vmem>>, vector<1x32xf32>
    %303 = vector.broadcast %302 : vector<1x32xf32> to vector<16x32xf32>
    %304 = arith.addf %301, %303 : vector<16x32xf32>
    %c315 = arith.constant 315 : index
    %c0_113 = arith.constant 0 : index
    %305 = vector.load %arg4[%c315, %c0_113] : memref<560x96xf32, #tpu.memory_space<vmem>>, vector<1x32xf32>
    %c316 = arith.constant 316 : index
    %c0_114 = arith.constant 0 : index
    %306 = vector.load %arg4[%c316, %c0_114] : memref<560x96xf32, #tpu.memory_space<vmem>>, vector<1x32xf32>
    %cst_115 = arith.constant dense<0.000000e+00> : vector<16xf32>
    %307 = vector.multi_reduction <add>, %304, %cst_115 [1] : vector<16x32xf32> to vector<16xf32>
    %308 = vector.shape_cast %307 : vector<16xf32> to vector<16x1xf32>
    %cst_116 = arith.constant 3.200000e+01 : f32
    %309 = vector.broadcast %cst_116 : f32 to vector<16x1xf32>
    %310 = arith.divf %308, %309 : vector<16x1xf32>
    %311 = vector.broadcast %310 : vector<16x1xf32> to vector<16x32xf32>
    %312 = arith.subf %304, %311 : vector<16x32xf32>
    %313 = arith.mulf %312, %312 : vector<16x32xf32>
    %cst_117 = arith.constant dense<0.000000e+00> : vector<16xf32>
    %314 = vector.multi_reduction <add>, %313, %cst_117 [1] : vector<16x32xf32> to vector<16xf32>
    %315 = vector.shape_cast %314 : vector<16xf32> to vector<16x1xf32>
    %cst_118 = arith.constant 0.0322580636 : f32
    %316 = vector.broadcast %cst_118 : f32 to vector<16x1xf32>
    %317 = arith.mulf %315, %316 : vector<16x1xf32>
    %318 = math.sqrt %317 : vector<16x1xf32>
    %cst_119 = arith.constant 9.99999997E-7 : f32
    %319 = vector.broadcast %cst_119 : f32 to vector<16x1xf32>
    %320 = arith.addf %318, %319 : vector<16x1xf32>
    %321 = tpu.reciprocal %320 : vector<16x1xf32> -> vector<16x1xf32>
    %322 = vector.broadcast %321 : vector<16x1xf32> to vector<16x32xf32>
    %323 = arith.mulf %312, %322 : vector<16x32xf32>
    %324 = vector.broadcast %305 : vector<1x32xf32> to vector<16x32xf32>
    %325 = arith.mulf %324, %323 : vector<16x32xf32>
    %326 = vector.broadcast %306 : vector<1x32xf32> to vector<16x32xf32>
    %327 = arith.addf %325, %326 : vector<16x32xf32>
    %c320 = arith.constant 320 : index
    %c0_120 = arith.constant 0 : index
    %328 = vector.load %arg4[%c320, %c0_120] : memref<560x96xf32, #tpu.memory_space<vmem>>, vector<32x96xf32>
    %cst_121 = arith.constant dense<0.000000e+00> : vector<16x96xf32>
    %329 = tpu.matmul %327, %328, %cst_121 {dimension_numbers = #tpu.dot_dimension_numbers<[1], [0], [0], [1], [0, 0, 1, 1], [], []>} : vector<16x32xf32>, vector<32x96xf32>, vector<16x96xf32> -> vector<16x96xf32>
    %c544 = arith.constant 544 : index
    %c0_122 = arith.constant 0 : index
    %330 = vector.load %arg4[%c544, %c0_122] : memref<560x96xf32, #tpu.memory_space<vmem>>, vector<1x96xf32>
    %331 = vector.broadcast %330 : vector<1x96xf32> to vector<16x96xf32>
    %332 = arith.addf %329, %331 : vector<16x96xf32>
    %333 = vector.extract_strided_slice %332 {offsets = [0, 0], sizes = [16, 32], strides = [1, 1]} : vector<16x96xf32> to vector<16x32xf32>
    %334 = vector.extract_strided_slice %332 {offsets = [0, 32], sizes = [16, 32], strides = [1, 1]} : vector<16x96xf32> to vector<16x32xf32>
    %335 = vector.extract_strided_slice %332 {offsets = [0, 64], sizes = [16, 32], strides = [1, 1]} : vector<16x96xf32> to vector<16x32xf32>
    %c384 = arith.constant 384 : index
    %c0_123 = arith.constant 0 : index
    %336 = vector.load %arg4[%c384, %c0_123] : memref<560x96xf32, #tpu.memory_space<vmem>>, vector<32x32xf32>
    %c546 = arith.constant 546 : index
    %c0_124 = arith.constant 0 : index
    %337 = vector.load %arg4[%c546, %c0_124] : memref<560x96xf32, #tpu.memory_space<vmem>>, vector<1x32xf32>
    %338 = tpu.transpose %334, [1, 0] : vector<16x32xf32> -> vector<32x16xf32>
    %339 = vector.extract_strided_slice %333 {offsets = [0, 0], sizes = [16, 8], strides = [1, 1]} : vector<16x32xf32> to vector<16x8xf32>
    %340 = vector.extract_strided_slice %338 {offsets = [0, 0], sizes = [8, 16], strides = [1, 1]} : vector<32x16xf32> to vector<8x16xf32>
    %cst_125 = arith.constant dense<0.000000e+00> : vector<16x16xf32>
    %341 = tpu.matmul %339, %340, %cst_125 {dimension_numbers = #tpu.dot_dimension_numbers<[1], [0], [0], [1], [0, 0, 1, 1], [], []>} : vector<16x8xf32>, vector<8x16xf32>, vector<16x16xf32> -> vector<16x16xf32>
    %342 = arith.addf %341, %19 : vector<16x16xf32>
    %cst_126 = arith.constant dense<0xFF800000> : vector<16xf32>
    %343 = vector.multi_reduction <maximumf>, %342, %cst_126 [1] : vector<16x16xf32> to vector<16xf32>
    %344 = vector.shape_cast %343 : vector<16xf32> to vector<16x1xf32>
    %345 = vector.broadcast %344 : vector<16x1xf32> to vector<16x16xf32>
    %346 = arith.subf %342, %345 : vector<16x16xf32>
    %347 = math.exp %346 : vector<16x16xf32>
    %cst_127 = arith.constant dense<0.000000e+00> : vector<16xf32>
    %348 = vector.multi_reduction <add>, %347, %cst_127 [1] : vector<16x16xf32> to vector<16xf32>
    %349 = vector.shape_cast %348 : vector<16xf32> to vector<16x1xf32>
    %350 = tpu.reciprocal %349 {approx = true} : vector<16x1xf32> -> vector<16x1xf32>
    %351 = vector.broadcast %350 : vector<16x1xf32> to vector<16x16xf32>
    %352 = arith.mulf %347, %351 : vector<16x16xf32>
    %353 = vector.extract_strided_slice %335 {offsets = [0, 0], sizes = [16, 8], strides = [1, 1]} : vector<16x32xf32> to vector<16x8xf32>
    %cst_128 = arith.constant dense<0.000000e+00> : vector<16x8xf32>
    %354 = tpu.matmul %352, %353, %cst_128 {dimension_numbers = #tpu.dot_dimension_numbers<[1], [0], [0], [1], [0, 0, 1, 1], [], []>} : vector<16x16xf32>, vector<16x8xf32>, vector<16x8xf32> -> vector<16x8xf32>
    %355 = vector.extract_strided_slice %333 {offsets = [0, 8], sizes = [16, 8], strides = [1, 1]} : vector<16x32xf32> to vector<16x8xf32>
    %356 = vector.extract_strided_slice %338 {offsets = [8, 0], sizes = [8, 16], strides = [1, 1]} : vector<32x16xf32> to vector<8x16xf32>
    %cst_129 = arith.constant dense<0.000000e+00> : vector<16x16xf32>
    %357 = tpu.matmul %355, %356, %cst_129 {dimension_numbers = #tpu.dot_dimension_numbers<[1], [0], [0], [1], [0, 0, 1, 1], [], []>} : vector<16x8xf32>, vector<8x16xf32>, vector<16x16xf32> -> vector<16x16xf32>
    %358 = arith.addf %357, %19 : vector<16x16xf32>
    %cst_130 = arith.constant dense<0xFF800000> : vector<16xf32>
    %359 = vector.multi_reduction <maximumf>, %358, %cst_130 [1] : vector<16x16xf32> to vector<16xf32>
    %360 = vector.shape_cast %359 : vector<16xf32> to vector<16x1xf32>
    %361 = vector.broadcast %360 : vector<16x1xf32> to vector<16x16xf32>
    %362 = arith.subf %358, %361 : vector<16x16xf32>
    %363 = math.exp %362 : vector<16x16xf32>
    %cst_131 = arith.constant dense<0.000000e+00> : vector<16xf32>
    %364 = vector.multi_reduction <add>, %363, %cst_131 [1] : vector<16x16xf32> to vector<16xf32>
    %365 = vector.shape_cast %364 : vector<16xf32> to vector<16x1xf32>
    %366 = tpu.reciprocal %365 {approx = true} : vector<16x1xf32> -> vector<16x1xf32>
    %367 = vector.broadcast %366 : vector<16x1xf32> to vector<16x16xf32>
    %368 = arith.mulf %363, %367 : vector<16x16xf32>
    %369 = vector.extract_strided_slice %335 {offsets = [0, 8], sizes = [16, 8], strides = [1, 1]} : vector<16x32xf32> to vector<16x8xf32>
    %cst_132 = arith.constant dense<0.000000e+00> : vector<16x8xf32>
    %370 = tpu.matmul %368, %369, %cst_132 {dimension_numbers = #tpu.dot_dimension_numbers<[1], [0], [0], [1], [0, 0, 1, 1], [], []>} : vector<16x16xf32>, vector<16x8xf32>, vector<16x8xf32> -> vector<16x8xf32>
    %371 = vector.extract_strided_slice %333 {offsets = [0, 16], sizes = [16, 8], strides = [1, 1]} : vector<16x32xf32> to vector<16x8xf32>
    %372 = vector.extract_strided_slice %338 {offsets = [16, 0], sizes = [8, 16], strides = [1, 1]} : vector<32x16xf32> to vector<8x16xf32>
    %cst_133 = arith.constant dense<0.000000e+00> : vector<16x16xf32>
    %373 = tpu.matmul %371, %372, %cst_133 {dimension_numbers = #tpu.dot_dimension_numbers<[1], [0], [0], [1], [0, 0, 1, 1], [], []>} : vector<16x8xf32>, vector<8x16xf32>, vector<16x16xf32> -> vector<16x16xf32>
    %374 = arith.addf %373, %19 : vector<16x16xf32>
    %cst_134 = arith.constant dense<0xFF800000> : vector<16xf32>
    %375 = vector.multi_reduction <maximumf>, %374, %cst_134 [1] : vector<16x16xf32> to vector<16xf32>
    %376 = vector.shape_cast %375 : vector<16xf32> to vector<16x1xf32>
    %377 = vector.broadcast %376 : vector<16x1xf32> to vector<16x16xf32>
    %378 = arith.subf %374, %377 : vector<16x16xf32>
    %379 = math.exp %378 : vector<16x16xf32>
    %cst_135 = arith.constant dense<0.000000e+00> : vector<16xf32>
    %380 = vector.multi_reduction <add>, %379, %cst_135 [1] : vector<16x16xf32> to vector<16xf32>
    %381 = vector.shape_cast %380 : vector<16xf32> to vector<16x1xf32>
    %382 = tpu.reciprocal %381 {approx = true} : vector<16x1xf32> -> vector<16x1xf32>
    %383 = vector.broadcast %382 : vector<16x1xf32> to vector<16x16xf32>
    %384 = arith.mulf %379, %383 : vector<16x16xf32>
    %385 = vector.extract_strided_slice %335 {offsets = [0, 16], sizes = [16, 8], strides = [1, 1]} : vector<16x32xf32> to vector<16x8xf32>
    %cst_136 = arith.constant dense<0.000000e+00> : vector<16x8xf32>
    %386 = tpu.matmul %384, %385, %cst_136 {dimension_numbers = #tpu.dot_dimension_numbers<[1], [0], [0], [1], [0, 0, 1, 1], [], []>} : vector<16x16xf32>, vector<16x8xf32>, vector<16x8xf32> -> vector<16x8xf32>
    %387 = vector.extract_strided_slice %333 {offsets = [0, 24], sizes = [16, 8], strides = [1, 1]} : vector<16x32xf32> to vector<16x8xf32>
    %388 = vector.extract_strided_slice %338 {offsets = [24, 0], sizes = [8, 16], strides = [1, 1]} : vector<32x16xf32> to vector<8x16xf32>
    %cst_137 = arith.constant dense<0.000000e+00> : vector<16x16xf32>
    %389 = tpu.matmul %387, %388, %cst_137 {dimension_numbers = #tpu.dot_dimension_numbers<[1], [0], [0], [1], [0, 0, 1, 1], [], []>} : vector<16x8xf32>, vector<8x16xf32>, vector<16x16xf32> -> vector<16x16xf32>
    %390 = arith.addf %389, %19 : vector<16x16xf32>
    %cst_138 = arith.constant dense<0xFF800000> : vector<16xf32>
    %391 = vector.multi_reduction <maximumf>, %390, %cst_138 [1] : vector<16x16xf32> to vector<16xf32>
    %392 = vector.shape_cast %391 : vector<16xf32> to vector<16x1xf32>
    %393 = vector.broadcast %392 : vector<16x1xf32> to vector<16x16xf32>
    %394 = arith.subf %390, %393 : vector<16x16xf32>
    %395 = math.exp %394 : vector<16x16xf32>
    %cst_139 = arith.constant dense<0.000000e+00> : vector<16xf32>
    %396 = vector.multi_reduction <add>, %395, %cst_139 [1] : vector<16x16xf32> to vector<16xf32>
    %397 = vector.shape_cast %396 : vector<16xf32> to vector<16x1xf32>
    %398 = tpu.reciprocal %397 {approx = true} : vector<16x1xf32> -> vector<16x1xf32>
    %399 = vector.broadcast %398 : vector<16x1xf32> to vector<16x16xf32>
    %400 = arith.mulf %395, %399 : vector<16x16xf32>
    %401 = vector.extract_strided_slice %335 {offsets = [0, 24], sizes = [16, 8], strides = [1, 1]} : vector<16x32xf32> to vector<16x8xf32>
    %cst_140 = arith.constant dense<0.000000e+00> : vector<16x8xf32>
    %402 = tpu.matmul %400, %401, %cst_140 {dimension_numbers = #tpu.dot_dimension_numbers<[1], [0], [0], [1], [0, 0, 1, 1], [], []>} : vector<16x16xf32>, vector<16x8xf32>, vector<16x8xf32> -> vector<16x8xf32>
    %403 = tpu.concatenate %354, %370, %386, %402 in 1 : vector<16x8xf32>, vector<16x8xf32>, vector<16x8xf32>, vector<16x8xf32> -> vector<16x32xf32>
    %cst_141 = arith.constant dense<0.000000e+00> : vector<16x32xf32>
    %404 = tpu.matmul %403, %336, %cst_141 {dimension_numbers = #tpu.dot_dimension_numbers<[1], [0], [0], [1], [0, 0, 1, 1], [], []>} : vector<16x32xf32>, vector<32x32xf32>, vector<16x32xf32> -> vector<16x32xf32>
    %405 = vector.broadcast %337 : vector<1x32xf32> to vector<16x32xf32>
    %406 = arith.addf %404, %405 : vector<16x32xf32>
    %407 = arith.addf %327, %406 : vector<16x32xf32>
    %c551 = arith.constant 551 : index
    %c0_142 = arith.constant 0 : index
    %408 = vector.load %arg4[%c551, %c0_142] : memref<560x96xf32, #tpu.memory_space<vmem>>, vector<1x32xf32>
    %c552 = arith.constant 552 : index
    %c0_143 = arith.constant 0 : index
    %409 = vector.load %arg4[%c552, %c0_143] : memref<560x96xf32, #tpu.memory_space<vmem>>, vector<1x32xf32>
    %cst_144 = arith.constant dense<0.000000e+00> : vector<16xf32>
    %410 = vector.multi_reduction <add>, %407, %cst_144 [1] : vector<16x32xf32> to vector<16xf32>
    %411 = vector.shape_cast %410 : vector<16xf32> to vector<16x1xf32>
    %cst_145 = arith.constant 3.200000e+01 : f32
    %412 = vector.broadcast %cst_145 : f32 to vector<16x1xf32>
    %413 = arith.divf %411, %412 : vector<16x1xf32>
    %414 = vector.broadcast %413 : vector<16x1xf32> to vector<16x32xf32>
    %415 = arith.subf %407, %414 : vector<16x32xf32>
    %416 = arith.mulf %415, %415 : vector<16x32xf32>
    %cst_146 = arith.constant dense<0.000000e+00> : vector<16xf32>
    %417 = vector.multi_reduction <add>, %416, %cst_146 [1] : vector<16x32xf32> to vector<16xf32>
    %418 = vector.shape_cast %417 : vector<16xf32> to vector<16x1xf32>
    %cst_147 = arith.constant 0.0322580636 : f32
    %419 = vector.broadcast %cst_147 : f32 to vector<16x1xf32>
    %420 = arith.mulf %418, %419 : vector<16x1xf32>
    %421 = math.sqrt %420 : vector<16x1xf32>
    %cst_148 = arith.constant 9.99999997E-7 : f32
    %422 = vector.broadcast %cst_148 : f32 to vector<16x1xf32>
    %423 = arith.addf %421, %422 : vector<16x1xf32>
    %424 = tpu.reciprocal %423 : vector<16x1xf32> -> vector<16x1xf32>
    %425 = vector.broadcast %424 : vector<16x1xf32> to vector<16x32xf32>
    %426 = arith.mulf %415, %425 : vector<16x32xf32>
    %427 = vector.broadcast %408 : vector<1x32xf32> to vector<16x32xf32>
    %428 = arith.mulf %427, %426 : vector<16x32xf32>
    %429 = vector.broadcast %409 : vector<1x32xf32> to vector<16x32xf32>
    %430 = arith.addf %428, %429 : vector<16x32xf32>
    %c416 = arith.constant 416 : index
    %c0_149 = arith.constant 0 : index
    %431 = vector.load %arg4[%c416, %c0_149] : memref<560x96xf32, #tpu.memory_space<vmem>>, vector<32x32xf32>
    %cst_150 = arith.constant dense<0.000000e+00> : vector<16x32xf32>
    %432 = tpu.matmul %430, %431, %cst_150 {dimension_numbers = #tpu.dot_dimension_numbers<[1], [0], [0], [1], [0, 0, 1, 1], [], []>} : vector<16x32xf32>, vector<32x32xf32>, vector<16x32xf32> -> vector<16x32xf32>
    %c547 = arith.constant 547 : index
    %c0_151 = arith.constant 0 : index
    %433 = vector.load %arg4[%c547, %c0_151] : memref<560x96xf32, #tpu.memory_space<vmem>>, vector<1x32xf32>
    %434 = vector.broadcast %433 : vector<1x32xf32> to vector<16x32xf32>
    %435 = arith.addf %432, %434 : vector<16x32xf32>
    %c352 = arith.constant 352 : index
    %c0_152 = arith.constant 0 : index
    %436 = vector.load %arg4[%c352, %c0_152] : memref<560x96xf32, #tpu.memory_space<vmem>>, vector<32x64xf32>
    %cst_153 = arith.constant dense<0.000000e+00> : vector<16x64xf32>
    %437 = tpu.matmul %1, %436, %cst_153 {dimension_numbers = #tpu.dot_dimension_numbers<[1], [0], [0], [1], [0, 0, 1, 1], [], []>} : vector<16x32xf32>, vector<32x64xf32>, vector<16x64xf32> -> vector<16x64xf32>
    %c545 = arith.constant 545 : index
    %c0_154 = arith.constant 0 : index
    %438 = vector.load %arg4[%c545, %c0_154] : memref<560x96xf32, #tpu.memory_space<vmem>>, vector<1x64xf32>
    %439 = vector.broadcast %438 : vector<1x64xf32> to vector<16x64xf32>
    %440 = arith.addf %437, %439 : vector<16x64xf32>
    %441 = vector.extract_strided_slice %440 {offsets = [0, 0], sizes = [16, 32], strides = [1, 1]} : vector<16x64xf32> to vector<16x32xf32>
    %442 = vector.extract_strided_slice %440 {offsets = [0, 32], sizes = [16, 32], strides = [1, 1]} : vector<16x64xf32> to vector<16x32xf32>
    %c448 = arith.constant 448 : index
    %c0_155 = arith.constant 0 : index
    %443 = vector.load %arg4[%c448, %c0_155] : memref<560x96xf32, #tpu.memory_space<vmem>>, vector<32x32xf32>
    %c548 = arith.constant 548 : index
    %c0_156 = arith.constant 0 : index
    %444 = vector.load %arg4[%c548, %c0_156] : memref<560x96xf32, #tpu.memory_space<vmem>>, vector<1x32xf32>
    %445 = tpu.transpose %441, [1, 0] : vector<16x32xf32> -> vector<32x16xf32>
    %446 = vector.extract_strided_slice %435 {offsets = [0, 0], sizes = [16, 8], strides = [1, 1]} : vector<16x32xf32> to vector<16x8xf32>
    %447 = vector.extract_strided_slice %445 {offsets = [0, 0], sizes = [8, 16], strides = [1, 1]} : vector<32x16xf32> to vector<8x16xf32>
    %cst_157 = arith.constant dense<0.000000e+00> : vector<16x16xf32>
    %448 = tpu.matmul %446, %447, %cst_157 {dimension_numbers = #tpu.dot_dimension_numbers<[1], [0], [0], [1], [0, 0, 1, 1], [], []>} : vector<16x8xf32>, vector<8x16xf32>, vector<16x16xf32> -> vector<16x16xf32>
    %449 = arith.addf %448, %41 : vector<16x16xf32>
    %cst_158 = arith.constant dense<0xFF800000> : vector<16xf32>
    %450 = vector.multi_reduction <maximumf>, %449, %cst_158 [1] : vector<16x16xf32> to vector<16xf32>
    %451 = vector.shape_cast %450 : vector<16xf32> to vector<16x1xf32>
    %452 = vector.broadcast %451 : vector<16x1xf32> to vector<16x16xf32>
    %453 = arith.subf %449, %452 : vector<16x16xf32>
    %454 = math.exp %453 : vector<16x16xf32>
    %cst_159 = arith.constant dense<0.000000e+00> : vector<16xf32>
    %455 = vector.multi_reduction <add>, %454, %cst_159 [1] : vector<16x16xf32> to vector<16xf32>
    %456 = vector.shape_cast %455 : vector<16xf32> to vector<16x1xf32>
    %457 = tpu.reciprocal %456 {approx = true} : vector<16x1xf32> -> vector<16x1xf32>
    %458 = vector.broadcast %457 : vector<16x1xf32> to vector<16x16xf32>
    %459 = arith.mulf %454, %458 : vector<16x16xf32>
    %460 = vector.extract_strided_slice %442 {offsets = [0, 0], sizes = [16, 8], strides = [1, 1]} : vector<16x32xf32> to vector<16x8xf32>
    %cst_160 = arith.constant dense<0.000000e+00> : vector<16x8xf32>
    %461 = tpu.matmul %459, %460, %cst_160 {dimension_numbers = #tpu.dot_dimension_numbers<[1], [0], [0], [1], [0, 0, 1, 1], [], []>} : vector<16x16xf32>, vector<16x8xf32>, vector<16x8xf32> -> vector<16x8xf32>
    %462 = vector.extract_strided_slice %435 {offsets = [0, 8], sizes = [16, 8], strides = [1, 1]} : vector<16x32xf32> to vector<16x8xf32>
    %463 = vector.extract_strided_slice %445 {offsets = [8, 0], sizes = [8, 16], strides = [1, 1]} : vector<32x16xf32> to vector<8x16xf32>
    %cst_161 = arith.constant dense<0.000000e+00> : vector<16x16xf32>
    %464 = tpu.matmul %462, %463, %cst_161 {dimension_numbers = #tpu.dot_dimension_numbers<[1], [0], [0], [1], [0, 0, 1, 1], [], []>} : vector<16x8xf32>, vector<8x16xf32>, vector<16x16xf32> -> vector<16x16xf32>
    %465 = arith.addf %464, %41 : vector<16x16xf32>
    %cst_162 = arith.constant dense<0xFF800000> : vector<16xf32>
    %466 = vector.multi_reduction <maximumf>, %465, %cst_162 [1] : vector<16x16xf32> to vector<16xf32>
    %467 = vector.shape_cast %466 : vector<16xf32> to vector<16x1xf32>
    %468 = vector.broadcast %467 : vector<16x1xf32> to vector<16x16xf32>
    %469 = arith.subf %465, %468 : vector<16x16xf32>
    %470 = math.exp %469 : vector<16x16xf32>
    %cst_163 = arith.constant dense<0.000000e+00> : vector<16xf32>
    %471 = vector.multi_reduction <add>, %470, %cst_163 [1] : vector<16x16xf32> to vector<16xf32>
    %472 = vector.shape_cast %471 : vector<16xf32> to vector<16x1xf32>
    %473 = tpu.reciprocal %472 {approx = true} : vector<16x1xf32> -> vector<16x1xf32>
    %474 = vector.broadcast %473 : vector<16x1xf32> to vector<16x16xf32>
    %475 = arith.mulf %470, %474 : vector<16x16xf32>
    %476 = vector.extract_strided_slice %442 {offsets = [0, 8], sizes = [16, 8], strides = [1, 1]} : vector<16x32xf32> to vector<16x8xf32>
    %cst_164 = arith.constant dense<0.000000e+00> : vector<16x8xf32>
    %477 = tpu.matmul %475, %476, %cst_164 {dimension_numbers = #tpu.dot_dimension_numbers<[1], [0], [0], [1], [0, 0, 1, 1], [], []>} : vector<16x16xf32>, vector<16x8xf32>, vector<16x8xf32> -> vector<16x8xf32>
    %478 = vector.extract_strided_slice %435 {offsets = [0, 16], sizes = [16, 8], strides = [1, 1]} : vector<16x32xf32> to vector<16x8xf32>
    %479 = vector.extract_strided_slice %445 {offsets = [16, 0], sizes = [8, 16], strides = [1, 1]} : vector<32x16xf32> to vector<8x16xf32>
    %cst_165 = arith.constant dense<0.000000e+00> : vector<16x16xf32>
    %480 = tpu.matmul %478, %479, %cst_165 {dimension_numbers = #tpu.dot_dimension_numbers<[1], [0], [0], [1], [0, 0, 1, 1], [], []>} : vector<16x8xf32>, vector<8x16xf32>, vector<16x16xf32> -> vector<16x16xf32>
    %481 = arith.addf %480, %41 : vector<16x16xf32>
    %cst_166 = arith.constant dense<0xFF800000> : vector<16xf32>
    %482 = vector.multi_reduction <maximumf>, %481, %cst_166 [1] : vector<16x16xf32> to vector<16xf32>
    %483 = vector.shape_cast %482 : vector<16xf32> to vector<16x1xf32>
    %484 = vector.broadcast %483 : vector<16x1xf32> to vector<16x16xf32>
    %485 = arith.subf %481, %484 : vector<16x16xf32>
    %486 = math.exp %485 : vector<16x16xf32>
    %cst_167 = arith.constant dense<0.000000e+00> : vector<16xf32>
    %487 = vector.multi_reduction <add>, %486, %cst_167 [1] : vector<16x16xf32> to vector<16xf32>
    %488 = vector.shape_cast %487 : vector<16xf32> to vector<16x1xf32>
    %489 = tpu.reciprocal %488 {approx = true} : vector<16x1xf32> -> vector<16x1xf32>
    %490 = vector.broadcast %489 : vector<16x1xf32> to vector<16x16xf32>
    %491 = arith.mulf %486, %490 : vector<16x16xf32>
    %492 = vector.extract_strided_slice %442 {offsets = [0, 16], sizes = [16, 8], strides = [1, 1]} : vector<16x32xf32> to vector<16x8xf32>
    %cst_168 = arith.constant dense<0.000000e+00> : vector<16x8xf32>
    %493 = tpu.matmul %491, %492, %cst_168 {dimension_numbers = #tpu.dot_dimension_numbers<[1], [0], [0], [1], [0, 0, 1, 1], [], []>} : vector<16x16xf32>, vector<16x8xf32>, vector<16x8xf32> -> vector<16x8xf32>
    %494 = vector.extract_strided_slice %435 {offsets = [0, 24], sizes = [16, 8], strides = [1, 1]} : vector<16x32xf32> to vector<16x8xf32>
    %495 = vector.extract_strided_slice %445 {offsets = [24, 0], sizes = [8, 16], strides = [1, 1]} : vector<32x16xf32> to vector<8x16xf32>
    %cst_169 = arith.constant dense<0.000000e+00> : vector<16x16xf32>
    %496 = tpu.matmul %494, %495, %cst_169 {dimension_numbers = #tpu.dot_dimension_numbers<[1], [0], [0], [1], [0, 0, 1, 1], [], []>} : vector<16x8xf32>, vector<8x16xf32>, vector<16x16xf32> -> vector<16x16xf32>
    %497 = arith.addf %496, %41 : vector<16x16xf32>
    %cst_170 = arith.constant dense<0xFF800000> : vector<16xf32>
    %498 = vector.multi_reduction <maximumf>, %497, %cst_170 [1] : vector<16x16xf32> to vector<16xf32>
    %499 = vector.shape_cast %498 : vector<16xf32> to vector<16x1xf32>
    %500 = vector.broadcast %499 : vector<16x1xf32> to vector<16x16xf32>
    %501 = arith.subf %497, %500 : vector<16x16xf32>
    %502 = math.exp %501 : vector<16x16xf32>
    %cst_171 = arith.constant dense<0.000000e+00> : vector<16xf32>
    %503 = vector.multi_reduction <add>, %502, %cst_171 [1] : vector<16x16xf32> to vector<16xf32>
    %504 = vector.shape_cast %503 : vector<16xf32> to vector<16x1xf32>
    %505 = tpu.reciprocal %504 {approx = true} : vector<16x1xf32> -> vector<16x1xf32>
    %506 = vector.broadcast %505 : vector<16x1xf32> to vector<16x16xf32>
    %507 = arith.mulf %502, %506 : vector<16x16xf32>
    %508 = vector.extract_strided_slice %442 {offsets = [0, 24], sizes = [16, 8], strides = [1, 1]} : vector<16x32xf32> to vector<16x8xf32>
    %cst_172 = arith.constant dense<0.000000e+00> : vector<16x8xf32>
    %509 = tpu.matmul %507, %508, %cst_172 {dimension_numbers = #tpu.dot_dimension_numbers<[1], [0], [0], [1], [0, 0, 1, 1], [], []>} : vector<16x16xf32>, vector<16x8xf32>, vector<16x8xf32> -> vector<16x8xf32>
    %510 = tpu.concatenate %461, %477, %493, %509 in 1 : vector<16x8xf32>, vector<16x8xf32>, vector<16x8xf32>, vector<16x8xf32> -> vector<16x32xf32>
    %cst_173 = arith.constant dense<0.000000e+00> : vector<16x32xf32>
    %511 = tpu.matmul %510, %443, %cst_173 {dimension_numbers = #tpu.dot_dimension_numbers<[1], [0], [0], [1], [0, 0, 1, 1], [], []>} : vector<16x32xf32>, vector<32x32xf32>, vector<16x32xf32> -> vector<16x32xf32>
    %512 = vector.broadcast %444 : vector<1x32xf32> to vector<16x32xf32>
    %513 = arith.addf %511, %512 : vector<16x32xf32>
    %514 = arith.addf %430, %513 : vector<16x32xf32>
    %c553 = arith.constant 553 : index
    %c0_174 = arith.constant 0 : index
    %515 = vector.load %arg4[%c553, %c0_174] : memref<560x96xf32, #tpu.memory_space<vmem>>, vector<1x32xf32>
    %c554 = arith.constant 554 : index
    %c0_175 = arith.constant 0 : index
    %516 = vector.load %arg4[%c554, %c0_175] : memref<560x96xf32, #tpu.memory_space<vmem>>, vector<1x32xf32>
    %cst_176 = arith.constant dense<0.000000e+00> : vector<16xf32>
    %517 = vector.multi_reduction <add>, %514, %cst_176 [1] : vector<16x32xf32> to vector<16xf32>
    %518 = vector.shape_cast %517 : vector<16xf32> to vector<16x1xf32>
    %cst_177 = arith.constant 3.200000e+01 : f32
    %519 = vector.broadcast %cst_177 : f32 to vector<16x1xf32>
    %520 = arith.divf %518, %519 : vector<16x1xf32>
    %521 = vector.broadcast %520 : vector<16x1xf32> to vector<16x32xf32>
    %522 = arith.subf %514, %521 : vector<16x32xf32>
    %523 = arith.mulf %522, %522 : vector<16x32xf32>
    %cst_178 = arith.constant dense<0.000000e+00> : vector<16xf32>
    %524 = vector.multi_reduction <add>, %523, %cst_178 [1] : vector<16x32xf32> to vector<16xf32>
    %525 = vector.shape_cast %524 : vector<16xf32> to vector<16x1xf32>
    %cst_179 = arith.constant 0.0322580636 : f32
    %526 = vector.broadcast %cst_179 : f32 to vector<16x1xf32>
    %527 = arith.mulf %525, %526 : vector<16x1xf32>
    %528 = math.sqrt %527 : vector<16x1xf32>
    %cst_180 = arith.constant 9.99999997E-7 : f32
    %529 = vector.broadcast %cst_180 : f32 to vector<16x1xf32>
    %530 = arith.addf %528, %529 : vector<16x1xf32>
    %531 = tpu.reciprocal %530 : vector<16x1xf32> -> vector<16x1xf32>
    %532 = vector.broadcast %531 : vector<16x1xf32> to vector<16x32xf32>
    %533 = arith.mulf %522, %532 : vector<16x32xf32>
    %534 = vector.broadcast %515 : vector<1x32xf32> to vector<16x32xf32>
    %535 = arith.mulf %534, %533 : vector<16x32xf32>
    %536 = vector.broadcast %516 : vector<1x32xf32> to vector<16x32xf32>
    %537 = arith.addf %535, %536 : vector<16x32xf32>
    %c480 = arith.constant 480 : index
    %c0_181 = arith.constant 0 : index
    %538 = vector.load %arg4[%c480, %c0_181] : memref<560x96xf32, #tpu.memory_space<vmem>>, vector<32x32xf32>
    %cst_182 = arith.constant dense<0.000000e+00> : vector<16x32xf32>
    %539 = tpu.matmul %537, %538, %cst_182 {dimension_numbers = #tpu.dot_dimension_numbers<[1], [0], [0], [1], [0, 0, 1, 1], [], []>} : vector<16x32xf32>, vector<32x32xf32>, vector<16x32xf32> -> vector<16x32xf32>
    %c549 = arith.constant 549 : index
    %c0_183 = arith.constant 0 : index
    %540 = vector.load %arg4[%c549, %c0_183] : memref<560x96xf32, #tpu.memory_space<vmem>>, vector<1x32xf32>
    %541 = vector.broadcast %540 : vector<1x32xf32> to vector<16x32xf32>
    %542 = arith.addf %539, %541 : vector<16x32xf32>
    %cst_184 = arith.constant 0.000000e+00 : f32
    %543 = vector.broadcast %cst_184 : f32 to vector<16x32xf32>
    %544 = arith.maximumf %542, %543 : vector<16x32xf32>
    %c512 = arith.constant 512 : index
    %c0_185 = arith.constant 0 : index
    %545 = vector.load %arg4[%c512, %c0_185] : memref<560x96xf32, #tpu.memory_space<vmem>>, vector<32x32xf32>
    %cst_186 = arith.constant dense<0.000000e+00> : vector<16x32xf32>
    %546 = tpu.matmul %544, %545, %cst_186 {dimension_numbers = #tpu.dot_dimension_numbers<[1], [0], [0], [1], [0, 0, 1, 1], [], []>} : vector<16x32xf32>, vector<32x32xf32>, vector<16x32xf32> -> vector<16x32xf32>
    %547 = arith.addf %537, %546 : vector<16x32xf32>
    %c550 = arith.constant 550 : index
    %c0_187 = arith.constant 0 : index
    %548 = vector.load %arg4[%c550, %c0_187] : memref<560x96xf32, #tpu.memory_space<vmem>>, vector<1x32xf32>
    %549 = vector.broadcast %548 : vector<1x32xf32> to vector<16x32xf32>
    %550 = arith.addf %547, %549 : vector<16x32xf32>
    %c555 = arith.constant 555 : index
    %c0_188 = arith.constant 0 : index
    %551 = vector.load %arg4[%c555, %c0_188] : memref<560x96xf32, #tpu.memory_space<vmem>>, vector<1x32xf32>
    %c556 = arith.constant 556 : index
    %c0_189 = arith.constant 0 : index
    %552 = vector.load %arg4[%c556, %c0_189] : memref<560x96xf32, #tpu.memory_space<vmem>>, vector<1x32xf32>
    %cst_190 = arith.constant dense<0.000000e+00> : vector<16xf32>
    %553 = vector.multi_reduction <add>, %550, %cst_190 [1] : vector<16x32xf32> to vector<16xf32>
    %554 = vector.shape_cast %553 : vector<16xf32> to vector<16x1xf32>
    %cst_191 = arith.constant 3.200000e+01 : f32
    %555 = vector.broadcast %cst_191 : f32 to vector<16x1xf32>
    %556 = arith.divf %554, %555 : vector<16x1xf32>
    %557 = vector.broadcast %556 : vector<16x1xf32> to vector<16x32xf32>
    %558 = arith.subf %550, %557 : vector<16x32xf32>
    %559 = arith.mulf %558, %558 : vector<16x32xf32>
    %cst_192 = arith.constant dense<0.000000e+00> : vector<16xf32>
    %560 = vector.multi_reduction <add>, %559, %cst_192 [1] : vector<16x32xf32> to vector<16xf32>
    %561 = vector.shape_cast %560 : vector<16xf32> to vector<16x1xf32>
    %cst_193 = arith.constant 0.0322580636 : f32
    %562 = vector.broadcast %cst_193 : f32 to vector<16x1xf32>
    %563 = arith.mulf %561, %562 : vector<16x1xf32>
    %564 = math.sqrt %563 : vector<16x1xf32>
    %cst_194 = arith.constant 9.99999997E-7 : f32
    %565 = vector.broadcast %cst_194 : f32 to vector<16x1xf32>
    %566 = arith.addf %564, %565 : vector<16x1xf32>
    %567 = tpu.reciprocal %566 : vector<16x1xf32> -> vector<16x1xf32>
    %568 = vector.broadcast %567 : vector<16x1xf32> to vector<16x32xf32>
    %569 = arith.mulf %558, %568 : vector<16x32xf32>
    %570 = vector.broadcast %551 : vector<1x32xf32> to vector<16x32xf32>
    %571 = arith.mulf %570, %569 : vector<16x32xf32>
    %572 = vector.broadcast %552 : vector<1x32xf32> to vector<16x32xf32>
    %573 = arith.addf %571, %572 : vector<16x32xf32>
    %c77 = arith.constant 77 : index
    %c0_195 = arith.constant 0 : index
    %574 = vector.load %arg4[%c77, %c0_195] : memref<560x96xf32, #tpu.memory_space<vmem>>, vector<1x32xf32>
    %c78 = arith.constant 78 : index
    %c0_196 = arith.constant 0 : index
    %575 = vector.load %arg4[%c78, %c0_196] : memref<560x96xf32, #tpu.memory_space<vmem>>, vector<1x32xf32>
    %cst_197 = arith.constant dense<0.000000e+00> : vector<16xf32>
    %576 = vector.multi_reduction <add>, %573, %cst_197 [1] : vector<16x32xf32> to vector<16xf32>
    %577 = vector.shape_cast %576 : vector<16xf32> to vector<16x1xf32>
    %cst_198 = arith.constant 3.200000e+01 : f32
    %578 = vector.broadcast %cst_198 : f32 to vector<16x1xf32>
    %579 = arith.divf %577, %578 : vector<16x1xf32>
    %580 = vector.broadcast %579 : vector<16x1xf32> to vector<16x32xf32>
    %581 = arith.subf %573, %580 : vector<16x32xf32>
    %582 = arith.mulf %581, %581 : vector<16x32xf32>
    %cst_199 = arith.constant dense<0.000000e+00> : vector<16xf32>
    %583 = vector.multi_reduction <add>, %582, %cst_199 [1] : vector<16x32xf32> to vector<16xf32>
    %584 = vector.shape_cast %583 : vector<16xf32> to vector<16x1xf32>
    %cst_200 = arith.constant 0.0322580636 : f32
    %585 = vector.broadcast %cst_200 : f32 to vector<16x1xf32>
    %586 = arith.mulf %584, %585 : vector<16x1xf32>
    %587 = math.sqrt %586 : vector<16x1xf32>
    %cst_201 = arith.constant 9.99999997E-7 : f32
    %588 = vector.broadcast %cst_201 : f32 to vector<16x1xf32>
    %589 = arith.addf %587, %588 : vector<16x1xf32>
    %590 = tpu.reciprocal %589 : vector<16x1xf32> -> vector<16x1xf32>
    %591 = vector.broadcast %590 : vector<16x1xf32> to vector<16x32xf32>
    %592 = arith.mulf %581, %591 : vector<16x32xf32>
    %593 = vector.broadcast %574 : vector<1x32xf32> to vector<16x32xf32>
    %594 = arith.mulf %593, %592 : vector<16x32xf32>
    %595 = vector.broadcast %575 : vector<1x32xf32> to vector<16x32xf32>
    %596 = arith.addf %594, %595 : vector<16x32xf32>
    %c0_202 = arith.constant 0 : index
    %c0_203 = arith.constant 0 : index
    %597 = vector.load %arg5[%c0_202, %c0_203] : memref<16x32xf32, #tpu.memory_space<vmem>>, vector<16x32xf32>
    tpu.vector_store %arg5[%c0_202, %c0_203], %596 {strides = array<i32>} : memref<16x32xf32, #tpu.memory_space<vmem>>, vector<16x32xf32>,
    return
  }
}

</mosaic_0001>

<llo_original>
// kernel: transformer_decoder_forward.1
$region0: #{transformer_decoder_forward.1}
  #allocation0 [shape = 'u32[]', space=smem, size = 0x4, offset = 0x4, fixed_abs, tag = 'smem constant byte address 0x4 - core index']
  #allocation1 [shape = 'u32[144,128]{1,0:T(1,128)}', space=vmem, size = 0x12000, scoped, tag = 'internal scratch']
  %s0 = inlined_call_operand.vmem [shape: f32[16,8], index: 0, kind: input, shape index: {}]
  %s1 = inlined_call_operand.vmem [shape: f32[16,32], index: 1, kind: input, shape index: {}]
  %s2 = inlined_call_operand.vmem [shape: f32[2,8,8], index: 2, kind: input, shape index: {}]
  %s3 = inlined_call_operand.vmem [shape: f32[2,1,8], index: 3, kind: input, shape index: {}]
  %s4 = inlined_call_operand.vmem [shape: f32[560,96], index: 4, kind: input, shape index: {}]
  %s5 = inlined_call_operand.hbm [shape: f32[16,32], index: 5, kind: output, shape index: {}]
  %s6 = sld [smem:[#allocation0]]
  $region30: #{transformer_decoder_forward.1} parent=0
    _
  %s8 = ssub.s32 1, %s6
  %s9 = scalar_select 0, %s8, %s6
  $region1: #{transformer_decoder_forward.1} parent=0
    #allocation2 [shape = 'u8[8192]{0}', space=vmem, size = 0x2000, scoped, tag = 'output window, operand 0, single buffered']
    #allocation3 [shape = 's32[1]{0}', space=sflag, size = 0x4, scoped, tag = 'scoped memory for transformer_decoder_forward.1']
    %10 = vsyncpa [#allocation3], 0
    // Predicated region
    $region2: #{transformer_decoder_forward.1} parent=1 // pred_check
      _
    $region3: #{transformer_decoder_forward.1} parent=1 // pred_check_branch
      %12 = sbr.rel (0) target = $region5
    $region4: #{transformer_decoder_forward.1} parent=1 // pred_region
      _
    $region5: #{transformer_decoder_forward.1} parent=1 // pred_fallthru
      _
    // Predicated region
    $region6: #{transformer_decoder_forward.1} parent=1 // pred_check
      _
    $region7: #{transformer_decoder_forward.1} parent=1 // pred_check_branch
      %14 = sbr.rel (0) target = $region9
    $region8: #{transformer_decoder_forward.1} parent=1 // pred_region
      _
    $region9: #{transformer_decoder_forward.1} parent=1 // pred_fallthru
      _
    // Predicated region
    $region10: #{transformer_decoder_forward.1} parent=1 // pred_check
      _
    $region11: #{transformer_decoder_forward.1} parent=1 // pred_check_branch
      %16 = sbr.rel (0) target = $region13
    $region12: #{transformer_decoder_forward.1} parent=1 // pred_region
      _
    $region13: #{transformer_decoder_forward.1} parent=1 // pred_fallthru
      _
    // Predicated region
    $region14: #{transformer_decoder_forward.1} parent=1 // pred_check
      _
    $region15: #{transformer_decoder_forward.1} parent=1 // pred_check_branch
      %18 = sbr.rel (0) target = $region17
    $region16: #{transformer_decoder_forward.1} parent=1 // pred_region
      _
    $region17: #{transformer_decoder_forward.1} parent=1 // pred_fallthru
      _
    // Predicated region
    $region18: #{transformer_decoder_forward.1} parent=1 // pred_check
      _
    $region19: #{transformer_decoder_forward.1} parent=1 // pred_check_branch
      %20 = sbr.rel (0) target = $region21
    $region20: #{transformer_decoder_forward.1} parent=1 // pred_region
      _
    $region21: #{transformer_decoder_forward.1} parent=1 // pred_fallthru
      _
    %v21 = vld [vmem:[%s0] sm:$0xff]
    %v22 = vld [vmem:[%s0 + $0x8] sm:$0xff]
    %v23 = vld [vmem:[%s1] sm:$0xff]
    %v24 = vld [vmem:[%s1 + $0x8] sm:$0xff]
    %v25 = vld [vmem:[%s2] sm:$0xff]
    %vm26 = vcmp.gt.f32.partialorder %v25, 0.0
    %v27 = vsel %vm26, 0.0, -1e+09
    %vm28 = vcmask 64512
    %v29 = vsel %vm28, %v27, -1e+09
    %s30 = scalar_lea.vmem %s2, 8
    %v31 = vld [vmem:[%s30] sm:$0xff]
    %vm32 = vcmp.gt.f32.partialorder %v31, 0.0
    %v33 = vsel %vm32, 0.0, -1e+09
    %35 = vrot.lane.b32.xlu0 %v33, 8
    %v36 = vpop.permute.xlu0 %35
    %v38 = vsel %vm28, -1e+09, %v36
    %v39 = vld [vmem:[%s3] sm:$0x1]
    %v41 = vlaneseq
    %v42 = vshrl.u32 %v41, 7
    %v43 = vsub.s32 0, %v42
    %v44 = vrot.slane %v39, %v43
    %vm46 = vcmp.gt.f32.partialorder %v44, 0.0
    %v47 = vsel %vm46, 0.0, -1e+09
    %v48 = vsel %vm28, %v47, -1e+09
    %s49 = scalar_lea.vmem %s3, 1
    %v50 = vld [vmem:[%s49] sm:$0x1]
    %v52 = vlaneseq
    %v53 = vshrl.u32 %v52, 7
    %v54 = vsub.s32 0, %v53
    %v55 = vrot.slane %v50, %v54
    %vm57 = vcmp.gt.f32.partialorder %v55, 0.0
    %v58 = vsel %vm57, 0.0, -1e+09
    %60 = vrot.lane.b32.xlu0 %v58, 8
    %v61 = vpop.permute.xlu0 %60
    %v63 = vsel %vm28, -1e+09, %v61
    %v64 = vld [vmem:[%s4] sm:$0xff]
    %v65 = vld [vmem:[%s4 + $0x48] sm:$0x1]
    %v66 = vlaneseq
    %v67 = vshrl.u32 %v66, 7
    %v68 = vsub.s32 0, %v67
    %v69 = vrot.slane %v65, %v68
    %v71 = vsel %vm28, %v21, 0
    %v74 = vsel %vm28, %v22, 0
    %76 = vmatprep.subr.mxu0 0.0
    %77 = vmatpush1.msra.mxu0 %v64
    %78 = vmatprep.subr.mxu0 0.0
    %79 = vmatpush1.msra.mxu0 0.0
    %80 = vmatprep.subr.mxu0 0.0
    %81 = vmatpush1.msra.mxu0 0.0
    %82 = vmatprep.subr.mxu0 0.0
    %83 = vmatpush1.msra.mxu0 0.0
    %84 = vmatprep.subr.mxu0 0.0
    %85 = vmatpush1.msra.mxu0 0.0
    %86 = vmatprep.subr.mxu0 0.0
    %87 = vmatpush1.msra.mxu0 0.0
    %88 = vmatprep.subr.mxu0 0.0
    %89 = vmatpush1.msra.mxu0 0.0
    %90 = vmatprep.subr.mxu0 0.0
    %91 = vmatpush1.msra.mxu0 0.0
    %92 = vmatprep.subr.mxu0 0.0
    %93 = vmatpush1.msra.mxu0 0.0
    %94 = vmatprep.subr.mxu0 0.0
    %95 = vmatpush1.msra.mxu0 0.0
    %96 = vmatprep.subr.mxu0 0.0
    %97 = vmatpush1.msra.mxu0 0.0
    %98 = vmatprep.subr.mxu0 0.0
    %99 = vmatpush1.msra.mxu0 0.0
    %100 = vmatprep.subr.mxu0 0.0
    %101 = vmatpush1.msra.mxu0 0.0
    %102 = vmatprep.subr.mxu0 0.0
    %103 = vmatpush1.msra.mxu0 0.0
    %104 = vmatprep.subr.mxu0 0.0
    %105 = vmatpush1.msra.mxu0 0.0
    %106 = vmatprep.subr.mxu0 0.0
    %107 = vmatpush1.msra.mxu0 0.0
    %108 = vmatprep.subr.mxu0 0.0
    %109 = vmatpush1.msra.mxu0 0.0
    %110 = vmatprep.subr.mxu0 0.0
    %111 = vmatpush1.msra.mxu0 0.0
    %112 = vmatprep.subr.mxu0 0.0
    %113 = vmatpush1.msra.mxu0 0.0
    %114 = vmatprep.subr.mxu0 0.0
    %115 = vmatpush1.msra.mxu0 0.0
    %116 = vmatprep.subr.mxu0 0.0
    %117 = vmatpush1.msra.mxu0 0.0
    %118 = vmatprep.subr.mxu0 0.0
    %119 = vmatpush1.msra.mxu0 0.0
    %120 = vmatprep.subr.mxu0 0.0
    %121 = vmatpush1.msra.mxu0 0.0
    %122 = vmatprep.subr.mxu0 0.0
    %123 = vmatpush1.msra.mxu0 0.0
    %124 = vmatprep.subr.mxu0 0.0
    %125 = vmatpush1.msra.mxu0 0.0
    %126 = vmatprep.subr.mxu0 0.0
    %127 = vmatpush1.msra.mxu0 0.0
    %128 = vmatprep.subr.mxu0 0.0
    %129 = vmatpush1.msra.mxu0 0.0
    %130 = vmatprep.subr.mxu0 0.0
    %131 = vmatpush1.msra.mxu0 0.0
    %132 = vmatprep.subr.mxu0 0.0
    %133 = vmatpush1.msra.mxu0 0.0
    %134 = vmatprep.subr.mxu0 0.0
    %135 = vmatpush1.msra.mxu0 0.0
    %136 = vmatprep.subr.mxu0 0.0
    %137 = vmatpush1.msra.mxu0 0.0
    %138 = vmatprep.subr.mxu0 0.0
    %139 = vmatpush1.msra.mxu0 0.0
    %140 = vmatprep.mubr.f32.mxu0 0.0
    %141 = vmatmul.mubr.f32.gmra.mrb[0].mxu0 %v71
    %v142 = vpop.f32.mrb[0].mxu0
    %v143 = vadd.f32 %v69, %v142
    %v144 = vpop.f32.mrb[0].mxu0
    %145 = vmatprep.mubr.f32.mxu0 0.0
    %146 = vmatmul.mubr.f32.gmra.mrb[0].mxu0 %v74
    %v147 = vpop.f32.mrb[0].mxu0
    %v148 = vadd.f32 %v69, %v147
    %v149 = vpop.f32.mrb[0].mxu0
    %150 = vdwg.mxu0
    %v151 = vld [vmem:[%s4 + $0x4b] sm:$0x1]
    %v152 = vld [vmem:[%s4 + $0x4c] sm:$0x1]
    %vm153 = vcmask 261120
    %v154 = vsel %vm153, %v143, 0.0
    %155 = vadd.xlane.f32.xlu0 %v154
    %v156 = vpop.xlane.xlu0 %155
    %v157 = vsel %vm153, %v148, 0.0
    %158 = vadd.xlane.f32.xlu0 %v157
    %v159 = vpop.xlane.xlu0 %158
    %v160 = vrcp.pop 32.0
    %v161 = vmul.f32 %v156, %v160
    %v162 = vmul.f32 %v159, %v160
    %v163 = vsub.f32 %v143, %v161
    %v164 = vsub.f32 %v148, %v162
    %v165 = vmul.f32 %v163, %v163
    %v166 = vmul.f32 %v164, %v164
    %v167 = vsel %vm153, %v165, 0.0
    %168 = vadd.xlane.f32.xlu0 %v167
    %v169 = vpop.xlane.xlu0 %168
    %v170 = vsel %vm153, %v166, 0.0
    %171 = vadd.xlane.f32.xlu0 %v170
    %v172 = vpop.xlane.xlu0 %171
    %v173 = vmul.f32 %v169, 0.032258064
    %v174 = vmul.f32 %v172, 0.032258064
    %v175 = vrsqrt.pop %v173
    %v176 = vmul.f32 %v173, %v175
    %vm177 = vcmp.eq.f32.partialorder %v173, inf
    %v178 = vsel %vm177, %v173, %v176
    %vm179 = vcmp.eq.f32.partialorder %v173, 0.0
    %v180 = vand.u32 %v173, 2147483648
    %v181 = vsel %vm179, %v180, %v178
    %v182 = vrsqrt.pop %v174
    %v183 = vmul.f32 %v174, %v182
    %vm184 = vcmp.eq.f32.partialorder %v174, inf
    %v185 = vsel %vm184, %v174, %v183
    %vm186 = vcmp.eq.f32.partialorder %v174, 0.0
    %v187 = vand.u32 %v174, 2147483648
    %v188 = vsel %vm186, %v187, %v185
    %v189 = vadd.f32 %v181, 1e-06
    %v190 = vadd.f32 %v188, 1e-06
    %v191 = vrcp.pop %v189
    %v192 = vrcp.pop %v190
    %v193 = vmul.f32 %v163, %v191
    %v194 = vmul.f32 %v164, %v192
    %v195 = vlaneseq
    %v196 = vshrl.u32 %v195, 7
    %v197 = vsub.s32 0, %v196
    %v198 = vrot.slane %v151, %v197
    %v199 = vmul.f32 %v198, %v193
    %v200 = vmul.f32 %v198, %v194
    %v201 = vlaneseq
    %v202 = vshrl.u32 %v201, 7
    %v203 = vsub.s32 0, %v202
    %v204 = vrot.slane %v152, %v203
    %v205 = vadd.f32 %v199, %v204
    %v206 = vadd.f32 %v200, %v204
    %v207 = vld [vmem:[%s4 + $0x8] sm:$0xff]
    %v208 = vld [vmem:[%s4 + $0x10] sm:$0xff]
    %v209 = vld [vmem:[%s4 + $0x18] sm:$0xff]
    %v210 = vld [vmem:[%s4 + $0x20] sm:$0xff]
    %v211 = vld [vmem:[%s4 + $0x49] sm:$0x1]
    %v212 = vlaneseq
    %v213 = vshrl.u32 %v212, 7
    %v214 = vsub.s32 0, %v213
    %v215 = vrot.slane %v211, %v214
    %v217 = vsel %vm153, %v205, 0
    %v220 = vsel %vm153, %v206, 0
    %222 = vmatprep.subr.mxu0 0.0
    %223 = vmatpush1.msra.mxu0 %v207
    %224 = vmatprep.subr.mxu0 0.0
    %225 = vmatpush1.msra.mxu0 %v208
    %226 = vmatprep.subr.mxu0 0.0
    %227 = vmatpush1.msra.mxu0 %v209
    %228 = vmatprep.subr.mxu0 0.0
    %229 = vmatpush1.msra.mxu0 %v210
    %230 = vmatprep.subr.mxu0 0.0
    %231 = vmatpush1.msra.mxu0 0.0
    %232 = vmatprep.subr.mxu0 0.0
    %233 = vmatpush1.msra.mxu0 0.0
    %234 = vmatprep.subr.mxu0 0.0
    %235 = vmatpush1.msra.mxu0 0.0
    %236 = vmatprep.subr.mxu0 0.0
    %237 = vmatpush1.msra.mxu0 0.0
    %238 = vmatprep.subr.mxu0 0.0
    %239 = vmatpush1.msra.mxu0 0.0
    %240 = vmatprep.subr.mxu0 0.0
    %241 = vmatpush1.msra.mxu0 0.0
    %242 = vmatprep.subr.mxu0 0.0
    %243 = vmatpush1.msra.mxu0 0.0
    %244 = vmatprep.subr.mxu0 0.0
    %245 = vmatpush1.msra.mxu0 0.0
    %246 = vmatprep.subr.mxu0 0.0
    %247 = vmatpush1.msra.mxu0 0.0
    %248 = vmatprep.subr.mxu0 0.0
    %249 = vmatpush1.msra.mxu0 0.0
    %250 = vmatprep.subr.mxu0 0.0
    %251 = vmatpush1.msra.mxu0 0.0
    %252 = vmatprep.subr.mxu0 0.0
    %253 = vmatpush1.msra.mxu0 0.0
    %254 = vmatprep.subr.mxu0 0.0
    %255 = vmatpush1.msra.mxu0 0.0
    %256 = vmatprep.subr.mxu0 0.0
    %257 = vmatpush1.msra.mxu0 0.0
    %258 = vmatprep.subr.mxu0 0.0
    %259 = vmatpush1.msra.mxu0 0.0
    %260 = vmatprep.subr.mxu0 0.0
    %261 = vmatpush1.msra.mxu0 0.0
    %262 = vmatprep.subr.mxu0 0.0
    %263 = vmatpush1.msra.mxu0 0.0
    %264 = vmatprep.subr.mxu0 0.0
    %265 = vmatpush1.msra.mxu0 0.0
    %266 = vmatprep.subr.mxu0 0.0
    %267 = vmatpush1.msra.mxu0 0.0
    %268 = vmatprep.subr.mxu0 0.0
    %269 = vmatpush1.msra.mxu0 0.0
    %270 = vmatprep.subr.mxu0 0.0
    %271 = vmatpush1.msra.mxu0 0.0
    %272 = vmatprep.subr.mxu0 0.0
    %273 = vmatpush1.msra.mxu0 0.0
    %274 = vmatprep.subr.mxu0 0.0
    %275 = vmatpush1.msra.mxu0 0.0
    %276 = vmatprep.subr.mxu0 0.0
    %277 = vmatpush1.msra.mxu0 0.0
    %278 = vmatprep.subr.mxu0 0.0
    %279 = vmatpush1.msra.mxu0 0.0
    %280 = vmatprep.subr.mxu0 0.0
    %281 = vmatpush1.msra.mxu0 0.0
    %282 = vmatprep.subr.mxu0 0.0
    %283 = vmatpush1.msra.mxu0 0.0
    %284 = vmatprep.subr.mxu0 0.0
    %285 = vmatpush1.msra.mxu0 0.0
    %286 = vmatprep.mubr.f32.mxu0 0.0
    %287 = vmatmul.mubr.f32.gmra.mrb[0].mxu0 %v217
    %v288 = vpop.f32.mrb[0].mxu0
    %v289 = vadd.f32 %v215, %v288
    %v290 = vpop.f32.mrb[0].mxu0
    %291 = vmatprep.mubr.f32.mxu0 0.0
    %292 = vmatmul.mubr.f32.gmra.mrb[0].mxu0 %v220
    %v293 = vpop.f32.mrb[0].mxu0
    %v294 = vadd.f32 %v215, %v293
    %v295 = vpop.f32.mrb[0].mxu0
    %296 = vdwg.mxu0
    %v297 = vmax.f32 %v289, 0.0
    %v298 = vmax.f32 %v294, 0.0
    %v299 = vld [vmem:[%s4 + $0x28] sm:$0xff]
    %v300 = vld [vmem:[%s4 + $0x30] sm:$0xff]
    %v301 = vld [vmem:[%s4 + $0x38] sm:$0xff]
    %v302 = vld [vmem:[%s4 + $0x40] sm:$0xff]
    %v303 = vld [vmem:[%s4 + $0x4a] sm:$0x1]
    %v304 = vlaneseq
    %v305 = vshrl.u32 %v304, 7
    %v306 = vsub.s32 0, %v305
    %v307 = vrot.slane %v303, %v306
    %v309 = vsel %vm153, %v297, 0
    %v312 = vsel %vm153, %v298, 0
    %314 = vmatprep.subr.mxu0 0.0
    %315 = vmatpush1.msra.mxu0 %v299
    %316 = vmatprep.subr.mxu0 0.0
    %317 = vmatpush1.msra.mxu0 %v300
    %318 = vmatprep.subr.mxu0 0.0
    %319 = vmatpush1.msra.mxu0 %v301
    %320 = vmatprep.subr.mxu0 0.0
    %321 = vmatpush1.msra.mxu0 %v302
    %322 = vmatprep.subr.mxu0 0.0
    %323 = vmatpush1.msra.mxu0 0.0
    %324 = vmatprep.subr.mxu0 0.0
    %325 = vmatpush1.msra.mxu0 0.0
    %326 = vmatprep.subr.mxu0 0.0
    %327 = vmatpush1.msra.mxu0 0.0
    %328 = vmatprep.subr.mxu0 0.0
    %329 = vmatpush1.msra.mxu0 0.0
    %330 = vmatprep.subr.mxu0 0.0
    %331 = vmatpush1.msra.mxu0 0.0
    %332 = vmatprep.subr.mxu0 0.0
    %333 = vmatpush1.msra.mxu0 0.0
    %334 = vmatprep.subr.mxu0 0.0
    %335 = vmatpush1.msra.mxu0 0.0
    %336 = vmatprep.subr.mxu0 0.0
    %337 = vmatpush1.msra.mxu0 0.0
    %338 = vmatprep.subr.mxu0 0.0
    %339 = vmatpush1.msra.mxu0 0.0
    %340 = vmatprep.subr.mxu0 0.0
    %341 = vmatpush1.msra.mxu0 0.0
    %342 = vmatprep.subr.mxu0 0.0
    %343 = vmatpush1.msra.mxu0 0.0
    %344 = vmatprep.subr.mxu0 0.0
    %345 = vmatpush1.msra.mxu0 0.0
    %346 = vmatprep.subr.mxu0 0.0
    %347 = vmatpush1.msra.mxu0 0.0
    %348 = vmatprep.subr.mxu0 0.0
    %349 = vmatpush1.msra.mxu0 0.0
    %350 = vmatprep.subr.mxu0 0.0
    %351 = vmatpush1.msra.mxu0 0.0
    %352 = vmatprep.subr.mxu0 0.0
    %353 = vmatpush1.msra.mxu0 0.0
    %354 = vmatprep.subr.mxu0 0.0
    %355 = vmatpush1.msra.mxu0 0.0
    %356 = vmatprep.subr.mxu0 0.0
    %357 = vmatpush1.msra.mxu0 0.0
    %358 = vmatprep.subr.mxu0 0.0
    %359 = vmatpush1.msra.mxu0 0.0
    %360 = vmatprep.subr.mxu0 0.0
    %361 = vmatpush1.msra.mxu0 0.0
    %362 = vmatprep.subr.mxu0 0.0
    %363 = vmatpush1.msra.mxu0 0.0
    %364 = vmatprep.subr.mxu0 0.0
    %365 = vmatpush1.msra.mxu0 0.0
    %366 = vmatprep.subr.mxu0 0.0
    %367 = vmatpush1.msra.mxu0 0.0
    %368 = vmatprep.subr.mxu0 0.0
    %369 = vmatpush1.msra.mxu0 0.0
    %370 = vmatprep.subr.mxu0 0.0
    %371 = vmatpush1.msra.mxu0 0.0
    %372 = vmatprep.subr.mxu0 0.0
    %373 = vmatpush1.msra.mxu0 0.0
    %374 = vmatprep.subr.mxu0 0.0
    %375 = vmatpush1.msra.mxu0 0.0
    %376 = vmatprep.subr.mxu0 0.0
    %377 = vmatpush1.msra.mxu0 0.0
    %378 = vmatprep.mubr.f32.mxu0 0.0
    %379 = vmatmul.mubr.f32.gmra.mrb[0].mxu0 %v309
    %v380 = vpop.f32.mrb[0].mxu0
    %v381 = vadd.f32 %v307, %v380
    %v382 = vpop.f32.mrb[0].mxu0
    %383 = vmatprep.mubr.f32.mxu0 0.0
    %384 = vmatmul.mubr.f32.gmra.mrb[0].mxu0 %v312
    %v385 = vpop.f32.mrb[0].mxu0
    %v386 = vadd.f32 %v307, %v385
    %v387 = vpop.f32.mrb[0].mxu0
    %388 = vdwg.mxu0
    %v389 = vld [vmem:[%s4 + $0x50] sm:$0xff]
    %v390 = vld [vmem:[%s4 + $0x58] sm:$0xff]
    %v391 = vld [vmem:[%s4 + $0x60] sm:$0xff]
    %v392 = vld [vmem:[%s4 + $0x68] sm:$0xff]
    %v393 = vld [vmem:[%s4 + $0x130] sm:$0x1]
    %v394 = vlaneseq
    %v395 = vshrl.u32 %v394, 7
    %v396 = vsub.s32 0, %v395
    %v397 = vrot.slane %v393, %v396
    %v399 = vsel %vm153, %v381, 0
    %v402 = vsel %vm153, %v386, 0
    %404 = vmatprep.subr.mxu0 0.0
    %405 = vmatpush1.msra.mxu0 %v389
    %406 = vmatprep.subr.mxu0 0.0
    %407 = vmatpush1.msra.mxu0 %v390
    %408 = vmatprep.subr.mxu0 0.0
    %409 = vmatpush1.msra.mxu0 %v391
    %410 = vmatprep.subr.mxu0 0.0
    %411 = vmatpush1.msra.mxu0 %v392
    %412 = vmatprep.subr.mxu0 0.0
    %413 = vmatpush1.msra.mxu0 0.0
    %414 = vmatprep.subr.mxu0 0.0
    %415 = vmatpush1.msra.mxu0 0.0
    %416 = vmatprep.subr.mxu0 0.0
    %417 = vmatpush1.msra.mxu0 0.0
    %418 = vmatprep.subr.mxu0 0.0
    %419 = vmatpush1.msra.mxu0 0.0
    %420 = vmatprep.subr.mxu0 0.0
    %421 = vmatpush1.msra.mxu0 0.0
    %422 = vmatprep.subr.mxu0 0.0
    %423 = vmatpush1.msra.mxu0 0.0
    %424 = vmatprep.subr.mxu0 0.0
    %425 = vmatpush1.msra.mxu0 0.0
    %426 = vmatprep.subr.mxu0 0.0
    %427 = vmatpush1.msra.mxu0 0.0
    %428 = vmatprep.subr.mxu0 0.0
    %429 = vmatpush1.msra.mxu0 0.0
    %430 = vmatprep.subr.mxu0 0.0
    %431 = vmatpush1.msra.mxu0 0.0
    %432 = vmatprep.subr.mxu0 0.0
    %433 = vmatpush1.msra.mxu0 0.0
    %434 = vmatprep.subr.mxu0 0.0
    %435 = vmatpush1.msra.mxu0 0.0
    %436 = vmatprep.subr.mxu0 0.0
    %437 = vmatpush1.msra.mxu0 0.0
    %438 = vmatprep.subr.mxu0 0.0
    %439 = vmatpush1.msra.mxu0 0.0
    %440 = vmatprep.subr.mxu0 0.0
    %441 = vmatpush1.msra.mxu0 0.0
    %442 = vmatprep.subr.mxu0 0.0
    %443 = vmatpush1.msra.mxu0 0.0
    %444 = vmatprep.subr.mxu0 0.0
    %445 = vmatpush1.msra.mxu0 0.0
    %446 = vmatprep.subr.mxu0 0.0
    %447 = vmatpush1.msra.mxu0 0.0
    %448 = vmatprep.subr.mxu0 0.0
    %449 = vmatpush1.msra.mxu0 0.0
    %450 = vmatprep.subr.mxu0 0.0
    %451 = vmatpush1.msra.mxu0 0.0
    %452 = vmatprep.subr.mxu0 0.0
    %453 = vmatpush1.msra.mxu0 0.0
    %454 = vmatprep.subr.mxu0 0.0
    %455 = vmatpush1.msra.mxu0 0.0
    %456 = vmatprep.subr.mxu0 0.0
    %457 = vmatpush1.msra.mxu0 0.0
    %458 = vmatprep.subr.mxu0 0.0
    %459 = vmatpush1.msra.mxu0 0.0
    %460 = vmatprep.subr.mxu0 0.0
    %461 = vmatpush1.msra.mxu0 0.0
    %462 = vmatprep.subr.mxu0 0.0
    %463 = vmatpush1.msra.mxu0 0.0
    %464 = vmatprep.subr.mxu0 0.0
    %465 = vmatpush1.msra.mxu0 0.0
    %466 = vmatprep.subr.mxu0 0.0
    %467 = vmatpush1.msra.mxu0 0.0
    %468 = vmatprep.mubr.f32.mxu0 0.0
    %469 = vmatmul.mubr.f32.gmra.mrb[0].mxu0 %v399
    %v470 = vpop.f32.mrb[0].mxu0
    %v471 = vadd.f32 %v397, %v470
    %v472 = vpop.f32.mrb[0].mxu0
    %473 = vmatprep.mubr.f32.mxu0 0.0
    %474 = vmatmul.mubr.f32.gmra.mrb[0].mxu0 %v402
    %v475 = vpop.f32.mrb[0].mxu0
    %v476 = vadd.f32 %v397, %v475
    %v477 = vpop.f32.mrb[0].mxu0
    %478 = vdwg.mxu0
    %v479 = vld [vmem:[%s4 + $0x90] sm:$0xff]
    %v480 = vld [vmem:[%s4 + $0x98] sm:$0xff]
    %v481 = vld [vmem:[%s4 + $0xa0] sm:$0xff]
    %v482 = vld [vmem:[%s4 + $0xa8] sm:$0xff]
    %v483 = vld [vmem:[%s4 + $0x132] sm:$0x1]
    %486 = vrot.lane.b32.xlu0 %v471, 96
    %v487 = vpop.permute.xlu0 %486
    %488 = vrot.lane.b32.xlu0 %v476, 96
    %v489 = vpop.permute.xlu0 %488
    %v490 = vsel %vm28, %v471, 0
    %v492 = vsel %vm28, %v476, 0
    %v494 = vsel %vm28, %v487, 0
    %v496 = vsel %vm28, %v489, 0
    %498 = vmatprep.subr.mxu0 0.0
    %499 = vmatpush1.xpose.msra.mxu0 %v494
    %500 = vmatprep.subr.mxu0 0.0
    %501 = vmatpush1.xpose.msra.mxu0 %v496
    %502 = vmatprep.subr.mxu0 0.0
    %503 = vmatpush1.xpose.msra.mxu0 0.0
    %504 = vmatprep.subr.mxu0 0.0
    %505 = vmatpush1.xpose.msra.mxu0 0.0
    %506 = vmatprep.subr.mxu0 0.0
    %507 = vmatpush1.xpose.msra.mxu0 0.0
    %508 = vmatprep.subr.mxu0 0.0
    %509 = vmatpush1.xpose.msra.mxu0 0.0
    %510 = vmatprep.subr.mxu0 0.0
    %511 = vmatpush1.xpose.msra.mxu0 0.0
    %512 = vmatprep.subr.mxu0 0.0
    %513 = vmatpush1.xpose.msra.mxu0 0.0
    %514 = vmatprep.subr.mxu0 0.0
    %515 = vmatpush1.xpose.msra.mxu0 0.0
    %516 = vmatprep.subr.mxu0 0.0
    %517 = vmatpush1.xpose.msra.mxu0 0.0
    %518 = vmatprep.subr.mxu0 0.0
    %519 = vmatpush1.xpose.msra.mxu0 0.0
    %520 = vmatprep.subr.mxu0 0.0
    %521 = vmatpush1.xpose.msra.mxu0 0.0
    %522 = vmatprep.subr.mxu0 0.0
    %523 = vmatpush1.xpose.msra.mxu0 0.0
    %524 = vmatprep.subr.mxu0 0.0
    %525 = vmatpush1.xpose.msra.mxu0 0.0
    %526 = vmatprep.subr.mxu0 0.0
    %527 = vmatpush1.xpose.msra.mxu0 0.0
    %528 = vmatprep.subr.mxu0 0.0
    %529 = vmatpush1.xpose.msra.mxu0 0.0
    %530 = vmatprep.subr.mxu0 0.0
    %531 = vmatpush1.xpose.msra.mxu0 0.0
    %532 = vmatprep.subr.mxu0 0.0
    %533 = vmatpush1.xpose.msra.mxu0 0.0
    %534 = vmatprep.subr.mxu0 0.0
    %535 = vmatpush1.xpose.msra.mxu0 0.0
    %536 = vmatprep.subr.mxu0 0.0
    %537 = vmatpush1.xpose.msra.mxu0 0.0
    %538 = vmatprep.subr.mxu0 0.0
    %539 = vmatpush1.xpose.msra.mxu0 0.0
    %540 = vmatprep.subr.mxu0 0.0
    %541 = vmatpush1.xpose.msra.mxu0 0.0
    %542 = vmatprep.subr.mxu0 0.0
    %543 = vmatpush1.xpose.msra.mxu0 0.0
    %544 = vmatprep.subr.mxu0 0.0
    %545 = vmatpush1.xpose.msra.mxu0 0.0
    %546 = vmatprep.subr.mxu0 0.0
    %547 = vmatpush1.xpose.msra.mxu0 0.0
    %548 = vmatprep.subr.mxu0 0.0
    %549 = vmatpush1.xpose.msra.mxu0 0.0
    %550 = vmatprep.subr.mxu0 0.0
    %551 = vmatpush1.xpose.msra.mxu0 0.0
    %552 = vmatprep.subr.mxu0 0.0
    %553 = vmatpush1.xpose.msra.mxu0 0.0
    %554 = vmatprep.subr.mxu0 0.0
    %555 = vmatpush1.xpose.msra.mxu0 0.0
    %556 = vmatprep.subr.mxu0 0.0
    %557 = vmatpush1.xpose.msra.mxu0 0.0
    %558 = vmatprep.subr.mxu0 0.0
    %559 = vmatpush1.xpose.msra.mxu0 0.0
    %560 = vmatprep.subr.mxu0 0.0
    %561 = vmatpush1.xpose.msra.mxu0 0.0
    %562 = vmatprep.mubr.f32.mxu0 0.0
    %563 = vmatmul.mubr.f32.gmra.mrb[0].mxu0 %v490
    %v564 = vpop.f32.mrb[0].mxu0
    %v565 = vadd.f32 %v29, %v564
    %v566 = vpop.f32.mrb[0].mxu0
    %567 = vmatprep.mubr.f32.mxu0 0.0
    %568 = vmatmul.mubr.f32.gmra.mrb[0].mxu0 %v492
    %v569 = vpop.f32.mrb[0].mxu0
    %v570 = vadd.f32 %v38, %v569
    %v571 = vpop.f32.mrb[0].mxu0
    %572 = vdwg.mxu0
    %vm573 = vcmask 130048
    %v574 = vsel %vm573, %v565, -inf
    %575 = vmax.xlane.f32.xlu0 %v574
    %v576 = vpop.xlane.xlu0 %575
    %v577 = vsel %vm573, %v570, -inf
    %578 = vmax.xlane.f32.xlu0 %v577
    %v579 = vpop.xlane.xlu0 %578
    %v580 = vsub.f32 %v565, %v576
    %v581 = vsub.f32 %v570, %v579
    %v582 = vmul.f32 %v580, 1.442695
    %v583 = vpow.pop %v582
    %v584 = vmul.f32 %v581, 1.442695
    %v585 = vpow.pop %v584
    %v586 = vsel %vm573, %v583, 0.0
    %587 = vadd.xlane.f32.xlu0 %v586
    %v588 = vpop.xlane.xlu0 %587
    %v589 = vsel %vm573, %v585, 0.0
    %590 = vadd.xlane.f32.xlu0 %v589
    %v591 = vpop.xlane.xlu0 %590
    %v592 = vrcp.pop %v588
    %v593 = vrcp.pop %v591
    %v594 = vmul.f32 %v583, %v592
    %v595 = vmul.f32 %v585, %v593
    %596 = vrot.lane.b32.xlu0 %v471, 64
    %v597 = vpop.permute.xlu0 %596
    %598 = vrot.lane.b32.xlu0 %v476, 64
    %v599 = vpop.permute.xlu0 %598
    %v603 = vsel %vm573, %v594, 0
    %v606 = vsel %vm573, %v595, 0
    %608 = vmatprep.subr.mxu0 0.0
    %609 = vmatpush1.msra.mxu0 %v597
    %610 = vmatprep.subr.mxu0 0.0
    %611 = vmatpush1.msra.mxu0 %v599
    %612 = vmatprep.subr.mxu0 0.0
    %613 = vmatpush1.msra.mxu0 0.0
    %614 = vmatprep.subr.mxu0 0.0
    %615 = vmatpush1.msra.mxu0 0.0
    %616 = vmatprep.subr.mxu0 0.0
    %617 = vmatpush1.msra.mxu0 0.0
    %618 = vmatprep.subr.mxu0 0.0
    %619 = vmatpush1.msra.mxu0 0.0
    %620 = vmatprep.subr.mxu0 0.0
    %621 = vmatpush1.msra.mxu0 0.0
    %622 = vmatprep.subr.mxu0 0.0
    %623 = vmatpush1.msra.mxu0 0.0
    %624 = vmatprep.subr.mxu0 0.0
    %625 = vmatpush1.msra.mxu0 0.0
    %626 = vmatprep.subr.mxu0 0.0
    %627 = vmatpush1.msra.mxu0 0.0
    %628 = vmatprep.subr.mxu0 0.0
    %629 = vmatpush1.msra.mxu0 0.0
    %630 = vmatprep.subr.mxu0 0.0
    %631 = vmatpush1.msra.mxu0 0.0
    %632 = vmatprep.subr.mxu0 0.0
    %633 = vmatpush1.msra.mxu0 0.0
    %634 = vmatprep.subr.mxu0 0.0
    %635 = vmatpush1.msra.mxu0 0.0
    %636 = vmatprep.subr.mxu0 0.0
    %637 = vmatpush1.msra.mxu0 0.0
    %638 = vmatprep.subr.mxu0 0.0
    %639 = vmatpush1.msra.mxu0 0.0
    %640 = vmatprep.subr.mxu0 0.0
    %641 = vmatpush1.msra.mxu0 0.0
    %642 = vmatprep.subr.mxu0 0.0
    %643 = vmatpush1.msra.mxu0 0.0
    %644 = vmatprep.subr.mxu0 0.0
    %645 = vmatpush1.msra.mxu0 0.0
    %646 = vmatprep.subr.mxu0 0.0
    %647 = vmatpush1.msra.mxu0 0.0
    %648 = vmatprep.subr.mxu0 0.0
    %649 = vmatpush1.msra.mxu0 0.0
    %650 = vmatprep.subr.mxu0 0.0
    %651 = vmatpush1.msra.mxu0 0.0
    %652 = vmatprep.subr.mxu0 0.0
    %653 = vmatpush1.msra.mxu0 0.0
    %654 = vmatprep.subr.mxu0 0.0
    %655 = vmatpush1.msra.mxu0 0.0
    %656 = vmatprep.subr.mxu0 0.0
    %657 = vmatpush1.msra.mxu0 0.0
    %658 = vmatprep.subr.mxu0 0.0
    %659 = vmatpush1.msra.mxu0 0.0
    %660 = vmatprep.subr.mxu0 0.0
    %661 = vmatpush1.msra.mxu0 0.0
    %662 = vmatprep.subr.mxu0 0.0
    %663 = vmatpush1.msra.mxu0 0.0
    %664 = vmatprep.subr.mxu0 0.0
    %665 = vmatpush1.msra.mxu0 0.0
    %666 = vmatprep.subr.mxu0 0.0
    %667 = vmatpush1.msra.mxu0 0.0
    %668 = vmatprep.subr.mxu0 0.0
    %669 = vmatpush1.msra.mxu0 0.0
    %670 = vmatprep.subr.mxu0 0.0
    %671 = vmatpush1.msra.mxu0 0.0
    %672 = vmatprep.mubr.f32.mxu0 0.0
    %673 = vmatmul.mubr.f32.gmra.mrb[0].mxu0 %v603
    %v674 = vpop.f32.mrb[0].mxu0
    %v675 = vadd.f32 0.0, %v674
    %v676 = vpop.f32.mrb[0].mxu0
    %677 = vmatprep.mubr.f32.mxu0 0.0
    %678 = vmatmul.mubr.f32.gmra.mrb[0].mxu0 %v606
    %v679 = vpop.f32.mrb[0].mxu0
    %v680 = vadd.f32 0.0, %v679
    %v681 = vpop.f32.mrb[0].mxu0
    %682 = vdwg.mxu0
    %683 = vrot.lane.b32.xlu0 %v471, 120
    %v684 = vpop.permute.xlu0 %683
    %685 = vrot.lane.b32.xlu0 %v476, 120
    %v686 = vpop.permute.xlu0 %685
    %687 = vrot.lane.b32.xlu0 %v471, 88
    %v688 = vpop.permute.xlu0 %687
    %689 = vrot.lane.b32.xlu0 %v476, 88
    %v690 = vpop.permute.xlu0 %689
    %v691 = vsel %vm28, %v684, 0
    %v693 = vsel %vm28, %v686, 0
    %v695 = vsel %vm28, %v688, 0
    %v697 = vsel %vm28, %v690, 0
    %699 = vmatprep.subr.mxu0 0.0
    %700 = vmatpush1.xpose.msra.mxu0 %v695
    %701 = vmatprep.subr.mxu0 0.0
    %702 = vmatpush1.xpose.msra.mxu0 %v697
    %703 = vmatprep.subr.mxu0 0.0
    %704 = vmatpush1.xpose.msra.mxu0 0.0
    %705 = vmatprep.subr.mxu0 0.0
    %706 = vmatpush1.xpose.msra.mxu0 0.0
    %707 = vmatprep.subr.mxu0 0.0
    %708 = vmatpush1.xpose.msra.mxu0 0.0
    %709 = vmatprep.subr.mxu0 0.0
    %710 = vmatpush1.xpose.msra.mxu0 0.0
    %711 = vmatprep.subr.mxu0 0.0
    %712 = vmatpush1.xpose.msra.mxu0 0.0
    %713 = vmatprep.subr.mxu0 0.0
    %714 = vmatpush1.xpose.msra.mxu0 0.0
    %715 = vmatprep.subr.mxu0 0.0
    %716 = vmatpush1.xpose.msra.mxu0 0.0
    %717 = vmatprep.subr.mxu0 0.0
    %718 = vmatpush1.xpose.msra.mxu0 0.0
    %719 = vmatprep.subr.mxu0 0.0
    %720 = vmatpush1.xpose.msra.mxu0 0.0
    %721 = vmatprep.subr.mxu0 0.0
    %722 = vmatpush1.xpose.msra.mxu0 0.0
    %723 = vmatprep.subr.mxu0 0.0
    %724 = vmatpush1.xpose.msra.mxu0 0.0
    %725 = vmatprep.subr.mxu0 0.0
    %726 = vmatpush1.xpose.msra.mxu0 0.0
    %727 = vmatprep.subr.mxu0 0.0
    %728 = vmatpush1.xpose.msra.mxu0 0.0
    %729 = vmatprep.subr.mxu0 0.0
    %730 = vmatpush1.xpose.msra.mxu0 0.0
    %731 = vmatprep.subr.mxu0 0.0
    %732 = vmatpush1.xpose.msra.mxu0 0.0
    %733 = vmatprep.subr.mxu0 0.0
    %734 = vmatpush1.xpose.msra.mxu0 0.0
    %735 = vmatprep.subr.mxu0 0.0
    %736 = vmatpush1.xpose.msra.mxu0 0.0
    %737 = vmatprep.subr.mxu0 0.0
    %738 = vmatpush1.xpose.msra.mxu0 0.0
    %739 = vmatprep.subr.mxu0 0.0
    %740 = vmatpush1.xpose.msra.mxu0 0.0
    %741 = vmatprep.subr.mxu0 0.0
    %742 = vmatpush1.xpose.msra.mxu0 0.0
    %743 = vmatprep.subr.mxu0 0.0
    %744 = vmatpush1.xpose.msra.mxu0 0.0
    %745 = vmatprep.subr.mxu0 0.0
    %746 = vmatpush1.xpose.msra.mxu0 0.0
    %747 = vmatprep.subr.mxu0 0.0
    %748 = vmatpush1.xpose.msra.mxu0 0.0
    %749 = vmatprep.subr.mxu0 0.0
    %750 = vmatpush1.xpose.msra.mxu0 0.0
    %751 = vmatprep.subr.mxu0 0.0
    %752 = vmatpush1.xpose.msra.mxu0 0.0
    %753 = vmatprep.subr.mxu0 0.0
    %754 = vmatpush1.xpose.msra.mxu0 0.0
    %755 = vmatprep.subr.mxu0 0.0
    %756 = vmatpush1.xpose.msra.mxu0 0.0
    %757 = vmatprep.subr.mxu0 0.0
    %758 = vmatpush1.xpose.msra.mxu0 0.0
    %759 = vmatprep.subr.mxu0 0.0
    %760 = vmatpush1.xpose.msra.mxu0 0.0
    %761 = vmatprep.subr.mxu0 0.0
    %762 = vmatpush1.xpose.msra.mxu0 0.0
    %763 = vmatprep.mubr.f32.mxu0 0.0
    %764 = vmatmul.mubr.f32.gmra.mrb[0].mxu0 %v691
    %v765 = vpop.f32.mrb[0].mxu0
    %v766 = vadd.f32 %v29, %v765
    %v767 = vpop.f32.mrb[0].mxu0
    %768 = vmatprep.mubr.f32.mxu0 0.0
    %769 = vmatmul.mubr.f32.gmra.mrb[0].mxu0 %v693
    %v770 = vpop.f32.mrb[0].mxu0
    %v771 = vadd.f32 %v38, %v770
    %v772 = vpop.f32.mrb[0].mxu0
    %773 = vdwg.mxu0
    %v774 = vsel %vm573, %v766, -inf
    %775 = vmax.xlane.f32.xlu0 %v774
    %v776 = vpop.xlane.xlu0 %775
    %v777 = vsel %vm573, %v771, -inf
    %778 = vmax.xlane.f32.xlu0 %v777
    %v779 = vpop.xlane.xlu0 %778
    %v780 = vsub.f32 %v766, %v776
    %v781 = vsub.f32 %v771, %v779
    %v782 = vmul.f32 %v780, 1.442695
    %v783 = vpow.pop %v782
    %v784 = vmul.f32 %v781, 1.442695
    %v785 = vpow.pop %v784
    %v786 = vsel %vm573, %v783, 0.0
    %787 = vadd.xlane.f32.xlu0 %v786
    %v788 = vpop.xlane.xlu0 %787
    %v789 = vsel %vm573, %v785, 0.0
    %790 = vadd.xlane.f32.xlu0 %v789
    %v791 = vpop.xlane.xlu0 %790
    %v792 = vrcp.pop %v788
    %v793 = vrcp.pop %v791
    %v794 = vmul.f32 %v783, %v792
    %v795 = vmul.f32 %v785, %v793
    %796 = vrot.lane.b32.xlu0 %v471, 56
    %v797 = vpop.permute.xlu0 %796
    %798 = vrot.lane.b32.xlu0 %v476, 56
    %v799 = vpop.permute.xlu0 %798
    %v803 = vsel %vm573, %v794, 0
    %v806 = vsel %vm573, %v795, 0
    %808 = vmatprep.subr.mxu0 0.0
    %809 = vmatpush1.msra.mxu0 %v797
    %810 = vmatprep.subr.mxu0 0.0
    %811 = vmatpush1.msra.mxu0 %v799
    %812 = vmatprep.subr.mxu0 0.0
    %813 = vmatpush1.msra.mxu0 0.0
    %814 = vmatprep.subr.mxu0 0.0
    %815 = vmatpush1.msra.mxu0 0.0
    %816 = vmatprep.subr.mxu0 0.0
    %817 = vmatpush1.msra.mxu0 0.0
    %818 = vmatprep.subr.mxu0 0.0
    %819 = vmatpush1.msra.mxu0 0.0
    %820 = vmatprep.subr.mxu0 0.0
    %821 = vmatpush1.msra.mxu0 0.0
    %822 = vmatprep.subr.mxu0 0.0
    %823 = vmatpush1.msra.mxu0 0.0
    %824 = vmatprep.subr.mxu0 0.0
    %825 = vmatpush1.msra.mxu0 0.0
    %826 = vmatprep.subr.mxu0 0.0
    %827 = vmatpush1.msra.mxu0 0.0
    %828 = vmatprep.subr.mxu0 0.0
    %829 = vmatpush1.msra.mxu0 0.0
    %830 = vmatprep.subr.mxu0 0.0
    %831 = vmatpush1.msra.mxu0 0.0
    %832 = vmatprep.subr.mxu0 0.0
    %833 = vmatpush1.msra.mxu0 0.0
    %834 = vmatprep.subr.mxu0 0.0
    %835 = vmatpush1.msra.mxu0 0.0
    %836 = vmatprep.subr.mxu0 0.0
    %837 = vmatpush1.msra.mxu0 0.0
    %838 = vmatprep.subr.mxu0 0.0
    %839 = vmatpush1.msra.mxu0 0.0
    %840 = vmatprep.subr.mxu0 0.0
    %841 = vmatpush1.msra.mxu0 0.0
    %842 = vmatprep.subr.mxu0 0.0
    %843 = vmatpush1.msra.mxu0 0.0
    %844 = vmatprep.subr.mxu0 0.0
    %845 = vmatpush1.msra.mxu0 0.0
    %846 = vmatprep.subr.mxu0 0.0
    %847 = vmatpush1.msra.mxu0 0.0
    %848 = vmatprep.subr.mxu0 0.0
    %849 = vmatpush1.msra.mxu0 0.0
    %850 = vmatprep.subr.mxu0 0.0
    %851 = vmatpush1.msra.mxu0 0.0
    %852 = vmatprep.subr.mxu0 0.0
    %853 = vmatpush1.msra.mxu0 0.0
    %854 = vmatprep.subr.mxu0 0.0
    %855 = vmatpush1.msra.mxu0 0.0
    %856 = vmatprep.subr.mxu0 0.0
    %857 = vmatpush1.msra.mxu0 0.0
    %858 = vmatprep.subr.mxu0 0.0
    %859 = vmatpush1.msra.mxu0 0.0
    %860 = vmatprep.subr.mxu0 0.0
    %861 = vmatpush1.msra.mxu0 0.0
    %862 = vmatprep.subr.mxu0 0.0
    %863 = vmatpush1.msra.mxu0 0.0
    %864 = vmatprep.subr.mxu0 0.0
    %865 = vmatpush1.msra.mxu0 0.0
    %866 = vmatprep.subr.mxu0 0.0
    %867 = vmatpush1.msra.mxu0 0.0
    %868 = vmatprep.subr.mxu0 0.0
    %869 = vmatpush1.msra.mxu0 0.0
    %870 = vmatprep.subr.mxu0 0.0
    %871 = vmatpush1.msra.mxu0 0.0
    %872 = vmatprep.mubr.f32.mxu0 0.0
    %873 = vmatmul.mubr.f32.gmra.mrb[0].mxu0 %v803
    %v874 = vpop.f32.mrb[0].mxu0
    %v875 = vadd.f32 0.0, %v874
    %v876 = vpop.f32.mrb[0].mxu0
    %877 = vmatprep.mubr.f32.mxu0 0.0
    %878 = vmatmul.mubr.f32.gmra.mrb[0].mxu0 %v806
    %v879 = vpop.f32.mrb[0].mxu0
    %v880 = vadd.f32 0.0, %v879
    %v881 = vpop.f32.mrb[0].mxu0
    %882 = vdwg.mxu0
    %883 = vrot.lane.b32.xlu0 %v471, 112
    %v884 = vpop.permute.xlu0 %883
    %885 = vrot.lane.b32.xlu0 %v476, 112
    %v886 = vpop.permute.xlu0 %885
    %887 = vrot.lane.b32.xlu0 %v471, 80
    %v888 = vpop.permute.xlu0 %887
    %889 = vrot.lane.b32.xlu0 %v476, 80
    %v890 = vpop.permute.xlu0 %889
    %v891 = vsel %vm28, %v884, 0
    %v893 = vsel %vm28, %v886, 0
    %v895 = vsel %vm28, %v888, 0
    %v897 = vsel %vm28, %v890, 0
    %899 = vmatprep.subr.mxu0 0.0
    %900 = vmatpush1.xpose.msra.mxu0 %v895
    %901 = vmatprep.subr.mxu0 0.0
    %902 = vmatpush1.xpose.msra.mxu0 %v897
    %903 = vmatprep.subr.mxu0 0.0
    %904 = vmatpush1.xpose.msra.mxu0 0.0
    %905 = vmatprep.subr.mxu0 0.0
    %906 = vmatpush1.xpose.msra.mxu0 0.0
    %907 = vmatprep.subr.mxu0 0.0
    %908 = vmatpush1.xpose.msra.mxu0 0.0
    %909 = vmatprep.subr.mxu0 0.0
    %910 = vmatpush1.xpose.msra.mxu0 0.0
    %911 = vmatprep.subr.mxu0 0.0
    %912 = vmatpush1.xpose.msra.mxu0 0.0
    %913 = vmatprep.subr.mxu0 0.0
    %914 = vmatpush1.xpose.msra.mxu0 0.0
    %915 = vmatprep.subr.mxu0 0.0
    %916 = vmatpush1.xpose.msra.mxu0 0.0
    %917 = vmatprep.subr.mxu0 0.0
    %918 = vmatpush1.xpose.msra.mxu0 0.0
    %919 = vmatprep.subr.mxu0 0.0
    %920 = vmatpush1.xpose.msra.mxu0 0.0
    %921 = vmatprep.subr.mxu0 0.0
    %922 = vmatpush1.xpose.msra.mxu0 0.0
    %923 = vmatprep.subr.mxu0 0.0
    %924 = vmatpush1.xpose.msra.mxu0 0.0
    %925 = vmatprep.subr.mxu0 0.0
    %926 = vmatpush1.xpose.msra.mxu0 0.0
    %927 = vmatprep.subr.mxu0 0.0
    %928 = vmatpush1.xpose.msra.mxu0 0.0
    %929 = vmatprep.subr.mxu0 0.0
    %930 = vmatpush1.xpose.msra.mxu0 0.0
    %931 = vmatprep.subr.mxu0 0.0
    %932 = vmatpush1.xpose.msra.mxu0 0.0
    %933 = vmatprep.subr.mxu0 0.0
    %934 = vmatpush1.xpose.msra.mxu0 0.0
    %935 = vmatprep.subr.mxu0 0.0
    %936 = vmatpush1.xpose.msra.mxu0 0.0
    %937 = vmatprep.subr.mxu0 0.0
    %938 = vmatpush1.xpose.msra.mxu0 0.0
    %939 = vmatprep.subr.mxu0 0.0
    %940 = vmatpush1.xpose.msra.mxu0 0.0
    %941 = vmatprep.subr.mxu0 0.0
    %942 = vmatpush1.xpose.msra.mxu0 0.0
    %943 = vmatprep.subr.mxu0 0.0
    %944 = vmatpush1.xpose.msra.mxu0 0.0
    %945 = vmatprep.subr.mxu0 0.0
    %946 = vmatpush1.xpose.msra.mxu0 0.0
    %947 = vmatprep.subr.mxu0 0.0
    %948 = vmatpush1.xpose.msra.mxu0 0.0
    %949 = vmatprep.subr.mxu0 0.0
    %950 = vmatpush1.xpose.msra.mxu0 0.0
    %951 = vmatprep.subr.mxu0 0.0
    %952 = vmatpush1.xpose.msra.mxu0 0.0
    %953 = vmatprep.subr.mxu0 0.0
    %954 = vmatpush1.xpose.msra.mxu0 0.0
    %955 = vmatprep.subr.mxu0 0.0
    %956 = vmatpush1.xpose.msra.mxu0 0.0
    %957 = vmatprep.subr.mxu0 0.0
    %958 = vmatpush1.xpose.msra.mxu0 0.0
    %959 = vmatprep.subr.mxu0 0.0
    %960 = vmatpush1.xpose.msra.mxu0 0.0
    %961 = vmatprep.subr.mxu0 0.0
    %962 = vmatpush1.xpose.msra.mxu0 0.0
    %963 = vmatprep.mubr.f32.mxu0 0.0
    %964 = vmatmul.mubr.f32.gmra.mrb[0].mxu0 %v891
    %v965 = vpop.f32.mrb[0].mxu0
    %v966 = vadd.f32 %v29, %v965
    %v967 = vpop.f32.mrb[0].mxu0
    %968 = vmatprep.mubr.f32.mxu0 0.0
    %969 = vmatmul.mubr.f32.gmra.mrb[0].mxu0 %v893
    %v970 = vpop.f32.mrb[0].mxu0
    %v971 = vadd.f32 %v38, %v970
    %v972 = vpop.f32.mrb[0].mxu0
    %973 = vdwg.mxu0
    %v974 = vsel %vm573, %v966, -inf
    %975 = vmax.xlane.f32.xlu0 %v974
    %v976 = vpop.xlane.xlu0 %975
    %v977 = vsel %vm573, %v971, -inf
    %978 = vmax.xlane.f32.xlu0 %v977
    %v979 = vpop.xlane.xlu0 %978
    %v980 = vsub.f32 %v966, %v976
    %v981 = vsub.f32 %v971, %v979
    %v982 = vmul.f32 %v980, 1.442695
    %v983 = vpow.pop %v982
    %v984 = vmul.f32 %v981, 1.442695
    %v985 = vpow.pop %v984
    %v986 = vsel %vm573, %v983, 0.0
    %987 = vadd.xlane.f32.xlu0 %v986
    %v988 = vpop.xlane.xlu0 %987
    %v989 = vsel %vm573, %v985, 0.0
    %990 = vadd.xlane.f32.xlu0 %v989
    %v991 = vpop.xlane.xlu0 %990
    %v992 = vrcp.pop %v988
    %v993 = vrcp.pop %v991
    %v994 = vmul.f32 %v983, %v992
    %v995 = vmul.f32 %v985, %v993
    %996 = vrot.lane.b32.xlu0 %v471, 48
    %v997 = vpop.permute.xlu0 %996
    %998 = vrot.lane.b32.xlu0 %v476, 48
    %v999 = vpop.permute.xlu0 %998
    %v1003 = vsel %vm573, %v994, 0
    %v1006 = vsel %vm573, %v995, 0
    %1008 = vmatprep.subr.mxu0 0.0
    %1009 = vmatpush1.msra.mxu0 %v997
    %1010 = vmatprep.subr.mxu0 0.0
    %1011 = vmatpush1.msra.mxu0 %v999
    %1012 = vmatprep.subr.mxu0 0.0
    %1013 = vmatpush1.msra.mxu0 0.0
    %1014 = vmatprep.subr.mxu0 0.0
    %1015 = vmatpush1.msra.mxu0 0.0
    %1016 = vmatprep.subr.mxu0 0.0
    %1017 = vmatpush1.msra.mxu0 0.0
    %1018 = vmatprep.subr.mxu0 0.0
    %1019 = vmatpush1.msra.mxu0 0.0
    %1020 = vmatprep.subr.mxu0 0.0
    %1021 = vmatpush1.msra.mxu0 0.0
    %1022 = vmatprep.subr.mxu0 0.0
    %1023 = vmatpush1.msra.mxu0 0.0
    %1024 = vmatprep.subr.mxu0 0.0
    %1025 = vmatpush1.msra.mxu0 0.0
    %1026 = vmatprep.subr.mxu0 0.0
    %1027 = vmatpush1.msra.mxu0 0.0
    %1028 = vmatprep.subr.mxu0 0.0
    %1029 = vmatpush1.msra.mxu0 0.0
    %1030 = vmatprep.subr.mxu0 0.0
    %1031 = vmatpush1.msra.mxu0 0.0
    %1032 = vmatprep.subr.mxu0 0.0
    %1033 = vmatpush1.msra.mxu0 0.0
    %1034 = vmatprep.subr.mxu0 0.0
    %1035 = vmatpush1.msra.mxu0 0.0
    %1036 = vmatprep.subr.mxu0 0.0
    %1037 = vmatpush1.msra.mxu0 0.0
    %1038 = vmatprep.subr.mxu0 0.0
    %1039 = vmatpush1.msra.mxu0 0.0
    %1040 = vmatprep.subr.mxu0 0.0
    %1041 = vmatpush1.msra.mxu0 0.0
    %1042 = vmatprep.subr.mxu0 0.0
    %1043 = vmatpush1.msra.mxu0 0.0
    %1044 = vmatprep.subr.mxu0 0.0
    %1045 = vmatpush1.msra.mxu0 0.0
    %1046 = vmatprep.subr.mxu0 0.0
    %1047 = vmatpush1.msra.mxu0 0.0
    %1048 = vmatprep.subr.mxu0 0.0
    %1049 = vmatpush1.msra.mxu0 0.0
    %1050 = vmatprep.subr.mxu0 0.0
    %1051 = vmatpush1.msra.mxu0 0.0
    %1052 = vmatprep.subr.mxu0 0.0
    %1053 = vmatpush1.msra.mxu0 0.0
    %1054 = vmatprep.subr.mxu0 0.0
    %1055 = vmatpush1.msra.mxu0 0.0
    %1056 = vmatprep.subr.mxu0 0.0
    %1057 = vmatpush1.msra.mxu0 0.0
    %1058 = vmatprep.subr.mxu0 0.0
    %1059 = vmatpush1.msra.mxu0 0.0
    %1060 = vmatprep.subr.mxu0 0.0
    %1061 = vmatpush1.msra.mxu0 0.0
    %1062 = vmatprep.subr.mxu0 0.0
    %1063 = vmatpush1.msra.mxu0 0.0
    %1064 = vmatprep.subr.mxu0 0.0
    %1065 = vmatpush1.msra.mxu0 0.0
    %1066 = vmatprep.subr.mxu0 0.0
    %1067 = vmatpush1.msra.mxu0 0.0
    %1068 = vmatprep.subr.mxu0 0.0
    %1069 = vmatpush1.msra.mxu0 0.0
    %1070 = vmatprep.subr.mxu0 0.0
    %1071 = vmatpush1.msra.mxu0 0.0
    %1072 = vmatprep.mubr.f32.mxu0 0.0
    %1073 = vmatmul.mubr.f32.gmra.mrb[0].mxu0 %v1003
    %v1074 = vpop.f32.mrb[0].mxu0
    %v1075 = vadd.f32 0.0, %v1074
    %v1076 = vpop.f32.mrb[0].mxu0
    %1077 = vmatprep.mubr.f32.mxu0 0.0
    %1078 = vmatmul.mubr.f32.gmra.mrb[0].mxu0 %v1006
    %v1079 = vpop.f32.mrb[0].mxu0
    %v1080 = vadd.f32 0.0, %v1079
    %v1081 = vpop.f32.mrb[0].mxu0
    %1082 = vdwg.mxu0
    %1083 = vrot.lane.b32.xlu0 %v471, 104
    %v1084 = vpop.permute.xlu0 %1083
    %1085 = vrot.lane.b32.xlu0 %v476, 104
    %v1086 = vpop.permute.xlu0 %1085
    %1087 = vrot.lane.b32.xlu0 %v471, 72
    %v1088 = vpop.permute.xlu0 %1087
    %1089 = vrot.lane.b32.xlu0 %v476, 72
    %v1090 = vpop.permute.xlu0 %1089
    %v1091 = vsel %vm28, %v1084, 0
    %v1093 = vsel %vm28, %v1086, 0
    %v1095 = vsel %vm28, %v1088, 0
    %v1097 = vsel %vm28, %v1090, 0
    %1099 = vmatprep.subr.mxu0 0.0
    %1100 = vmatpush1.xpose.msra.mxu0 %v1095
    %1101 = vmatprep.subr.mxu0 0.0
    %1102 = vmatpush1.xpose.msra.mxu0 %v1097
    %1103 = vmatprep.subr.mxu0 0.0
    %1104 = vmatpush1.xpose.msra.mxu0 0.0
    %1105 = vmatprep.subr.mxu0 0.0
    %1106 = vmatpush1.xpose.msra.mxu0 0.0
    %1107 = vmatprep.subr.mxu0 0.0
    %1108 = vmatpush1.xpose.msra.mxu0 0.0
    %1109 = vmatprep.subr.mxu0 0.0
    %1110 = vmatpush1.xpose.msra.mxu0 0.0
    %1111 = vmatprep.subr.mxu0 0.0
    %1112 = vmatpush1.xpose.msra.mxu0 0.0
    %1113 = vmatprep.subr.mxu0 0.0
    %1114 = vmatpush1.xpose.msra.mxu0 0.0
    %1115 = vmatprep.subr.mxu0 0.0
    %1116 = vmatpush1.xpose.msra.mxu0 0.0
    %1117 = vmatprep.subr.mxu0 0.0
    %1118 = vmatpush1.xpose.msra.mxu0 0.0
    %1119 = vmatprep.subr.mxu0 0.0
    %1120 = vmatpush1.xpose.msra.mxu0 0.0
    %1121 = vmatprep.subr.mxu0 0.0
    %1122 = vmatpush1.xpose.msra.mxu0 0.0
    %1123 = vmatprep.subr.mxu0 0.0
    %1124 = vmatpush1.xpose.msra.mxu0 0.0
    %1125 = vmatprep.subr.mxu0 0.0
    %1126 = vmatpush1.xpose.msra.mxu0 0.0
    %1127 = vmatprep.subr.mxu0 0.0
    %1128 = vmatpush1.xpose.msra.mxu0 0.0
    %1129 = vmatprep.subr.mxu0 0.0
    %1130 = vmatpush1.xpose.msra.mxu0 0.0
    %1131 = vmatprep.subr.mxu0 0.0
    %1132 = vmatpush1.xpose.msra.mxu0 0.0
    %1133 = vmatprep.subr.mxu0 0.0
    %1134 = vmatpush1.xpose.msra.mxu0 0.0
    %1135 = vmatprep.subr.mxu0 0.0
    %1136 = vmatpush1.xpose.msra.mxu0 0.0
    %1137 = vmatprep.subr.mxu0 0.0
    %1138 = vmatpush1.xpose.msra.mxu0 0.0
    %1139 = vmatprep.subr.mxu0 0.0
    %1140 = vmatpush1.xpose.msra.mxu0 0.0
    %1141 = vmatprep.subr.mxu0 0.0
    %1142 = vmatpush1.xpose.msra.mxu0 0.0
    %1143 = vmatprep.subr.mxu0 0.0
    %1144 = vmatpush1.xpose.msra.mxu0 0.0
    %1145 = vmatprep.subr.mxu0 0.0
    %1146 = vmatpush1.xpose.msra.mxu0 0.0
    %1147 = vmatprep.subr.mxu0 0.0
    %1148 = vmatpush1.xpose.msra.mxu0 0.0
    %1149 = vmatprep.subr.mxu0 0.0
    %1150 = vmatpush1.xpose.msra.mxu0 0.0
    %1151 = vmatprep.subr.mxu0 0.0
    %1152 = vmatpush1.xpose.msra.mxu0 0.0
    %1153 = vmatprep.subr.mxu0 0.0
    %1154 = vmatpush1.xpose.msra.mxu0 0.0
    %1155 = vmatprep.subr.mxu0 0.0
    %1156 = vmatpush1.xpose.msra.mxu0 0.0
    %1157 = vmatprep.subr.mxu0 0.0
    %1158 = vmatpush1.xpose.msra.mxu0 0.0
    %1159 = vmatprep.subr.mxu0 0.0
    %1160 = vmatpush1.xpose.msra.mxu0 0.0
    %1161 = vmatprep.subr.mxu0 0.0
    %1162 = vmatpush1.xpose.msra.mxu0 0.0
    %1163 = vmatprep.mubr.f32.mxu0 0.0
    %1164 = vmatmul.mubr.f32.gmra.mrb[0].mxu0 %v1091
    %v1165 = vpop.f32.mrb[0].mxu0
    %v1166 = vadd.f32 %v29, %v1165
    %v1167 = vpop.f32.mrb[0].mxu0
    %1168 = vmatprep.mubr.f32.mxu0 0.0
    %1169 = vmatmul.mubr.f32.gmra.mrb[0].mxu0 %v1093
    %v1170 = vpop.f32.mrb[0].mxu0
    %v1171 = vadd.f32 %v38, %v1170
    %v1172 = vpop.f32.mrb[0].mxu0
    %1173 = vdwg.mxu0
    %v1174 = vsel %vm573, %v1166, -inf
    %1175 = vmax.xlane.f32.xlu0 %v1174
    %v1176 = vpop.xlane.xlu0 %1175
    %v1177 = vsel %vm573, %v1171, -inf
    %1178 = vmax.xlane.f32.xlu0 %v1177
    %v1179 = vpop.xlane.xlu0 %1178
    %v1180 = vsub.f32 %v1166, %v1176
    %v1181 = vsub.f32 %v1171, %v1179
    %v1182 = vmul.f32 %v1180, 1.442695
    %v1183 = vpow.pop %v1182
    %v1184 = vmul.f32 %v1181, 1.442695
    %v1185 = vpow.pop %v1184
    %v1186 = vsel %vm573, %v1183, 0.0
    %1187 = vadd.xlane.f32.xlu0 %v1186
    %v1188 = vpop.xlane.xlu0 %1187
    %v1189 = vsel %vm573, %v1185, 0.0
    %1190 = vadd.xlane.f32.xlu0 %v1189
    %v1191 = vpop.xlane.xlu0 %1190
    %v1192 = vrcp.pop %v1188
    %v1193 = vrcp.pop %v1191
    %v1194 = vmul.f32 %v1183, %v1192
    %v1195 = vmul.f32 %v1185, %v1193
    %1196 = vrot.lane.b32.xlu0 %v471, 40
    %v1197 = vpop.permute.xlu0 %1196
    %1198 = vrot.lane.b32.xlu0 %v476, 40
    %v1199 = vpop.permute.xlu0 %1198
    %v1203 = vsel %vm573, %v1194, 0
    %v1206 = vsel %vm573, %v1195, 0
    %1208 = vmatprep.subr.mxu0 0.0
    %1209 = vmatpush1.msra.mxu0 %v1197
    %1210 = vmatprep.subr.mxu0 0.0
    %1211 = vmatpush1.msra.mxu0 %v1199
    %1212 = vmatprep.subr.mxu0 0.0
    %1213 = vmatpush1.msra.mxu0 0.0
    %1214 = vmatprep.subr.mxu0 0.0
    %1215 = vmatpush1.msra.mxu0 0.0
    %1216 = vmatprep.subr.mxu0 0.0
    %1217 = vmatpush1.msra.mxu0 0.0
    %1218 = vmatprep.subr.mxu0 0.0
    %1219 = vmatpush1.msra.mxu0 0.0
    %1220 = vmatprep.subr.mxu0 0.0
    %1221 = vmatpush1.msra.mxu0 0.0
    %1222 = vmatprep.subr.mxu0 0.0
    %1223 = vmatpush1.msra.mxu0 0.0
    %1224 = vmatprep.subr.mxu0 0.0
    %1225 = vmatpush1.msra.mxu0 0.0
    %1226 = vmatprep.subr.mxu0 0.0
    %1227 = vmatpush1.msra.mxu0 0.0
    %1228 = vmatprep.subr.mxu0 0.0
    %1229 = vmatpush1.msra.mxu0 0.0
    %1230 = vmatprep.subr.mxu0 0.0
    %1231 = vmatpush1.msra.mxu0 0.0
    %1232 = vmatprep.subr.mxu0 0.0
    %1233 = vmatpush1.msra.mxu0 0.0
    %1234 = vmatprep.subr.mxu0 0.0
    %1235 = vmatpush1.msra.mxu0 0.0
    %1236 = vmatprep.subr.mxu0 0.0
    %1237 = vmatpush1.msra.mxu0 0.0
    %1238 = vmatprep.subr.mxu0 0.0
    %1239 = vmatpush1.msra.mxu0 0.0
    %1240 = vmatprep.subr.mxu0 0.0
    %1241 = vmatpush1.msra.mxu0 0.0
    %1242 = vmatprep.subr.mxu0 0.0
    %1243 = vmatpush1.msra.mxu0 0.0
    %1244 = vmatprep.subr.mxu0 0.0
    %1245 = vmatpush1.msra.mxu0 0.0
    %1246 = vmatprep.subr.mxu0 0.0
    %1247 = vmatpush1.msra.mxu0 0.0
    %1248 = vmatprep.subr.mxu0 0.0
    %1249 = vmatpush1.msra.mxu0 0.0
    %1250 = vmatprep.subr.mxu0 0.0
    %1251 = vmatpush1.msra.mxu0 0.0
    %1252 = vmatprep.subr.mxu0 0.0
    %1253 = vmatpush1.msra.mxu0 0.0
    %1254 = vmatprep.subr.mxu0 0.0
    %1255 = vmatpush1.msra.mxu0 0.0
    %1256 = vmatprep.subr.mxu0 0.0
    %1257 = vmatpush1.msra.mxu0 0.0
    %1258 = vmatprep.subr.mxu0 0.0
    %1259 = vmatpush1.msra.mxu0 0.0
    %1260 = vmatprep.subr.mxu0 0.0
    %1261 = vmatpush1.msra.mxu0 0.0
    %1262 = vmatprep.subr.mxu0 0.0
    %1263 = vmatpush1.msra.mxu0 0.0
    %1264 = vmatprep.subr.mxu0 0.0
    %1265 = vmatpush1.msra.mxu0 0.0
    %1266 = vmatprep.subr.mxu0 0.0
    %1267 = vmatpush1.msra.mxu0 0.0
    %1268 = vmatprep.subr.mxu0 0.0
    %1269 = vmatpush1.msra.mxu0 0.0
    %1270 = vmatprep.subr.mxu0 0.0
    %1271 = vmatpush1.msra.mxu0 0.0
    %1272 = vmatprep.mubr.f32.mxu0 0.0
    %1273 = vmatmul.mubr.f32.gmra.mrb[0].mxu0 %v1203
    %v1274 = vpop.f32.mrb[0].mxu0
    %v1275 = vadd.f32 0.0, %v1274
    %v1276 = vpop.f32.mrb[0].mxu0
    %1277 = vmatprep.mubr.f32.mxu0 0.0
    %1278 = vmatmul.mubr.f32.gmra.mrb[0].mxu0 %v1206
    %v1279 = vpop.f32.mrb[0].mxu0
    %v1280 = vadd.f32 0.0, %v1279
    %v1281 = vpop.f32.mrb[0].mxu0
    %1282 = vdwg.mxu0
    %1285 = vrot.lane.b32.xlu0 %v875, 8
    %v1286 = vpop.permute.xlu0 %1285
    %1287 = vrot.lane.b32.xlu0 %v880, 8
    %v1288 = vpop.permute.xlu0 %1287
    %1293 = vrot.lane.b32.xlu0 %v1075, 16
    %v1294 = vpop.permute.xlu0 %1293
    %1295 = vrot.lane.b32.xlu0 %v1080, 16
    %v1296 = vpop.permute.xlu0 %1295
    %1301 = vrot.lane.b32.xlu0 %v1275, 24
    %v1302 = vpop.permute.xlu0 %1301
    %1303 = vrot.lane.b32.xlu0 %v1280, 24
    %v1304 = vpop.permute.xlu0 %1303
    %v1307 = vsel %vm28, %v675, %v1286
    %v1308 = vsel %vm28, %v680, %v1288
    %v1309 = vsel %vm573, %v1307, %v1294
    %v1310 = vsel %vm573, %v1308, %v1296
    %vm1311 = vcmask 195584
    %v1312 = vsel %vm1311, %v1309, %v1302
    %v1313 = vsel %vm1311, %v1310, %v1304
    %v1314 = vlaneseq
    %v1315 = vshrl.u32 %v1314, 7
    %v1316 = vsub.s32 0, %v1315
    %v1317 = vrot.slane %v483, %v1316
    %v1319 = vsel %vm153, %v1312, 0
    %v1322 = vsel %vm153, %v1313, 0
    %1324 = vmatprep.subr.mxu0 0.0
    %1325 = vmatpush1.msra.mxu0 %v479
    %1326 = vmatprep.subr.mxu0 0.0
    %1327 = vmatpush1.msra.mxu0 %v480
    %1328 = vmatprep.subr.mxu0 0.0
    %1329 = vmatpush1.msra.mxu0 %v481
    %1330 = vmatprep.subr.mxu0 0.0
    %1331 = vmatpush1.msra.mxu0 %v482
    %1332 = vmatprep.subr.mxu0 0.0
    %1333 = vmatpush1.msra.mxu0 0.0
    %1334 = vmatprep.subr.mxu0 0.0
    %1335 = vmatpush1.msra.mxu0 0.0
    %1336 = vmatprep.subr.mxu0 0.0
    %1337 = vmatpush1.msra.mxu0 0.0
    %1338 = vmatprep.subr.mxu0 0.0
    %1339 = vmatpush1.msra.mxu0 0.0
    %1340 = vmatprep.subr.mxu0 0.0
    %1341 = vmatpush1.msra.mxu0 0.0
    %1342 = vmatprep.subr.mxu0 0.0
    %1343 = vmatpush1.msra.mxu0 0.0
    %1344 = vmatprep.subr.mxu0 0.0
    %1345 = vmatpush1.msra.mxu0 0.0
    %1346 = vmatprep.subr.mxu0 0.0
    %1347 = vmatpush1.msra.mxu0 0.0
    %1348 = vmatprep.subr.mxu0 0.0
    %1349 = vmatpush1.msra.mxu0 0.0
    %1350 = vmatprep.subr.mxu0 0.0
    %1351 = vmatpush1.msra.mxu0 0.0
    %1352 = vmatprep.subr.mxu0 0.0
    %1353 = vmatpush1.msra.mxu0 0.0
    %1354 = vmatprep.subr.mxu0 0.0
    %1355 = vmatpush1.msra.mxu0 0.0
    %1356 = vmatprep.subr.mxu0 0.0
    %1357 = vmatpush1.msra.mxu0 0.0
    %1358 = vmatprep.subr.mxu0 0.0
    %1359 = vmatpush1.msra.mxu0 0.0
    %1360 = vmatprep.subr.mxu0 0.0
    %1361 = vmatpush1.msra.mxu0 0.0
    %1362 = vmatprep.subr.mxu0 0.0
    %1363 = vmatpush1.msra.mxu0 0.0
    %1364 = vmatprep.subr.mxu0 0.0
    %1365 = vmatpush1.msra.mxu0 0.0
    %1366 = vmatprep.subr.mxu0 0.0
    %1367 = vmatpush1.msra.mxu0 0.0
    %1368 = vmatprep.subr.mxu0 0.0
    %1369 = vmatpush1.msra.mxu0 0.0
    %1370 = vmatprep.subr.mxu0 0.0
    %1371 = vmatpush1.msra.mxu0 0.0
    %1372 = vmatprep.subr.mxu0 0.0
    %1373 = vmatpush1.msra.mxu0 0.0
    %1374 = vmatprep.subr.mxu0 0.0
    %1375 = vmatpush1.msra.mxu0 0.0
    %1376 = vmatprep.subr.mxu0 0.0
    %1377 = vmatpush1.msra.mxu0 0.0
    %1378 = vmatprep.subr.mxu0 0.0
    %1379 = vmatpush1.msra.mxu0 0.0
    %1380 = vmatprep.subr.mxu0 0.0
    %1381 = vmatpush1.msra.mxu0 0.0
    %1382 = vmatprep.subr.mxu0 0.0
    %1383 = vmatpush1.msra.mxu0 0.0
    %1384 = vmatprep.subr.mxu0 0.0
    %1385 = vmatpush1.msra.mxu0 0.0
    %1386 = vmatprep.subr.mxu0 0.0
    %1387 = vmatpush1.msra.mxu0 0.0
    %1388 = vmatprep.mubr.f32.mxu0 0.0
    %1389 = vmatmul.mubr.f32.gmra.mrb[0].mxu0 %v1319
    %v1390 = vpop.f32.mrb[0].mxu0
    %v1391 = vadd.f32 %v1317, %v1390
    %v1392 = vpop.f32.mrb[0].mxu0
    %1393 = vmatprep.mubr.f32.mxu0 0.0
    %1394 = vmatmul.mubr.f32.gmra.mrb[0].mxu0 %v1322
    %v1395 = vpop.f32.mrb[0].mxu0
    %v1396 = vadd.f32 %v1317, %v1395
    %v1397 = vpop.f32.mrb[0].mxu0
    %1398 = vdwg.mxu0
    %v1399 = vadd.f32 %v381, %v1391
    %v1400 = vadd.f32 %v386, %v1396
    %v1401 = vld [vmem:[%s4 + $0x137] sm:$0x1]
    %v1402 = vld [vmem:[%s4 + $0x138] sm:$0x1]
    %v1403 = vsel %vm153, %v1399, 0.0
    %1404 = vadd.xlane.f32.xlu0 %v1403
    %v1405 = vpop.xlane.xlu0 %1404
    %v1406 = vsel %vm153, %v1400, 0.0
    %1407 = vadd.xlane.f32.xlu0 %v1406
    %v1408 = vpop.xlane.xlu0 %1407
    %v1409 = vmul.f32 %v1405, %v160
    %v1410 = vmul.f32 %v1408, %v160
    %v1411 = vsub.f32 %v1399, %v1409
    %v1412 = vsub.f32 %v1400, %v1410
    %v1413 = vmul.f32 %v1411, %v1411
    %v1414 = vmul.f32 %v1412, %v1412
    %v1415 = vsel %vm153, %v1413, 0.0
    %1416 = vadd.xlane.f32.xlu0 %v1415
    %v1417 = vpop.xlane.xlu0 %1416
    %v1418 = vsel %vm153, %v1414, 0.0
    %1419 = vadd.xlane.f32.xlu0 %v1418
    %v1420 = vpop.xlane.xlu0 %1419
    %v1421 = vmul.f32 %v1417, 0.032258064
    %v1422 = vmul.f32 %v1420, 0.032258064
    %v1423 = vrsqrt.pop %v1421
    %v1424 = vmul.f32 %v1421, %v1423
    %vm1425 = vcmp.eq.f32.partialorder %v1421, inf
    %v1426 = vsel %vm1425, %v1421, %v1424
    %vm1427 = vcmp.eq.f32.partialorder %v1421, 0.0
    %v1428 = vand.u32 %v1421, 2147483648
    %v1429 = vsel %vm1427, %v1428, %v1426
    %v1430 = vrsqrt.pop %v1422
    %v1431 = vmul.f32 %v1422, %v1430
    %vm1432 = vcmp.eq.f32.partialorder %v1422, inf
    %v1433 = vsel %vm1432, %v1422, %v1431
    %vm1434 = vcmp.eq.f32.partialorder %v1422, 0.0
    %v1435 = vand.u32 %v1422, 2147483648
    %v1436 = vsel %vm1434, %v1435, %v1433
    %v1437 = vadd.f32 %v1429, 1e-06
    %v1438 = vadd.f32 %v1436, 1e-06
    %v1439 = vrcp.pop %v1437
    %v1440 = vrcp.pop %v1438
    %v1441 = vmul.f32 %v1411, %v1439
    %v1442 = vmul.f32 %v1412, %v1440
    %v1443 = vlaneseq
    %v1444 = vshrl.u32 %v1443, 7
    %v1445 = vsub.s32 0, %v1444
    %v1446 = vrot.slane %v1401, %v1445
    %v1447 = vmul.f32 %v1446, %v1441
    %v1448 = vmul.f32 %v1446, %v1442
    %v1449 = vlaneseq
    %v1450 = vshrl.u32 %v1449, 7
    %v1451 = vsub.s32 0, %v1450
    %v1452 = vrot.slane %v1402, %v1451
    %v1453 = vadd.f32 %v1447, %v1452
    %v1454 = vadd.f32 %v1448, %v1452
    %v1455 = vld [vmem:[%s4 + $0xb0] sm:$0xff]
    %v1456 = vld [vmem:[%s4 + $0xb8] sm:$0xff]
    %v1457 = vld [vmem:[%s4 + $0xc0] sm:$0xff]
    %v1458 = vld [vmem:[%s4 + $0xc8] sm:$0xff]
    %v1459 = vld [vmem:[%s4 + $0x133] sm:$0x1]
    %v1460 = vlaneseq
    %v1461 = vshrl.u32 %v1460, 7
    %v1462 = vsub.s32 0, %v1461
    %v1463 = vrot.slane %v1459, %v1462
    %v1465 = vsel %vm153, %v1453, 0
    %v1468 = vsel %vm153, %v1454, 0
    %1470 = vmatprep.subr.mxu0 0.0
    %1471 = vmatpush1.msra.mxu0 %v1455
    %1472 = vmatprep.subr.mxu0 0.0
    %1473 = vmatpush1.msra.mxu0 %v1456
    %1474 = vmatprep.subr.mxu0 0.0
    %1475 = vmatpush1.msra.mxu0 %v1457
    %1476 = vmatprep.subr.mxu0 0.0
    %1477 = vmatpush1.msra.mxu0 %v1458
    %1478 = vmatprep.subr.mxu0 0.0
    %1479 = vmatpush1.msra.mxu0 0.0
    %1480 = vmatprep.subr.mxu0 0.0
    %1481 = vmatpush1.msra.mxu0 0.0
    %1482 = vmatprep.subr.mxu0 0.0
    %1483 = vmatpush1.msra.mxu0 0.0
    %1484 = vmatprep.subr.mxu0 0.0
    %1485 = vmatpush1.msra.mxu0 0.0
    %1486 = vmatprep.subr.mxu0 0.0
    %1487 = vmatpush1.msra.mxu0 0.0
    %1488 = vmatprep.subr.mxu0 0.0
    %1489 = vmatpush1.msra.mxu0 0.0
    %1490 = vmatprep.subr.mxu0 0.0
    %1491 = vmatpush1.msra.mxu0 0.0
    %1492 = vmatprep.subr.mxu0 0.0
    %1493 = vmatpush1.msra.mxu0 0.0
    %1494 = vmatprep.subr.mxu0 0.0
    %1495 = vmatpush1.msra.mxu0 0.0
    %1496 = vmatprep.subr.mxu0 0.0
    %1497 = vmatpush1.msra.mxu0 0.0
    %1498 = vmatprep.subr.mxu0 0.0
    %1499 = vmatpush1.msra.mxu0 0.0
    %1500 = vmatprep.subr.mxu0 0.0
    %1501 = vmatpush1.msra.mxu0 0.0
    %1502 = vmatprep.subr.mxu0 0.0
    %1503 = vmatpush1.msra.mxu0 0.0
    %1504 = vmatprep.subr.mxu0 0.0
    %1505 = vmatpush1.msra.mxu0 0.0
    %1506 = vmatprep.subr.mxu0 0.0
    %1507 = vmatpush1.msra.mxu0 0.0
    %1508 = vmatprep.subr.mxu0 0.0
    %1509 = vmatpush1.msra.mxu0 0.0
    %1510 = vmatprep.subr.mxu0 0.0
    %1511 = vmatpush1.msra.mxu0 0.0
    %1512 = vmatprep.subr.mxu0 0.0
    %1513 = vmatpush1.msra.mxu0 0.0
    %1514 = vmatprep.subr.mxu0 0.0
    %1515 = vmatpush1.msra.mxu0 0.0
    %1516 = vmatprep.subr.mxu0 0.0
    %1517 = vmatpush1.msra.mxu0 0.0
    %1518 = vmatprep.subr.mxu0 0.0
    %1519 = vmatpush1.msra.mxu0 0.0
    %1520 = vmatprep.subr.mxu0 0.0
    %1521 = vmatpush1.msra.mxu0 0.0
    %1522 = vmatprep.subr.mxu0 0.0
    %1523 = vmatpush1.msra.mxu0 0.0
    %1524 = vmatprep.subr.mxu0 0.0
    %1525 = vmatpush1.msra.mxu0 0.0
    %1526 = vmatprep.subr.mxu0 0.0
    %1527 = vmatpush1.msra.mxu0 0.0
    %1528 = vmatprep.subr.mxu0 0.0
    %1529 = vmatpush1.msra.mxu0 0.0
    %1530 = vmatprep.subr.mxu0 0.0
    %1531 = vmatpush1.msra.mxu0 0.0
    %1532 = vmatprep.subr.mxu0 0.0
    %1533 = vmatpush1.msra.mxu0 0.0
    %1534 = vmatprep.mubr.f32.mxu0 0.0
    %1535 = vmatmul.mubr.f32.gmra.mrb[0].mxu0 %v1465
    %v1536 = vpop.f32.mrb[0].mxu0
    %v1537 = vadd.f32 %v1463, %v1536
    %v1538 = vpop.f32.mrb[0].mxu0
    %1539 = vmatprep.mubr.f32.mxu0 0.0
    %1540 = vmatmul.mubr.f32.gmra.mrb[0].mxu0 %v1468
    %v1541 = vpop.f32.mrb[0].mxu0
    %v1542 = vadd.f32 %v1463, %v1541
    %v1543 = vpop.f32.mrb[0].mxu0
    %1544 = vdwg.mxu0
    %v1545 = vld [vmem:[%s4 + $0x70] sm:$0xff]
    %v1546 = vld [vmem:[%s4 + $0x78] sm:$0xff]
    %v1547 = vld [vmem:[%s4 + $0x80] sm:$0xff]
    %v1548 = vld [vmem:[%s4 + $0x88] sm:$0xff]
    %v1549 = vld [vmem:[%s4 + $0x131] sm:$0x1]
    %v1550 = vlaneseq
    %v1551 = vshrl.u32 %v1550, 7
    %v1552 = vsub.s32 0, %v1551
    %v1553 = vrot.slane %v1549, %v1552
    %v1555 = vsel %vm153, %v23, 0
    %v1558 = vsel %vm153, %v24, 0
    %1560 = vmatprep.subr.mxu0 0.0
    %1561 = vmatpush1.msra.mxu0 %v1545
    %1562 = vmatprep.subr.mxu0 0.0
    %1563 = vmatpush1.msra.mxu0 %v1546
    %1564 = vmatprep.subr.mxu0 0.0
    %1565 = vmatpush1.msra.mxu0 %v1547
    %1566 = vmatprep.subr.mxu0 0.0
    %1567 = vmatpush1.msra.mxu0 %v1548
    %1568 = vmatprep.subr.mxu0 0.0
    %1569 = vmatpush1.msra.mxu0 0.0
    %1570 = vmatprep.subr.mxu0 0.0
    %1571 = vmatpush1.msra.mxu0 0.0
    %1572 = vmatprep.subr.mxu0 0.0
    %1573 = vmatpush1.msra.mxu0 0.0
    %1574 = vmatprep.subr.mxu0 0.0
    %1575 = vmatpush1.msra.mxu0 0.0
    %1576 = vmatprep.subr.mxu0 0.0
    %1577 = vmatpush1.msra.mxu0 0.0
    %1578 = vmatprep.subr.mxu0 0.0
    %1579 = vmatpush1.msra.mxu0 0.0
    %1580 = vmatprep.subr.mxu0 0.0
    %1581 = vmatpush1.msra.mxu0 0.0
    %1582 = vmatprep.subr.mxu0 0.0
    %1583 = vmatpush1.msra.mxu0 0.0
    %1584 = vmatprep.subr.mxu0 0.0
    %1585 = vmatpush1.msra.mxu0 0.0
    %1586 = vmatprep.subr.mxu0 0.0
    %1587 = vmatpush1.msra.mxu0 0.0
    %1588 = vmatprep.subr.mxu0 0.0
    %1589 = vmatpush1.msra.mxu0 0.0
    %1590 = vmatprep.subr.mxu0 0.0
    %1591 = vmatpush1.msra.mxu0 0.0
    %1592 = vmatprep.subr.mxu0 0.0
    %1593 = vmatpush1.msra.mxu0 0.0
    %1594 = vmatprep.subr.mxu0 0.0
    %1595 = vmatpush1.msra.mxu0 0.0
    %1596 = vmatprep.subr.mxu0 0.0
    %1597 = vmatpush1.msra.mxu0 0.0
    %1598 = vmatprep.subr.mxu0 0.0
    %1599 = vmatpush1.msra.mxu0 0.0
    %1600 = vmatprep.subr.mxu0 0.0
    %1601 = vmatpush1.msra.mxu0 0.0
    %1602 = vmatprep.subr.mxu0 0.0
    %1603 = vmatpush1.msra.mxu0 0.0
    %1604 = vmatprep.subr.mxu0 0.0
    %1605 = vmatpush1.msra.mxu0 0.0
    %1606 = vmatprep.subr.mxu0 0.0
    %1607 = vmatpush1.msra.mxu0 0.0
    %1608 = vmatprep.subr.mxu0 0.0
    %1609 = vmatpush1.msra.mxu0 0.0
    %1610 = vmatprep.subr.mxu0 0.0
    %1611 = vmatpush1.msra.mxu0 0.0
    %1612 = vmatprep.subr.mxu0 0.0
    %1613 = vmatpush1.msra.mxu0 0.0
    %1614 = vmatprep.subr.mxu0 0.0
    %1615 = vmatpush1.msra.mxu0 0.0
    %1616 = vmatprep.subr.mxu0 0.0
    %1617 = vmatpush1.msra.mxu0 0.0
    %1618 = vmatprep.subr.mxu0 0.0
    %1619 = vmatpush1.msra.mxu0 0.0
    %1620 = vmatprep.subr.mxu0 0.0
    %1621 = vmatpush1.msra.mxu0 0.0
    %1622 = vmatprep.subr.mxu0 0.0
    %1623 = vmatpush1.msra.mxu0 0.0
    %1624 = vmatprep.mubr.f32.mxu0 0.0
    %1625 = vmatmul.mubr.f32.gmra.mrb[0].mxu0 %v1555
    %v1626 = vpop.f32.mrb[0].mxu0
    %v1627 = vadd.f32 %v1553, %v1626
    %v1628 = vpop.f32.mrb[0].mxu0
    %1629 = vmatprep.mubr.f32.mxu0 0.0
    %1630 = vmatmul.mubr.f32.gmra.mrb[0].mxu0 %v1558
    %v1631 = vpop.f32.mrb[0].mxu0
    %v1632 = vadd.f32 %v1553, %v1631
    %v1633 = vpop.f32.mrb[0].mxu0
    %1634 = vdwg.mxu0
    %v1635 = vld [vmem:[%s4 + $0xd0] sm:$0xff]
    %v1636 = vld [vmem:[%s4 + $0xd8] sm:$0xff]
    %v1637 = vld [vmem:[%s4 + $0xe0] sm:$0xff]
    %v1638 = vld [vmem:[%s4 + $0xe8] sm:$0xff]
    %v1639 = vld [vmem:[%s4 + $0x134] sm:$0x1]
    %v1641 = vsel %vm28, %v1537, 0
    %v1644 = vsel %vm28, %v1542, 0
    %v1647 = vsel %vm28, %v1627, 0
    %v1650 = vsel %vm28, %v1632, 0
    %1652 = vmatprep.subr.mxu0 0.0
    %1653 = vmatpush1.xpose.msra.mxu0 %v1647
    %1654 = vmatprep.subr.mxu0 0.0
    %1655 = vmatpush1.xpose.msra.mxu0 %v1650
    %1656 = vmatprep.subr.mxu0 0.0
    %1657 = vmatpush1.xpose.msra.mxu0 0.0
    %1658 = vmatprep.subr.mxu0 0.0
    %1659 = vmatpush1.xpose.msra.mxu0 0.0
    %1660 = vmatprep.subr.mxu0 0.0
    %1661 = vmatpush1.xpose.msra.mxu0 0.0
    %1662 = vmatprep.subr.mxu0 0.0
    %1663 = vmatpush1.xpose.msra.mxu0 0.0
    %1664 = vmatprep.subr.mxu0 0.0
    %1665 = vmatpush1.xpose.msra.mxu0 0.0
    %1666 = vmatprep.subr.mxu0 0.0
    %1667 = vmatpush1.xpose.msra.mxu0 0.0
    %1668 = vmatprep.subr.mxu0 0.0
    %1669 = vmatpush1.xpose.msra.mxu0 0.0
    %1670 = vmatprep.subr.mxu0 0.0
    %1671 = vmatpush1.xpose.msra.mxu0 0.0
    %1672 = vmatprep.subr.mxu0 0.0
    %1673 = vmatpush1.xpose.msra.mxu0 0.0
    %1674 = vmatprep.subr.mxu0 0.0
    %1675 = vmatpush1.xpose.msra.mxu0 0.0
    %1676 = vmatprep.subr.mxu0 0.0
    %1677 = vmatpush1.xpose.msra.mxu0 0.0
    %1678 = vmatprep.subr.mxu0 0.0
    %1679 = vmatpush1.xpose.msra.mxu0 0.0
    %1680 = vmatprep.subr.mxu0 0.0
    %1681 = vmatpush1.xpose.msra.mxu0 0.0
    %1682 = vmatprep.subr.mxu0 0.0
    %1683 = vmatpush1.xpose.msra.mxu0 0.0
    %1684 = vmatprep.subr.mxu0 0.0
    %1685 = vmatpush1.xpose.msra.mxu0 0.0
    %1686 = vmatprep.subr.mxu0 0.0
    %1687 = vmatpush1.xpose.msra.mxu0 0.0
    %1688 = vmatprep.subr.mxu0 0.0
    %1689 = vmatpush1.xpose.msra.mxu0 0.0
    %1690 = vmatprep.subr.mxu0 0.0
    %1691 = vmatpush1.xpose.msra.mxu0 0.0
    %1692 = vmatprep.subr.mxu0 0.0
    %1693 = vmatpush1.xpose.msra.mxu0 0.0
    %1694 = vmatprep.subr.mxu0 0.0
    %1695 = vmatpush1.xpose.msra.mxu0 0.0
    %1696 = vmatprep.subr.mxu0 0.0
    %1697 = vmatpush1.xpose.msra.mxu0 0.0
    %1698 = vmatprep.subr.mxu0 0.0
    %1699 = vmatpush1.xpose.msra.mxu0 0.0
    %1700 = vmatprep.subr.mxu0 0.0
    %1701 = vmatpush1.xpose.msra.mxu0 0.0
    %1702 = vmatprep.subr.mxu0 0.0
    %1703 = vmatpush1.xpose.msra.mxu0 0.0
    %1704 = vmatprep.subr.mxu0 0.0
    %1705 = vmatpush1.xpose.msra.mxu0 0.0
    %1706 = vmatprep.subr.mxu0 0.0
    %1707 = vmatpush1.xpose.msra.mxu0 0.0
    %1708 = vmatprep.subr.mxu0 0.0
    %1709 = vmatpush1.xpose.msra.mxu0 0.0
    %1710 = vmatprep.subr.mxu0 0.0
    %1711 = vmatpush1.xpose.msra.mxu0 0.0
    %1712 = vmatprep.subr.mxu0 0.0
    %1713 = vmatpush1.xpose.msra.mxu0 0.0
    %1714 = vmatprep.subr.mxu0 0.0
    %1715 = vmatpush1.xpose.msra.mxu0 0.0
    %1716 = vmatprep.mubr.f32.mxu0 0.0
    %1717 = vmatmul.mubr.f32.gmra.mrb[0].mxu0 %v1641
    %v1718 = vpop.f32.mrb[0].mxu0
    %v1719 = vadd.f32 %v48, %v1718
    %v1720 = vpop.f32.mrb[0].mxu0
    %1721 = vmatprep.mubr.f32.mxu0 0.0
    %1722 = vmatmul.mubr.f32.gmra.mrb[0].mxu0 %v1644
    %v1723 = vpop.f32.mrb[0].mxu0
    %v1724 = vadd.f32 %v63, %v1723
    %v1725 = vpop.f32.mrb[0].mxu0
    %1726 = vdwg.mxu0
    %v1727 = vsel %vm573, %v1719, -inf
    %1728 = vmax.xlane.f32.xlu0 %v1727
    %v1729 = vpop.xlane.xlu0 %1728
    %v1730 = vsel %vm573, %v1724, -inf
    %1731 = vmax.xlane.f32.xlu0 %v1730
    %v1732 = vpop.xlane.xlu0 %1731
    %v1733 = vsub.f32 %v1719, %v1729
    %v1734 = vsub.f32 %v1724, %v1732
    %v1735 = vmul.f32 %v1733, 1.442695
    %v1736 = vpow.pop %v1735
    %v1737 = vmul.f32 %v1734, 1.442695
    %v1738 = vpow.pop %v1737
    %v1739 = vsel %vm573, %v1736, 0.0
    %1740 = vadd.xlane.f32.xlu0 %v1739
    %v1741 = vpop.xlane.xlu0 %1740
    %v1742 = vsel %vm573, %v1738, 0.0
    %1743 = vadd.xlane.f32.xlu0 %v1742
    %v1744 = vpop.xlane.xlu0 %1743
    %v1745 = vrcp.pop %v1741
    %v1746 = vrcp.pop %v1744
    %v1747 = vmul.f32 %v1736, %v1745
    %v1748 = vmul.f32 %v1738, %v1746
    %1749 = vrot.lane.b32.xlu0 %v1627, 96
    %v1750 = vpop.permute.xlu0 %1749
    %1751 = vrot.lane.b32.xlu0 %v1632, 96
    %v1752 = vpop.permute.xlu0 %1751
    %v1756 = vsel %vm573, %v1747, 0
    %v1759 = vsel %vm573, %v1748, 0
    %1761 = vmatprep.subr.mxu0 0.0
    %1762 = vmatpush1.msra.mxu0 %v1750
    %1763 = vmatprep.subr.mxu0 0.0
    %1764 = vmatpush1.msra.mxu0 %v1752
    %1765 = vmatprep.subr.mxu0 0.0
    %1766 = vmatpush1.msra.mxu0 0.0
    %1767 = vmatprep.subr.mxu0 0.0
    %1768 = vmatpush1.msra.mxu0 0.0
    %1769 = vmatprep.subr.mxu0 0.0
    %1770 = vmatpush1.msra.mxu0 0.0
    %1771 = vmatprep.subr.mxu0 0.0
    %1772 = vmatpush1.msra.mxu0 0.0
    %1773 = vmatprep.subr.mxu0 0.0
    %1774 = vmatpush1.msra.mxu0 0.0
    %1775 = vmatprep.subr.mxu0 0.0
    %1776 = vmatpush1.msra.mxu0 0.0
    %1777 = vmatprep.subr.mxu0 0.0
    %1778 = vmatpush1.msra.mxu0 0.0
    %1779 = vmatprep.subr.mxu0 0.0
    %1780 = vmatpush1.msra.mxu0 0.0
    %1781 = vmatprep.subr.mxu0 0.0
    %1782 = vmatpush1.msra.mxu0 0.0
    %1783 = vmatprep.subr.mxu0 0.0
    %1784 = vmatpush1.msra.mxu0 0.0
    %1785 = vmatprep.subr.mxu0 0.0
    %1786 = vmatpush1.msra.mxu0 0.0
    %1787 = vmatprep.subr.mxu0 0.0
    %1788 = vmatpush1.msra.mxu0 0.0
    %1789 = vmatprep.subr.mxu0 0.0
    %1790 = vmatpush1.msra.mxu0 0.0
    %1791 = vmatprep.subr.mxu0 0.0
    %1792 = vmatpush1.msra.mxu0 0.0
    %1793 = vmatprep.subr.mxu0 0.0
    %1794 = vmatpush1.msra.mxu0 0.0
    %1795 = vmatprep.subr.mxu0 0.0
    %1796 = vmatpush1.msra.mxu0 0.0
    %1797 = vmatprep.subr.mxu0 0.0
    %1798 = vmatpush1.msra.mxu0 0.0
    %1799 = vmatprep.subr.mxu0 0.0
    %1800 = vmatpush1.msra.mxu0 0.0
    %1801 = vmatprep.subr.mxu0 0.0
    %1802 = vmatpush1.msra.mxu0 0.0
    %1803 = vmatprep.subr.mxu0 0.0
    %1804 = vmatpush1.msra.mxu0 0.0
    %1805 = vmatprep.subr.mxu0 0.0
    %1806 = vmatpush1.msra.mxu0 0.0
    %1807 = vmatprep.subr.mxu0 0.0
    %1808 = vmatpush1.msra.mxu0 0.0
    %1809 = vmatprep.subr.mxu0 0.0
    %1810 = vmatpush1.msra.mxu0 0.0
    %1811 = vmatprep.subr.mxu0 0.0
    %1812 = vmatpush1.msra.mxu0 0.0
    %1813 = vmatprep.subr.mxu0 0.0
    %1814 = vmatpush1.msra.mxu0 0.0
    %1815 = vmatprep.subr.mxu0 0.0
    %1816 = vmatpush1.msra.mxu0 0.0
    %1817 = vmatprep.subr.mxu0 0.0
    %1818 = vmatpush1.msra.mxu0 0.0
    %1819 = vmatprep.subr.mxu0 0.0
    %1820 = vmatpush1.msra.mxu0 0.0
    %1821 = vmatprep.subr.mxu0 0.0
    %1822 = vmatpush1.msra.mxu0 0.0
    %1823 = vmatprep.subr.mxu0 0.0
    %1824 = vmatpush1.msra.mxu0 0.0
    %1825 = vmatprep.mubr.f32.mxu0 0.0
    %1826 = vmatmul.mubr.f32.gmra.mrb[0].mxu0 %v1756
    %v1827 = vpop.f32.mrb[0].mxu0
    %v1828 = vadd.f32 0.0, %v1827
    %v1829 = vpop.f32.mrb[0].mxu0
    %1830 = vmatprep.mubr.f32.mxu0 0.0
    %1831 = vmatmul.mubr.f32.gmra.mrb[0].mxu0 %v1759
    %v1832 = vpop.f32.mrb[0].mxu0
    %v1833 = vadd.f32 0.0, %v1832
    %v1834 = vpop.f32.mrb[0].mxu0
    %1835 = vdwg.mxu0
    %1836 = vrot.lane.b32.xlu0 %v1537, 120
    %v1837 = vpop.permute.xlu0 %1836
    %1838 = vrot.lane.b32.xlu0 %v1542, 120
    %v1839 = vpop.permute.xlu0 %1838
    %1840 = vrot.lane.b32.xlu0 %v1627, 120
    %v1841 = vpop.permute.xlu0 %1840
    %1842 = vrot.lane.b32.xlu0 %v1632, 120
    %v1843 = vpop.permute.xlu0 %1842
    %v1844 = vsel %vm28, %v1837, 0
    %v1846 = vsel %vm28, %v1839, 0
    %v1848 = vsel %vm28, %v1841, 0
    %v1850 = vsel %vm28, %v1843, 0
    %1852 = vmatprep.subr.mxu0 0.0
    %1853 = vmatpush1.xpose.msra.mxu0 %v1848
    %1854 = vmatprep.subr.mxu0 0.0
    %1855 = vmatpush1.xpose.msra.mxu0 %v1850
    %1856 = vmatprep.subr.mxu0 0.0
    %1857 = vmatpush1.xpose.msra.mxu0 0.0
    %1858 = vmatprep.subr.mxu0 0.0
    %1859 = vmatpush1.xpose.msra.mxu0 0.0
    %1860 = vmatprep.subr.mxu0 0.0
    %1861 = vmatpush1.xpose.msra.mxu0 0.0
    %1862 = vmatprep.subr.mxu0 0.0
    %1863 = vmatpush1.xpose.msra.mxu0 0.0
    %1864 = vmatprep.subr.mxu0 0.0
    %1865 = vmatpush1.xpose.msra.mxu0 0.0
    %1866 = vmatprep.subr.mxu0 0.0
    %1867 = vmatpush1.xpose.msra.mxu0 0.0
    %1868 = vmatprep.subr.mxu0 0.0
    %1869 = vmatpush1.xpose.msra.mxu0 0.0
    %1870 = vmatprep.subr.mxu0 0.0
    %1871 = vmatpush1.xpose.msra.mxu0 0.0
    %1872 = vmatprep.subr.mxu0 0.0
    %1873 = vmatpush1.xpose.msra.mxu0 0.0
    %1874 = vmatprep.subr.mxu0 0.0
    %1875 = vmatpush1.xpose.msra.mxu0 0.0
    %1876 = vmatprep.subr.mxu0 0.0
    %1877 = vmatpush1.xpose.msra.mxu0 0.0
    %1878 = vmatprep.subr.mxu0 0.0
    %1879 = vmatpush1.xpose.msra.mxu0 0.0
    %1880 = vmatprep.subr.mxu0 0.0
    %1881 = vmatpush1.xpose.msra.mxu0 0.0
    %1882 = vmatprep.subr.mxu0 0.0
    %1883 = vmatpush1.xpose.msra.mxu0 0.0
    %1884 = vmatprep.subr.mxu0 0.0
    %1885 = vmatpush1.xpose.msra.mxu0 0.0
    %1886 = vmatprep.subr.mxu0 0.0
    %1887 = vmatpush1.xpose.msra.mxu0 0.0
    %1888 = vmatprep.subr.mxu0 0.0
    %1889 = vmatpush1.xpose.msra.mxu0 0.0
    %1890 = vmatprep.subr.mxu0 0.0
    %1891 = vmatpush1.xpose.msra.mxu0 0.0
    %1892 = vmatprep.subr.mxu0 0.0
    %1893 = vmatpush1.xpose.msra.mxu0 0.0
    %1894 = vmatprep.subr.mxu0 0.0
    %1895 = vmatpush1.xpose.msra.mxu0 0.0
    %1896 = vmatprep.subr.mxu0 0.0
    %1897 = vmatpush1.xpose.msra.mxu0 0.0
    %1898 = vmatprep.subr.mxu0 0.0
    %1899 = vmatpush1.xpose.msra.mxu0 0.0
    %1900 = vmatprep.subr.mxu0 0.0
    %1901 = vmatpush1.xpose.msra.mxu0 0.0
    %1902 = vmatprep.subr.mxu0 0.0
    %1903 = vmatpush1.xpose.msra.mxu0 0.0
    %1904 = vmatprep.subr.mxu0 0.0
    %1905 = vmatpush1.xpose.msra.mxu0 0.0
    %1906 = vmatprep.subr.mxu0 0.0
    %1907 = vmatpush1.xpose.msra.mxu0 0.0
    %1908 = vmatprep.subr.mxu0 0.0
    %1909 = vmatpush1.xpose.msra.mxu0 0.0
    %1910 = vmatprep.subr.mxu0 0.0
    %1911 = vmatpush1.xpose.msra.mxu0 0.0
    %1912 = vmatprep.subr.mxu0 0.0
    %1913 = vmatpush1.xpose.msra.mxu0 0.0
    %1914 = vmatprep.subr.mxu0 0.0
    %1915 = vmatpush1.xpose.msra.mxu0 0.0
    %1916 = vmatprep.mubr.f32.mxu0 0.0
    %1917 = vmatmul.mubr.f32.gmra.mrb[0].mxu0 %v1844
    %v1918 = vpop.f32.mrb[0].mxu0
    %v1919 = vadd.f32 %v48, %v1918
    %v1920 = vpop.f32.mrb[0].mxu0
    %1921 = vmatprep.mubr.f32.mxu0 0.0
    %1922 = vmatmul.mubr.f32.gmra.mrb[0].mxu0 %v1846
    %v1923 = vpop.f32.mrb[0].mxu0
    %v1924 = vadd.f32 %v63, %v1923
    %v1925 = vpop.f32.mrb[0].mxu0
    %1926 = vdwg.mxu0
    %v1927 = vsel %vm573, %v1919, -inf
    %1928 = vmax.xlane.f32.xlu0 %v1927
    %v1929 = vpop.xlane.xlu0 %1928
    %v1930 = vsel %vm573, %v1924, -inf
    %1931 = vmax.xlane.f32.xlu0 %v1930
    %v1932 = vpop.xlane.xlu0 %1931
    %v1933 = vsub.f32 %v1919, %v1929
    %v1934 = vsub.f32 %v1924, %v1932
    %v1935 = vmul.f32 %v1933, 1.442695
    %v1936 = vpow.pop %v1935
    %v1937 = vmul.f32 %v1934, 1.442695
    %v1938 = vpow.pop %v1937
    %v1939 = vsel %vm573, %v1936, 0.0
    %1940 = vadd.xlane.f32.xlu0 %v1939
    %v1941 = vpop.xlane.xlu0 %1940
    %v1942 = vsel %vm573, %v1938, 0.0
    %1943 = vadd.xlane.f32.xlu0 %v1942
    %v1944 = vpop.xlane.xlu0 %1943
    %v1945 = vrcp.pop %v1941
    %v1946 = vrcp.pop %v1944
    %v1947 = vmul.f32 %v1936, %v1945
    %v1948 = vmul.f32 %v1938, %v1946
    %1949 = vrot.lane.b32.xlu0 %v1627, 88
    %v1950 = vpop.permute.xlu0 %1949
    %1951 = vrot.lane.b32.xlu0 %v1632, 88
    %v1952 = vpop.permute.xlu0 %1951
    %v1956 = vsel %vm573, %v1947, 0
    %v1959 = vsel %vm573, %v1948, 0
    %1961 = vmatprep.subr.mxu0 0.0
    %1962 = vmatpush1.msra.mxu0 %v1950
    %1963 = vmatprep.subr.mxu0 0.0
    %1964 = vmatpush1.msra.mxu0 %v1952
    %1965 = vmatprep.subr.mxu0 0.0
    %1966 = vmatpush1.msra.mxu0 0.0
    %1967 = vmatprep.subr.mxu0 0.0
    %1968 = vmatpush1.msra.mxu0 0.0
    %1969 = vmatprep.subr.mxu0 0.0
    %1970 = vmatpush1.msra.mxu0 0.0
    %1971 = vmatprep.subr.mxu0 0.0
    %1972 = vmatpush1.msra.mxu0 0.0
    %1973 = vmatprep.subr.mxu0 0.0
    %1974 = vmatpush1.msra.mxu0 0.0
    %1975 = vmatprep.subr.mxu0 0.0
    %1976 = vmatpush1.msra.mxu0 0.0
    %1977 = vmatprep.subr.mxu0 0.0
    %1978 = vmatpush1.msra.mxu0 0.0
    %1979 = vmatprep.subr.mxu0 0.0
    %1980 = vmatpush1.msra.mxu0 0.0
    %1981 = vmatprep.subr.mxu0 0.0
    %1982 = vmatpush1.msra.mxu0 0.0
    %1983 = vmatprep.subr.mxu0 0.0
    %1984 = vmatpush1.msra.mxu0 0.0
    %1985 = vmatprep.subr.mxu0 0.0
    %1986 = vmatpush1.msra.mxu0 0.0
    %1987 = vmatprep.subr.mxu0 0.0
    %1988 = vmatpush1.msra.mxu0 0.0
    %1989 = vmatprep.subr.mxu0 0.0
    %1990 = vmatpush1.msra.mxu0 0.0
    %1991 = vmatprep.subr.mxu0 0.0
    %1992 = vmatpush1.msra.mxu0 0.0
    %1993 = vmatprep.subr.mxu0 0.0
    %1994 = vmatpush1.msra.mxu0 0.0
    %1995 = vmatprep.subr.mxu0 0.0
    %1996 = vmatpush1.msra.mxu0 0.0
    %1997 = vmatprep.subr.mxu0 0.0
    %1998 = vmatpush1.msra.mxu0 0.0
    %1999 = vmatprep.subr.mxu0 0.0
    %2000 = vmatpush1.msra.mxu0 0.0
    %2001 = vmatprep.subr.mxu0 0.0
    %2002 = vmatpush1.msra.mxu0 0.0
    %2003 = vmatprep.subr.mxu0 0.0
    %2004 = vmatpush1.msra.mxu0 0.0
    %2005 = vmatprep.subr.mxu0 0.0
    %2006 = vmatpush1.msra.mxu0 0.0
    %2007 = vmatprep.subr.mxu0 0.0
    %2008 = vmatpush1.msra.mxu0 0.0
    %2009 = vmatprep.subr.mxu0 0.0
    %2010 = vmatpush1.msra.mxu0 0.0
    %2011 = vmatprep.subr.mxu0 0.0
    %2012 = vmatpush1.msra.mxu0 0.0
    %2013 = vmatprep.subr.mxu0 0.0
    %2014 = vmatpush1.msra.mxu0 0.0
    %2015 = vmatprep.subr.mxu0 0.0
    %2016 = vmatpush1.msra.mxu0 0.0
    %2017 = vmatprep.subr.mxu0 0.0
    %2018 = vmatpush1.msra.mxu0 0.0
    %2019 = vmatprep.subr.mxu0 0.0
    %2020 = vmatpush1.msra.mxu0 0.0
    %2021 = vmatprep.subr.mxu0 0.0
    %2022 = vmatpush1.msra.mxu0 0.0
    %2023 = vmatprep.subr.mxu0 0.0
    %2024 = vmatpush1.msra.mxu0 0.0
    %2025 = vmatprep.mubr.f32.mxu0 0.0
    %2026 = vmatmul.mubr.f32.gmra.mrb[0].mxu0 %v1956
    %v2027 = vpop.f32.mrb[0].mxu0
    %v2028 = vadd.f32 0.0, %v2027
    %v2029 = vpop.f32.mrb[0].mxu0
    %2030 = vmatprep.mubr.f32.mxu0 0.0
    %2031 = vmatmul.mubr.f32.gmra.mrb[0].mxu0 %v1959
    %v2032 = vpop.f32.mrb[0].mxu0
    %v2033 = vadd.f32 0.0, %v2032
    %v2034 = vpop.f32.mrb[0].mxu0
    %2035 = vdwg.mxu0
    %2036 = vrot.lane.b32.xlu0 %v1537, 112
    %v2037 = vpop.permute.xlu0 %2036
    %2038 = vrot.lane.b32.xlu0 %v1542, 112
    %v2039 = vpop.permute.xlu0 %2038
    %2040 = vrot.lane.b32.xlu0 %v1627, 112
    %v2041 = vpop.permute.xlu0 %2040
    %2042 = vrot.lane.b32.xlu0 %v1632, 112
    %v2043 = vpop.permute.xlu0 %2042
    %v2044 = vsel %vm28, %v2037, 0
    %v2046 = vsel %vm28, %v2039, 0
    %v2048 = vsel %vm28, %v2041, 0
    %v2050 = vsel %vm28, %v2043, 0
    %2052 = vmatprep.subr.mxu0 0.0
    %2053 = vmatpush1.xpose.msra.mxu0 %v2048
    %2054 = vmatprep.subr.mxu0 0.0
    %2055 = vmatpush1.xpose.msra.mxu0 %v2050
    %2056 = vmatprep.subr.mxu0 0.0
    %2057 = vmatpush1.xpose.msra.mxu0 0.0
    %2058 = vmatprep.subr.mxu0 0.0
    %2059 = vmatpush1.xpose.msra.mxu0 0.0
    %2060 = vmatprep.subr.mxu0 0.0
    %2061 = vmatpush1.xpose.msra.mxu0 0.0
    %2062 = vmatprep.subr.mxu0 0.0
    %2063 = vmatpush1.xpose.msra.mxu0 0.0
    %2064 = vmatprep.subr.mxu0 0.0
    %2065 = vmatpush1.xpose.msra.mxu0 0.0
    %2066 = vmatprep.subr.mxu0 0.0
    %2067 = vmatpush1.xpose.msra.mxu0 0.0
    %2068 = vmatprep.subr.mxu0 0.0
    %2069 = vmatpush1.xpose.msra.mxu0 0.0
    %2070 = vmatprep.subr.mxu0 0.0
    %2071 = vmatpush1.xpose.msra.mxu0 0.0
    %2072 = vmatprep.subr.mxu0 0.0
    %2073 = vmatpush1.xpose.msra.mxu0 0.0
    %2074 = vmatprep.subr.mxu0 0.0
    %2075 = vmatpush1.xpose.msra.mxu0 0.0
    %2076 = vmatprep.subr.mxu0 0.0
    %2077 = vmatpush1.xpose.msra.mxu0 0.0
    %2078 = vmatprep.subr.mxu0 0.0
    %2079 = vmatpush1.xpose.msra.mxu0 0.0
    %2080 = vmatprep.subr.mxu0 0.0
    %2081 = vmatpush1.xpose.msra.mxu0 0.0
    %2082 = vmatprep.subr.mxu0 0.0
    %2083 = vmatpush1.xpose.msra.mxu0 0.0
    %2084 = vmatprep.subr.mxu0 0.0
    %2085 = vmatpush1.xpose.msra.mxu0 0.0
    %2086 = vmatprep.subr.mxu0 0.0
    %2087 = vmatpush1.xpose.msra.mxu0 0.0
    %2088 = vmatprep.subr.mxu0 0.0
    %2089 = vmatpush1.xpose.msra.mxu0 0.0
    %2090 = vmatprep.subr.mxu0 0.0
    %2091 = vmatpush1.xpose.msra.mxu0 0.0
    %2092 = vmatprep.subr.mxu0 0.0
    %2093 = vmatpush1.xpose.msra.mxu0 0.0
    %2094 = vmatprep.subr.mxu0 0.0
    %2095 = vmatpush1.xpose.msra.mxu0 0.0
    %2096 = vmatprep.subr.mxu0 0.0
    %2097 = vmatpush1.xpose.msra.mxu0 0.0
    %2098 = vmatprep.subr.mxu0 0.0
    %2099 = vmatpush1.xpose.msra.mxu0 0.0
    %2100 = vmatprep.subr.mxu0 0.0
    %2101 = vmatpush1.xpose.msra.mxu0 0.0
    %2102 = vmatprep.subr.mxu0 0.0
    %2103 = vmatpush1.xpose.msra.mxu0 0.0
    %2104 = vmatprep.subr.mxu0 0.0
    %2105 = vmatpush1.xpose.msra.mxu0 0.0
    %2106 = vmatprep.subr.mxu0 0.0
    %2107 = vmatpush1.xpose.msra.mxu0 0.0
    %2108 = vmatprep.subr.mxu0 0.0
    %2109 = vmatpush1.xpose.msra.mxu0 0.0
    %2110 = vmatprep.subr.mxu0 0.0
    %2111 = vmatpush1.xpose.msra.mxu0 0.0
    %2112 = vmatprep.subr.mxu0 0.0
    %2113 = vmatpush1.xpose.msra.mxu0 0.0
    %2114 = vmatprep.subr.mxu0 0.0
    %2115 = vmatpush1.xpose.msra.mxu0 0.0
    %2116 = vmatprep.mubr.f32.mxu0 0.0
    %2117 = vmatmul.mubr.f32.gmra.mrb[0].mxu0 %v2044
    %v2118 = vpop.f32.mrb[0].mxu0
    %v2119 = vadd.f32 %v48, %v2118
    %v2120 = vpop.f32.mrb[0].mxu0
    %2121 = vmatprep.mubr.f32.mxu0 0.0
    %2122 = vmatmul.mubr.f32.gmra.mrb[0].mxu0 %v2046
    %v2123 = vpop.f32.mrb[0].mxu0
    %v2124 = vadd.f32 %v63, %v2123
    %v2125 = vpop.f32.mrb[0].mxu0
    %2126 = vdwg.mxu0
    %v2127 = vsel %vm573, %v2119, -inf
    %2128 = vmax.xlane.f32.xlu0 %v2127
    %v2129 = vpop.xlane.xlu0 %2128
    %v2130 = vsel %vm573, %v2124, -inf
    %2131 = vmax.xlane.f32.xlu0 %v2130
    %v2132 = vpop.xlane.xlu0 %2131
    %v2133 = vsub.f32 %v2119, %v2129
    %v2134 = vsub.f32 %v2124, %v2132
    %v2135 = vmul.f32 %v2133, 1.442695
    %v2136 = vpow.pop %v2135
    %v2137 = vmul.f32 %v2134, 1.442695
    %v2138 = vpow.pop %v2137
    %v2139 = vsel %vm573, %v2136, 0.0
    %2140 = vadd.xlane.f32.xlu0 %v2139
    %v2141 = vpop.xlane.xlu0 %2140
    %v2142 = vsel %vm573, %v2138, 0.0
    %2143 = vadd.xlane.f32.xlu0 %v2142
    %v2144 = vpop.xlane.xlu0 %2143
    %v2145 = vrcp.pop %v2141
    %v2146 = vrcp.pop %v2144
    %v2147 = vmul.f32 %v2136, %v2145
    %v2148 = vmul.f32 %v2138, %v2146
    %2149 = vrot.lane.b32.xlu0 %v1627, 80
    %v2150 = vpop.permute.xlu0 %2149
    %2151 = vrot.lane.b32.xlu0 %v1632, 80
    %v2152 = vpop.permute.xlu0 %2151
    %v2156 = vsel %vm573, %v2147, 0
    %v2159 = vsel %vm573, %v2148, 0
    %2161 = vmatprep.subr.mxu0 0.0
    %2162 = vmatpush1.msra.mxu0 %v2150
    %2163 = vmatprep.subr.mxu0 0.0
    %2164 = vmatpush1.msra.mxu0 %v2152
    %2165 = vmatprep.subr.mxu0 0.0
    %2166 = vmatpush1.msra.mxu0 0.0
    %2167 = vmatprep.subr.mxu0 0.0
    %2168 = vmatpush1.msra.mxu0 0.0
    %2169 = vmatprep.subr.mxu0 0.0
    %2170 = vmatpush1.msra.mxu0 0.0
    %2171 = vmatprep.subr.mxu0 0.0
    %2172 = vmatpush1.msra.mxu0 0.0
    %2173 = vmatprep.subr.mxu0 0.0
    %2174 = vmatpush1.msra.mxu0 0.0
    %2175 = vmatprep.subr.mxu0 0.0
    %2176 = vmatpush1.msra.mxu0 0.0
    %2177 = vmatprep.subr.mxu0 0.0
    %2178 = vmatpush1.msra.mxu0 0.0
    %2179 = vmatprep.subr.mxu0 0.0
    %2180 = vmatpush1.msra.mxu0 0.0
    %2181 = vmatprep.subr.mxu0 0.0
    %2182 = vmatpush1.msra.mxu0 0.0
    %2183 = vmatprep.subr.mxu0 0.0
    %2184 = vmatpush1.msra.mxu0 0.0
    %2185 = vmatprep.subr.mxu0 0.0
    %2186 = vmatpush1.msra.mxu0 0.0
    %2187 = vmatprep.subr.mxu0 0.0
    %2188 = vmatpush1.msra.mxu0 0.0
    %2189 = vmatprep.subr.mxu0 0.0
    %2190 = vmatpush1.msra.mxu0 0.0
    %2191 = vmatprep.subr.mxu0 0.0
    %2192 = vmatpush1.msra.mxu0 0.0
    %2193 = vmatprep.subr.mxu0 0.0
    %2194 = vmatpush1.msra.mxu0 0.0
    %2195 = vmatprep.subr.mxu0 0.0
    %2196 = vmatpush1.msra.mxu0 0.0
    %2197 = vmatprep.subr.mxu0 0.0
    %2198 = vmatpush1.msra.mxu0 0.0
    %2199 = vmatprep.subr.mxu0 0.0
    %2200 = vmatpush1.msra.mxu0 0.0
    %2201 = vmatprep.subr.mxu0 0.0
    %2202 = vmatpush1.msra.mxu0 0.0
    %2203 = vmatprep.subr.mxu0 0.0
    %2204 = vmatpush1.msra.mxu0 0.0
    %2205 = vmatprep.subr.mxu0 0.0
    %2206 = vmatpush1.msra.mxu0 0.0
    %2207 = vmatprep.subr.mxu0 0.0
    %2208 = vmatpush1.msra.mxu0 0.0
    %2209 = vmatprep.subr.mxu0 0.0
    %2210 = vmatpush1.msra.mxu0 0.0
    %2211 = vmatprep.subr.mxu0 0.0
    %2212 = vmatpush1.msra.mxu0 0.0
    %2213 = vmatprep.subr.mxu0 0.0
    %2214 = vmatpush1.msra.mxu0 0.0
    %2215 = vmatprep.subr.mxu0 0.0
    %2216 = vmatpush1.msra.mxu0 0.0
    %2217 = vmatprep.subr.mxu0 0.0
    %2218 = vmatpush1.msra.mxu0 0.0
    %2219 = vmatprep.subr.mxu0 0.0
    %2220 = vmatpush1.msra.mxu0 0.0
    %2221 = vmatprep.subr.mxu0 0.0
    %2222 = vmatpush1.msra.mxu0 0.0
    %2223 = vmatprep.subr.mxu0 0.0
    %2224 = vmatpush1.msra.mxu0 0.0
    %2225 = vmatprep.mubr.f32.mxu0 0.0
    %2226 = vmatmul.mubr.f32.gmra.mrb[0].mxu0 %v2156
    %v2227 = vpop.f32.mrb[0].mxu0
    %v2228 = vadd.f32 0.0, %v2227
    %v2229 = vpop.f32.mrb[0].mxu0
    %2230 = vmatprep.mubr.f32.mxu0 0.0
    %2231 = vmatmul.mubr.f32.gmra.mrb[0].mxu0 %v2159
    %v2232 = vpop.f32.mrb[0].mxu0
    %v2233 = vadd.f32 0.0, %v2232
    %v2234 = vpop.f32.mrb[0].mxu0
    %2235 = vdwg.mxu0
    %2236 = vrot.lane.b32.xlu0 %v1537, 104
    %v2237 = vpop.permute.xlu0 %2236
    %2238 = vrot.lane.b32.xlu0 %v1542, 104
    %v2239 = vpop.permute.xlu0 %2238
    %2240 = vrot.lane.b32.xlu0 %v1627, 104
    %v2241 = vpop.permute.xlu0 %2240
    %2242 = vrot.lane.b32.xlu0 %v1632, 104
    %v2243 = vpop.permute.xlu0 %2242
    %v2244 = vsel %vm28, %v2237, 0
    %v2246 = vsel %vm28, %v2239, 0
    %v2248 = vsel %vm28, %v2241, 0
    %v2250 = vsel %vm28, %v2243, 0
    %2252 = vmatprep.subr.mxu0 0.0
    %2253 = vmatpush1.xpose.msra.mxu0 %v2248
    %2254 = vmatprep.subr.mxu0 0.0
    %2255 = vmatpush1.xpose.msra.mxu0 %v2250
    %2256 = vmatprep.subr.mxu0 0.0
    %2257 = vmatpush1.xpose.msra.mxu0 0.0
    %2258 = vmatprep.subr.mxu0 0.0
    %2259 = vmatpush1.xpose.msra.mxu0 0.0
    %2260 = vmatprep.subr.mxu0 0.0
    %2261 = vmatpush1.xpose.msra.mxu0 0.0
    %2262 = vmatprep.subr.mxu0 0.0
    %2263 = vmatpush1.xpose.msra.mxu0 0.0
    %2264 = vmatprep.subr.mxu0 0.0
    %2265 = vmatpush1.xpose.msra.mxu0 0.0
    %2266 = vmatprep.subr.mxu0 0.0
    %2267 = vmatpush1.xpose.msra.mxu0 0.0
    %2268 = vmatprep.subr.mxu0 0.0
    %2269 = vmatpush1.xpose.msra.mxu0 0.0
    %2270 = vmatprep.subr.mxu0 0.0
    %2271 = vmatpush1.xpose.msra.mxu0 0.0
    %2272 = vmatprep.subr.mxu0 0.0
    %2273 = vmatpush1.xpose.msra.mxu0 0.0
    %2274 = vmatprep.subr.mxu0 0.0
    %2275 = vmatpush1.xpose.msra.mxu0 0.0
    %2276 = vmatprep.subr.mxu0 0.0
    %2277 = vmatpush1.xpose.msra.mxu0 0.0
    %2278 = vmatprep.subr.mxu0 0.0
    %2279 = vmatpush1.xpose.msra.mxu0 0.0
    %2280 = vmatprep.subr.mxu0 0.0
    %2281 = vmatpush1.xpose.msra.mxu0 0.0
    %2282 = vmatprep.subr.mxu0 0.0
    %2283 = vmatpush1.xpose.msra.mxu0 0.0
    %2284 = vmatprep.subr.mxu0 0.0
    %2285 = vmatpush1.xpose.msra.mxu0 0.0
    %2286 = vmatprep.subr.mxu0 0.0
    %2287 = vmatpush1.xpose.msra.mxu0 0.0
    %2288 = vmatprep.subr.mxu0 0.0
    %2289 = vmatpush1.xpose.msra.mxu0 0.0
    %2290 = vmatprep.subr.mxu0 0.0
    %2291 = vmatpush1.xpose.msra.mxu0 0.0
    %2292 = vmatprep.subr.mxu0 0.0
    %2293 = vmatpush1.xpose.msra.mxu0 0.0
    %2294 = vmatprep.subr.mxu0 0.0
    %2295 = vmatpush1.xpose.msra.mxu0 0.0
    %2296 = vmatprep.subr.mxu0 0.0
    %2297 = vmatpush1.xpose.msra.mxu0 0.0
    %2298 = vmatprep.subr.mxu0 0.0
    %2299 = vmatpush1.xpose.msra.mxu0 0.0
    %2300 = vmatprep.subr.mxu0 0.0
    %2301 = vmatpush1.xpose.msra.mxu0 0.0
    %2302 = vmatprep.subr.mxu0 0.0
    %2303 = vmatpush1.xpose.msra.mxu0 0.0
    %2304 = vmatprep.subr.mxu0 0.0
    %2305 = vmatpush1.xpose.msra.mxu0 0.0
    %2306 = vmatprep.subr.mxu0 0.0
    %2307 = vmatpush1.xpose.msra.mxu0 0.0
    %2308 = vmatprep.subr.mxu0 0.0
    %2309 = vmatpush1.xpose.msra.mxu0 0.0
    %2310 = vmatprep.subr.mxu0 0.0
    %2311 = vmatpush1.xpose.msra.mxu0 0.0
    %2312 = vmatprep.subr.mxu0 0.0
    %2313 = vmatpush1.xpose.msra.mxu0 0.0
    %2314 = vmatprep.subr.mxu0 0.0
    %2315 = vmatpush1.xpose.msra.mxu0 0.0
    %2316 = vmatprep.mubr.f32.mxu0 0.0
    %2317 = vmatmul.mubr.f32.gmra.mrb[0].mxu0 %v2244
    %v2318 = vpop.f32.mrb[0].mxu0
    %v2319 = vadd.f32 %v48, %v2318
    %v2320 = vpop.f32.mrb[0].mxu0
    %2321 = vmatprep.mubr.f32.mxu0 0.0
    %2322 = vmatmul.mubr.f32.gmra.mrb[0].mxu0 %v2246
    %v2323 = vpop.f32.mrb[0].mxu0
    %v2324 = vadd.f32 %v63, %v2323
    %v2325 = vpop.f32.mrb[0].mxu0
    %2326 = vdwg.mxu0
    %v2327 = vsel %vm573, %v2319, -inf
    %2328 = vmax.xlane.f32.xlu0 %v2327
    %v2329 = vpop.xlane.xlu0 %2328
    %v2330 = vsel %vm573, %v2324, -inf
    %2331 = vmax.xlane.f32.xlu0 %v2330
    %v2332 = vpop.xlane.xlu0 %2331
    %v2333 = vsub.f32 %v2319, %v2329
    %v2334 = vsub.f32 %v2324, %v2332
    %v2335 = vmul.f32 %v2333, 1.442695
    %v2336 = vpow.pop %v2335
    %v2337 = vmul.f32 %v2334, 1.442695
    %v2338 = vpow.pop %v2337
    %v2339 = vsel %vm573, %v2336, 0.0
    %2340 = vadd.xlane.f32.xlu0 %v2339
    %v2341 = vpop.xlane.xlu0 %2340
    %v2342 = vsel %vm573, %v2338, 0.0
    %2343 = vadd.xlane.f32.xlu0 %v2342
    %v2344 = vpop.xlane.xlu0 %2343
    %v2345 = vrcp.pop %v2341
    %v2346 = vrcp.pop %v2344
    %v2347 = vmul.f32 %v2336, %v2345
    %v2348 = vmul.f32 %v2338, %v2346
    %2349 = vrot.lane.b32.xlu0 %v1627, 72
    %v2350 = vpop.permute.xlu0 %2349
    %2351 = vrot.lane.b32.xlu0 %v1632, 72
    %v2352 = vpop.permute.xlu0 %2351
    %v2356 = vsel %vm573, %v2347, 0
    %v2359 = vsel %vm573, %v2348, 0
    %2361 = vmatprep.subr.mxu0 0.0
    %2362 = vmatpush1.msra.mxu0 %v2350
    %2363 = vmatprep.subr.mxu0 0.0
    %2364 = vmatpush1.msra.mxu0 %v2352
    %2365 = vmatprep.subr.mxu0 0.0
    %2366 = vmatpush1.msra.mxu0 0.0
    %2367 = vmatprep.subr.mxu0 0.0
    %2368 = vmatpush1.msra.mxu0 0.0
    %2369 = vmatprep.subr.mxu0 0.0
    %2370 = vmatpush1.msra.mxu0 0.0
    %2371 = vmatprep.subr.mxu0 0.0
    %2372 = vmatpush1.msra.mxu0 0.0
    %2373 = vmatprep.subr.mxu0 0.0
    %2374 = vmatpush1.msra.mxu0 0.0
    %2375 = vmatprep.subr.mxu0 0.0
    %2376 = vmatpush1.msra.mxu0 0.0
    %2377 = vmatprep.subr.mxu0 0.0
    %2378 = vmatpush1.msra.mxu0 0.0
    %2379 = vmatprep.subr.mxu0 0.0
    %2380 = vmatpush1.msra.mxu0 0.0
    %2381 = vmatprep.subr.mxu0 0.0
    %2382 = vmatpush1.msra.mxu0 0.0
    %2383 = vmatprep.subr.mxu0 0.0
    %2384 = vmatpush1.msra.mxu0 0.0
    %2385 = vmatprep.subr.mxu0 0.0
    %2386 = vmatpush1.msra.mxu0 0.0
    %2387 = vmatprep.subr.mxu0 0.0
    %2388 = vmatpush1.msra.mxu0 0.0
    %2389 = vmatprep.subr.mxu0 0.0
    %2390 = vmatpush1.msra.mxu0 0.0
    %2391 = vmatprep.subr.mxu0 0.0
    %2392 = vmatpush1.msra.mxu0 0.0
    %2393 = vmatprep.subr.mxu0 0.0
    %2394 = vmatpush1.msra.mxu0 0.0
    %2395 = vmatprep.subr.mxu0 0.0
    %2396 = vmatpush1.msra.mxu0 0.0
    %2397 = vmatprep.subr.mxu0 0.0
    %2398 = vmatpush1.msra.mxu0 0.0
    %2399 = vmatprep.subr.mxu0 0.0
    %2400 = vmatpush1.msra.mxu0 0.0
    %2401 = vmatprep.subr.mxu0 0.0
    %2402 = vmatpush1.msra.mxu0 0.0
    %2403 = vmatprep.subr.mxu0 0.0
    %2404 = vmatpush1.msra.mxu0 0.0
    %2405 = vmatprep.subr.mxu0 0.0
    %2406 = vmatpush1.msra.mxu0 0.0
    %2407 = vmatprep.subr.mxu0 0.0
    %2408 = vmatpush1.msra.mxu0 0.0
    %2409 = vmatprep.subr.mxu0 0.0
    %2410 = vmatpush1.msra.mxu0 0.0
    %2411 = vmatprep.subr.mxu0 0.0
    %2412 = vmatpush1.msra.mxu0 0.0
    %2413 = vmatprep.subr.mxu0 0.0
    %2414 = vmatpush1.msra.mxu0 0.0
    %2415 = vmatprep.subr.mxu0 0.0
    %2416 = vmatpush1.msra.mxu0 0.0
    %2417 = vmatprep.subr.mxu0 0.0
    %2418 = vmatpush1.msra.mxu0 0.0
    %2419 = vmatprep.subr.mxu0 0.0
    %2420 = vmatpush1.msra.mxu0 0.0
    %2421 = vmatprep.subr.mxu0 0.0
    %2422 = vmatpush1.msra.mxu0 0.0
    %2423 = vmatprep.subr.mxu0 0.0
    %2424 = vmatpush1.msra.mxu0 0.0
    %2425 = vmatprep.mubr.f32.mxu0 0.0
    %2426 = vmatmul.mubr.f32.gmra.mrb[0].mxu0 %v2356
    %v2427 = vpop.f32.mrb[0].mxu0
    %v2428 = vadd.f32 0.0, %v2427
    %v2429 = vpop.f32.mrb[0].mxu0
    %2430 = vmatprep.mubr.f32.mxu0 0.0
    %2431 = vmatmul.mubr.f32.gmra.mrb[0].mxu0 %v2359
    %v2432 = vpop.f32.mrb[0].mxu0
    %v2433 = vadd.f32 0.0, %v2432
    %v2434 = vpop.f32.mrb[0].mxu0
    %2435 = vdwg.mxu0
    %2438 = vrot.lane.b32.xlu0 %v2028, 8
    %v2439 = vpop.permute.xlu0 %2438
    %2440 = vrot.lane.b32.xlu0 %v2033, 8
    %v2441 = vpop.permute.xlu0 %2440
    %2446 = vrot.lane.b32.xlu0 %v2228, 16
    %v2447 = vpop.permute.xlu0 %2446
    %2448 = vrot.lane.b32.xlu0 %v2233, 16
    %v2449 = vpop.permute.xlu0 %2448
    %2454 = vrot.lane.b32.xlu0 %v2428, 24
    %v2455 = vpop.permute.xlu0 %2454
    %2456 = vrot.lane.b32.xlu0 %v2433, 24
    %v2457 = vpop.permute.xlu0 %2456
    %v2460 = vsel %vm28, %v1828, %v2439
    %v2461 = vsel %vm28, %v1833, %v2441
    %v2462 = vsel %vm573, %v2460, %v2447
    %v2463 = vsel %vm573, %v2461, %v2449
    %v2464 = vsel %vm1311, %v2462, %v2455
    %v2465 = vsel %vm1311, %v2463, %v2457
    %v2466 = vlaneseq
    %v2467 = vshrl.u32 %v2466, 7
    %v2468 = vsub.s32 0, %v2467
    %v2469 = vrot.slane %v1639, %v2468
    %v2471 = vsel %vm153, %v2464, 0
    %v2474 = vsel %vm153, %v2465, 0
    %2476 = vmatprep.subr.mxu0 0.0
    %2477 = vmatpush1.msra.mxu0 %v1635
    %2478 = vmatprep.subr.mxu0 0.0
    %2479 = vmatpush1.msra.mxu0 %v1636
    %2480 = vmatprep.subr.mxu0 0.0
    %2481 = vmatpush1.msra.mxu0 %v1637
    %2482 = vmatprep.subr.mxu0 0.0
    %2483 = vmatpush1.msra.mxu0 %v1638
    %2484 = vmatprep.subr.mxu0 0.0
    %2485 = vmatpush1.msra.mxu0 0.0
    %2486 = vmatprep.subr.mxu0 0.0
    %2487 = vmatpush1.msra.mxu0 0.0
    %2488 = vmatprep.subr.mxu0 0.0
    %2489 = vmatpush1.msra.mxu0 0.0
    %2490 = vmatprep.subr.mxu0 0.0
    %2491 = vmatpush1.msra.mxu0 0.0
    %2492 = vmatprep.subr.mxu0 0.0
    %2493 = vmatpush1.msra.mxu0 0.0
    %2494 = vmatprep.subr.mxu0 0.0
    %2495 = vmatpush1.msra.mxu0 0.0
    %2496 = vmatprep.subr.mxu0 0.0
    %2497 = vmatpush1.msra.mxu0 0.0
    %2498 = vmatprep.subr.mxu0 0.0
    %2499 = vmatpush1.msra.mxu0 0.0
    %2500 = vmatprep.subr.mxu0 0.0
    %2501 = vmatpush1.msra.mxu0 0.0
    %2502 = vmatprep.subr.mxu0 0.0
    %2503 = vmatpush1.msra.mxu0 0.0
    %2504 = vmatprep.subr.mxu0 0.0
    %2505 = vmatpush1.msra.mxu0 0.0
    %2506 = vmatprep.subr.mxu0 0.0
    %2507 = vmatpush1.msra.mxu0 0.0
    %2508 = vmatprep.subr.mxu0 0.0
    %2509 = vmatpush1.msra.mxu0 0.0
    %2510 = vmatprep.subr.mxu0 0.0
    %2511 = vmatpush1.msra.mxu0 0.0
    %2512 = vmatprep.subr.mxu0 0.0
    %2513 = vmatpush1.msra.mxu0 0.0
    %2514 = vmatprep.subr.mxu0 0.0
    %2515 = vmatpush1.msra.mxu0 0.0
    %2516 = vmatprep.subr.mxu0 0.0
    %2517 = vmatpush1.msra.mxu0 0.0
    %2518 = vmatprep.subr.mxu0 0.0
    %2519 = vmatpush1.msra.mxu0 0.0
    %2520 = vmatprep.subr.mxu0 0.0
    %2521 = vmatpush1.msra.mxu0 0.0
    %2522 = vmatprep.subr.mxu0 0.0
    %2523 = vmatpush1.msra.mxu0 0.0
    %2524 = vmatprep.subr.mxu0 0.0
    %2525 = vmatpush1.msra.mxu0 0.0
    %2526 = vmatprep.subr.mxu0 0.0
    %2527 = vmatpush1.msra.mxu0 0.0
    %2528 = vmatprep.subr.mxu0 0.0
    %2529 = vmatpush1.msra.mxu0 0.0
    %2530 = vmatprep.subr.mxu0 0.0
    %2531 = vmatpush1.msra.mxu0 0.0
    %2532 = vmatprep.subr.mxu0 0.0
    %2533 = vmatpush1.msra.mxu0 0.0
    %2534 = vmatprep.subr.mxu0 0.0
    %2535 = vmatpush1.msra.mxu0 0.0
    %2536 = vmatprep.subr.mxu0 0.0
    %2537 = vmatpush1.msra.mxu0 0.0
    %2538 = vmatprep.subr.mxu0 0.0
    %2539 = vmatpush1.msra.mxu0 0.0
    %2540 = vmatprep.mubr.f32.mxu0 0.0
    %2541 = vmatmul.mubr.f32.gmra.mrb[0].mxu0 %v2471
    %v2542 = vpop.f32.mrb[0].mxu0
    %v2543 = vadd.f32 %v2469, %v2542
    %v2544 = vpop.f32.mrb[0].mxu0
    %2545 = vmatprep.mubr.f32.mxu0 0.0
    %2546 = vmatmul.mubr.f32.gmra.mrb[0].mxu0 %v2474
    %v2547 = vpop.f32.mrb[0].mxu0
    %v2548 = vadd.f32 %v2469, %v2547
    %v2549 = vpop.f32.mrb[0].mxu0
    %2550 = vdwg.mxu0
    %v2551 = vadd.f32 %v1453, %v2543
    %v2552 = vadd.f32 %v1454, %v2548
    %v2553 = vld [vmem:[%s4 + $0x139] sm:$0x1]
    %v2554 = vld [vmem:[%s4 + $0x13a] sm:$0x1]
    %v2555 = vsel %vm153, %v2551, 0.0
    %2556 = vadd.xlane.f32.xlu0 %v2555
    %v2557 = vpop.xlane.xlu0 %2556
    %v2558 = vsel %vm153, %v2552, 0.0
    %2559 = vadd.xlane.f32.xlu0 %v2558
    %v2560 = vpop.xlane.xlu0 %2559
    %v2561 = vmul.f32 %v2557, %v160
    %v2562 = vmul.f32 %v2560, %v160
    %v2563 = vsub.f32 %v2551, %v2561
    %v2564 = vsub.f32 %v2552, %v2562
    %v2565 = vmul.f32 %v2563, %v2563
    %v2566 = vmul.f32 %v2564, %v2564
    %v2567 = vsel %vm153, %v2565, 0.0
    %2568 = vadd.xlane.f32.xlu0 %v2567
    %v2569 = vpop.xlane.xlu0 %2568
    %v2570 = vsel %vm153, %v2566, 0.0
    %2571 = vadd.xlane.f32.xlu0 %v2570
    %v2572 = vpop.xlane.xlu0 %2571
    %v2573 = vmul.f32 %v2569, 0.032258064
    %v2574 = vmul.f32 %v2572, 0.032258064
    %v2575 = vrsqrt.pop %v2573
    %v2576 = vmul.f32 %v2573, %v2575
    %vm2577 = vcmp.eq.f32.partialorder %v2573, inf
    %v2578 = vsel %vm2577, %v2573, %v2576
    %vm2579 = vcmp.eq.f32.partialorder %v2573, 0.0
    %v2580 = vand.u32 %v2573, 2147483648
    %v2581 = vsel %vm2579, %v2580, %v2578
    %v2582 = vrsqrt.pop %v2574
    %v2583 = vmul.f32 %v2574, %v2582
    %vm2584 = vcmp.eq.f32.partialorder %v2574, inf
    %v2585 = vsel %vm2584, %v2574, %v2583
    %vm2586 = vcmp.eq.f32.partialorder %v2574, 0.0
    %v2587 = vand.u32 %v2574, 2147483648
    %v2588 = vsel %vm2586, %v2587, %v2585
    %v2589 = vadd.f32 %v2581, 1e-06
    %v2590 = vadd.f32 %v2588, 1e-06
    %v2591 = vrcp.pop %v2589
    %v2592 = vrcp.pop %v2590
    %v2593 = vmul.f32 %v2563, %v2591
    %v2594 = vmul.f32 %v2564, %v2592
    %v2595 = vlaneseq
    %v2596 = vshrl.u32 %v2595, 7
    %v2597 = vsub.s32 0, %v2596
    %v2598 = vrot.slane %v2553, %v2597
    %v2599 = vmul.f32 %v2598, %v2593
    %v2600 = vmul.f32 %v2598, %v2594
    %v2601 = vlaneseq
    %v2602 = vshrl.u32 %v2601, 7
    %v2603 = vsub.s32 0, %v2602
    %v2604 = vrot.slane %v2554, %v2603
    %v2605 = vadd.f32 %v2599, %v2604
    %v2606 = vadd.f32 %v2600, %v2604
    %v2607 = vld [vmem:[%s4 + $0xf0] sm:$0xff]
    %v2608 = vld [vmem:[%s4 + $0xf8] sm:$0xff]
    %v2609 = vld [vmem:[%s4 + $0x100] sm:$0xff]
    %v2610 = vld [vmem:[%s4 + $0x108] sm:$0xff]
    %v2611 = vld [vmem:[%s4 + $0x135] sm:$0x1]
    %v2612 = vlaneseq
    %v2613 = vshrl.u32 %v2612, 7
    %v2614 = vsub.s32 0, %v2613
    %v2615 = vrot.slane %v2611, %v2614
    %v2617 = vsel %vm153, %v2605, 0
    %v2620 = vsel %vm153, %v2606, 0
    %2622 = vmatprep.subr.mxu0 0.0
    %2623 = vmatpush1.msra.mxu0 %v2607
    %2624 = vmatprep.subr.mxu0 0.0
    %2625 = vmatpush1.msra.mxu0 %v2608
    %2626 = vmatprep.subr.mxu0 0.0
    %2627 = vmatpush1.msra.mxu0 %v2609
    %2628 = vmatprep.subr.mxu0 0.0
    %2629 = vmatpush1.msra.mxu0 %v2610
    %2630 = vmatprep.subr.mxu0 0.0
    %2631 = vmatpush1.msra.mxu0 0.0
    %2632 = vmatprep.subr.mxu0 0.0
    %2633 = vmatpush1.msra.mxu0 0.0
    %2634 = vmatprep.subr.mxu0 0.0
    %2635 = vmatpush1.msra.mxu0 0.0
    %2636 = vmatprep.subr.mxu0 0.0
    %2637 = vmatpush1.msra.mxu0 0.0
    %2638 = vmatprep.subr.mxu0 0.0
    %2639 = vmatpush1.msra.mxu0 0.0
    %2640 = vmatprep.subr.mxu0 0.0
    %2641 = vmatpush1.msra.mxu0 0.0
    %2642 = vmatprep.subr.mxu0 0.0
    %2643 = vmatpush1.msra.mxu0 0.0
    %2644 = vmatprep.subr.mxu0 0.0
    %2645 = vmatpush1.msra.mxu0 0.0
    %2646 = vmatprep.subr.mxu0 0.0
    %2647 = vmatpush1.msra.mxu0 0.0
    %2648 = vmatprep.subr.mxu0 0.0
    %2649 = vmatpush1.msra.mxu0 0.0
    %2650 = vmatprep.subr.mxu0 0.0
    %2651 = vmatpush1.msra.mxu0 0.0
    %2652 = vmatprep.subr.mxu0 0.0
    %2653 = vmatpush1.msra.mxu0 0.0
    %2654 = vmatprep.subr.mxu0 0.0
    %2655 = vmatpush1.msra.mxu0 0.0
    %2656 = vmatprep.subr.mxu0 0.0
    %2657 = vmatpush1.msra.mxu0 0.0
    %2658 = vmatprep.subr.mxu0 0.0
    %2659 = vmatpush1.msra.mxu0 0.0
    %2660 = vmatprep.subr.mxu0 0.0
    %2661 = vmatpush1.msra.mxu0 0.0
    %2662 = vmatprep.subr.mxu0 0.0
    %2663 = vmatpush1.msra.mxu0 0.0
    %2664 = vmatprep.subr.mxu0 0.0
    %2665 = vmatpush1.msra.mxu0 0.0
    %2666 = vmatprep.subr.mxu0 0.0
    %2667 = vmatpush1.msra.mxu0 0.0
    %2668 = vmatprep.subr.mxu0 0.0
    %2669 = vmatpush1.msra.mxu0 0.0
    %2670 = vmatprep.subr.mxu0 0.0
    %2671 = vmatpush1.msra.mxu0 0.0
    %2672 = vmatprep.subr.mxu0 0.0
    %2673 = vmatpush1.msra.mxu0 0.0
    %2674 = vmatprep.subr.mxu0 0.0
    %2675 = vmatpush1.msra.mxu0 0.0
    %2676 = vmatprep.subr.mxu0 0.0
    %2677 = vmatpush1.msra.mxu0 0.0
    %2678 = vmatprep.subr.mxu0 0.0
    %2679 = vmatpush1.msra.mxu0 0.0
    %2680 = vmatprep.subr.mxu0 0.0
    %2681 = vmatpush1.msra.mxu0 0.0
    %2682 = vmatprep.subr.mxu0 0.0
    %2683 = vmatpush1.msra.mxu0 0.0
    %2684 = vmatprep.subr.mxu0 0.0
    %2685 = vmatpush1.msra.mxu0 0.0
    %2686 = vmatprep.mubr.f32.mxu0 0.0
    %2687 = vmatmul.mubr.f32.gmra.mrb[0].mxu0 %v2617
    %v2688 = vpop.f32.mrb[0].mxu0
    %v2689 = vadd.f32 %v2615, %v2688
    %v2690 = vpop.f32.mrb[0].mxu0
    %2691 = vmatprep.mubr.f32.mxu0 0.0
    %2692 = vmatmul.mubr.f32.gmra.mrb[0].mxu0 %v2620
    %v2693 = vpop.f32.mrb[0].mxu0
    %v2694 = vadd.f32 %v2615, %v2693
    %v2695 = vpop.f32.mrb[0].mxu0
    %2696 = vdwg.mxu0
    %v2697 = vmax.f32 %v2689, 0.0
    %v2698 = vmax.f32 %v2694, 0.0
    %v2699 = vld [vmem:[%s4 + $0x110] sm:$0xff]
    %v2700 = vld [vmem:[%s4 + $0x118] sm:$0xff]
    %v2701 = vld [vmem:[%s4 + $0x120] sm:$0xff]
    %v2702 = vld [vmem:[%s4 + $0x128] sm:$0xff]
    %v2704 = vsel %vm153, %v2697, 0
    %v2707 = vsel %vm153, %v2698, 0
    %2709 = vmatprep.subr.mxu0 0.0
    %2710 = vmatpush1.msra.mxu0 %v2699
    %2711 = vmatprep.subr.mxu0 0.0
    %2712 = vmatpush1.msra.mxu0 %v2700
    %2713 = vmatprep.subr.mxu0 0.0
    %2714 = vmatpush1.msra.mxu0 %v2701
    %2715 = vmatprep.subr.mxu0 0.0
    %2716 = vmatpush1.msra.mxu0 %v2702
    %2717 = vmatprep.subr.mxu0 0.0
    %2718 = vmatpush1.msra.mxu0 0.0
    %2719 = vmatprep.subr.mxu0 0.0
    %2720 = vmatpush1.msra.mxu0 0.0
    %2721 = vmatprep.subr.mxu0 0.0
    %2722 = vmatpush1.msra.mxu0 0.0
    %2723 = vmatprep.subr.mxu0 0.0
    %2724 = vmatpush1.msra.mxu0 0.0
    %2725 = vmatprep.subr.mxu0 0.0
    %2726 = vmatpush1.msra.mxu0 0.0
    %2727 = vmatprep.subr.mxu0 0.0
    %2728 = vmatpush1.msra.mxu0 0.0
    %2729 = vmatprep.subr.mxu0 0.0
    %2730 = vmatpush1.msra.mxu0 0.0
    %2731 = vmatprep.subr.mxu0 0.0
    %2732 = vmatpush1.msra.mxu0 0.0
    %2733 = vmatprep.subr.mxu0 0.0
    %2734 = vmatpush1.msra.mxu0 0.0
    %2735 = vmatprep.subr.mxu0 0.0
    %2736 = vmatpush1.msra.mxu0 0.0
    %2737 = vmatprep.subr.mxu0 0.0
    %2738 = vmatpush1.msra.mxu0 0.0
    %2739 = vmatprep.subr.mxu0 0.0
    %2740 = vmatpush1.msra.mxu0 0.0
    %2741 = vmatprep.subr.mxu0 0.0
    %2742 = vmatpush1.msra.mxu0 0.0
    %2743 = vmatprep.subr.mxu0 0.0
    %2744 = vmatpush1.msra.mxu0 0.0
    %2745 = vmatprep.subr.mxu0 0.0
    %2746 = vmatpush1.msra.mxu0 0.0
    %2747 = vmatprep.subr.mxu0 0.0
    %2748 = vmatpush1.msra.mxu0 0.0
    %2749 = vmatprep.subr.mxu0 0.0
    %2750 = vmatpush1.msra.mxu0 0.0
    %2751 = vmatprep.subr.mxu0 0.0
    %2752 = vmatpush1.msra.mxu0 0.0
    %2753 = vmatprep.subr.mxu0 0.0
    %2754 = vmatpush1.msra.mxu0 0.0
    %2755 = vmatprep.subr.mxu0 0.0
    %2756 = vmatpush1.msra.mxu0 0.0
    %2757 = vmatprep.subr.mxu0 0.0
    %2758 = vmatpush1.msra.mxu0 0.0
    %2759 = vmatprep.subr.mxu0 0.0
    %2760 = vmatpush1.msra.mxu0 0.0
    %2761 = vmatprep.subr.mxu0 0.0
    %2762 = vmatpush1.msra.mxu0 0.0
    %2763 = vmatprep.subr.mxu0 0.0
    %2764 = vmatpush1.msra.mxu0 0.0
    %2765 = vmatprep.subr.mxu0 0.0
    %2766 = vmatpush1.msra.mxu0 0.0
    %2767 = vmatprep.subr.mxu0 0.0
    %2768 = vmatpush1.msra.mxu0 0.0
    %2769 = vmatprep.subr.mxu0 0.0
    %2770 = vmatpush1.msra.mxu0 0.0
    %2771 = vmatprep.subr.mxu0 0.0
    %2772 = vmatpush1.msra.mxu0 0.0
    %2773 = vmatprep.mubr.f32.mxu0 0.0
    %2774 = vmatmul.mubr.f32.gmra.mrb[0].mxu0 %v2704
    %v2775 = vpop.f32.mrb[0].mxu0
    %v2776 = vadd.f32 0.0, %v2775
    %v2777 = vpop.f32.mrb[0].mxu0
    %2778 = vmatprep.mubr.f32.mxu0 0.0
    %2779 = vmatmul.mubr.f32.gmra.mrb[0].mxu0 %v2707
    %v2780 = vpop.f32.mrb[0].mxu0
    %v2781 = vadd.f32 0.0, %v2780
    %v2782 = vpop.f32.mrb[0].mxu0
    %2783 = vdwg.mxu0
    %v2784 = vadd.f32 %v2605, %v2776
    %v2785 = vadd.f32 %v2606, %v2781
    %v2786 = vld [vmem:[%s4 + $0x136] sm:$0x1]
    %v2787 = vlaneseq
    %v2788 = vshrl.u32 %v2787, 7
    %v2789 = vsub.s32 0, %v2788
    %v2790 = vrot.slane %v2786, %v2789
    %v2791 = vadd.f32 %v2784, %v2790
    %v2792 = vadd.f32 %v2785, %v2790
    %v2793 = vld [vmem:[%s4 + $0x13b] sm:$0x1]
    %v2794 = vld [vmem:[%s4 + $0x13c] sm:$0x1]
    %v2795 = vsel %vm153, %v2791, 0.0
    %2796 = vadd.xlane.f32.xlu0 %v2795
    %v2797 = vpop.xlane.xlu0 %2796
    %v2798 = vsel %vm153, %v2792, 0.0
    %2799 = vadd.xlane.f32.xlu0 %v2798
    %v2800 = vpop.xlane.xlu0 %2799
    %v2801 = vmul.f32 %v2797, %v160
    %v2802 = vmul.f32 %v2800, %v160
    %v2803 = vsub.f32 %v2791, %v2801
    %v2804 = vsub.f32 %v2792, %v2802
    %v2805 = vmul.f32 %v2803, %v2803
    %v2806 = vmul.f32 %v2804, %v2804
    %v2807 = vsel %vm153, %v2805, 0.0
    %2808 = vadd.xlane.f32.xlu0 %v2807
    %v2809 = vpop.xlane.xlu0 %2808
    %v2810 = vsel %vm153, %v2806, 0.0
    %2811 = vadd.xlane.f32.xlu0 %v2810
    %v2812 = vpop.xlane.xlu0 %2811
    %v2813 = vmul.f32 %v2809, 0.032258064
    %v2814 = vmul.f32 %v2812, 0.032258064
    %v2815 = vrsqrt.pop %v2813
    %v2816 = vmul.f32 %v2813, %v2815
    %vm2817 = vcmp.eq.f32.partialorder %v2813, inf
    %v2818 = vsel %vm2817, %v2813, %v2816
    %vm2819 = vcmp.eq.f32.partialorder %v2813, 0.0
    %v2820 = vand.u32 %v2813, 2147483648
    %v2821 = vsel %vm2819, %v2820, %v2818
    %v2822 = vrsqrt.pop %v2814
    %v2823 = vmul.f32 %v2814, %v2822
    %vm2824 = vcmp.eq.f32.partialorder %v2814, inf
    %v2825 = vsel %vm2824, %v2814, %v2823
    %vm2826 = vcmp.eq.f32.partialorder %v2814, 0.0
    %v2827 = vand.u32 %v2814, 2147483648
    %v2828 = vsel %vm2826, %v2827, %v2825
    %v2829 = vadd.f32 %v2821, 1e-06
    %v2830 = vadd.f32 %v2828, 1e-06
    %v2831 = vrcp.pop %v2829
    %v2832 = vrcp.pop %v2830
    %v2833 = vmul.f32 %v2803, %v2831
    %v2834 = vmul.f32 %v2804, %v2832
    %v2835 = vlaneseq
    %v2836 = vshrl.u32 %v2835, 7
    %v2837 = vsub.s32 0, %v2836
    %v2838 = vrot.slane %v2793, %v2837
    %v2839 = vmul.f32 %v2838, %v2833
    %v2840 = vmul.f32 %v2838, %v2834
    %v2841 = vlaneseq
    %v2842 = vshrl.u32 %v2841, 7
    %v2843 = vsub.s32 0, %v2842
    %v2844 = vrot.slane %v2794, %v2843
    %v2845 = vadd.f32 %v2839, %v2844
    %v2846 = vadd.f32 %v2840, %v2844
    %v2847 = vld [vmem:[%s4 + $0x140] sm:$0xff]
    %v2848 = vld [vmem:[%s4 + $0x148] sm:$0xff]
    %v2849 = vld [vmem:[%s4 + $0x150] sm:$0xff]
    %v2850 = vld [vmem:[%s4 + $0x158] sm:$0xff]
    %v2851 = vld [vmem:[%s4 + $0x220] sm:$0x1]
    %v2852 = vlaneseq
    %v2853 = vshrl.u32 %v2852, 7
    %v2854 = vsub.s32 0, %v2853
    %v2855 = vrot.slane %v2851, %v2854
    %v2857 = vsel %vm153, %v2845, 0
    %v2860 = vsel %vm153, %v2846, 0
    %2862 = vmatprep.subr.mxu0 0.0
    %2863 = vmatpush1.msra.mxu0 %v2847
    %2864 = vmatprep.subr.mxu0 0.0
    %2865 = vmatpush1.msra.mxu0 %v2848
    %2866 = vmatprep.subr.mxu0 0.0
    %2867 = vmatpush1.msra.mxu0 %v2849
    %2868 = vmatprep.subr.mxu0 0.0
    %2869 = vmatpush1.msra.mxu0 %v2850
    %2870 = vmatprep.subr.mxu0 0.0
    %2871 = vmatpush1.msra.mxu0 0.0
    %2872 = vmatprep.subr.mxu0 0.0
    %2873 = vmatpush1.msra.mxu0 0.0
    %2874 = vmatprep.subr.mxu0 0.0
    %2875 = vmatpush1.msra.mxu0 0.0
    %2876 = vmatprep.subr.mxu0 0.0
    %2877 = vmatpush1.msra.mxu0 0.0
    %2878 = vmatprep.subr.mxu0 0.0
    %2879 = vmatpush1.msra.mxu0 0.0
    %2880 = vmatprep.subr.mxu0 0.0
    %2881 = vmatpush1.msra.mxu0 0.0
    %2882 = vmatprep.subr.mxu0 0.0
    %2883 = vmatpush1.msra.mxu0 0.0
    %2884 = vmatprep.subr.mxu0 0.0
    %2885 = vmatpush1.msra.mxu0 0.0
    %2886 = vmatprep.subr.mxu0 0.0
    %2887 = vmatpush1.msra.mxu0 0.0
    %2888 = vmatprep.subr.mxu0 0.0
    %2889 = vmatpush1.msra.mxu0 0.0
    %2890 = vmatprep.subr.mxu0 0.0
    %2891 = vmatpush1.msra.mxu0 0.0
    %2892 = vmatprep.subr.mxu0 0.0
    %2893 = vmatpush1.msra.mxu0 0.0
    %2894 = vmatprep.subr.mxu0 0.0
    %2895 = vmatpush1.msra.mxu0 0.0
    %2896 = vmatprep.subr.mxu0 0.0
    %2897 = vmatpush1.msra.mxu0 0.0
    %2898 = vmatprep.subr.mxu0 0.0
    %2899 = vmatpush1.msra.mxu0 0.0
    %2900 = vmatprep.subr.mxu0 0.0
    %2901 = vmatpush1.msra.mxu0 0.0
    %2902 = vmatprep.subr.mxu0 0.0
    %2903 = vmatpush1.msra.mxu0 0.0
    %2904 = vmatprep.subr.mxu0 0.0
    %2905 = vmatpush1.msra.mxu0 0.0
    %2906 = vmatprep.subr.mxu0 0.0
    %2907 = vmatpush1.msra.mxu0 0.0
    %2908 = vmatprep.subr.mxu0 0.0
    %2909 = vmatpush1.msra.mxu0 0.0
    %2910 = vmatprep.subr.mxu0 0.0
    %2911 = vmatpush1.msra.mxu0 0.0
    %2912 = vmatprep.subr.mxu0 0.0
    %2913 = vmatpush1.msra.mxu0 0.0
    %2914 = vmatprep.subr.mxu0 0.0
    %2915 = vmatpush1.msra.mxu0 0.0
    %2916 = vmatprep.subr.mxu0 0.0
    %2917 = vmatpush1.msra.mxu0 0.0
    %2918 = vmatprep.subr.mxu0 0.0
    %2919 = vmatpush1.msra.mxu0 0.0
    %2920 = vmatprep.subr.mxu0 0.0
    %2921 = vmatpush1.msra.mxu0 0.0
    %2922 = vmatprep.subr.mxu0 0.0
    %2923 = vmatpush1.msra.mxu0 0.0
    %2924 = vmatprep.subr.mxu0 0.0
    %2925 = vmatpush1.msra.mxu0 0.0
    %2926 = vmatprep.mubr.f32.mxu0 0.0
    %2927 = vmatmul.mubr.f32.gmra.mrb[0].mxu0 %v2857
    %v2928 = vpop.f32.mrb[0].mxu0
    %v2929 = vadd.f32 %v2855, %v2928
    %v2930 = vpop.f32.mrb[0].mxu0
    %2931 = vmatprep.mubr.f32.mxu0 0.0
    %2932 = vmatmul.mubr.f32.gmra.mrb[0].mxu0 %v2860
    %v2933 = vpop.f32.mrb[0].mxu0
    %v2934 = vadd.f32 %v2855, %v2933
    %v2935 = vpop.f32.mrb[0].mxu0
    %2936 = vdwg.mxu0
    %v2937 = vld [vmem:[%s4 + $0x180] sm:$0xff]
    %v2938 = vld [vmem:[%s4 + $0x188] sm:$0xff]
    %v2939 = vld [vmem:[%s4 + $0x190] sm:$0xff]
    %v2940 = vld [vmem:[%s4 + $0x198] sm:$0xff]
    %v2941 = vld [vmem:[%s4 + $0x222] sm:$0x1]
    %2944 = vrot.lane.b32.xlu0 %v2929, 96
    %v2945 = vpop.permute.xlu0 %2944
    %2946 = vrot.lane.b32.xlu0 %v2934, 96
    %v2947 = vpop.permute.xlu0 %2946
    %v2948 = vsel %vm28, %v2929, 0
    %v2950 = vsel %vm28, %v2934, 0
    %v2952 = vsel %vm28, %v2945, 0
    %v2954 = vsel %vm28, %v2947, 0
    %2956 = vmatprep.subr.mxu0 0.0
    %2957 = vmatpush1.xpose.msra.mxu0 %v2952
    %2958 = vmatprep.subr.mxu0 0.0
    %2959 = vmatpush1.xpose.msra.mxu0 %v2954
    %2960 = vmatprep.subr.mxu0 0.0
    %2961 = vmatpush1.xpose.msra.mxu0 0.0
    %2962 = vmatprep.subr.mxu0 0.0
    %2963 = vmatpush1.xpose.msra.mxu0 0.0
    %2964 = vmatprep.subr.mxu0 0.0
    %2965 = vmatpush1.xpose.msra.mxu0 0.0
    %2966 = vmatprep.subr.mxu0 0.0
    %2967 = vmatpush1.xpose.msra.mxu0 0.0
    %2968 = vmatprep.subr.mxu0 0.0
    %2969 = vmatpush1.xpose.msra.mxu0 0.0
    %2970 = vmatprep.subr.mxu0 0.0
    %2971 = vmatpush1.xpose.msra.mxu0 0.0
    %2972 = vmatprep.subr.mxu0 0.0
    %2973 = vmatpush1.xpose.msra.mxu0 0.0
    %2974 = vmatprep.subr.mxu0 0.0
    %2975 = vmatpush1.xpose.msra.mxu0 0.0
    %2976 = vmatprep.subr.mxu0 0.0
    %2977 = vmatpush1.xpose.msra.mxu0 0.0
    %2978 = vmatprep.subr.mxu0 0.0
    %2979 = vmatpush1.xpose.msra.mxu0 0.0
    %2980 = vmatprep.subr.mxu0 0.0
    %2981 = vmatpush1.xpose.msra.mxu0 0.0
    %2982 = vmatprep.subr.mxu0 0.0
    %2983 = vmatpush1.xpose.msra.mxu0 0.0
    %2984 = vmatprep.subr.mxu0 0.0
    %2985 = vmatpush1.xpose.msra.mxu0 0.0
    %2986 = vmatprep.subr.mxu0 0.0
    %2987 = vmatpush1.xpose.msra.mxu0 0.0
    %2988 = vmatprep.subr.mxu0 0.0
    %2989 = vmatpush1.xpose.msra.mxu0 0.0
    %2990 = vmatprep.subr.mxu0 0.0
    %2991 = vmatpush1.xpose.msra.mxu0 0.0
    %2992 = vmatprep.subr.mxu0 0.0
    %2993 = vmatpush1.xpose.msra.mxu0 0.0
    %2994 = vmatprep.subr.mxu0 0.0
    %2995 = vmatpush1.xpose.msra.mxu0 0.0
    %2996 = vmatprep.subr.mxu0 0.0
    %2997 = vmatpush1.xpose.msra.mxu0 0.0
    %2998 = vmatprep.subr.mxu0 0.0
    %2999 = vmatpush1.xpose.msra.mxu0 0.0
    %3000 = vmatprep.subr.mxu0 0.0
    %3001 = vmatpush1.xpose.msra.mxu0 0.0
    %3002 = vmatprep.subr.mxu0 0.0
    %3003 = vmatpush1.xpose.msra.mxu0 0.0
    %3004 = vmatprep.subr.mxu0 0.0
    %3005 = vmatpush1.xpose.msra.mxu0 0.0
    %3006 = vmatprep.subr.mxu0 0.0
    %3007 = vmatpush1.xpose.msra.mxu0 0.0
    %3008 = vmatprep.subr.mxu0 0.0
    %3009 = vmatpush1.xpose.msra.mxu0 0.0
    %3010 = vmatprep.subr.mxu0 0.0
    %3011 = vmatpush1.xpose.msra.mxu0 0.0
    %3012 = vmatprep.subr.mxu0 0.0
    %3013 = vmatpush1.xpose.msra.mxu0 0.0
    %3014 = vmatprep.subr.mxu0 0.0
    %3015 = vmatpush1.xpose.msra.mxu0 0.0
    %3016 = vmatprep.subr.mxu0 0.0
    %3017 = vmatpush1.xpose.msra.mxu0 0.0
    %3018 = vmatprep.subr.mxu0 0.0
    %3019 = vmatpush1.xpose.msra.mxu0 0.0
    %3020 = vmatprep.mubr.f32.mxu0 0.0
    %3021 = vmatmul.mubr.f32.gmra.mrb[0].mxu0 %v2948
    %v3022 = vpop.f32.mrb[0].mxu0
    %v3023 = vadd.f32 %v29, %v3022
    %v3024 = vpop.f32.mrb[0].mxu0
    %3025 = vmatprep.mubr.f32.mxu0 0.0
    %3026 = vmatmul.mubr.f32.gmra.mrb[0].mxu0 %v2950
    %v3027 = vpop.f32.mrb[0].mxu0
    %v3028 = vadd.f32 %v38, %v3027
    %v3029 = vpop.f32.mrb[0].mxu0
    %3030 = vdwg.mxu0
    %v3031 = vsel %vm573, %v3023, -inf
    %3032 = vmax.xlane.f32.xlu0 %v3031
    %v3033 = vpop.xlane.xlu0 %3032
    %v3034 = vsel %vm573, %v3028, -inf
    %3035 = vmax.xlane.f32.xlu0 %v3034
    %v3036 = vpop.xlane.xlu0 %3035
    %v3037 = vsub.f32 %v3023, %v3033
    %v3038 = vsub.f32 %v3028, %v3036
    %v3039 = vmul.f32 %v3037, 1.442695
    %v3040 = vpow.pop %v3039
    %v3041 = vmul.f32 %v3038, 1.442695
    %v3042 = vpow.pop %v3041
    %v3043 = vsel %vm573, %v3040, 0.0
    %3044 = vadd.xlane.f32.xlu0 %v3043
    %v3045 = vpop.xlane.xlu0 %3044
    %v3046 = vsel %vm573, %v3042, 0.0
    %3047 = vadd.xlane.f32.xlu0 %v3046
    %v3048 = vpop.xlane.xlu0 %3047
    %v3049 = vrcp.pop %v3045
    %v3050 = vrcp.pop %v3048
    %v3051 = vmul.f32 %v3040, %v3049
    %v3052 = vmul.f32 %v3042, %v3050
    %3053 = vrot.lane.b32.xlu0 %v2929, 64
    %v3054 = vpop.permute.xlu0 %3053
    %3055 = vrot.lane.b32.xlu0 %v2934, 64
    %v3056 = vpop.permute.xlu0 %3055
    %v3060 = vsel %vm573, %v3051, 0
    %v3063 = vsel %vm573, %v3052, 0
    %3065 = vmatprep.subr.mxu0 0.0
    %3066 = vmatpush1.msra.mxu0 %v3054
    %3067 = vmatprep.subr.mxu0 0.0
    %3068 = vmatpush1.msra.mxu0 %v3056
    %3069 = vmatprep.subr.mxu0 0.0
    %3070 = vmatpush1.msra.mxu0 0.0
    %3071 = vmatprep.subr.mxu0 0.0
    %3072 = vmatpush1.msra.mxu0 0.0
    %3073 = vmatprep.subr.mxu0 0.0
    %3074 = vmatpush1.msra.mxu0 0.0
    %3075 = vmatprep.subr.mxu0 0.0
    %3076 = vmatpush1.msra.mxu0 0.0
    %3077 = vmatprep.subr.mxu0 0.0
    %3078 = vmatpush1.msra.mxu0 0.0
    %3079 = vmatprep.subr.mxu0 0.0
    %3080 = vmatpush1.msra.mxu0 0.0
    %3081 = vmatprep.subr.mxu0 0.0
    %3082 = vmatpush1.msra.mxu0 0.0
    %3083 = vmatprep.subr.mxu0 0.0
    %3084 = vmatpush1.msra.mxu0 0.0
    %3085 = vmatprep.subr.mxu0 0.0
    %3086 = vmatpush1.msra.mxu0 0.0
    %3087 = vmatprep.subr.mxu0 0.0
    %3088 = vmatpush1.msra.mxu0 0.0
    %3089 = vmatprep.subr.mxu0 0.0
    %3090 = vmatpush1.msra.mxu0 0.0
    %3091 = vmatprep.subr.mxu0 0.0
    %3092 = vmatpush1.msra.mxu0 0.0
    %3093 = vmatprep.subr.mxu0 0.0
    %3094 = vmatpush1.msra.mxu0 0.0
    %3095 = vmatprep.subr.mxu0 0.0
    %3096 = vmatpush1.msra.mxu0 0.0
    %3097 = vmatprep.subr.mxu0 0.0
    %3098 = vmatpush1.msra.mxu0 0.0
    %3099 = vmatprep.subr.mxu0 0.0
    %3100 = vmatpush1.msra.mxu0 0.0
    %3101 = vmatprep.subr.mxu0 0.0
    %3102 = vmatpush1.msra.mxu0 0.0
    %3103 = vmatprep.subr.mxu0 0.0
    %3104 = vmatpush1.msra.mxu0 0.0
    %3105 = vmatprep.subr.mxu0 0.0
    %3106 = vmatpush1.msra.mxu0 0.0
    %3107 = vmatprep.subr.mxu0 0.0
    %3108 = vmatpush1.msra.mxu0 0.0
    %3109 = vmatprep.subr.mxu0 0.0
    %3110 = vmatpush1.msra.mxu0 0.0
    %3111 = vmatprep.subr.mxu0 0.0
    %3112 = vmatpush1.msra.mxu0 0.0
    %3113 = vmatprep.subr.mxu0 0.0
    %3114 = vmatpush1.msra.mxu0 0.0
    %3115 = vmatprep.subr.mxu0 0.0
    %3116 = vmatpush1.msra.mxu0 0.0
    %3117 = vmatprep.subr.mxu0 0.0
    %3118 = vmatpush1.msra.mxu0 0.0
    %3119 = vmatprep.subr.mxu0 0.0
    %3120 = vmatpush1.msra.mxu0 0.0
    %3121 = vmatprep.subr.mxu0 0.0
    %3122 = vmatpush1.msra.mxu0 0.0
    %3123 = vmatprep.subr.mxu0 0.0
    %3124 = vmatpush1.msra.mxu0 0.0
    %3125 = vmatprep.subr.mxu0 0.0
    %3126 = vmatpush1.msra.mxu0 0.0
    %3127 = vmatprep.subr.mxu0 0.0
    %3128 = vmatpush1.msra.mxu0 0.0
    %3129 = vmatprep.mubr.f32.mxu0 0.0
    %3130 = vmatmul.mubr.f32.gmra.mrb[0].mxu0 %v3060
    %v3131 = vpop.f32.mrb[0].mxu0
    %v3132 = vadd.f32 0.0, %v3131
    %v3133 = vpop.f32.mrb[0].mxu0
    %3134 = vmatprep.mubr.f32.mxu0 0.0
    %3135 = vmatmul.mubr.f32.gmra.mrb[0].mxu0 %v3063
    %v3136 = vpop.f32.mrb[0].mxu0
    %v3137 = vadd.f32 0.0, %v3136
    %v3138 = vpop.f32.mrb[0].mxu0
    %3139 = vdwg.mxu0
    %3140 = vrot.lane.b32.xlu0 %v2929, 120
    %v3141 = vpop.permute.xlu0 %3140
    %3142 = vrot.lane.b32.xlu0 %v2934, 120
    %v3143 = vpop.permute.xlu0 %3142
    %3144 = vrot.lane.b32.xlu0 %v2929, 88
    %v3145 = vpop.permute.xlu0 %3144
    %3146 = vrot.lane.b32.xlu0 %v2934, 88
    %v3147 = vpop.permute.xlu0 %3146
    %v3148 = vsel %vm28, %v3141, 0
    %v3150 = vsel %vm28, %v3143, 0
    %v3152 = vsel %vm28, %v3145, 0
    %v3154 = vsel %vm28, %v3147, 0
    %3156 = vmatprep.subr.mxu0 0.0
    %3157 = vmatpush1.xpose.msra.mxu0 %v3152
    %3158 = vmatprep.subr.mxu0 0.0
    %3159 = vmatpush1.xpose.msra.mxu0 %v3154
    %3160 = vmatprep.subr.mxu0 0.0
    %3161 = vmatpush1.xpose.msra.mxu0 0.0
    %3162 = vmatprep.subr.mxu0 0.0
    %3163 = vmatpush1.xpose.msra.mxu0 0.0
    %3164 = vmatprep.subr.mxu0 0.0
    %3165 = vmatpush1.xpose.msra.mxu0 0.0
    %3166 = vmatprep.subr.mxu0 0.0
    %3167 = vmatpush1.xpose.msra.mxu0 0.0
    %3168 = vmatprep.subr.mxu0 0.0
    %3169 = vmatpush1.xpose.msra.mxu0 0.0
    %3170 = vmatprep.subr.mxu0 0.0
    %3171 = vmatpush1.xpose.msra.mxu0 0.0
    %3172 = vmatprep.subr.mxu0 0.0
    %3173 = vmatpush1.xpose.msra.mxu0 0.0
    %3174 = vmatprep.subr.mxu0 0.0
    %3175 = vmatpush1.xpose.msra.mxu0 0.0
    %3176 = vmatprep.subr.mxu0 0.0
    %3177 = vmatpush1.xpose.msra.mxu0 0.0
    %3178 = vmatprep.subr.mxu0 0.0
    %3179 = vmatpush1.xpose.msra.mxu0 0.0
    %3180 = vmatprep.subr.mxu0 0.0
    %3181 = vmatpush1.xpose.msra.mxu0 0.0
    %3182 = vmatprep.subr.mxu0 0.0
    %3183 = vmatpush1.xpose.msra.mxu0 0.0
    %3184 = vmatprep.subr.mxu0 0.0
    %3185 = vmatpush1.xpose.msra.mxu0 0.0
    %3186 = vmatprep.subr.mxu0 0.0
    %3187 = vmatpush1.xpose.msra.mxu0 0.0
    %3188 = vmatprep.subr.mxu0 0.0
    %3189 = vmatpush1.xpose.msra.mxu0 0.0
    %3190 = vmatprep.subr.mxu0 0.0
    %3191 = vmatpush1.xpose.msra.mxu0 0.0
    %3192 = vmatprep.subr.mxu0 0.0
    %3193 = vmatpush1.xpose.msra.mxu0 0.0
    %3194 = vmatprep.subr.mxu0 0.0
    %3195 = vmatpush1.xpose.msra.mxu0 0.0
    %3196 = vmatprep.subr.mxu0 0.0
    %3197 = vmatpush1.xpose.msra.mxu0 0.0
    %3198 = vmatprep.subr.mxu0 0.0
    %3199 = vmatpush1.xpose.msra.mxu0 0.0
    %3200 = vmatprep.subr.mxu0 0.0
    %3201 = vmatpush1.xpose.msra.mxu0 0.0
    %3202 = vmatprep.subr.mxu0 0.0
    %3203 = vmatpush1.xpose.msra.mxu0 0.0
    %3204 = vmatprep.subr.mxu0 0.0
    %3205 = vmatpush1.xpose.msra.mxu0 0.0
    %3206 = vmatprep.subr.mxu0 0.0
    %3207 = vmatpush1.xpose.msra.mxu0 0.0
    %3208 = vmatprep.subr.mxu0 0.0
    %3209 = vmatpush1.xpose.msra.mxu0 0.0
    %3210 = vmatprep.subr.mxu0 0.0
    %3211 = vmatpush1.xpose.msra.mxu0 0.0
    %3212 = vmatprep.subr.mxu0 0.0
    %3213 = vmatpush1.xpose.msra.mxu0 0.0
    %3214 = vmatprep.subr.mxu0 0.0
    %3215 = vmatpush1.xpose.msra.mxu0 0.0
    %3216 = vmatprep.subr.mxu0 0.0
    %3217 = vmatpush1.xpose.msra.mxu0 0.0
    %3218 = vmatprep.subr.mxu0 0.0
    %3219 = vmatpush1.xpose.msra.mxu0 0.0
    %3220 = vmatprep.mubr.f32.mxu0 0.0
    %3221 = vmatmul.mubr.f32.gmra.mrb[0].mxu0 %v3148
    %v3222 = vpop.f32.mrb[0].mxu0
    %v3223 = vadd.f32 %v29, %v3222
    %v3224 = vpop.f32.mrb[0].mxu0
    %3225 = vmatprep.mubr.f32.mxu0 0.0
    %3226 = vmatmul.mubr.f32.gmra.mrb[0].mxu0 %v3150
    %v3227 = vpop.f32.mrb[0].mxu0
    %v3228 = vadd.f32 %v38, %v3227
    %v3229 = vpop.f32.mrb[0].mxu0
    %3230 = vdwg.mxu0
    %v3231 = vsel %vm573, %v3223, -inf
    %3232 = vmax.xlane.f32.xlu0 %v3231
    %v3233 = vpop.xlane.xlu0 %3232
    %v3234 = vsel %vm573, %v3228, -inf
    %3235 = vmax.xlane.f32.xlu0 %v3234
    %v3236 = vpop.xlane.xlu0 %3235
    %v3237 = vsub.f32 %v3223, %v3233
    %v3238 = vsub.f32 %v3228, %v3236
    %v3239 = vmul.f32 %v3237, 1.442695
    %v3240 = vpow.pop %v3239
    %v3241 = vmul.f32 %v3238, 1.442695
    %v3242 = vpow.pop %v3241
    %v3243 = vsel %vm573, %v3240, 0.0
    %3244 = vadd.xlane.f32.xlu0 %v3243
    %v3245 = vpop.xlane.xlu0 %3244
    %v3246 = vsel %vm573, %v3242, 0.0
    %3247 = vadd.xlane.f32.xlu0 %v3246
    %v3248 = vpop.xlane.xlu0 %3247
    %v3249 = vrcp.pop %v3245
    %v3250 = vrcp.pop %v3248
    %v3251 = vmul.f32 %v3240, %v3249
    %v3252 = vmul.f32 %v3242, %v3250
    %3253 = vrot.lane.b32.xlu0 %v2929, 56
    %v3254 = vpop.permute.xlu0 %3253
    %3255 = vrot.lane.b32.xlu0 %v2934, 56
    %v3256 = vpop.permute.xlu0 %3255
    %v3260 = vsel %vm573, %v3251, 0
    %v3263 = vsel %vm573, %v3252, 0
    %3265 = vmatprep.subr.mxu0 0.0
    %3266 = vmatpush1.msra.mxu0 %v3254
    %3267 = vmatprep.subr.mxu0 0.0
    %3268 = vmatpush1.msra.mxu0 %v3256
    %3269 = vmatprep.subr.mxu0 0.0
    %3270 = vmatpush1.msra.mxu0 0.0
    %3271 = vmatprep.subr.mxu0 0.0
    %3272 = vmatpush1.msra.mxu0 0.0
    %3273 = vmatprep.subr.mxu0 0.0
    %3274 = vmatpush1.msra.mxu0 0.0
    %3275 = vmatprep.subr.mxu0 0.0
    %3276 = vmatpush1.msra.mxu0 0.0
    %3277 = vmatprep.subr.mxu0 0.0
    %3278 = vmatpush1.msra.mxu0 0.0
    %3279 = vmatprep.subr.mxu0 0.0
    %3280 = vmatpush1.msra.mxu0 0.0
    %3281 = vmatprep.subr.mxu0 0.0
    %3282 = vmatpush1.msra.mxu0 0.0
    %3283 = vmatprep.subr.mxu0 0.0
    %3284 = vmatpush1.msra.mxu0 0.0
    %3285 = vmatprep.subr.mxu0 0.0
    %3286 = vmatpush1.msra.mxu0 0.0
    %3287 = vmatprep.subr.mxu0 0.0
    %3288 = vmatpush1.msra.mxu0 0.0
    %3289 = vmatprep.subr.mxu0 0.0
    %3290 = vmatpush1.msra.mxu0 0.0
    %3291 = vmatprep.subr.mxu0 0.0
    %3292 = vmatpush1.msra.mxu0 0.0
    %3293 = vmatprep.subr.mxu0 0.0
    %3294 = vmatpush1.msra.mxu0 0.0
    %3295 = vmatprep.subr.mxu0 0.0
    %3296 = vmatpush1.msra.mxu0 0.0
    %3297 = vmatprep.subr.mxu0 0.0
    %3298 = vmatpush1.msra.mxu0 0.0
    %3299 = vmatprep.subr.mxu0 0.0
    %3300 = vmatpush1.msra.mxu0 0.0
    %3301 = vmatprep.subr.mxu0 0.0
    %3302 = vmatpush1.msra.mxu0 0.0
    %3303 = vmatprep.subr.mxu0 0.0
    %3304 = vmatpush1.msra.mxu0 0.0
    %3305 = vmatprep.subr.mxu0 0.0
    %3306 = vmatpush1.msra.mxu0 0.0
    %3307 = vmatprep.subr.mxu0 0.0
    %3308 = vmatpush1.msra.mxu0 0.0
    %3309 = vmatprep.subr.mxu0 0.0
    %3310 = vmatpush1.msra.mxu0 0.0
    %3311 = vmatprep.subr.mxu0 0.0
    %3312 = vmatpush1.msra.mxu0 0.0
    %3313 = vmatprep.subr.mxu0 0.0
    %3314 = vmatpush1.msra.mxu0 0.0
    %3315 = vmatprep.subr.mxu0 0.0
    %3316 = vmatpush1.msra.mxu0 0.0
    %3317 = vmatprep.subr.mxu0 0.0
    %3318 = vmatpush1.msra.mxu0 0.0
    %3319 = vmatprep.subr.mxu0 0.0
    %3320 = vmatpush1.msra.mxu0 0.0
    %3321 = vmatprep.subr.mxu0 0.0
    %3322 = vmatpush1.msra.mxu0 0.0
    %3323 = vmatprep.subr.mxu0 0.0
    %3324 = vmatpush1.msra.mxu0 0.0
    %3325 = vmatprep.subr.mxu0 0.0
    %3326 = vmatpush1.msra.mxu0 0.0
    %3327 = vmatprep.subr.mxu0 0.0
    %3328 = vmatpush1.msra.mxu0 0.0
    %3329 = vmatprep.mubr.f32.mxu0 0.0
    %3330 = vmatmul.mubr.f32.gmra.mrb[0].mxu0 %v3260
    %v3331 = vpop.f32.mrb[0].mxu0
    %v3332 = vadd.f32 0.0, %v3331
    %v3333 = vpop.f32.mrb[0].mxu0
    %3334 = vmatprep.mubr.f32.mxu0 0.0
    %3335 = vmatmul.mubr.f32.gmra.mrb[0].mxu0 %v3263
    %v3336 = vpop.f32.mrb[0].mxu0
    %v3337 = vadd.f32 0.0, %v3336
    %v3338 = vpop.f32.mrb[0].mxu0
    %3339 = vdwg.mxu0
    %3340 = vrot.lane.b32.xlu0 %v2929, 112
    %v3341 = vpop.permute.xlu0 %3340
    %3342 = vrot.lane.b32.xlu0 %v2934, 112
    %v3343 = vpop.permute.xlu0 %3342
    %3344 = vrot.lane.b32.xlu0 %v2929, 80
    %v3345 = vpop.permute.xlu0 %3344
    %3346 = vrot.lane.b32.xlu0 %v2934, 80
    %v3347 = vpop.permute.xlu0 %3346
    %v3348 = vsel %vm28, %v3341, 0
    %v3350 = vsel %vm28, %v3343, 0
    %v3352 = vsel %vm28, %v3345, 0
    %v3354 = vsel %vm28, %v3347, 0
    %3356 = vmatprep.subr.mxu0 0.0
    %3357 = vmatpush1.xpose.msra.mxu0 %v3352
    %3358 = vmatprep.subr.mxu0 0.0
    %3359 = vmatpush1.xpose.msra.mxu0 %v3354
    %3360 = vmatprep.subr.mxu0 0.0
    %3361 = vmatpush1.xpose.msra.mxu0 0.0
    %3362 = vmatprep.subr.mxu0 0.0
    %3363 = vmatpush1.xpose.msra.mxu0 0.0
    %3364 = vmatprep.subr.mxu0 0.0
    %3365 = vmatpush1.xpose.msra.mxu0 0.0
    %3366 = vmatprep.subr.mxu0 0.0
    %3367 = vmatpush1.xpose.msra.mxu0 0.0
    %3368 = vmatprep.subr.mxu0 0.0
    %3369 = vmatpush1.xpose.msra.mxu0 0.0
    %3370 = vmatprep.subr.mxu0 0.0
    %3371 = vmatpush1.xpose.msra.mxu0 0.0
    %3372 = vmatprep.subr.mxu0 0.0
    %3373 = vmatpush1.xpose.msra.mxu0 0.0
    %3374 = vmatprep.subr.mxu0 0.0
    %3375 = vmatpush1.xpose.msra.mxu0 0.0
    %3376 = vmatprep.subr.mxu0 0.0
    %3377 = vmatpush1.xpose.msra.mxu0 0.0
    %3378 = vmatprep.subr.mxu0 0.0
    %3379 = vmatpush1.xpose.msra.mxu0 0.0
    %3380 = vmatprep.subr.mxu0 0.0
    %3381 = vmatpush1.xpose.msra.mxu0 0.0
    %3382 = vmatprep.subr.mxu0 0.0
    %3383 = vmatpush1.xpose.msra.mxu0 0.0
    %3384 = vmatprep.subr.mxu0 0.0
    %3385 = vmatpush1.xpose.msra.mxu0 0.0
    %3386 = vmatprep.subr.mxu0 0.0
    %3387 = vmatpush1.xpose.msra.mxu0 0.0
    %3388 = vmatprep.subr.mxu0 0.0
    %3389 = vmatpush1.xpose.msra.mxu0 0.0
    %3390 = vmatprep.subr.mxu0 0.0
    %3391 = vmatpush1.xpose.msra.mxu0 0.0
    %3392 = vmatprep.subr.mxu0 0.0
    %3393 = vmatpush1.xpose.msra.mxu0 0.0
    %3394 = vmatprep.subr.mxu0 0.0
    %3395 = vmatpush1.xpose.msra.mxu0 0.0
    %3396 = vmatprep.subr.mxu0 0.0
    %3397 = vmatpush1.xpose.msra.mxu0 0.0
    %3398 = vmatprep.subr.mxu0 0.0
    %3399 = vmatpush1.xpose.msra.mxu0 0.0
    %3400 = vmatprep.subr.mxu0 0.0
    %3401 = vmatpush1.xpose.msra.mxu0 0.0
    %3402 = vmatprep.subr.mxu0 0.0
    %3403 = vmatpush1.xpose.msra.mxu0 0.0
    %3404 = vmatprep.subr.mxu0 0.0
    %3405 = vmatpush1.xpose.msra.mxu0 0.0
    %3406 = vmatprep.subr.mxu0 0.0
    %3407 = vmatpush1.xpose.msra.mxu0 0.0
    %3408 = vmatprep.subr.mxu0 0.0
    %3409 = vmatpush1.xpose.msra.mxu0 0.0
    %3410 = vmatprep.subr.mxu0 0.0
    %3411 = vmatpush1.xpose.msra.mxu0 0.0
    %3412 = vmatprep.subr.mxu0 0.0
    %3413 = vmatpush1.xpose.msra.mxu0 0.0
    %3414 = vmatprep.subr.mxu0 0.0
    %3415 = vmatpush1.xpose.msra.mxu0 0.0
    %3416 = vmatprep.subr.mxu0 0.0
    %3417 = vmatpush1.xpose.msra.mxu0 0.0
    %3418 = vmatprep.subr.mxu0 0.0
    %3419 = vmatpush1.xpose.msra.mxu0 0.0
    %3420 = vmatprep.mubr.f32.mxu0 0.0
    %3421 = vmatmul.mubr.f32.gmra.mrb[0].mxu0 %v3348
    %v3422 = vpop.f32.mrb[0].mxu0
    %v3423 = vadd.f32 %v29, %v3422
    %v3424 = vpop.f32.mrb[0].mxu0
    %3425 = vmatprep.mubr.f32.mxu0 0.0
    %3426 = vmatmul.mubr.f32.gmra.mrb[0].mxu0 %v3350
    %v3427 = vpop.f32.mrb[0].mxu0
    %v3428 = vadd.f32 %v38, %v3427
    %v3429 = vpop.f32.mrb[0].mxu0
    %3430 = vdwg.mxu0
    %v3431 = vsel %vm573, %v3423, -inf
    %3432 = vmax.xlane.f32.xlu0 %v3431
    %v3433 = vpop.xlane.xlu0 %3432
    %v3434 = vsel %vm573, %v3428, -inf
    %3435 = vmax.xlane.f32.xlu0 %v3434
    %v3436 = vpop.xlane.xlu0 %3435
    %v3437 = vsub.f32 %v3423, %v3433
    %v3438 = vsub.f32 %v3428, %v3436
    %v3439 = vmul.f32 %v3437, 1.442695
    %v3440 = vpow.pop %v3439
    %v3441 = vmul.f32 %v3438, 1.442695
    %v3442 = vpow.pop %v3441
    %v3443 = vsel %vm573, %v3440, 0.0
    %3444 = vadd.xlane.f32.xlu0 %v3443
    %v3445 = vpop.xlane.xlu0 %3444
    %v3446 = vsel %vm573, %v3442, 0.0
    %3447 = vadd.xlane.f32.xlu0 %v3446
    %v3448 = vpop.xlane.xlu0 %3447
    %v3449 = vrcp.pop %v3445
    %v3450 = vrcp.pop %v3448
    %v3451 = vmul.f32 %v3440, %v3449
    %v3452 = vmul.f32 %v3442, %v3450
    %3453 = vrot.lane.b32.xlu0 %v2929, 48
    %v3454 = vpop.permute.xlu0 %3453
    %3455 = vrot.lane.b32.xlu0 %v2934, 48
    %v3456 = vpop.permute.xlu0 %3455
    %v3460 = vsel %vm573, %v3451, 0
    %v3463 = vsel %vm573, %v3452, 0
    %3465 = vmatprep.subr.mxu0 0.0
    %3466 = vmatpush1.msra.mxu0 %v3454
    %3467 = vmatprep.subr.mxu0 0.0
    %3468 = vmatpush1.msra.mxu0 %v3456
    %3469 = vmatprep.subr.mxu0 0.0
    %3470 = vmatpush1.msra.mxu0 0.0
    %3471 = vmatprep.subr.mxu0 0.0
    %3472 = vmatpush1.msra.mxu0 0.0
    %3473 = vmatprep.subr.mxu0 0.0
    %3474 = vmatpush1.msra.mxu0 0.0
    %3475 = vmatprep.subr.mxu0 0.0
    %3476 = vmatpush1.msra.mxu0 0.0
    %3477 = vmatprep.subr.mxu0 0.0
    %3478 = vmatpush1.msra.mxu0 0.0
    %3479 = vmatprep.subr.mxu0 0.0
    %3480 = vmatpush1.msra.mxu0 0.0
    %3481 = vmatprep.subr.mxu0 0.0
    %3482 = vmatpush1.msra.mxu0 0.0
    %3483 = vmatprep.subr.mxu0 0.0
    %3484 = vmatpush1.msra.mxu0 0.0
    %3485 = vmatprep.subr.mxu0 0.0
    %3486 = vmatpush1.msra.mxu0 0.0
    %3487 = vmatprep.subr.mxu0 0.0
    %3488 = vmatpush1.msra.mxu0 0.0
    %3489 = vmatprep.subr.mxu0 0.0
    %3490 = vmatpush1.msra.mxu0 0.0
    %3491 = vmatprep.subr.mxu0 0.0
    %3492 = vmatpush1.msra.mxu0 0.0
    %3493 = vmatprep.subr.mxu0 0.0
    %3494 = vmatpush1.msra.mxu0 0.0
    %3495 = vmatprep.subr.mxu0 0.0
    %3496 = vmatpush1.msra.mxu0 0.0
    %3497 = vmatprep.subr.mxu0 0.0
    %3498 = vmatpush1.msra.mxu0 0.0
    %3499 = vmatprep.subr.mxu0 0.0
    %3500 = vmatpush1.msra.mxu0 0.0
    %3501 = vmatprep.subr.mxu0 0.0
    %3502 = vmatpush1.msra.mxu0 0.0
    %3503 = vmatprep.subr.mxu0 0.0
    %3504 = vmatpush1.msra.mxu0 0.0
    %3505 = vmatprep.subr.mxu0 0.0
    %3506 = vmatpush1.msra.mxu0 0.0
    %3507 = vmatprep.subr.mxu0 0.0
    %3508 = vmatpush1.msra.mxu0 0.0
    %3509 = vmatprep.subr.mxu0 0.0
    %3510 = vmatpush1.msra.mxu0 0.0
    %3511 = vmatprep.subr.mxu0 0.0
    %3512 = vmatpush1.msra.mxu0 0.0
    %3513 = vmatprep.subr.mxu0 0.0
    %3514 = vmatpush1.msra.mxu0 0.0
    %3515 = vmatprep.subr.mxu0 0.0
    %3516 = vmatpush1.msra.mxu0 0.0
    %3517 = vmatprep.subr.mxu0 0.0
    %3518 = vmatpush1.msra.mxu0 0.0
    %3519 = vmatprep.subr.mxu0 0.0
    %3520 = vmatpush1.msra.mxu0 0.0
    %3521 = vmatprep.subr.mxu0 0.0
    %3522 = vmatpush1.msra.mxu0 0.0
    %3523 = vmatprep.subr.mxu0 0.0
    %3524 = vmatpush1.msra.mxu0 0.0
    %3525 = vmatprep.subr.mxu0 0.0
    %3526 = vmatpush1.msra.mxu0 0.0
    %3527 = vmatprep.subr.mxu0 0.0
    %3528 = vmatpush1.msra.mxu0 0.0
    %3529 = vmatprep.mubr.f32.mxu0 0.0
    %3530 = vmatmul.mubr.f32.gmra.mrb[0].mxu0 %v3460
    %v3531 = vpop.f32.mrb[0].mxu0
    %v3532 = vadd.f32 0.0, %v3531
    %v3533 = vpop.f32.mrb[0].mxu0
    %3534 = vmatprep.mubr.f32.mxu0 0.0
    %3535 = vmatmul.mubr.f32.gmra.mrb[0].mxu0 %v3463
    %v3536 = vpop.f32.mrb[0].mxu0
    %v3537 = vadd.f32 0.0, %v3536
    %v3538 = vpop.f32.mrb[0].mxu0
    %3539 = vdwg.mxu0
    %3540 = vrot.lane.b32.xlu0 %v2929, 104
    %v3541 = vpop.permute.xlu0 %3540
    %3542 = vrot.lane.b32.xlu0 %v2934, 104
    %v3543 = vpop.permute.xlu0 %3542
    %3544 = vrot.lane.b32.xlu0 %v2929, 72
    %v3545 = vpop.permute.xlu0 %3544
    %3546 = vrot.lane.b32.xlu0 %v2934, 72
    %v3547 = vpop.permute.xlu0 %3546
    %v3548 = vsel %vm28, %v3541, 0
    %v3550 = vsel %vm28, %v3543, 0
    %v3552 = vsel %vm28, %v3545, 0
    %v3554 = vsel %vm28, %v3547, 0
    %3556 = vmatprep.subr.mxu0 0.0
    %3557 = vmatpush1.xpose.msra.mxu0 %v3552
    %3558 = vmatprep.subr.mxu0 0.0
    %3559 = vmatpush1.xpose.msra.mxu0 %v3554
    %3560 = vmatprep.subr.mxu0 0.0
    %3561 = vmatpush1.xpose.msra.mxu0 0.0
    %3562 = vmatprep.subr.mxu0 0.0
    %3563 = vmatpush1.xpose.msra.mxu0 0.0
    %3564 = vmatprep.subr.mxu0 0.0
    %3565 = vmatpush1.xpose.msra.mxu0 0.0
    %3566 = vmatprep.subr.mxu0 0.0
    %3567 = vmatpush1.xpose.msra.mxu0 0.0
    %3568 = vmatprep.subr.mxu0 0.0
    %3569 = vmatpush1.xpose.msra.mxu0 0.0
    %3570 = vmatprep.subr.mxu0 0.0
    %3571 = vmatpush1.xpose.msra.mxu0 0.0
    %3572 = vmatprep.subr.mxu0 0.0
    %3573 = vmatpush1.xpose.msra.mxu0 0.0
    %3574 = vmatprep.subr.mxu0 0.0
    %3575 = vmatpush1.xpose.msra.mxu0 0.0
    %3576 = vmatprep.subr.mxu0 0.0
    %3577 = vmatpush1.xpose.msra.mxu0 0.0
    %3578 = vmatprep.subr.mxu0 0.0
    %3579 = vmatpush1.xpose.msra.mxu0 0.0
    %3580 = vmatprep.subr.mxu0 0.0
    %3581 = vmatpush1.xpose.msra.mxu0 0.0
    %3582 = vmatprep.subr.mxu0 0.0
    %3583 = vmatpush1.xpose.msra.mxu0 0.0
    %3584 = vmatprep.subr.mxu0 0.0
    %3585 = vmatpush1.xpose.msra.mxu0 0.0
    %3586 = vmatprep.subr.mxu0 0.0
    %3587 = vmatpush1.xpose.msra.mxu0 0.0
    %3588 = vmatprep.subr.mxu0 0.0
    %3589 = vmatpush1.xpose.msra.mxu0 0.0
    %3590 = vmatprep.subr.mxu0 0.0
    %3591 = vmatpush1.xpose.msra.mxu0 0.0
    %3592 = vmatprep.subr.mxu0 0.0
    %3593 = vmatpush1.xpose.msra.mxu0 0.0
    %3594 = vmatprep.subr.mxu0 0.0
    %3595 = vmatpush1.xpose.msra.mxu0 0.0
    %3596 = vmatprep.subr.mxu0 0.0
    %3597 = vmatpush1.xpose.msra.mxu0 0.0
    %3598 = vmatprep.subr.mxu0 0.0
    %3599 = vmatpush1.xpose.msra.mxu0 0.0
    %3600 = vmatprep.subr.mxu0 0.0
    %3601 = vmatpush1.xpose.msra.mxu0 0.0
    %3602 = vmatprep.subr.mxu0 0.0
    %3603 = vmatpush1.xpose.msra.mxu0 0.0
    %3604 = vmatprep.subr.mxu0 0.0
    %3605 = vmatpush1.xpose.msra.mxu0 0.0
    %3606 = vmatprep.subr.mxu0 0.0
    %3607 = vmatpush1.xpose.msra.mxu0 0.0
    %3608 = vmatprep.subr.mxu0 0.0
    %3609 = vmatpush1.xpose.msra.mxu0 0.0
    %3610 = vmatprep.subr.mxu0 0.0
    %3611 = vmatpush1.xpose.msra.mxu0 0.0
    %3612 = vmatprep.subr.mxu0 0.0
    %3613 = vmatpush1.xpose.msra.mxu0 0.0
    %3614 = vmatprep.subr.mxu0 0.0
    %3615 = vmatpush1.xpose.msra.mxu0 0.0
    %3616 = vmatprep.subr.mxu0 0.0
    %3617 = vmatpush1.xpose.msra.mxu0 0.0
    %3618 = vmatprep.subr.mxu0 0.0
    %3619 = vmatpush1.xpose.msra.mxu0 0.0
    %3620 = vmatprep.mubr.f32.mxu0 0.0
    %3621 = vmatmul.mubr.f32.gmra.mrb[0].mxu0 %v3548
    %v3622 = vpop.f32.mrb[0].mxu0
    %v3623 = vadd.f32 %v29, %v3622
    %v3624 = vpop.f32.mrb[0].mxu0
    %3625 = vmatprep.mubr.f32.mxu0 0.0
    %3626 = vmatmul.mubr.f32.gmra.mrb[0].mxu0 %v3550
    %v3627 = vpop.f32.mrb[0].mxu0
    %v3628 = vadd.f32 %v38, %v3627
    %v3629 = vpop.f32.mrb[0].mxu0
    %3630 = vdwg.mxu0
    %v3631 = vsel %vm573, %v3623, -inf
    %3632 = vmax.xlane.f32.xlu0 %v3631
    %v3633 = vpop.xlane.xlu0 %3632
    %v3634 = vsel %vm573, %v3628, -inf
    %3635 = vmax.xlane.f32.xlu0 %v3634
    %v3636 = vpop.xlane.xlu0 %3635
    %v3637 = vsub.f32 %v3623, %v3633
    %v3638 = vsub.f32 %v3628, %v3636
    %v3639 = vmul.f32 %v3637, 1.442695
    %v3640 = vpow.pop %v3639
    %v3641 = vmul.f32 %v3638, 1.442695
    %v3642 = vpow.pop %v3641
    %v3643 = vsel %vm573, %v3640, 0.0
    %3644 = vadd.xlane.f32.xlu0 %v3643
    %v3645 = vpop.xlane.xlu0 %3644
    %v3646 = vsel %vm573, %v3642, 0.0
    %3647 = vadd.xlane.f32.xlu0 %v3646
    %v3648 = vpop.xlane.xlu0 %3647
    %v3649 = vrcp.pop %v3645
    %v3650 = vrcp.pop %v3648
    %v3651 = vmul.f32 %v3640, %v3649
    %v3652 = vmul.f32 %v3642, %v3650
    %3653 = vrot.lane.b32.xlu0 %v2929, 40
    %v3654 = vpop.permute.xlu0 %3653
    %3655 = vrot.lane.b32.xlu0 %v2934, 40
    %v3656 = vpop.permute.xlu0 %3655
    %v3660 = vsel %vm573, %v3651, 0
    %v3663 = vsel %vm573, %v3652, 0
    %3665 = vmatprep.subr.mxu0 0.0
    %3666 = vmatpush1.msra.mxu0 %v3654
    %3667 = vmatprep.subr.mxu0 0.0
    %3668 = vmatpush1.msra.mxu0 %v3656
    %3669 = vmatprep.subr.mxu0 0.0
    %3670 = vmatpush1.msra.mxu0 0.0
    %3671 = vmatprep.subr.mxu0 0.0
    %3672 = vmatpush1.msra.mxu0 0.0
    %3673 = vmatprep.subr.mxu0 0.0
    %3674 = vmatpush1.msra.mxu0 0.0
    %3675 = vmatprep.subr.mxu0 0.0
    %3676 = vmatpush1.msra.mxu0 0.0
    %3677 = vmatprep.subr.mxu0 0.0
    %3678 = vmatpush1.msra.mxu0 0.0
    %3679 = vmatprep.subr.mxu0 0.0
    %3680 = vmatpush1.msra.mxu0 0.0
    %3681 = vmatprep.subr.mxu0 0.0
    %3682 = vmatpush1.msra.mxu0 0.0
    %3683 = vmatprep.subr.mxu0 0.0
    %3684 = vmatpush1.msra.mxu0 0.0
    %3685 = vmatprep.subr.mxu0 0.0
    %3686 = vmatpush1.msra.mxu0 0.0
    %3687 = vmatprep.subr.mxu0 0.0
    %3688 = vmatpush1.msra.mxu0 0.0
    %3689 = vmatprep.subr.mxu0 0.0
    %3690 = vmatpush1.msra.mxu0 0.0
    %3691 = vmatprep.subr.mxu0 0.0
    %3692 = vmatpush1.msra.mxu0 0.0
    %3693 = vmatprep.subr.mxu0 0.0
    %3694 = vmatpush1.msra.mxu0 0.0
    %3695 = vmatprep.subr.mxu0 0.0
    %3696 = vmatpush1.msra.mxu0 0.0
    %3697 = vmatprep.subr.mxu0 0.0
    %3698 = vmatpush1.msra.mxu0 0.0
    %3699 = vmatprep.subr.mxu0 0.0
    %3700 = vmatpush1.msra.mxu0 0.0
    %3701 = vmatprep.subr.mxu0 0.0
    %3702 = vmatpush1.msra.mxu0 0.0
    %3703 = vmatprep.subr.mxu0 0.0
    %3704 = vmatpush1.msra.mxu0 0.0
    %3705 = vmatprep.subr.mxu0 0.0
    %3706 = vmatpush1.msra.mxu0 0.0
    %3707 = vmatprep.subr.mxu0 0.0
    %3708 = vmatpush1.msra.mxu0 0.0
    %3709 = vmatprep.subr.mxu0 0.0
    %3710 = vmatpush1.msra.mxu0 0.0
    %3711 = vmatprep.subr.mxu0 0.0
    %3712 = vmatpush1.msra.mxu0 0.0
    %3713 = vmatprep.subr.mxu0 0.0
    %3714 = vmatpush1.msra.mxu0 0.0
    %3715 = vmatprep.subr.mxu0 0.0
    %3716 = vmatpush1.msra.mxu0 0.0
    %3717 = vmatprep.subr.mxu0 0.0
    %3718 = vmatpush1.msra.mxu0 0.0
    %3719 = vmatprep.subr.mxu0 0.0
    %3720 = vmatpush1.msra.mxu0 0.0
    %3721 = vmatprep.subr.mxu0 0.0
    %3722 = vmatpush1.msra.mxu0 0.0
    %3723 = vmatprep.subr.mxu0 0.0
    %3724 = vmatpush1.msra.mxu0 0.0
    %3725 = vmatprep.subr.mxu0 0.0
    %3726 = vmatpush1.msra.mxu0 0.0
    %3727 = vmatprep.subr.mxu0 0.0
    %3728 = vmatpush1.msra.mxu0 0.0
    %3729 = vmatprep.mubr.f32.mxu0 0.0
    %3730 = vmatmul.mubr.f32.gmra.mrb[0].mxu0 %v3660
    %v3731 = vpop.f32.mrb[0].mxu0
    %v3732 = vadd.f32 0.0, %v3731
    %v3733 = vpop.f32.mrb[0].mxu0
    %3734 = vmatprep.mubr.f32.mxu0 0.0
    %3735 = vmatmul.mubr.f32.gmra.mrb[0].mxu0 %v3663
    %v3736 = vpop.f32.mrb[0].mxu0
    %v3737 = vadd.f32 0.0, %v3736
    %v3738 = vpop.f32.mrb[0].mxu0
    %3739 = vdwg.mxu0
    %3742 = vrot.lane.b32.xlu0 %v3332, 8
    %v3743 = vpop.permute.xlu0 %3742
    %3744 = vrot.lane.b32.xlu0 %v3337, 8
    %v3745 = vpop.permute.xlu0 %3744
    %3750 = vrot.lane.b32.xlu0 %v3532, 16
    %v3751 = vpop.permute.xlu0 %3750
    %3752 = vrot.lane.b32.xlu0 %v3537, 16
    %v3753 = vpop.permute.xlu0 %3752
    %3758 = vrot.lane.b32.xlu0 %v3732, 24
    %v3759 = vpop.permute.xlu0 %3758
    %3760 = vrot.lane.b32.xlu0 %v3737, 24
    %v3761 = vpop.permute.xlu0 %3760
    %v3764 = vsel %vm28, %v3132, %v3743
    %v3765 = vsel %vm28, %v3137, %v3745
    %v3766 = vsel %vm573, %v3764, %v3751
    %v3767 = vsel %vm573, %v3765, %v3753
    %v3768 = vsel %vm1311, %v3766, %v3759
    %v3769 = vsel %vm1311, %v3767, %v3761
    %v3770 = vlaneseq
    %v3771 = vshrl.u32 %v3770, 7
    %v3772 = vsub.s32 0, %v3771
    %v3773 = vrot.slane %v2941, %v3772
    %v3775 = vsel %vm153, %v3768, 0
    %v3778 = vsel %vm153, %v3769, 0
    %3780 = vmatprep.subr.mxu0 0.0
    %3781 = vmatpush1.msra.mxu0 %v2937
    %3782 = vmatprep.subr.mxu0 0.0
    %3783 = vmatpush1.msra.mxu0 %v2938
    %3784 = vmatprep.subr.mxu0 0.0
    %3785 = vmatpush1.msra.mxu0 %v2939
    %3786 = vmatprep.subr.mxu0 0.0
    %3787 = vmatpush1.msra.mxu0 %v2940
    %3788 = vmatprep.subr.mxu0 0.0
    %3789 = vmatpush1.msra.mxu0 0.0
    %3790 = vmatprep.subr.mxu0 0.0
    %3791 = vmatpush1.msra.mxu0 0.0
    %3792 = vmatprep.subr.mxu0 0.0
    %3793 = vmatpush1.msra.mxu0 0.0
    %3794 = vmatprep.subr.mxu0 0.0
    %3795 = vmatpush1.msra.mxu0 0.0
    %3796 = vmatprep.subr.mxu0 0.0
    %3797 = vmatpush1.msra.mxu0 0.0
    %3798 = vmatprep.subr.mxu0 0.0
    %3799 = vmatpush1.msra.mxu0 0.0
    %3800 = vmatprep.subr.mxu0 0.0
    %3801 = vmatpush1.msra.mxu0 0.0
    %3802 = vmatprep.subr.mxu0 0.0
    %3803 = vmatpush1.msra.mxu0 0.0
    %3804 = vmatprep.subr.mxu0 0.0
    %3805 = vmatpush1.msra.mxu0 0.0
    %3806 = vmatprep.subr.mxu0 0.0
    %3807 = vmatpush1.msra.mxu0 0.0
    %3808 = vmatprep.subr.mxu0 0.0
    %3809 = vmatpush1.msra.mxu0 0.0
    %3810 = vmatprep.subr.mxu0 0.0
    %3811 = vmatpush1.msra.mxu0 0.0
    %3812 = vmatprep.subr.mxu0 0.0
    %3813 = vmatpush1.msra.mxu0 0.0
    %3814 = vmatprep.subr.mxu0 0.0
    %3815 = vmatpush1.msra.mxu0 0.0
    %3816 = vmatprep.subr.mxu0 0.0
    %3817 = vmatpush1.msra.mxu0 0.0
    %3818 = vmatprep.subr.mxu0 0.0
    %3819 = vmatpush1.msra.mxu0 0.0
    %3820 = vmatprep.subr.mxu0 0.0
    %3821 = vmatpush1.msra.mxu0 0.0
    %3822 = vmatprep.subr.mxu0 0.0
    %3823 = vmatpush1.msra.mxu0 0.0
    %3824 = vmatprep.subr.mxu0 0.0
    %3825 = vmatpush1.msra.mxu0 0.0
    %3826 = vmatprep.subr.mxu0 0.0
    %3827 = vmatpush1.msra.mxu0 0.0
    %3828 = vmatprep.subr.mxu0 0.0
    %3829 = vmatpush1.msra.mxu0 0.0
    %3830 = vmatprep.subr.mxu0 0.0
    %3831 = vmatpush1.msra.mxu0 0.0
    %3832 = vmatprep.subr.mxu0 0.0
    %3833 = vmatpush1.msra.mxu0 0.0
    %3834 = vmatprep.subr.mxu0 0.0
    %3835 = vmatpush1.msra.mxu0 0.0
    %3836 = vmatprep.subr.mxu0 0.0
    %3837 = vmatpush1.msra.mxu0 0.0
    %3838 = vmatprep.subr.mxu0 0.0
    %3839 = vmatpush1.msra.mxu0 0.0
    %3840 = vmatprep.subr.mxu0 0.0
    %3841 = vmatpush1.msra.mxu0 0.0
    %3842 = vmatprep.subr.mxu0 0.0
    %3843 = vmatpush1.msra.mxu0 0.0
    %3844 = vmatprep.mubr.f32.mxu0 0.0
    %3845 = vmatmul.mubr.f32.gmra.mrb[0].mxu0 %v3775
    %v3846 = vpop.f32.mrb[0].mxu0
    %v3847 = vadd.f32 %v3773, %v3846
    %v3848 = vpop.f32.mrb[0].mxu0
    %3849 = vmatprep.mubr.f32.mxu0 0.0
    %3850 = vmatmul.mubr.f32.gmra.mrb[0].mxu0 %v3778
    %v3851 = vpop.f32.mrb[0].mxu0
    %v3852 = vadd.f32 %v3773, %v3851
    %v3853 = vpop.f32.mrb[0].mxu0
    %3854 = vdwg.mxu0
    %v3855 = vadd.f32 %v2845, %v3847
    %v3856 = vadd.f32 %v2846, %v3852
    %v3857 = vld [vmem:[%s4 + $0x227] sm:$0x1]
    %v3858 = vld [vmem:[%s4 + $0x228] sm:$0x1]
    %v3859 = vsel %vm153, %v3855, 0.0
    %3860 = vadd.xlane.f32.xlu0 %v3859
    %v3861 = vpop.xlane.xlu0 %3860
    %v3862 = vsel %vm153, %v3856, 0.0
    %3863 = vadd.xlane.f32.xlu0 %v3862
    %v3864 = vpop.xlane.xlu0 %3863
    %v3865 = vmul.f32 %v3861, %v160
    %v3866 = vmul.f32 %v3864, %v160
    %v3867 = vsub.f32 %v3855, %v3865
    %v3868 = vsub.f32 %v3856, %v3866
    %v3869 = vmul.f32 %v3867, %v3867
    %v3870 = vmul.f32 %v3868, %v3868
    %v3871 = vsel %vm153, %v3869, 0.0
    %3872 = vadd.xlane.f32.xlu0 %v3871
    %v3873 = vpop.xlane.xlu0 %3872
    %v3874 = vsel %vm153, %v3870, 0.0
    %3875 = vadd.xlane.f32.xlu0 %v3874
    %v3876 = vpop.xlane.xlu0 %3875
    %v3877 = vmul.f32 %v3873, 0.032258064
    %v3878 = vmul.f32 %v3876, 0.032258064
    %v3879 = vrsqrt.pop %v3877
    %v3880 = vmul.f32 %v3877, %v3879
    %vm3881 = vcmp.eq.f32.partialorder %v3877, inf
    %v3882 = vsel %vm3881, %v3877, %v3880
    %vm3883 = vcmp.eq.f32.partialorder %v3877, 0.0
    %v3884 = vand.u32 %v3877, 2147483648
    %v3885 = vsel %vm3883, %v3884, %v3882
    %v3886 = vrsqrt.pop %v3878
    %v3887 = vmul.f32 %v3878, %v3886
    %vm3888 = vcmp.eq.f32.partialorder %v3878, inf
    %v3889 = vsel %vm3888, %v3878, %v3887
    %vm3890 = vcmp.eq.f32.partialorder %v3878, 0.0
    %v3891 = vand.u32 %v3878, 2147483648
    %v3892 = vsel %vm3890, %v3891, %v3889
    %v3893 = vadd.f32 %v3885, 1e-06
    %v3894 = vadd.f32 %v3892, 1e-06
    %v3895 = vrcp.pop %v3893
    %v3896 = vrcp.pop %v3894
    %v3897 = vmul.f32 %v3867, %v3895
    %v3898 = vmul.f32 %v3868, %v3896
    %v3899 = vlaneseq
    %v3900 = vshrl.u32 %v3899, 7
    %v3901 = vsub.s32 0, %v3900
    %v3902 = vrot.slane %v3857, %v3901
    %v3903 = vmul.f32 %v3902, %v3897
    %v3904 = vmul.f32 %v3902, %v3898
    %v3905 = vlaneseq
    %v3906 = vshrl.u32 %v3905, 7
    %v3907 = vsub.s32 0, %v3906
    %v3908 = vrot.slane %v3858, %v3907
    %v3909 = vadd.f32 %v3903, %v3908
    %v3910 = vadd.f32 %v3904, %v3908
    %v3911 = vld [vmem:[%s4 + $0x1a0] sm:$0xff]
    %v3912 = vld [vmem:[%s4 + $0x1a8] sm:$0xff]
    %v3913 = vld [vmem:[%s4 + $0x1b0] sm:$0xff]
    %v3914 = vld [vmem:[%s4 + $0x1b8] sm:$0xff]
    %v3915 = vld [vmem:[%s4 + $0x223] sm:$0x1]
    %v3916 = vlaneseq
    %v3917 = vshrl.u32 %v3916, 7
    %v3918 = vsub.s32 0, %v3917
    %v3919 = vrot.slane %v3915, %v3918
    %v3921 = vsel %vm153, %v3909, 0
    %v3924 = vsel %vm153, %v3910, 0
    %3926 = vmatprep.subr.mxu0 0.0
    %3927 = vmatpush1.msra.mxu0 %v3911
    %3928 = vmatprep.subr.mxu0 0.0
    %3929 = vmatpush1.msra.mxu0 %v3912
    %3930 = vmatprep.subr.mxu0 0.0
    %3931 = vmatpush1.msra.mxu0 %v3913
    %3932 = vmatprep.subr.mxu0 0.0
    %3933 = vmatpush1.msra.mxu0 %v3914
    %3934 = vmatprep.subr.mxu0 0.0
    %3935 = vmatpush1.msra.mxu0 0.0
    %3936 = vmatprep.subr.mxu0 0.0
    %3937 = vmatpush1.msra.mxu0 0.0
    %3938 = vmatprep.subr.mxu0 0.0
    %3939 = vmatpush1.msra.mxu0 0.0
    %3940 = vmatprep.subr.mxu0 0.0
    %3941 = vmatpush1.msra.mxu0 0.0
    %3942 = vmatprep.subr.mxu0 0.0
    %3943 = vmatpush1.msra.mxu0 0.0
    %3944 = vmatprep.subr.mxu0 0.0
    %3945 = vmatpush1.msra.mxu0 0.0
    %3946 = vmatprep.subr.mxu0 0.0
    %3947 = vmatpush1.msra.mxu0 0.0
    %3948 = vmatprep.subr.mxu0 0.0
    %3949 = vmatpush1.msra.mxu0 0.0
    %3950 = vmatprep.subr.mxu0 0.0
    %3951 = vmatpush1.msra.mxu0 0.0
    %3952 = vmatprep.subr.mxu0 0.0
    %3953 = vmatpush1.msra.mxu0 0.0
    %3954 = vmatprep.subr.mxu0 0.0
    %3955 = vmatpush1.msra.mxu0 0.0
    %3956 = vmatprep.subr.mxu0 0.0
    %3957 = vmatpush1.msra.mxu0 0.0
    %3958 = vmatprep.subr.mxu0 0.0
    %3959 = vmatpush1.msra.mxu0 0.0
    %3960 = vmatprep.subr.mxu0 0.0
    %3961 = vmatpush1.msra.mxu0 0.0
    %3962 = vmatprep.subr.mxu0 0.0
    %3963 = vmatpush1.msra.mxu0 0.0
    %3964 = vmatprep.subr.mxu0 0.0
    %3965 = vmatpush1.msra.mxu0 0.0
    %3966 = vmatprep.subr.mxu0 0.0
    %3967 = vmatpush1.msra.mxu0 0.0
    %3968 = vmatprep.subr.mxu0 0.0
    %3969 = vmatpush1.msra.mxu0 0.0
    %3970 = vmatprep.subr.mxu0 0.0
    %3971 = vmatpush1.msra.mxu0 0.0
    %3972 = vmatprep.subr.mxu0 0.0
    %3973 = vmatpush1.msra.mxu0 0.0
    %3974 = vmatprep.subr.mxu0 0.0
    %3975 = vmatpush1.msra.mxu0 0.0
    %3976 = vmatprep.subr.mxu0 0.0
    %3977 = vmatpush1.msra.mxu0 0.0
    %3978 = vmatprep.subr.mxu0 0.0
    %3979 = vmatpush1.msra.mxu0 0.0
    %3980 = vmatprep.subr.mxu0 0.0
    %3981 = vmatpush1.msra.mxu0 0.0
    %3982 = vmatprep.subr.mxu0 0.0
    %3983 = vmatpush1.msra.mxu0 0.0
    %3984 = vmatprep.subr.mxu0 0.0
    %3985 = vmatpush1.msra.mxu0 0.0
    %3986 = vmatprep.subr.mxu0 0.0
    %3987 = vmatpush1.msra.mxu0 0.0
    %3988 = vmatprep.subr.mxu0 0.0
    %3989 = vmatpush1.msra.mxu0 0.0
    %3990 = vmatprep.mubr.f32.mxu0 0.0
    %3991 = vmatmul.mubr.f32.gmra.mrb[0].mxu0 %v3921
    %v3992 = vpop.f32.mrb[0].mxu0
    %v3993 = vadd.f32 %v3919, %v3992
    %v3994 = vpop.f32.mrb[0].mxu0
    %3995 = vmatprep.mubr.f32.mxu0 0.0
    %3996 = vmatmul.mubr.f32.gmra.mrb[0].mxu0 %v3924
    %v3997 = vpop.f32.mrb[0].mxu0
    %v3998 = vadd.f32 %v3919, %v3997
    %v3999 = vpop.f32.mrb[0].mxu0
    %4000 = vdwg.mxu0
    %v4001 = vld [vmem:[%s4 + $0x160] sm:$0xff]
    %v4002 = vld [vmem:[%s4 + $0x168] sm:$0xff]
    %v4003 = vld [vmem:[%s4 + $0x170] sm:$0xff]
    %v4004 = vld [vmem:[%s4 + $0x178] sm:$0xff]
    %v4005 = vld [vmem:[%s4 + $0x221] sm:$0x1]
    %v4006 = vlaneseq
    %v4007 = vshrl.u32 %v4006, 7
    %v4008 = vsub.s32 0, %v4007
    %v4009 = vrot.slane %v4005, %v4008
    %4010 = vmatprep.subr.mxu0 0.0
    %4011 = vmatpush1.msra.mxu0 %v4001
    %4012 = vmatprep.subr.mxu0 0.0
    %4013 = vmatpush1.msra.mxu0 %v4002
    %4014 = vmatprep.subr.mxu0 0.0
    %4015 = vmatpush1.msra.mxu0 %v4003
    %4016 = vmatprep.subr.mxu0 0.0
    %4017 = vmatpush1.msra.mxu0 %v4004
    %4018 = vmatprep.subr.mxu0 0.0
    %4019 = vmatpush1.msra.mxu0 0.0
    %4020 = vmatprep.subr.mxu0 0.0
    %4021 = vmatpush1.msra.mxu0 0.0
    %4022 = vmatprep.subr.mxu0 0.0
    %4023 = vmatpush1.msra.mxu0 0.0
    %4024 = vmatprep.subr.mxu0 0.0
    %4025 = vmatpush1.msra.mxu0 0.0
    %4026 = vmatprep.subr.mxu0 0.0
    %4027 = vmatpush1.msra.mxu0 0.0
    %4028 = vmatprep.subr.mxu0 0.0
    %4029 = vmatpush1.msra.mxu0 0.0
    %4030 = vmatprep.subr.mxu0 0.0
    %4031 = vmatpush1.msra.mxu0 0.0
    %4032 = vmatprep.subr.mxu0 0.0
    %4033 = vmatpush1.msra.mxu0 0.0
    %4034 = vmatprep.subr.mxu0 0.0
    %4035 = vmatpush1.msra.mxu0 0.0
    %4036 = vmatprep.subr.mxu0 0.0
    %4037 = vmatpush1.msra.mxu0 0.0
    %4038 = vmatprep.subr.mxu0 0.0
    %4039 = vmatpush1.msra.mxu0 0.0
    %4040 = vmatprep.subr.mxu0 0.0
    %4041 = vmatpush1.msra.mxu0 0.0
    %4042 = vmatprep.subr.mxu0 0.0
    %4043 = vmatpush1.msra.mxu0 0.0
    %4044 = vmatprep.subr.mxu0 0.0
    %4045 = vmatpush1.msra.mxu0 0.0
    %4046 = vmatprep.subr.mxu0 0.0
    %4047 = vmatpush1.msra.mxu0 0.0
    %4048 = vmatprep.subr.mxu0 0.0
    %4049 = vmatpush1.msra.mxu0 0.0
    %4050 = vmatprep.subr.mxu0 0.0
    %4051 = vmatpush1.msra.mxu0 0.0
    %4052 = vmatprep.subr.mxu0 0.0
    %4053 = vmatpush1.msra.mxu0 0.0
    %4054 = vmatprep.subr.mxu0 0.0
    %4055 = vmatpush1.msra.mxu0 0.0
    %4056 = vmatprep.subr.mxu0 0.0
    %4057 = vmatpush1.msra.mxu0 0.0
    %4058 = vmatprep.subr.mxu0 0.0
    %4059 = vmatpush1.msra.mxu0 0.0
    %4060 = vmatprep.subr.mxu0 0.0
    %4061 = vmatpush1.msra.mxu0 0.0
    %4062 = vmatprep.subr.mxu0 0.0
    %4063 = vmatpush1.msra.mxu0 0.0
    %4064 = vmatprep.subr.mxu0 0.0
    %4065 = vmatpush1.msra.mxu0 0.0
    %4066 = vmatprep.subr.mxu0 0.0
    %4067 = vmatpush1.msra.mxu0 0.0
    %4068 = vmatprep.subr.mxu0 0.0
    %4069 = vmatpush1.msra.mxu0 0.0
    %4070 = vmatprep.subr.mxu0 0.0
    %4071 = vmatpush1.msra.mxu0 0.0
    %4072 = vmatprep.subr.mxu0 0.0
    %4073 = vmatpush1.msra.mxu0 0.0
    %4074 = vmatprep.mubr.f32.mxu0 0.0
    %4075 = vmatmul.mubr.f32.gmra.mrb[0].mxu0 %v1555
    %v4076 = vpop.f32.mrb[0].mxu0
    %v4077 = vadd.f32 %v4009, %v4076
    %v4078 = vpop.f32.mrb[0].mxu0
    %4079 = vmatprep.mubr.f32.mxu0 0.0
    %4080 = vmatmul.mubr.f32.gmra.mrb[0].mxu0 %v1558
    %v4081 = vpop.f32.mrb[0].mxu0
    %v4082 = vadd.f32 %v4009, %v4081
    %v4083 = vpop.f32.mrb[0].mxu0
    %4084 = vdwg.mxu0
    %v4085 = vld [vmem:[%s4 + $0x1c0] sm:$0xff]
    %v4086 = vld [vmem:[%s4 + $0x1c8] sm:$0xff]
    %v4087 = vld [vmem:[%s4 + $0x1d0] sm:$0xff]
    %v4088 = vld [vmem:[%s4 + $0x1d8] sm:$0xff]
    %v4089 = vld [vmem:[%s4 + $0x224] sm:$0x1]
    %v4091 = vsel %vm28, %v3993, 0
    %v4094 = vsel %vm28, %v3998, 0
    %v4097 = vsel %vm28, %v4077, 0
    %v4100 = vsel %vm28, %v4082, 0
    %4102 = vmatprep.subr.mxu0 0.0
    %4103 = vmatpush1.xpose.msra.mxu0 %v4097
    %4104 = vmatprep.subr.mxu0 0.0
    %4105 = vmatpush1.xpose.msra.mxu0 %v4100
    %4106 = vmatprep.subr.mxu0 0.0
    %4107 = vmatpush1.xpose.msra.mxu0 0.0
    %4108 = vmatprep.subr.mxu0 0.0
    %4109 = vmatpush1.xpose.msra.mxu0 0.0
    %4110 = vmatprep.subr.mxu0 0.0
    %4111 = vmatpush1.xpose.msra.mxu0 0.0
    %4112 = vmatprep.subr.mxu0 0.0
    %4113 = vmatpush1.xpose.msra.mxu0 0.0
    %4114 = vmatprep.subr.mxu0 0.0
    %4115 = vmatpush1.xpose.msra.mxu0 0.0
    %4116 = vmatprep.subr.mxu0 0.0
    %4117 = vmatpush1.xpose.msra.mxu0 0.0
    %4118 = vmatprep.subr.mxu0 0.0
    %4119 = vmatpush1.xpose.msra.mxu0 0.0
    %4120 = vmatprep.subr.mxu0 0.0
    %4121 = vmatpush1.xpose.msra.mxu0 0.0
    %4122 = vmatprep.subr.mxu0 0.0
    %4123 = vmatpush1.xpose.msra.mxu0 0.0
    %4124 = vmatprep.subr.mxu0 0.0
    %4125 = vmatpush1.xpose.msra.mxu0 0.0
    %4126 = vmatprep.subr.mxu0 0.0
    %4127 = vmatpush1.xpose.msra.mxu0 0.0
    %4128 = vmatprep.subr.mxu0 0.0
    %4129 = vmatpush1.xpose.msra.mxu0 0.0
    %4130 = vmatprep.subr.mxu0 0.0
    %4131 = vmatpush1.xpose.msra.mxu0 0.0
    %4132 = vmatprep.subr.mxu0 0.0
    %4133 = vmatpush1.xpose.msra.mxu0 0.0
    %4134 = vmatprep.subr.mxu0 0.0
    %4135 = vmatpush1.xpose.msra.mxu0 0.0
    %4136 = vmatprep.subr.mxu0 0.0
    %4137 = vmatpush1.xpose.msra.mxu0 0.0
    %4138 = vmatprep.subr.mxu0 0.0
    %4139 = vmatpush1.xpose.msra.mxu0 0.0
    %4140 = vmatprep.subr.mxu0 0.0
    %4141 = vmatpush1.xpose.msra.mxu0 0.0
    %4142 = vmatprep.subr.mxu0 0.0
    %4143 = vmatpush1.xpose.msra.mxu0 0.0
    %4144 = vmatprep.subr.mxu0 0.0
    %4145 = vmatpush1.xpose.msra.mxu0 0.0
    %4146 = vmatprep.subr.mxu0 0.0
    %4147 = vmatpush1.xpose.msra.mxu0 0.0
    %4148 = vmatprep.subr.mxu0 0.0
    %4149 = vmatpush1.xpose.msra.mxu0 0.0
    %4150 = vmatprep.subr.mxu0 0.0
    %4151 = vmatpush1.xpose.msra.mxu0 0.0
    %4152 = vmatprep.subr.mxu0 0.0
    %4153 = vmatpush1.xpose.msra.mxu0 0.0
    %4154 = vmatprep.subr.mxu0 0.0
    %4155 = vmatpush1.xpose.msra.mxu0 0.0
    %4156 = vmatprep.subr.mxu0 0.0
    %4157 = vmatpush1.xpose.msra.mxu0 0.0
    %4158 = vmatprep.subr.mxu0 0.0
    %4159 = vmatpush1.xpose.msra.mxu0 0.0
    %4160 = vmatprep.subr.mxu0 0.0
    %4161 = vmatpush1.xpose.msra.mxu0 0.0
    %4162 = vmatprep.subr.mxu0 0.0
    %4163 = vmatpush1.xpose.msra.mxu0 0.0
    %4164 = vmatprep.subr.mxu0 0.0
    %4165 = vmatpush1.xpose.msra.mxu0 0.0
    %4166 = vmatprep.mubr.f32.mxu0 0.0
    %4167 = vmatmul.mubr.f32.gmra.mrb[0].mxu0 %v4091
    %v4168 = vpop.f32.mrb[0].mxu0
    %v4169 = vadd.f32 %v48, %v4168
    %v4170 = vpop.f32.mrb[0].mxu0
    %4171 = vmatprep.mubr.f32.mxu0 0.0
    %4172 = vmatmul.mubr.f32.gmra.mrb[0].mxu0 %v4094
    %v4173 = vpop.f32.mrb[0].mxu0
    %v4174 = vadd.f32 %v63, %v4173
    %v4175 = vpop.f32.mrb[0].mxu0
    %4176 = vdwg.mxu0
    %v4177 = vsel %vm573, %v4169, -inf
    %4178 = vmax.xlane.f32.xlu0 %v4177
    %v4179 = vpop.xlane.xlu0 %4178
    %v4180 = vsel %vm573, %v4174, -inf
    %4181 = vmax.xlane.f32.xlu0 %v4180
    %v4182 = vpop.xlane.xlu0 %4181
    %v4183 = vsub.f32 %v4169, %v4179
    %v4184 = vsub.f32 %v4174, %v4182
    %v4185 = vmul.f32 %v4183, 1.442695
    %v4186 = vpow.pop %v4185
    %v4187 = vmul.f32 %v4184, 1.442695
    %v4188 = vpow.pop %v4187
    %v4189 = vsel %vm573, %v4186, 0.0
    %4190 = vadd.xlane.f32.xlu0 %v4189
    %v4191 = vpop.xlane.xlu0 %4190
    %v4192 = vsel %vm573, %v4188, 0.0
    %4193 = vadd.xlane.f32.xlu0 %v4192
    %v4194 = vpop.xlane.xlu0 %4193
    %v4195 = vrcp.pop %v4191
    %v4196 = vrcp.pop %v4194
    %v4197 = vmul.f32 %v4186, %v4195
    %v4198 = vmul.f32 %v4188, %v4196
    %4199 = vrot.lane.b32.xlu0 %v4077, 96
    %v4200 = vpop.permute.xlu0 %4199
    %4201 = vrot.lane.b32.xlu0 %v4082, 96
    %v4202 = vpop.permute.xlu0 %4201
    %v4206 = vsel %vm573, %v4197, 0
    %v4209 = vsel %vm573, %v4198, 0
    %4211 = vmatprep.subr.mxu0 0.0
    %4212 = vmatpush1.msra.mxu0 %v4200
    %4213 = vmatprep.subr.mxu0 0.0
    %4214 = vmatpush1.msra.mxu0 %v4202
    %4215 = vmatprep.subr.mxu0 0.0
    %4216 = vmatpush1.msra.mxu0 0.0
    %4217 = vmatprep.subr.mxu0 0.0
    %4218 = vmatpush1.msra.mxu0 0.0
    %4219 = vmatprep.subr.mxu0 0.0
    %4220 = vmatpush1.msra.mxu0 0.0
    %4221 = vmatprep.subr.mxu0 0.0
    %4222 = vmatpush1.msra.mxu0 0.0
    %4223 = vmatprep.subr.mxu0 0.0
    %4224 = vmatpush1.msra.mxu0 0.0
    %4225 = vmatprep.subr.mxu0 0.0
    %4226 = vmatpush1.msra.mxu0 0.0
    %4227 = vmatprep.subr.mxu0 0.0
    %4228 = vmatpush1.msra.mxu0 0.0
    %4229 = vmatprep.subr.mxu0 0.0
    %4230 = vmatpush1.msra.mxu0 0.0
    %4231 = vmatprep.subr.mxu0 0.0
    %4232 = vmatpush1.msra.mxu0 0.0
    %4233 = vmatprep.subr.mxu0 0.0
    %4234 = vmatpush1.msra.mxu0 0.0
    %4235 = vmatprep.subr.mxu0 0.0
    %4236 = vmatpush1.msra.mxu0 0.0
    %4237 = vmatprep.subr.mxu0 0.0
    %4238 = vmatpush1.msra.mxu0 0.0
    %4239 = vmatprep.subr.mxu0 0.0
    %4240 = vmatpush1.msra.mxu0 0.0
    %4241 = vmatprep.subr.mxu0 0.0
    %4242 = vmatpush1.msra.mxu0 0.0
    %4243 = vmatprep.subr.mxu0 0.0
    %4244 = vmatpush1.msra.mxu0 0.0
    %4245 = vmatprep.subr.mxu0 0.0
    %4246 = vmatpush1.msra.mxu0 0.0
    %4247 = vmatprep.subr.mxu0 0.0
    %4248 = vmatpush1.msra.mxu0 0.0
    %4249 = vmatprep.subr.mxu0 0.0
    %4250 = vmatpush1.msra.mxu0 0.0
    %4251 = vmatprep.subr.mxu0 0.0
    %4252 = vmatpush1.msra.mxu0 0.0
    %4253 = vmatprep.subr.mxu0 0.0
    %4254 = vmatpush1.msra.mxu0 0.0
    %4255 = vmatprep.subr.mxu0 0.0
    %4256 = vmatpush1.msra.mxu0 0.0
    %4257 = vmatprep.subr.mxu0 0.0
    %4258 = vmatpush1.msra.mxu0 0.0
    %4259 = vmatprep.subr.mxu0 0.0
    %4260 = vmatpush1.msra.mxu0 0.0
    %4261 = vmatprep.subr.mxu0 0.0
    %4262 = vmatpush1.msra.mxu0 0.0
    %4263 = vmatprep.subr.mxu0 0.0
    %4264 = vmatpush1.msra.mxu0 0.0
    %4265 = vmatprep.subr.mxu0 0.0
    %4266 = vmatpush1.msra.mxu0 0.0
    %4267 = vmatprep.subr.mxu0 0.0
    %4268 = vmatpush1.msra.mxu0 0.0
    %4269 = vmatprep.subr.mxu0 0.0
    %4270 = vmatpush1.msra.mxu0 0.0
    %4271 = vmatprep.subr.mxu0 0.0
    %4272 = vmatpush1.msra.mxu0 0.0
    %4273 = vmatprep.subr.mxu0 0.0
    %4274 = vmatpush1.msra.mxu0 0.0
    %4275 = vmatprep.mubr.f32.mxu0 0.0
    %4276 = vmatmul.mubr.f32.gmra.mrb[0].mxu0 %v4206
    %v4277 = vpop.f32.mrb[0].mxu0
    %v4278 = vadd.f32 0.0, %v4277
    %v4279 = vpop.f32.mrb[0].mxu0
    %4280 = vmatprep.mubr.f32.mxu0 0.0
    %4281 = vmatmul.mubr.f32.gmra.mrb[0].mxu0 %v4209
    %v4282 = vpop.f32.mrb[0].mxu0
    %v4283 = vadd.f32 0.0, %v4282
    %v4284 = vpop.f32.mrb[0].mxu0
    %4285 = vdwg.mxu0
    %4286 = vrot.lane.b32.xlu0 %v3993, 120
    %v4287 = vpop.permute.xlu0 %4286
    %4288 = vrot.lane.b32.xlu0 %v3998, 120
    %v4289 = vpop.permute.xlu0 %4288
    %4290 = vrot.lane.b32.xlu0 %v4077, 120
    %v4291 = vpop.permute.xlu0 %4290
    %4292 = vrot.lane.b32.xlu0 %v4082, 120
    %v4293 = vpop.permute.xlu0 %4292
    %v4294 = vsel %vm28, %v4287, 0
    %v4296 = vsel %vm28, %v4289, 0
    %v4298 = vsel %vm28, %v4291, 0
    %v4300 = vsel %vm28, %v4293, 0
    %4302 = vmatprep.subr.mxu0 0.0
    %4303 = vmatpush1.xpose.msra.mxu0 %v4298
    %4304 = vmatprep.subr.mxu0 0.0
    %4305 = vmatpush1.xpose.msra.mxu0 %v4300
    %4306 = vmatprep.subr.mxu0 0.0
    %4307 = vmatpush1.xpose.msra.mxu0 0.0
    %4308 = vmatprep.subr.mxu0 0.0
    %4309 = vmatpush1.xpose.msra.mxu0 0.0
    %4310 = vmatprep.subr.mxu0 0.0
    %4311 = vmatpush1.xpose.msra.mxu0 0.0
    %4312 = vmatprep.subr.mxu0 0.0
    %4313 = vmatpush1.xpose.msra.mxu0 0.0
    %4314 = vmatprep.subr.mxu0 0.0
    %4315 = vmatpush1.xpose.msra.mxu0 0.0
    %4316 = vmatprep.subr.mxu0 0.0
    %4317 = vmatpush1.xpose.msra.mxu0 0.0
    %4318 = vmatprep.subr.mxu0 0.0
    %4319 = vmatpush1.xpose.msra.mxu0 0.0
    %4320 = vmatprep.subr.mxu0 0.0
    %4321 = vmatpush1.xpose.msra.mxu0 0.0
    %4322 = vmatprep.subr.mxu0 0.0
    %4323 = vmatpush1.xpose.msra.mxu0 0.0
    %4324 = vmatprep.subr.mxu0 0.0
    %4325 = vmatpush1.xpose.msra.mxu0 0.0
    %4326 = vmatprep.subr.mxu0 0.0
    %4327 = vmatpush1.xpose.msra.mxu0 0.0
    %4328 = vmatprep.subr.mxu0 0.0
    %4329 = vmatpush1.xpose.msra.mxu0 0.0
    %4330 = vmatprep.subr.mxu0 0.0
    %4331 = vmatpush1.xpose.msra.mxu0 0.0
    %4332 = vmatprep.subr.mxu0 0.0
    %4333 = vmatpush1.xpose.msra.mxu0 0.0
    %4334 = vmatprep.subr.mxu0 0.0
    %4335 = vmatpush1.xpose.msra.mxu0 0.0
    %4336 = vmatprep.subr.mxu0 0.0
    %4337 = vmatpush1.xpose.msra.mxu0 0.0
    %4338 = vmatprep.subr.mxu0 0.0
    %4339 = vmatpush1.xpose.msra.mxu0 0.0
    %4340 = vmatprep.subr.mxu0 0.0
    %4341 = vmatpush1.xpose.msra.mxu0 0.0
    %4342 = vmatprep.subr.mxu0 0.0
    %4343 = vmatpush1.xpose.msra.mxu0 0.0
    %4344 = vmatprep.subr.mxu0 0.0
    %4345 = vmatpush1.xpose.msra.mxu0 0.0
    %4346 = vmatprep.subr.mxu0 0.0
    %4347 = vmatpush1.xpose.msra.mxu0 0.0
    %4348 = vmatprep.subr.mxu0 0.0
    %4349 = vmatpush1.xpose.msra.mxu0 0.0
    %4350 = vmatprep.subr.mxu0 0.0
    %4351 = vmatpush1.xpose.msra.mxu0 0.0
    %4352 = vmatprep.subr.mxu0 0.0
    %4353 = vmatpush1.xpose.msra.mxu0 0.0
    %4354 = vmatprep.subr.mxu0 0.0
    %4355 = vmatpush1.xpose.msra.mxu0 0.0
    %4356 = vmatprep.subr.mxu0 0.0
    %4357 = vmatpush1.xpose.msra.mxu0 0.0
    %4358 = vmatprep.subr.mxu0 0.0
    %4359 = vmatpush1.xpose.msra.mxu0 0.0
    %4360 = vmatprep.subr.mxu0 0.0
    %4361 = vmatpush1.xpose.msra.mxu0 0.0
    %4362 = vmatprep.subr.mxu0 0.0
    %4363 = vmatpush1.xpose.msra.mxu0 0.0
    %4364 = vmatprep.subr.mxu0 0.0
    %4365 = vmatpush1.xpose.msra.mxu0 0.0
    %4366 = vmatprep.mubr.f32.mxu0 0.0
    %4367 = vmatmul.mubr.f32.gmra.mrb[0].mxu0 %v4294
    %v4368 = vpop.f32.mrb[0].mxu0
    %v4369 = vadd.f32 %v48, %v4368
    %v4370 = vpop.f32.mrb[0].mxu0
    %4371 = vmatprep.mubr.f32.mxu0 0.0
    %4372 = vmatmul.mubr.f32.gmra.mrb[0].mxu0 %v4296
    %v4373 = vpop.f32.mrb[0].mxu0
    %v4374 = vadd.f32 %v63, %v4373
    %v4375 = vpop.f32.mrb[0].mxu0
    %4376 = vdwg.mxu0
    %v4377 = vsel %vm573, %v4369, -inf
    %4378 = vmax.xlane.f32.xlu0 %v4377
    %v4379 = vpop.xlane.xlu0 %4378
    %v4380 = vsel %vm573, %v4374, -inf
    %4381 = vmax.xlane.f32.xlu0 %v4380
    %v4382 = vpop.xlane.xlu0 %4381
    %v4383 = vsub.f32 %v4369, %v4379
    %v4384 = vsub.f32 %v4374, %v4382
    %v4385 = vmul.f32 %v4383, 1.442695
    %v4386 = vpow.pop %v4385
    %v4387 = vmul.f32 %v4384, 1.442695
    %v4388 = vpow.pop %v4387
    %v4389 = vsel %vm573, %v4386, 0.0
    %4390 = vadd.xlane.f32.xlu0 %v4389
    %v4391 = vpop.xlane.xlu0 %4390
    %v4392 = vsel %vm573, %v4388, 0.0
    %4393 = vadd.xlane.f32.xlu0 %v4392
    %v4394 = vpop.xlane.xlu0 %4393
    %v4395 = vrcp.pop %v4391
    %v4396 = vrcp.pop %v4394
    %v4397 = vmul.f32 %v4386, %v4395
    %v4398 = vmul.f32 %v4388, %v4396
    %4399 = vrot.lane.b32.xlu0 %v4077, 88
    %v4400 = vpop.permute.xlu0 %4399
    %4401 = vrot.lane.b32.xlu0 %v4082, 88
    %v4402 = vpop.permute.xlu0 %4401
    %v4406 = vsel %vm573, %v4397, 0
    %v4409 = vsel %vm573, %v4398, 0
    %4411 = vmatprep.subr.mxu0 0.0
    %4412 = vmatpush1.msra.mxu0 %v4400
    %4413 = vmatprep.subr.mxu0 0.0
    %4414 = vmatpush1.msra.mxu0 %v4402
    %4415 = vmatprep.subr.mxu0 0.0
    %4416 = vmatpush1.msra.mxu0 0.0
    %4417 = vmatprep.subr.mxu0 0.0
    %4418 = vmatpush1.msra.mxu0 0.0
    %4419 = vmatprep.subr.mxu0 0.0
    %4420 = vmatpush1.msra.mxu0 0.0
    %4421 = vmatprep.subr.mxu0 0.0
    %4422 = vmatpush1.msra.mxu0 0.0
    %4423 = vmatprep.subr.mxu0 0.0
    %4424 = vmatpush1.msra.mxu0 0.0
    %4425 = vmatprep.subr.mxu0 0.0
    %4426 = vmatpush1.msra.mxu0 0.0
    %4427 = vmatprep.subr.mxu0 0.0
    %4428 = vmatpush1.msra.mxu0 0.0
    %4429 = vmatprep.subr.mxu0 0.0
    %4430 = vmatpush1.msra.mxu0 0.0
    %4431 = vmatprep.subr.mxu0 0.0
    %4432 = vmatpush1.msra.mxu0 0.0
    %4433 = vmatprep.subr.mxu0 0.0
    %4434 = vmatpush1.msra.mxu0 0.0
    %4435 = vmatprep.subr.mxu0 0.0
    %4436 = vmatpush1.msra.mxu0 0.0
    %4437 = vmatprep.subr.mxu0 0.0
    %4438 = vmatpush1.msra.mxu0 0.0
    %4439 = vmatprep.subr.mxu0 0.0
    %4440 = vmatpush1.msra.mxu0 0.0
    %4441 = vmatprep.subr.mxu0 0.0
    %4442 = vmatpush1.msra.mxu0 0.0
    %4443 = vmatprep.subr.mxu0 0.0
    %4444 = vmatpush1.msra.mxu0 0.0
    %4445 = vmatprep.subr.mxu0 0.0
    %4446 = vmatpush1.msra.mxu0 0.0
    %4447 = vmatprep.subr.mxu0 0.0
    %4448 = vmatpush1.msra.mxu0 0.0
    %4449 = vmatprep.subr.mxu0 0.0
    %4450 = vmatpush1.msra.mxu0 0.0
    %4451 = vmatprep.subr.mxu0 0.0
    %4452 = vmatpush1.msra.mxu0 0.0
    %4453 = vmatprep.subr.mxu0 0.0
    %4454 = vmatpush1.msra.mxu0 0.0
    %4455 = vmatprep.subr.mxu0 0.0
    %4456 = vmatpush1.msra.mxu0 0.0
    %4457 = vmatprep.subr.mxu0 0.0
    %4458 = vmatpush1.msra.mxu0 0.0
    %4459 = vmatprep.subr.mxu0 0.0
    %4460 = vmatpush1.msra.mxu0 0.0
    %4461 = vmatprep.subr.mxu0 0.0
    %4462 = vmatpush1.msra.mxu0 0.0
    %4463 = vmatprep.subr.mxu0 0.0
    %4464 = vmatpush1.msra.mxu0 0.0
    %4465 = vmatprep.subr.mxu0 0.0
    %4466 = vmatpush1.msra.mxu0 0.0
    %4467 = vmatprep.subr.mxu0 0.0
    %4468 = vmatpush1.msra.mxu0 0.0
    %4469 = vmatprep.subr.mxu0 0.0
    %4470 = vmatpush1.msra.mxu0 0.0
    %4471 = vmatprep.subr.mxu0 0.0
    %4472 = vmatpush1.msra.mxu0 0.0
    %4473 = vmatprep.subr.mxu0 0.0
    %4474 = vmatpush1.msra.mxu0 0.0
    %4475 = vmatprep.mubr.f32.mxu0 0.0
    %4476 = vmatmul.mubr.f32.gmra.mrb[0].mxu0 %v4406
    %v4477 = vpop.f32.mrb[0].mxu0
    %v4478 = vadd.f32 0.0, %v4477
    %v4479 = vpop.f32.mrb[0].mxu0
    %4480 = vmatprep.mubr.f32.mxu0 0.0
    %4481 = vmatmul.mubr.f32.gmra.mrb[0].mxu0 %v4409
    %v4482 = vpop.f32.mrb[0].mxu0
    %v4483 = vadd.f32 0.0, %v4482
    %v4484 = vpop.f32.mrb[0].mxu0
    %4485 = vdwg.mxu0
    %4486 = vrot.lane.b32.xlu0 %v3993, 112
    %v4487 = vpop.permute.xlu0 %4486
    %4488 = vrot.lane.b32.xlu0 %v3998, 112
    %v4489 = vpop.permute.xlu0 %4488
    %4490 = vrot.lane.b32.xlu0 %v4077, 112
    %v4491 = vpop.permute.xlu0 %4490
    %4492 = vrot.lane.b32.xlu0 %v4082, 112
    %v4493 = vpop.permute.xlu0 %4492
    %v4494 = vsel %vm28, %v4487, 0
    %v4496 = vsel %vm28, %v4489, 0
    %v4498 = vsel %vm28, %v4491, 0
    %v4500 = vsel %vm28, %v4493, 0
    %4502 = vmatprep.subr.mxu0 0.0
    %4503 = vmatpush1.xpose.msra.mxu0 %v4498
    %4504 = vmatprep.subr.mxu0 0.0
    %4505 = vmatpush1.xpose.msra.mxu0 %v4500
    %4506 = vmatprep.subr.mxu0 0.0
    %4507 = vmatpush1.xpose.msra.mxu0 0.0
    %4508 = vmatprep.subr.mxu0 0.0
    %4509 = vmatpush1.xpose.msra.mxu0 0.0
    %4510 = vmatprep.subr.mxu0 0.0
    %4511 = vmatpush1.xpose.msra.mxu0 0.0
    %4512 = vmatprep.subr.mxu0 0.0
    %4513 = vmatpush1.xpose.msra.mxu0 0.0
    %4514 = vmatprep.subr.mxu0 0.0
    %4515 = vmatpush1.xpose.msra.mxu0 0.0
    %4516 = vmatprep.subr.mxu0 0.0
    %4517 = vmatpush1.xpose.msra.mxu0 0.0
    %4518 = vmatprep.subr.mxu0 0.0
    %4519 = vmatpush1.xpose.msra.mxu0 0.0
    %4520 = vmatprep.subr.mxu0 0.0
    %4521 = vmatpush1.xpose.msra.mxu0 0.0
    %4522 = vmatprep.subr.mxu0 0.0
    %4523 = vmatpush1.xpose.msra.mxu0 0.0
    %4524 = vmatprep.subr.mxu0 0.0
    %4525 = vmatpush1.xpose.msra.mxu0 0.0
    %4526 = vmatprep.subr.mxu0 0.0
    %4527 = vmatpush1.xpose.msra.mxu0 0.0
    %4528 = vmatprep.subr.mxu0 0.0
    %4529 = vmatpush1.xpose.msra.mxu0 0.0
    %4530 = vmatprep.subr.mxu0 0.0
    %4531 = vmatpush1.xpose.msra.mxu0 0.0
    %4532 = vmatprep.subr.mxu0 0.0
    %4533 = vmatpush1.xpose.msra.mxu0 0.0
    %4534 = vmatprep.subr.mxu0 0.0
    %4535 = vmatpush1.xpose.msra.mxu0 0.0
    %4536 = vmatprep.subr.mxu0 0.0
    %4537 = vmatpush1.xpose.msra.mxu0 0.0
    %4538 = vmatprep.subr.mxu0 0.0
    %4539 = vmatpush1.xpose.msra.mxu0 0.0
    %4540 = vmatprep.subr.mxu0 0.0
    %4541 = vmatpush1.xpose.msra.mxu0 0.0
    %4542 = vmatprep.subr.mxu0 0.0
    %4543 = vmatpush1.xpose.msra.mxu0 0.0
    %4544 = vmatprep.subr.mxu0 0.0
    %4545 = vmatpush1.xpose.msra.mxu0 0.0
    %4546 = vmatprep.subr.mxu0 0.0
    %4547 = vmatpush1.xpose.msra.mxu0 0.0
    %4548 = vmatprep.subr.mxu0 0.0
    %4549 = vmatpush1.xpose.msra.mxu0 0.0
    %4550 = vmatprep.subr.mxu0 0.0
    %4551 = vmatpush1.xpose.msra.mxu0 0.0
    %4552 = vmatprep.subr.mxu0 0.0
    %4553 = vmatpush1.xpose.msra.mxu0 0.0
    %4554 = vmatprep.subr.mxu0 0.0
    %4555 = vmatpush1.xpose.msra.mxu0 0.0
    %4556 = vmatprep.subr.mxu0 0.0
    %4557 = vmatpush1.xpose.msra.mxu0 0.0
    %4558 = vmatprep.subr.mxu0 0.0
    %4559 = vmatpush1.xpose.msra.mxu0 0.0
    %4560 = vmatprep.subr.mxu0 0.0
    %4561 = vmatpush1.xpose.msra.mxu0 0.0
    %4562 = vmatprep.subr.mxu0 0.0
    %4563 = vmatpush1.xpose.msra.mxu0 0.0
    %4564 = vmatprep.subr.mxu0 0.0
    %4565 = vmatpush1.xpose.msra.mxu0 0.0
    %4566 = vmatprep.mubr.f32.mxu0 0.0
    %4567 = vmatmul.mubr.f32.gmra.mrb[0].mxu0 %v4494
    %v4568 = vpop.f32.mrb[0].mxu0
    %v4569 = vadd.f32 %v48, %v4568
    %v4570 = vpop.f32.mrb[0].mxu0
    %4571 = vmatprep.mubr.f32.mxu0 0.0
    %4572 = vmatmul.mubr.f32.gmra.mrb[0].mxu0 %v4496
    %v4573 = vpop.f32.mrb[0].mxu0
    %v4574 = vadd.f32 %v63, %v4573
    %v4575 = vpop.f32.mrb[0].mxu0
    %4576 = vdwg.mxu0
    %v4577 = vsel %vm573, %v4569, -inf
    %4578 = vmax.xlane.f32.xlu0 %v4577
    %v4579 = vpop.xlane.xlu0 %4578
    %v4580 = vsel %vm573, %v4574, -inf
    %4581 = vmax.xlane.f32.xlu0 %v4580
    %v4582 = vpop.xlane.xlu0 %4581
    %v4583 = vsub.f32 %v4569, %v4579
    %v4584 = vsub.f32 %v4574, %v4582
    %v4585 = vmul.f32 %v4583, 1.442695
    %v4586 = vpow.pop %v4585
    %v4587 = vmul.f32 %v4584, 1.442695
    %v4588 = vpow.pop %v4587
    %v4589 = vsel %vm573, %v4586, 0.0
    %4590 = vadd.xlane.f32.xlu0 %v4589
    %v4591 = vpop.xlane.xlu0 %4590
    %v4592 = vsel %vm573, %v4588, 0.0
    %4593 = vadd.xlane.f32.xlu0 %v4592
    %v4594 = vpop.xlane.xlu0 %4593
    %v4595 = vrcp.pop %v4591
    %v4596 = vrcp.pop %v4594
    %v4597 = vmul.f32 %v4586, %v4595
    %v4598 = vmul.f32 %v4588, %v4596
    %4599 = vrot.lane.b32.xlu0 %v4077, 80
    %v4600 = vpop.permute.xlu0 %4599
    %4601 = vrot.lane.b32.xlu0 %v4082, 80
    %v4602 = vpop.permute.xlu0 %4601
    %v4606 = vsel %vm573, %v4597, 0
    %v4609 = vsel %vm573, %v4598, 0
    %4611 = vmatprep.subr.mxu0 0.0
    %4612 = vmatpush1.msra.mxu0 %v4600
    %4613 = vmatprep.subr.mxu0 0.0
    %4614 = vmatpush1.msra.mxu0 %v4602
    %4615 = vmatprep.subr.mxu0 0.0
    %4616 = vmatpush1.msra.mxu0 0.0
    %4617 = vmatprep.subr.mxu0 0.0
    %4618 = vmatpush1.msra.mxu0 0.0
    %4619 = vmatprep.subr.mxu0 0.0
    %4620 = vmatpush1.msra.mxu0 0.0
    %4621 = vmatprep.subr.mxu0 0.0
    %4622 = vmatpush1.msra.mxu0 0.0
    %4623 = vmatprep.subr.mxu0 0.0
    %4624 = vmatpush1.msra.mxu0 0.0
    %4625 = vmatprep.subr.mxu0 0.0
    %4626 = vmatpush1.msra.mxu0 0.0
    %4627 = vmatprep.subr.mxu0 0.0
    %4628 = vmatpush1.msra.mxu0 0.0
    %4629 = vmatprep.subr.mxu0 0.0
    %4630 = vmatpush1.msra.mxu0 0.0
    %4631 = vmatprep.subr.mxu0 0.0
    %4632 = vmatpush1.msra.mxu0 0.0
    %4633 = vmatprep.subr.mxu0 0.0
    %4634 = vmatpush1.msra.mxu0 0.0
    %4635 = vmatprep.subr.mxu0 0.0
    %4636 = vmatpush1.msra.mxu0 0.0
    %4637 = vmatprep.subr.mxu0 0.0
    %4638 = vmatpush1.msra.mxu0 0.0
    %4639 = vmatprep.subr.mxu0 0.0
    %4640 = vmatpush1.msra.mxu0 0.0
    %4641 = vmatprep.subr.mxu0 0.0
    %4642 = vmatpush1.msra.mxu0 0.0
    %4643 = vmatprep.subr.mxu0 0.0
    %4644 = vmatpush1.msra.mxu0 0.0
    %4645 = vmatprep.subr.mxu0 0.0
    %4646 = vmatpush1.msra.mxu0 0.0
    %4647 = vmatprep.subr.mxu0 0.0
    %4648 = vmatpush1.msra.mxu0 0.0
    %4649 = vmatprep.subr.mxu0 0.0
    %4650 = vmatpush1.msra.mxu0 0.0
    %4651 = vmatprep.subr.mxu0 0.0
    %4652 = vmatpush1.msra.mxu0 0.0
    %4653 = vmatprep.subr.mxu0 0.0
    %4654 = vmatpush1.msra.mxu0 0.0
    %4655 = vmatprep.subr.mxu0 0.0
    %4656 = vmatpush1.msra.mxu0 0.0
    %4657 = vmatprep.subr.mxu0 0.0
    %4658 = vmatpush1.msra.mxu0 0.0
    %4659 = vmatprep.subr.mxu0 0.0
    %4660 = vmatpush1.msra.mxu0 0.0
    %4661 = vmatprep.subr.mxu0 0.0
    %4662 = vmatpush1.msra.mxu0 0.0
    %4663 = vmatprep.subr.mxu0 0.0
    %4664 = vmatpush1.msra.mxu0 0.0
    %4665 = vmatprep.subr.mxu0 0.0
    %4666 = vmatpush1.msra.mxu0 0.0
    %4667 = vmatprep.subr.mxu0 0.0
    %4668 = vmatpush1.msra.mxu0 0.0
    %4669 = vmatprep.subr.mxu0 0.0
    %4670 = vmatpush1.msra.mxu0 0.0
    %4671 = vmatprep.subr.mxu0 0.0
    %4672 = vmatpush1.msra.mxu0 0.0
    %4673 = vmatprep.subr.mxu0 0.0
    %4674 = vmatpush1.msra.mxu0 0.0
    %4675 = vmatprep.mubr.f32.mxu0 0.0
    %4676 = vmatmul.mubr.f32.gmra.mrb[0].mxu0 %v4606
    %v4677 = vpop.f32.mrb[0].mxu0
    %v4678 = vadd.f32 0.0, %v4677
    %v4679 = vpop.f32.mrb[0].mxu0
    %4680 = vmatprep.mubr.f32.mxu0 0.0
    %4681 = vmatmul.mubr.f32.gmra.mrb[0].mxu0 %v4609
    %v4682 = vpop.f32.mrb[0].mxu0
    %v4683 = vadd.f32 0.0, %v4682
    %v4684 = vpop.f32.mrb[0].mxu0
    %4685 = vdwg.mxu0
    %4686 = vrot.lane.b32.xlu0 %v3993, 104
    %v4687 = vpop.permute.xlu0 %4686
    %4688 = vrot.lane.b32.xlu0 %v3998, 104
    %v4689 = vpop.permute.xlu0 %4688
    %4690 = vrot.lane.b32.xlu0 %v4077, 104
    %v4691 = vpop.permute.xlu0 %4690
    %4692 = vrot.lane.b32.xlu0 %v4082, 104
    %v4693 = vpop.permute.xlu0 %4692
    %v4694 = vsel %vm28, %v4687, 0
    %v4696 = vsel %vm28, %v4689, 0
    %v4698 = vsel %vm28, %v4691, 0
    %v4700 = vsel %vm28, %v4693, 0
    %4702 = vmatprep.subr.mxu0 0.0
    %4703 = vmatpush1.xpose.msra.mxu0 %v4698
    %4704 = vmatprep.subr.mxu0 0.0
    %4705 = vmatpush1.xpose.msra.mxu0 %v4700
    %4706 = vmatprep.subr.mxu0 0.0
    %4707 = vmatpush1.xpose.msra.mxu0 0.0
    %4708 = vmatprep.subr.mxu0 0.0
    %4709 = vmatpush1.xpose.msra.mxu0 0.0
    %4710 = vmatprep.subr.mxu0 0.0
    %4711 = vmatpush1.xpose.msra.mxu0 0.0
    %4712 = vmatprep.subr.mxu0 0.0
    %4713 = vmatpush1.xpose.msra.mxu0 0.0
    %4714 = vmatprep.subr.mxu0 0.0
    %4715 = vmatpush1.xpose.msra.mxu0 0.0
    %4716 = vmatprep.subr.mxu0 0.0
    %4717 = vmatpush1.xpose.msra.mxu0 0.0
    %4718 = vmatprep.subr.mxu0 0.0
    %4719 = vmatpush1.xpose.msra.mxu0 0.0
    %4720 = vmatprep.subr.mxu0 0.0
    %4721 = vmatpush1.xpose.msra.mxu0 0.0
    %4722 = vmatprep.subr.mxu0 0.0
    %4723 = vmatpush1.xpose.msra.mxu0 0.0
    %4724 = vmatprep.subr.mxu0 0.0
    %4725 = vmatpush1.xpose.msra.mxu0 0.0
    %4726 = vmatprep.subr.mxu0 0.0
    %4727 = vmatpush1.xpose.msra.mxu0 0.0
    %4728 = vmatprep.subr.mxu0 0.0
    %4729 = vmatpush1.xpose.msra.mxu0 0.0
    %4730 = vmatprep.subr.mxu0 0.0
    %4731 = vmatpush1.xpose.msra.mxu0 0.0
    %4732 = vmatprep.subr.mxu0 0.0
    %4733 = vmatpush1.xpose.msra.mxu0 0.0
    %4734 = vmatprep.subr.mxu0 0.0
    %4735 = vmatpush1.xpose.msra.mxu0 0.0
    %4736 = vmatprep.subr.mxu0 0.0
    %4737 = vmatpush1.xpose.msra.mxu0 0.0
    %4738 = vmatprep.subr.mxu0 0.0
    %4739 = vmatpush1.xpose.msra.mxu0 0.0
    %4740 = vmatprep.subr.mxu0 0.0
    %4741 = vmatpush1.xpose.msra.mxu0 0.0
    %4742 = vmatprep.subr.mxu0 0.0
    %4743 = vmatpush1.xpose.msra.mxu0 0.0
    %4744 = vmatprep.subr.mxu0 0.0
    %4745 = vmatpush1.xpose.msra.mxu0 0.0
    %4746 = vmatprep.subr.mxu0 0.0
    %4747 = vmatpush1.xpose.msra.mxu0 0.0
    %4748 = vmatprep.subr.mxu0 0.0
    %4749 = vmatpush1.xpose.msra.mxu0 0.0
    %4750 = vmatprep.subr.mxu0 0.0
    %4751 = vmatpush1.xpose.msra.mxu0 0.0
    %4752 = vmatprep.subr.mxu0 0.0
    %4753 = vmatpush1.xpose.msra.mxu0 0.0
    %4754 = vmatprep.subr.mxu0 0.0
    %4755 = vmatpush1.xpose.msra.mxu0 0.0
    %4756 = vmatprep.subr.mxu0 0.0
    %4757 = vmatpush1.xpose.msra.mxu0 0.0
    %4758 = vmatprep.subr.mxu0 0.0
    %4759 = vmatpush1.xpose.msra.mxu0 0.0
    %4760 = vmatprep.subr.mxu0 0.0
    %4761 = vmatpush1.xpose.msra.mxu0 0.0
    %4762 = vmatprep.subr.mxu0 0.0
    %4763 = vmatpush1.xpose.msra.mxu0 0.0
    %4764 = vmatprep.subr.mxu0 0.0
    %4765 = vmatpush1.xpose.msra.mxu0 0.0
    %4766 = vmatprep.mubr.f32.mxu0 0.0
    %4767 = vmatmul.mubr.f32.gmra.mrb[0].mxu0 %v4694
    %v4768 = vpop.f32.mrb[0].mxu0
    %v4769 = vadd.f32 %v48, %v4768
    %v4770 = vpop.f32.mrb[0].mxu0
    %4771 = vmatprep.mubr.f32.mxu0 0.0
    %4772 = vmatmul.mubr.f32.gmra.mrb[0].mxu0 %v4696
    %v4773 = vpop.f32.mrb[0].mxu0
    %v4774 = vadd.f32 %v63, %v4773
    %v4775 = vpop.f32.mrb[0].mxu0
    %4776 = vdwg.mxu0
    %v4777 = vsel %vm573, %v4769, -inf
    %4778 = vmax.xlane.f32.xlu0 %v4777
    %v4779 = vpop.xlane.xlu0 %4778
    %v4780 = vsel %vm573, %v4774, -inf
    %4781 = vmax.xlane.f32.xlu0 %v4780
    %v4782 = vpop.xlane.xlu0 %4781
    %v4783 = vsub.f32 %v4769, %v4779
    %v4784 = vsub.f32 %v4774, %v4782
    %v4785 = vmul.f32 %v4783, 1.442695
    %v4786 = vpow.pop %v4785
    %v4787 = vmul.f32 %v4784, 1.442695
    %v4788 = vpow.pop %v4787
    %v4789 = vsel %vm573, %v4786, 0.0
    %4790 = vadd.xlane.f32.xlu0 %v4789
    %v4791 = vpop.xlane.xlu0 %4790
    %v4792 = vsel %vm573, %v4788, 0.0
    %4793 = vadd.xlane.f32.xlu0 %v4792
    %v4794 = vpop.xlane.xlu0 %4793
    %v4795 = vrcp.pop %v4791
    %v4796 = vrcp.pop %v4794
    %v4797 = vmul.f32 %v4786, %v4795
    %v4798 = vmul.f32 %v4788, %v4796
    %4799 = vrot.lane.b32.xlu0 %v4077, 72
    %v4800 = vpop.permute.xlu0 %4799
    %4801 = vrot.lane.b32.xlu0 %v4082, 72
    %v4802 = vpop.permute.xlu0 %4801
    %v4806 = vsel %vm573, %v4797, 0
    %v4809 = vsel %vm573, %v4798, 0
    %4811 = vmatprep.subr.mxu0 0.0
    %4812 = vmatpush1.msra.mxu0 %v4800
    %4813 = vmatprep.subr.mxu0 0.0
    %4814 = vmatpush1.msra.mxu0 %v4802
    %4815 = vmatprep.subr.mxu0 0.0
    %4816 = vmatpush1.msra.mxu0 0.0
    %4817 = vmatprep.subr.mxu0 0.0
    %4818 = vmatpush1.msra.mxu0 0.0
    %4819 = vmatprep.subr.mxu0 0.0
    %4820 = vmatpush1.msra.mxu0 0.0
    %4821 = vmatprep.subr.mxu0 0.0
    %4822 = vmatpush1.msra.mxu0 0.0
    %4823 = vmatprep.subr.mxu0 0.0
    %4824 = vmatpush1.msra.mxu0 0.0
    %4825 = vmatprep.subr.mxu0 0.0
    %4826 = vmatpush1.msra.mxu0 0.0
    %4827 = vmatprep.subr.mxu0 0.0
    %4828 = vmatpush1.msra.mxu0 0.0
    %4829 = vmatprep.subr.mxu0 0.0
    %4830 = vmatpush1.msra.mxu0 0.0
    %4831 = vmatprep.subr.mxu0 0.0
    %4832 = vmatpush1.msra.mxu0 0.0
    %4833 = vmatprep.subr.mxu0 0.0
    %4834 = vmatpush1.msra.mxu0 0.0
    %4835 = vmatprep.subr.mxu0 0.0
    %4836 = vmatpush1.msra.mxu0 0.0
    %4837 = vmatprep.subr.mxu0 0.0
    %4838 = vmatpush1.msra.mxu0 0.0
    %4839 = vmatprep.subr.mxu0 0.0
    %4840 = vmatpush1.msra.mxu0 0.0
    %4841 = vmatprep.subr.mxu0 0.0
    %4842 = vmatpush1.msra.mxu0 0.0
    %4843 = vmatprep.subr.mxu0 0.0
    %4844 = vmatpush1.msra.mxu0 0.0
    %4845 = vmatprep.subr.mxu0 0.0
    %4846 = vmatpush1.msra.mxu0 0.0
    %4847 = vmatprep.subr.mxu0 0.0
    %4848 = vmatpush1.msra.mxu0 0.0
    %4849 = vmatprep.subr.mxu0 0.0
    %4850 = vmatpush1.msra.mxu0 0.0
    %4851 = vmatprep.subr.mxu0 0.0
    %4852 = vmatpush1.msra.mxu0 0.0
    %4853 = vmatprep.subr.mxu0 0.0
    %4854 = vmatpush1.msra.mxu0 0.0
    %4855 = vmatprep.subr.mxu0 0.0
    %4856 = vmatpush1.msra.mxu0 0.0
    %4857 = vmatprep.subr.mxu0 0.0
    %4858 = vmatpush1.msra.mxu0 0.0
    %4859 = vmatprep.subr.mxu0 0.0
    %4860 = vmatpush1.msra.mxu0 0.0
    %4861 = vmatprep.subr.mxu0 0.0
    %4862 = vmatpush1.msra.mxu0 0.0
    %4863 = vmatprep.subr.mxu0 0.0
    %4864 = vmatpush1.msra.mxu0 0.0
    %4865 = vmatprep.subr.mxu0 0.0
    %4866 = vmatpush1.msra.mxu0 0.0
    %4867 = vmatprep.subr.mxu0 0.0
    %4868 = vmatpush1.msra.mxu0 0.0
    %4869 = vmatprep.subr.mxu0 0.0
    %4870 = vmatpush1.msra.mxu0 0.0
    %4871 = vmatprep.subr.mxu0 0.0
    %4872 = vmatpush1.msra.mxu0 0.0
    %4873 = vmatprep.subr.mxu0 0.0
    %4874 = vmatpush1.msra.mxu0 0.0
    %4875 = vmatprep.mubr.f32.mxu0 0.0
    %4876 = vmatmul.mubr.f32.gmra.mrb[0].mxu0 %v4806
    %v4877 = vpop.f32.mrb[0].mxu0
    %v4878 = vadd.f32 0.0, %v4877
    %v4879 = vpop.f32.mrb[0].mxu0
    %4880 = vmatprep.mubr.f32.mxu0 0.0
    %4881 = vmatmul.mubr.f32.gmra.mrb[0].mxu0 %v4809
    %v4882 = vpop.f32.mrb[0].mxu0
    %v4883 = vadd.f32 0.0, %v4882
    %v4884 = vpop.f32.mrb[0].mxu0
    %4885 = vdwg.mxu0
    %4888 = vrot.lane.b32.xlu0 %v4478, 8
    %v4889 = vpop.permute.xlu0 %4888
    %4890 = vrot.lane.b32.xlu0 %v4483, 8
    %v4891 = vpop.permute.xlu0 %4890
    %4896 = vrot.lane.b32.xlu0 %v4678, 16
    %v4897 = vpop.permute.xlu0 %4896
    %4898 = vrot.lane.b32.xlu0 %v4683, 16
    %v4899 = vpop.permute.xlu0 %4898
    %4904 = vrot.lane.b32.xlu0 %v4878, 24
    %v4905 = vpop.permute.xlu0 %4904
    %4906 = vrot.lane.b32.xlu0 %v4883, 24
    %v4907 = vpop.permute.xlu0 %4906
    %v4910 = vsel %vm28, %v4278, %v4889
    %v4911 = vsel %vm28, %v4283, %v4891
    %v4912 = vsel %vm573, %v4910, %v4897
    %v4913 = vsel %vm573, %v4911, %v4899
    %v4914 = vsel %vm1311, %v4912, %v4905
    %v4915 = vsel %vm1311, %v4913, %v4907
    %v4916 = vlaneseq
    %v4917 = vshrl.u32 %v4916, 7
    %v4918 = vsub.s32 0, %v4917
    %v4919 = vrot.slane %v4089, %v4918
    %v4921 = vsel %vm153, %v4914, 0
    %v4924 = vsel %vm153, %v4915, 0
    %4926 = vmatprep.subr.mxu0 0.0
    %4927 = vmatpush1.msra.mxu0 %v4085
    %4928 = vmatprep.subr.mxu0 0.0
    %4929 = vmatpush1.msra.mxu0 %v4086
    %4930 = vmatprep.subr.mxu0 0.0
    %4931 = vmatpush1.msra.mxu0 %v4087
    %4932 = vmatprep.subr.mxu0 0.0
    %4933 = vmatpush1.msra.mxu0 %v4088
    %4934 = vmatprep.subr.mxu0 0.0
    %4935 = vmatpush1.msra.mxu0 0.0
    %4936 = vmatprep.subr.mxu0 0.0
    %4937 = vmatpush1.msra.mxu0 0.0
    %4938 = vmatprep.subr.mxu0 0.0
    %4939 = vmatpush1.msra.mxu0 0.0
    %4940 = vmatprep.subr.mxu0 0.0
    %4941 = vmatpush1.msra.mxu0 0.0
    %4942 = vmatprep.subr.mxu0 0.0
    %4943 = vmatpush1.msra.mxu0 0.0
    %4944 = vmatprep.subr.mxu0 0.0
    %4945 = vmatpush1.msra.mxu0 0.0
    %4946 = vmatprep.subr.mxu0 0.0
    %4947 = vmatpush1.msra.mxu0 0.0
    %4948 = vmatprep.subr.mxu0 0.0
    %4949 = vmatpush1.msra.mxu0 0.0
    %4950 = vmatprep.subr.mxu0 0.0
    %4951 = vmatpush1.msra.mxu0 0.0
    %4952 = vmatprep.subr.mxu0 0.0
    %4953 = vmatpush1.msra.mxu0 0.0
    %4954 = vmatprep.subr.mxu0 0.0
    %4955 = vmatpush1.msra.mxu0 0.0
    %4956 = vmatprep.subr.mxu0 0.0
    %4957 = vmatpush1.msra.mxu0 0.0
    %4958 = vmatprep.subr.mxu0 0.0
    %4959 = vmatpush1.msra.mxu0 0.0
    %4960 = vmatprep.subr.mxu0 0.0
    %4961 = vmatpush1.msra.mxu0 0.0
    %4962 = vmatprep.subr.mxu0 0.0
    %4963 = vmatpush1.msra.mxu0 0.0
    %4964 = vmatprep.subr.mxu0 0.0
    %4965 = vmatpush1.msra.mxu0 0.0
    %4966 = vmatprep.subr.mxu0 0.0
    %4967 = vmatpush1.msra.mxu0 0.0
    %4968 = vmatprep.subr.mxu0 0.0
    %4969 = vmatpush1.msra.mxu0 0.0
    %4970 = vmatprep.subr.mxu0 0.0
    %4971 = vmatpush1.msra.mxu0 0.0
    %4972 = vmatprep.subr.mxu0 0.0
    %4973 = vmatpush1.msra.mxu0 0.0
    %4974 = vmatprep.subr.mxu0 0.0
    %4975 = vmatpush1.msra.mxu0 0.0
    %4976 = vmatprep.subr.mxu0 0.0
    %4977 = vmatpush1.msra.mxu0 0.0
    %4978 = vmatprep.subr.mxu0 0.0
    %4979 = vmatpush1.msra.mxu0 0.0
    %4980 = vmatprep.subr.mxu0 0.0
    %4981 = vmatpush1.msra.mxu0 0.0
    %4982 = vmatprep.subr.mxu0 0.0
    %4983 = vmatpush1.msra.mxu0 0.0
    %4984 = vmatprep.subr.mxu0 0.0
    %4985 = vmatpush1.msra.mxu0 0.0
    %4986 = vmatprep.subr.mxu0 0.0
    %4987 = vmatpush1.msra.mxu0 0.0
    %4988 = vmatprep.subr.mxu0 0.0
    %4989 = vmatpush1.msra.mxu0 0.0
    %4990 = vmatprep.mubr.f32.mxu0 0.0
    %4991 = vmatmul.mubr.f32.gmra.mrb[0].mxu0 %v4921
    %v4992 = vpop.f32.mrb[0].mxu0
    %v4993 = vadd.f32 %v4919, %v4992
    %v4994 = vpop.f32.mrb[0].mxu0
    %4995 = vmatprep.mubr.f32.mxu0 0.0
    %4996 = vmatmul.mubr.f32.gmra.mrb[0].mxu0 %v4924
    %v4997 = vpop.f32.mrb[0].mxu0
    %v4998 = vadd.f32 %v4919, %v4997
    %v4999 = vpop.f32.mrb[0].mxu0
    %5000 = vdwg.mxu0
    %v5001 = vadd.f32 %v3909, %v4993
    %v5002 = vadd.f32 %v3910, %v4998
    %v5003 = vld [vmem:[%s4 + $0x229] sm:$0x1]
    %v5004 = vld [vmem:[%s4 + $0x22a] sm:$0x1]
    %v5005 = vsel %vm153, %v5001, 0.0
    %5006 = vadd.xlane.f32.xlu0 %v5005
    %v5007 = vpop.xlane.xlu0 %5006
    %v5008 = vsel %vm153, %v5002, 0.0
    %5009 = vadd.xlane.f32.xlu0 %v5008
    %v5010 = vpop.xlane.xlu0 %5009
    %v5011 = vmul.f32 %v5007, %v160
    %v5012 = vmul.f32 %v5010, %v160
    %v5013 = vsub.f32 %v5001, %v5011
    %v5014 = vsub.f32 %v5002, %v5012
    %v5015 = vmul.f32 %v5013, %v5013
    %v5016 = vmul.f32 %v5014, %v5014
    %v5017 = vsel %vm153, %v5015, 0.0
    %5018 = vadd.xlane.f32.xlu0 %v5017
    %v5019 = vpop.xlane.xlu0 %5018
    %v5020 = vsel %vm153, %v5016, 0.0
    %5021 = vadd.xlane.f32.xlu0 %v5020
    %v5022 = vpop.xlane.xlu0 %5021
    %v5023 = vmul.f32 %v5019, 0.032258064
    %v5024 = vmul.f32 %v5022, 0.032258064
    %v5025 = vrsqrt.pop %v5023
    %v5026 = vmul.f32 %v5023, %v5025
    %vm5027 = vcmp.eq.f32.partialorder %v5023, inf
    %v5028 = vsel %vm5027, %v5023, %v5026
    %vm5029 = vcmp.eq.f32.partialorder %v5023, 0.0
    %v5030 = vand.u32 %v5023, 2147483648
    %v5031 = vsel %vm5029, %v5030, %v5028
    %v5032 = vrsqrt.pop %v5024
    %v5033 = vmul.f32 %v5024, %v5032
    %vm5034 = vcmp.eq.f32.partialorder %v5024, inf
    %v5035 = vsel %vm5034, %v5024, %v5033
    %vm5036 = vcmp.eq.f32.partialorder %v5024, 0.0
    %v5037 = vand.u32 %v5024, 2147483648
    %v5038 = vsel %vm5036, %v5037, %v5035
    %v5039 = vadd.f32 %v5031, 1e-06
    %v5040 = vadd.f32 %v5038, 1e-06
    %v5041 = vrcp.pop %v5039
    %v5042 = vrcp.pop %v5040
    %v5043 = vmul.f32 %v5013, %v5041
    %v5044 = vmul.f32 %v5014, %v5042
    %v5045 = vlaneseq
    %v5046 = vshrl.u32 %v5045, 7
    %v5047 = vsub.s32 0, %v5046
    %v5048 = vrot.slane %v5003, %v5047
    %v5049 = vmul.f32 %v5048, %v5043
    %v5050 = vmul.f32 %v5048, %v5044
    %v5051 = vlaneseq
    %v5052 = vshrl.u32 %v5051, 7
    %v5053 = vsub.s32 0, %v5052
    %v5054 = vrot.slane %v5004, %v5053
    %v5055 = vadd.f32 %v5049, %v5054
    %v5056 = vadd.f32 %v5050, %v5054
    %v5057 = vld [vmem:[%s4 + $0x1e0] sm:$0xff]
    %v5058 = vld [vmem:[%s4 + $0x1e8] sm:$0xff]
    %v5059 = vld [vmem:[%s4 + $0x1f0] sm:$0xff]
    %v5060 = vld [vmem:[%s4 + $0x1f8] sm:$0xff]
    %v5061 = vld [vmem:[%s4 + $0x225] sm:$0x1]
    %v5062 = vlaneseq
    %v5063 = vshrl.u32 %v5062, 7
    %v5064 = vsub.s32 0, %v5063
    %v5065 = vrot.slane %v5061, %v5064
    %v5067 = vsel %vm153, %v5055, 0
    %v5070 = vsel %vm153, %v5056, 0
    %5072 = vmatprep.subr.mxu0 0.0
    %5073 = vmatpush1.msra.mxu0 %v5057
    %5074 = vmatprep.subr.mxu0 0.0
    %5075 = vmatpush1.msra.mxu0 %v5058
    %5076 = vmatprep.subr.mxu0 0.0
    %5077 = vmatpush1.msra.mxu0 %v5059
    %5078 = vmatprep.subr.mxu0 0.0
    %5079 = vmatpush1.msra.mxu0 %v5060
    %5080 = vmatprep.subr.mxu0 0.0
    %5081 = vmatpush1.msra.mxu0 0.0
    %5082 = vmatprep.subr.mxu0 0.0
    %5083 = vmatpush1.msra.mxu0 0.0
    %5084 = vmatprep.subr.mxu0 0.0
    %5085 = vmatpush1.msra.mxu0 0.0
    %5086 = vmatprep.subr.mxu0 0.0
    %5087 = vmatpush1.msra.mxu0 0.0
    %5088 = vmatprep.subr.mxu0 0.0
    %5089 = vmatpush1.msra.mxu0 0.0
    %5090 = vmatprep.subr.mxu0 0.0
    %5091 = vmatpush1.msra.mxu0 0.0
    %5092 = vmatprep.subr.mxu0 0.0
    %5093 = vmatpush1.msra.mxu0 0.0
    %5094 = vmatprep.subr.mxu0 0.0
    %5095 = vmatpush1.msra.mxu0 0.0
    %5096 = vmatprep.subr.mxu0 0.0
    %5097 = vmatpush1.msra.mxu0 0.0
    %5098 = vmatprep.subr.mxu0 0.0
    %5099 = vmatpush1.msra.mxu0 0.0
    %5100 = vmatprep.subr.mxu0 0.0
    %5101 = vmatpush1.msra.mxu0 0.0
    %5102 = vmatprep.subr.mxu0 0.0
    %5103 = vmatpush1.msra.mxu0 0.0
    %5104 = vmatprep.subr.mxu0 0.0
    %5105 = vmatpush1.msra.mxu0 0.0
    %5106 = vmatprep.subr.mxu0 0.0
    %5107 = vmatpush1.msra.mxu0 0.0
    %5108 = vmatprep.subr.mxu0 0.0
    %5109 = vmatpush1.msra.mxu0 0.0
    %5110 = vmatprep.subr.mxu0 0.0
    %5111 = vmatpush1.msra.mxu0 0.0
    %5112 = vmatprep.subr.mxu0 0.0
    %5113 = vmatpush1.msra.mxu0 0.0
    %5114 = vmatprep.subr.mxu0 0.0
    %5115 = vmatpush1.msra.mxu0 0.0
    %5116 = vmatprep.subr.mxu0 0.0
    %5117 = vmatpush1.msra.mxu0 0.0
    %5118 = vmatprep.subr.mxu0 0.0
    %5119 = vmatpush1.msra.mxu0 0.0
    %5120 = vmatprep.subr.mxu0 0.0
    %5121 = vmatpush1.msra.mxu0 0.0
    %5122 = vmatprep.subr.mxu0 0.0
    %5123 = vmatpush1.msra.mxu0 0.0
    %5124 = vmatprep.subr.mxu0 0.0
    %5125 = vmatpush1.msra.mxu0 0.0
    %5126 = vmatprep.subr.mxu0 0.0
    %5127 = vmatpush1.msra.mxu0 0.0
    %5128 = vmatprep.subr.mxu0 0.0
    %5129 = vmatpush1.msra.mxu0 0.0
    %5130 = vmatprep.subr.mxu0 0.0
    %5131 = vmatpush1.msra.mxu0 0.0
    %5132 = vmatprep.subr.mxu0 0.0
    %5133 = vmatpush1.msra.mxu0 0.0
    %5134 = vmatprep.subr.mxu0 0.0
    %5135 = vmatpush1.msra.mxu0 0.0
    %5136 = vmatprep.mubr.f32.mxu0 0.0
    %5137 = vmatmul.mubr.f32.gmra.mrb[0].mxu0 %v5067
    %v5138 = vpop.f32.mrb[0].mxu0
    %v5139 = vadd.f32 %v5065, %v5138
    %v5140 = vpop.f32.mrb[0].mxu0
    %5141 = vmatprep.mubr.f32.mxu0 0.0
    %5142 = vmatmul.mubr.f32.gmra.mrb[0].mxu0 %v5070
    %v5143 = vpop.f32.mrb[0].mxu0
    %v5144 = vadd.f32 %v5065, %v5143
    %v5145 = vpop.f32.mrb[0].mxu0
    %5146 = vdwg.mxu0
    %v5147 = vmax.f32 %v5139, 0.0
    %v5148 = vmax.f32 %v5144, 0.0
    %v5149 = vld [vmem:[%s4 + $0x200] sm:$0xff]
    %v5150 = vld [vmem:[%s4 + $0x208] sm:$0xff]
    %v5151 = vld [vmem:[%s4 + $0x210] sm:$0xff]
    %v5152 = vld [vmem:[%s4 + $0x218] sm:$0xff]
    %v5154 = vsel %vm153, %v5147, 0
    %v5157 = vsel %vm153, %v5148, 0
    %5159 = vmatprep.subr.mxu0 0.0
    %5160 = vmatpush1.msra.mxu0 %v5149
    %5161 = vmatprep.subr.mxu0 0.0
    %5162 = vmatpush1.msra.mxu0 %v5150
    %5163 = vmatprep.subr.mxu0 0.0
    %5164 = vmatpush1.msra.mxu0 %v5151
    %5165 = vmatprep.subr.mxu0 0.0
    %5166 = vmatpush1.msra.mxu0 %v5152
    %5167 = vmatprep.subr.mxu0 0.0
    %5168 = vmatpush1.msra.mxu0 0.0
    %5169 = vmatprep.subr.mxu0 0.0
    %5170 = vmatpush1.msra.mxu0 0.0
    %5171 = vmatprep.subr.mxu0 0.0
    %5172 = vmatpush1.msra.mxu0 0.0
    %5173 = vmatprep.subr.mxu0 0.0
    %5174 = vmatpush1.msra.mxu0 0.0
    %5175 = vmatprep.subr.mxu0 0.0
    %5176 = vmatpush1.msra.mxu0 0.0
    %5177 = vmatprep.subr.mxu0 0.0
    %5178 = vmatpush1.msra.mxu0 0.0
    %5179 = vmatprep.subr.mxu0 0.0
    %5180 = vmatpush1.msra.mxu0 0.0
    %5181 = vmatprep.subr.mxu0 0.0
    %5182 = vmatpush1.msra.mxu0 0.0
    %5183 = vmatprep.subr.mxu0 0.0
    %5184 = vmatpush1.msra.mxu0 0.0
    %5185 = vmatprep.subr.mxu0 0.0
    %5186 = vmatpush1.msra.mxu0 0.0
    %5187 = vmatprep.subr.mxu0 0.0
    %5188 = vmatpush1.msra.mxu0 0.0
    %5189 = vmatprep.subr.mxu0 0.0
    %5190 = vmatpush1.msra.mxu0 0.0
    %5191 = vmatprep.subr.mxu0 0.0
    %5192 = vmatpush1.msra.mxu0 0.0
    %5193 = vmatprep.subr.mxu0 0.0
    %5194 = vmatpush1.msra.mxu0 0.0
    %5195 = vmatprep.subr.mxu0 0.0
    %5196 = vmatpush1.msra.mxu0 0.0
    %5197 = vmatprep.subr.mxu0 0.0
    %5198 = vmatpush1.msra.mxu0 0.0
    %5199 = vmatprep.subr.mxu0 0.0
    %5200 = vmatpush1.msra.mxu0 0.0
    %5201 = vmatprep.subr.mxu0 0.0
    %5202 = vmatpush1.msra.mxu0 0.0
    %5203 = vmatprep.subr.mxu0 0.0
    %5204 = vmatpush1.msra.mxu0 0.0
    %5205 = vmatprep.subr.mxu0 0.0
    %5206 = vmatpush1.msra.mxu0 0.0
    %5207 = vmatprep.subr.mxu0 0.0
    %5208 = vmatpush1.msra.mxu0 0.0
    %5209 = vmatprep.subr.mxu0 0.0
    %5210 = vmatpush1.msra.mxu0 0.0
    %5211 = vmatprep.subr.mxu0 0.0
    %5212 = vmatpush1.msra.mxu0 0.0
    %5213 = vmatprep.subr.mxu0 0.0
    %5214 = vmatpush1.msra.mxu0 0.0
    %5215 = vmatprep.subr.mxu0 0.0
    %5216 = vmatpush1.msra.mxu0 0.0
    %5217 = vmatprep.subr.mxu0 0.0
    %5218 = vmatpush1.msra.mxu0 0.0
    %5219 = vmatprep.subr.mxu0 0.0
    %5220 = vmatpush1.msra.mxu0 0.0
    %5221 = vmatprep.subr.mxu0 0.0
    %5222 = vmatpush1.msra.mxu0 0.0
    %5223 = vmatprep.mubr.f32.mxu0 0.0
    %5224 = vmatmul.mubr.f32.gmra.mrb[0].mxu0 %v5154
    %v5225 = vpop.f32.mrb[0].mxu0
    %v5226 = vadd.f32 0.0, %v5225
    %v5227 = vpop.f32.mrb[0].mxu0
    %5228 = vmatprep.mubr.f32.mxu0 0.0
    %5229 = vmatmul.mubr.f32.gmra.mrb[0].mxu0 %v5157
    %v5230 = vpop.f32.mrb[0].mxu0
    %v5231 = vadd.f32 0.0, %v5230
    %v5232 = vpop.f32.mrb[0].mxu0
    %5233 = vdwg.mxu0
    %v5234 = vadd.f32 %v5055, %v5226
    %v5235 = vadd.f32 %v5056, %v5231
    %v5236 = vld [vmem:[%s4 + $0x226] sm:$0x1]
    %v5237 = vlaneseq
    %v5238 = vshrl.u32 %v5237, 7
    %v5239 = vsub.s32 0, %v5238
    %v5240 = vrot.slane %v5236, %v5239
    %v5241 = vadd.f32 %v5234, %v5240
    %v5242 = vadd.f32 %v5235, %v5240
    %v5243 = vld [vmem:[%s4 + $0x22b] sm:$0x1]
    %v5244 = vld [vmem:[%s4 + $0x22c] sm:$0x1]
    %v5245 = vsel %vm153, %v5241, 0.0
    %5246 = vadd.xlane.f32.xlu0 %v5245
    %v5247 = vpop.xlane.xlu0 %5246
    %v5248 = vsel %vm153, %v5242, 0.0
    %5249 = vadd.xlane.f32.xlu0 %v5248
    %v5250 = vpop.xlane.xlu0 %5249
    %v5251 = vmul.f32 %v5247, %v160
    %v5252 = vmul.f32 %v5250, %v160
    %v5253 = vsub.f32 %v5241, %v5251
    %v5254 = vsub.f32 %v5242, %v5252
    %v5255 = vmul.f32 %v5253, %v5253
    %v5256 = vmul.f32 %v5254, %v5254
    %v5257 = vsel %vm153, %v5255, 0.0
    %5258 = vadd.xlane.f32.xlu0 %v5257
    %v5259 = vpop.xlane.xlu0 %5258
    %v5260 = vsel %vm153, %v5256, 0.0
    %5261 = vadd.xlane.f32.xlu0 %v5260
    %v5262 = vpop.xlane.xlu0 %5261
    %v5263 = vmul.f32 %v5259, 0.032258064
    %v5264 = vmul.f32 %v5262, 0.032258064
    %v5265 = vrsqrt.pop %v5263
    %v5266 = vmul.f32 %v5263, %v5265
    %vm5267 = vcmp.eq.f32.partialorder %v5263, inf
    %v5268 = vsel %vm5267, %v5263, %v5266
    %vm5269 = vcmp.eq.f32.partialorder %v5263, 0.0
    %v5270 = vand.u32 %v5263, 2147483648
    %v5271 = vsel %vm5269, %v5270, %v5268
    %v5272 = vrsqrt.pop %v5264
    %v5273 = vmul.f32 %v5264, %v5272
    %vm5274 = vcmp.eq.f32.partialorder %v5264, inf
    %v5275 = vsel %vm5274, %v5264, %v5273
    %vm5276 = vcmp.eq.f32.partialorder %v5264, 0.0
    %v5277 = vand.u32 %v5264, 2147483648
    %v5278 = vsel %vm5276, %v5277, %v5275
    %v5279 = vadd.f32 %v5271, 1e-06
    %v5280 = vadd.f32 %v5278, 1e-06
    %v5281 = vrcp.pop %v5279
    %v5282 = vrcp.pop %v5280
    %v5283 = vmul.f32 %v5253, %v5281
    %v5284 = vmul.f32 %v5254, %v5282
    %v5285 = vlaneseq
    %v5286 = vshrl.u32 %v5285, 7
    %v5287 = vsub.s32 0, %v5286
    %v5288 = vrot.slane %v5243, %v5287
    %v5289 = vmul.f32 %v5288, %v5283
    %v5290 = vmul.f32 %v5288, %v5284
    %v5291 = vlaneseq
    %v5292 = vshrl.u32 %v5291, 7
    %v5293 = vsub.s32 0, %v5292
    %v5294 = vrot.slane %v5244, %v5293
    %v5295 = vadd.f32 %v5289, %v5294
    %v5296 = vadd.f32 %v5290, %v5294
    %v5297 = vld [vmem:[%s4 + $0x4d] sm:$0x1]
    %v5298 = vld [vmem:[%s4 + $0x4e] sm:$0x1]
    %v5299 = vsel %vm153, %v5295, 0.0
    %5300 = vadd.xlane.f32.xlu0 %v5299
    %v5301 = vpop.xlane.xlu0 %5300
    %v5302 = vsel %vm153, %v5296, 0.0
    %5303 = vadd.xlane.f32.xlu0 %v5302
    %v5304 = vpop.xlane.xlu0 %5303
    %v5305 = vmul.f32 %v5301, %v160
    %v5306 = vmul.f32 %v5304, %v160
    %v5307 = vsub.f32 %v5295, %v5305
    %v5308 = vsub.f32 %v5296, %v5306
    %v5309 = vmul.f32 %v5307, %v5307
    %v5310 = vmul.f32 %v5308, %v5308
    %v5311 = vsel %vm153, %v5309, 0.0
    %5312 = vadd.xlane.f32.xlu0 %v5311
    %v5313 = vpop.xlane.xlu0 %5312
    %v5314 = vsel %vm153, %v5310, 0.0
    %5315 = vadd.xlane.f32.xlu0 %v5314
    %v5316 = vpop.xlane.xlu0 %5315
    %v5317 = vmul.f32 %v5313, 0.032258064
    %v5318 = vmul.f32 %v5316, 0.032258064
    %v5319 = vrsqrt.pop %v5317
    %v5320 = vmul.f32 %v5317, %v5319
    %vm5321 = vcmp.eq.f32.partialorder %v5317, inf
    %v5322 = vsel %vm5321, %v5317, %v5320
    %vm5323 = vcmp.eq.f32.partialorder %v5317, 0.0
    %v5324 = vand.u32 %v5317, 2147483648
    %v5325 = vsel %vm5323, %v5324, %v5322
    %v5326 = vrsqrt.pop %v5318
    %v5327 = vmul.f32 %v5318, %v5326
    %vm5328 = vcmp.eq.f32.partialorder %v5318, inf
    %v5329 = vsel %vm5328, %v5318, %v5327
    %vm5330 = vcmp.eq.f32.partialorder %v5318, 0.0
    %v5331 = vand.u32 %v5318, 2147483648
    %v5332 = vsel %vm5330, %v5331, %v5329
    %v5333 = vadd.f32 %v5325, 1e-06
    %v5334 = vadd.f32 %v5332, 1e-06
    %v5335 = vrcp.pop %v5333
    %v5336 = vrcp.pop %v5334
    %v5337 = vmul.f32 %v5307, %v5335
    %v5338 = vmul.f32 %v5308, %v5336
    %v5339 = vlaneseq
    %v5340 = vshrl.u32 %v5339, 7
    %v5341 = vsub.s32 0, %v5340
    %v5342 = vrot.slane %v5297, %v5341
    %v5343 = vmul.f32 %v5342, %v5337
    %v5344 = vmul.f32 %v5342, %v5338
    %v5345 = vlaneseq
    %v5346 = vshrl.u32 %v5345, 7
    %v5347 = vsub.s32 0, %v5346
    %v5348 = vrot.slane %v5298, %v5347
    %v5349 = vadd.f32 %v5343, %v5348
    %v5350 = vadd.f32 %v5344, %v5348
    %5351 = vst.msk [vmem:[#allocation2] sm:$0xff] %vm153, %v5349
    %5352 = vst.msk [vmem:[#allocation2 + $0x8] sm:$0xff] %vm153, %v5350
    // Predicated region
    $region22: #{transformer_decoder_forward.1} parent=1 // pred_check
      _
    $region23: #{transformer_decoder_forward.1} parent=1 // pred_check_branch
      %5354 = sbr.rel (0) target = $region25
    $region24: #{transformer_decoder_forward.1} parent=1 // pred_region
      %s5356 = ssub.s32 256, 256
      %5357 = vsyncadd [#allocation3], %s5356
      %s5358 = sshll.u32 [#allocation2], 4
      %s5359 = int_to_ptr.vmem [resolvable:$true] %s5358
      %5364 = dma.vmem_to_hbm [thread:$0]  %s5359, 256, %s5, [#allocation3], 128, 128, 8
    $region25: #{transformer_decoder_forward.1} parent=1 // pred_fallthru
      _
    // Predicated region
    $region26: #{transformer_decoder_forward.1} parent=1 // pred_check
      _
    $region27: #{transformer_decoder_forward.1} parent=1 // pred_check_branch
      %5366 = sbr.rel (0) target = $region29
    $region28: #{transformer_decoder_forward.1} parent=1 // pred_region
      %5367 = dma.done [#allocation3], 256
    $region29: #{transformer_decoder_forward.1} parent=1 // pred_fallthru
      _
    %5368 = vsyncpa [#allocation3], 1

</llo_original>
